<compile_context>
chip_gen: v6e
topology: v6e:2x2x1
jax: 0.10.0
libtpu: 0.0.40
codegen_flags: <defaults>
</compile_context>

<pallas_src>
import jax
import jax.numpy as jnp
from jax import lax
from jax.experimental import pallas as pl
from jax.experimental.pallas import tpu as pltpu

LEAKY_SLOPE = 0.2
KS = 4  # every conv is kernel=4, stride=2, pad=1

# tap offset k (0..3) -> (parity r, half-index shift d):
#   padded coord 2*o + k  ==  raw coord 2*o + k - 1  ==  2*(o + d) + r
_TAP = {0: (1, -1), 1: (0, 0), 2: (1, 0), 3: (0, +1)}


def _leaky(y):
    return jnp.where(y >= 0, y, LEAKY_SLOPE * y)


def _shift1(x, axis, d):
    """Shift x by d in {-1,0,+1} along a leading (major) axis, zero-filling the border."""
    if d == 0:
        return x
    n = x.shape[axis]
    zshape = list(x.shape)
    zshape[axis] = 1
    z = jnp.zeros(zshape, x.dtype)
    if d == -1:    # out[o] = x[o-1]
        return jnp.concatenate([z, lax.slice_in_dim(x, 0, n - 1, axis=axis)], axis=axis)
    else:          # out[o] = x[o+1]
        return jnp.concatenate([lax.slice_in_dim(x, 1, n, axis=axis), z], axis=axis)


def _im2col_taps(act):
    """k=4 / stride=2 / pad=1 im2col of act (Hi, Wi, TB, Cin) -> (Ho*Wo*TB, 16*Cin).

    Spatial dims are MAJOR dims (batch on sublanes, channels on lanes), so the parity
    decomposition is a free major-dim reshape + static index; each tap is a contiguous
    +-1 shift; the 16 taps are concatenated along the lane (contraction) axis.
    """
    hi, wi, tb, cin = act.shape
    ho, wo = hi // 2, wi // 2
    m = ho * wo * tb
    ah = act.reshape(ho, 2, wi, tb, cin)            # split H by parity (major dims only)
    a_h = (ah[:, 0], ah[:, 1])                      # each (ho, wi, tb, cin)
    taps = []
    for kh in range(KS):
        rh, dh = _TAP[kh]
        rowslab = _shift1(a_h[rh], 0, dh)           # rows 2*oh + kh - 1 (zero outside)
        aw = rowslab.reshape(ho, wo, 2, tb, cin)    # split W by parity (major dims only)
        a_w = (aw[:, :, 0], aw[:, :, 1])
        for kw in range(KS):
            rw, dw = _TAP[kw]
            t = _shift1(a_w[rw], 1, dw)             # cols 2*ow + kw - 1 (zero outside)
            taps.append(t.reshape(m, cin))
    return jnp.concatenate(taps, axis=-1)           # (M, 16*cin), column order (kh,kw,cin)


def _build_kernel(cfg):
    Ho1, Wo1, C1 = cfg["conv1_out"]
    TB = cfg["tb"]

    def kernel(p1_ref, cond_ref,
               w1_ref, b1_ref, w2_ref, b2_ref, w3_ref, b3_ref, w4_ref, b4_ref,
               wh_ref, bh_ref, out_ref):
        # ---- conv1 (Cin=1): wrapper-built f32 patches, single K=16 matmul ----
        p1 = p1_ref[...].reshape(Ho1 * Wo1 * TB, KS * KS)
        y = jnp.dot(p1, w1_ref[...], preferred_element_type=jnp.float32)
        y = _leaky(y + b1_ref[...])
        act = y.reshape(Ho1, Wo1, TB, C1).astype(jnp.bfloat16)   # cast once

        # ---- conv2..conv4: ONE (M, 16*cin) x (16*cin, cout) bf16 matmul each ----
        w_refs = (w2_ref, w3_ref, w4_ref)
        b_refs = (b2_ref, b3_ref, b4_ref)
        hi, wi = Ho1, Wo1
        y4 = None
        for li in range(3):
            ho, wo = hi // 2, wi // 2
            cout = w_refs[li].shape[-1]
            patch = _im2col_taps(act)                            # bf16, K = 16*cin
            y = jnp.dot(patch, w_refs[li][...], preferred_element_type=jnp.float32)
            y = _leaky(y + b_refs[li][...]).reshape(ho, wo, TB, cout)
            if li < 2:
                act = y.astype(jnp.bfloat16)
            else:
                y4 = y                                           # keep f32 for pooling
            hi, wi = ho, wo

        # ---- adaptive (2,2) avg-pool + fused [feat | cond] @ W_head matmul ----
        H4, W4, C4 = y4.shape[0], y4.shape[1], y4.shape[3]
        h2, w2 = H4 // 2, W4 // 2
        inv = 1.0 / (h2 * w2)
        feat = []
        for i in range(2):
            for j in range(2):
                blk = y4[i * h2:(i + 1) * h2, j * w2:(j + 1) * w2]
                feat.append((blk.sum(axis=(0, 1)) * inv).astype(jnp.bfloat16))  # (TB, C4)
        feat.append(cond_ref[...].astype(jnp.bfloat16))
        feat = jnp.concatenate(feat, axis=-1)                    # (TB, 4*C4 + NC)
        out = jnp.dot(feat, wh_ref[...], preferred_element_type=jnp.float32)
        out_ref[...] = out + bh_ref[...]

    return kernel


# ---------------------------------------------------------------------------
# One-time weight preprocessing (hoisted out of the per-call forward)
# ---------------------------------------------------------------------------
def prepare_params(params):
    convs = params["convs"]
    w1, b1 = convs[0]
    C1 = w1.shape[0]
    prep = {
        # (O,I,KH,KW) -> (kh,kw,cin,cout) -> (16*cin, cout); conv1 kept in f32
        "w1": jnp.transpose(w1, (2, 3, 1, 0)).reshape(KS * KS * w1.shape[1], C1).astype(jnp.float32),
        "b1": b1.reshape(1, C1).astype(jnp.float32),
        "emb": params["emb"].astype(jnp.float32),
    }
    for idx, (w, b) in enumerate(convs[1:], start=2):
        cout, cin = w.shape[0], w.shape[1]
        prep[f"w{idx}"] = (jnp.transpose(w, (2, 3, 1, 0))
                           .reshape(KS * KS * cin, cout).astype(jnp.bfloat16))
        prep[f"b{idx}"] = b.reshape(1, cout).astype(jnp.float32)

    C4 = convs[-1][0].shape[0]
    L = params["b_mu"].shape[0]
    wm = jnp.concatenate([params["w_mu"], params["w_lv"]], axis=0)         # (2L, 4*C4+NC)
    # PyTorch flatten order of the pooled map is (c, i, j); kernel concatenates (i, j, c).
    w_feat = (wm[:, :4 * C4].reshape(2 * L, C4, 2, 2)
              .transpose(2, 3, 1, 0).reshape(4 * C4, 2 * L))
    w_cond = wm[:, 4 * C4:].T
    prep["w_head"] = jnp.concatenate([w_feat, w_cond], axis=0).astype(jnp.bfloat16)
    prep["b_head"] = (jnp.concatenate([params["b_mu"], params["b_lv"]])
                      .reshape(1, 2 * L).astype(jnp.float32))
    return prep


def _choose_tb(B, batch_block):
    bb = max(8, (batch_block // 8) * 8)
    tb = B if B <= bb else bb
    # v7x has 2 TensorCores on the single "parallel" axis: prefer >= 2 grid steps
    # when splitting still keeps the batch tile 8-sublane aligned.
    if -(-B // tb) == 1 and tb % 16 == 0:
        tb //= 2
    return tb


def conv_encoder_forward(prep, x_nchw, labels, *, batch_block=32):
    x = x_nchw.astype(jnp.float32)
    B, Cin, H, W = x.shape
    assert Cin == 1 and H % 32 == 0 and W % 32 == 0, "spatial dims must be multiples of 32"

    C1 = prep["w1"].shape[1]
    NC = prep["emb"].shape[1]
    L2 = prep["w_head"].shape[1]
    Ho1, Wo1 = H // 2, W // 2

    TB = _choose_tb(B, batch_block)
    Bp = -(-B // TB) * TB                      # pad ragged batches instead of TB=B fallback
    grid = (Bp // TB,)

    # ---- glue: conv1 im2col (Cin=1, K=16) in the wrapper, rows ordered (oh, ow, b) ----
    xp = jnp.pad(x[:, 0], ((0, 0), (1, 1), (1, 1)))
    cols = [xp[:, kh:kh + 2 * Ho1:2, kw:kw + 2 * Wo1:2]
            for kh in range(KS) for kw in range(KS)]
    patches1 = jnp.transpose(jnp.stack(cols, axis=-1), (1, 2, 0, 3))       # (Ho1, Wo1, B, 16)

    # ---- glue: label-embedding gather (plain XLA gather) ----
    cond = prep["emb"][labels]                                             # (B, NC)
    if Bp != B:
        patches1 = jnp.pad(patches1, ((0, 0), (0, 0), (0, Bp - B), (0, 0)))
        cond = jnp.pad(cond, ((0, Bp - B), (0, 0)))

    kernel = _build_kernel(dict(conv1_out=(Ho1, Wo1, C1), tb=TB))

    def _resident(a):
        n = a.ndim
        return pl.BlockSpec(a.shape, lambda i, _n=n: (0,) * _n)

    in_specs = [
        pl.BlockSpec((Ho1, Wo1, TB, KS * KS), lambda i: (0, 0, i, 0)),     # conv1 patches
        pl.BlockSpec((TB, NC), lambda i: (i, 0)),                          # label embedding
        _resident(prep["w1"]), _resident(prep["b1"]),
        _resident(prep["w2"]), _resident(prep["b2"]),
        _resident(prep["w3"]), _resident(prep["b3"]),
        _resident(prep["w4"]), _resident(prep["b4"]),
        _resident(prep["w_head"]), _resident(prep["b_head"]),
    ]

    out = pl.pallas_call(
        kernel,
        out_shape=jax.ShapeDtypeStruct((Bp, L2), jnp.float32),
        grid=grid,
        in_specs=in_specs,
        out_specs=pl.BlockSpec((TB, L2), lambda i: (i, 0)),
        compiler_params=pltpu.CompilerParams(
            dimension_semantics=("parallel",),
            # ~20 MiB needed at TB=32 (conv1 patch blocks + resident weights + in-flight
            # activations); 48 MiB gives headroom on v5e/v6e and stays under v7x's 64 MiB.
            vmem_limit_bytes=48 * 1024 * 1024),
    )(patches1, cond,
      prep["w1"], prep["b1"], prep["w2"], prep["b2"],
      prep["w3"], prep["b3"], prep["w4"], prep["b4"],
      prep["w_head"], prep["b_head"])

    L = L2 // 2
    out = out[:B]
    return out[:, :L], out[:, L:]


# ---------------------------------------------------------------------------
# Pure-JAX reference (mirrors the PyTorch module exactly) for self-check
# ---------------------------------------------------------------------------
def reference_forward(params, x_nchw, labels):
    h = x_nchw.astype(jnp.float32)
    for (w, b) in params["convs"]:
        h = lax.conv_general_dilated(h, w, window_strides=(2, 2),
                                     padding=((1, 1), (1, 1)),
                                     dimension_numbers=("NCHW", "OIHW", "NCHW"),
                                     precision=lax.Precision.HIGHEST)
        h = h + b[None, :, None, None]
        h = jnp.where(h >= 0, h, LEAKY_SLOPE * h)
    B, C, H4, W4 = h.shape
    h = h.reshape(B, C, 2, H4 // 2, 2, W4 // 2).mean(axis=(3, 5))
    feat = h.reshape(B, -1)
    c = params["emb"][labels]
    xcat = jnp.concatenate([feat, c], axis=1)
    mu = jnp.dot(xcat, params["w_mu"].T, precision=lax.Precision.HIGHEST) + params["b_mu"]
    lv = jnp.dot(xcat, params["w_lv"].T, precision=lax.Precision.HIGHEST) + params["b_lv"]
    return mu, lv


# ---------------------------------------------------------------------------
# Deterministic synthetic parameters (shapes follow ConvEncoder.__init__)
# ---------------------------------------------------------------------------
def init_params(key, latent_dim, num_classes):
    ks = jax.random.split(key, 16)
    conv_shapes = [(32, 1, 4, 4), (64, 32, 4, 4), (128, 64, 4, 4), (256, 128, 4, 4)]
    convs = []
    for i, s in enumerate(conv_shapes):
        fan_in = s[1] * s[2] * s[3]
        w = jax.random.normal(ks[i], s, jnp.float32) / jnp.sqrt(fan_in)
        b = 0.05 * jax.random.normal(ks[4 + i], (s[0],), jnp.float32)
        convs.append((w, b))
    emb = jax.random.normal(ks[8], (num_classes, num_classes), jnp.float32)
    feat_dim = 256 * 2 * 2 + num_classes
    w_mu = jax.random.normal(ks[9], (latent_dim, feat_dim), jnp.float32) / jnp.sqrt(feat_dim)
    b_mu = 0.05 * jax.random.normal(ks[10], (latent_dim,), jnp.float32)
    w_lv = jax.random.normal(ks[11], (latent_dim, feat_dim), jnp.float32) / jnp.sqrt(feat_dim)
    b_lv = 0.05 * jax.random.normal(ks[12], (latent_dim,), jnp.float32)
    return {"convs": convs, "emb": emb,
            "w_mu": w_mu, "b_mu": b_mu, "w_lv": w_lv, "b_lv": b_lv}


if __name__ == "__main__":
    latent_dim, num_classes = 16, 10
    B, H, W = 2, 32, 32

    key = jax.random.PRNGKey(0)
    k_param, k_x, k_lbl = jax.random.split(key, 3)
    params = init_params(k_param, latent_dim, num_classes)
    x = jax.random.normal(k_x, (B, 1, H, W), jnp.float32)        # NCHW, like PyTorch
    labels = jax.random.randint(k_lbl, (B,), 0, num_classes)

    prep = prepare_params(params)                                # one-time weight prep
    fwd = jax.jit(conv_encoder_forward)
    mu, logvar = fwd(prep, x, labels)
    jax.block_until_ready((mu, logvar))

    mu_ref, lv_ref = reference_forward(params, x, labels)
    assert mu.shape == (B, latent_dim) and logvar.shape == (B, latent_dim)
    # conv1 + accumulation in f32; conv2..4 and head use bf16 MXU operands.
    assert jnp.allclose(mu, mu_ref, rtol=2.5e-2, atol=2.5e-2), \
        float(jnp.max(jnp.abs(mu - mu_ref)))
    assert jnp.allclose(logvar, lv_ref, rtol=2.5e-2, atol=2.5e-2), \
        float(jnp.max(jnp.abs(logvar - lv_ref)))

    print("KERNEL_OK")
</pallas_src>

<mosaic_0001>
module attributes {stable_mosaic.version = 11 : i64} {
  func.func @kernel(%arg0: i32, %arg1: memref<16x16x2x16xf32, #tpu.memory_space<vmem>>, %arg2: memref<2x10xf32, #tpu.memory_space<vmem>>, %arg3: memref<16x32xf32, #tpu.memory_space<vmem>>, %arg4: memref<1x32xf32, #tpu.memory_space<vmem>>, %arg5: memref<512x64xbf16, #tpu.memory_space<vmem>>, %arg6: memref<1x64xf32, #tpu.memory_space<vmem>>, %arg7: memref<1024x128xbf16, #tpu.memory_space<vmem>>, %arg8: memref<1x128xf32, #tpu.memory_space<vmem>>, %arg9: memref<2048x256xbf16, #tpu.memory_space<vmem>>, %arg10: memref<1x256xf32, #tpu.memory_space<vmem>>, %arg11: memref<1034x32xbf16, #tpu.memory_space<vmem>>, %arg12: memref<1x32xf32, #tpu.memory_space<vmem>>, %arg13: memref<2x32xf32, #tpu.memory_space<vmem>>) attributes {dimension_semantics = [#tpu.dimension_semantics<parallel>], iteration_bounds = array<i64: 1>, scalar_prefetch = 0 : i64, scratch_operands = 0 : i64, tpu.core_type = #tpu.core_type<tc>, window_params = [{transform_indices = @transform_0, window_bounds = array<i64: 16, 16, 2, 16>}, {transform_indices = @transform_1, window_bounds = array<i64: 2, 10>}, {pipeline_mode = #tpu.pipeline_mode<synchronous>, transform_indices = @transform_2, window_bounds = array<i64: 16, 32>}, {pipeline_mode = #tpu.pipeline_mode<synchronous>, transform_indices = @transform_3, window_bounds = array<i64: 1, 32>}, {pipeline_mode = #tpu.pipeline_mode<synchronous>, transform_indices = @transform_4, window_bounds = array<i64: 512, 64>}, {pipeline_mode = #tpu.pipeline_mode<synchronous>, transform_indices = @transform_5, window_bounds = array<i64: 1, 64>}, {pipeline_mode = #tpu.pipeline_mode<synchronous>, transform_indices = @transform_6, window_bounds = array<i64: 1024, 128>}, {pipeline_mode = #tpu.pipeline_mode<synchronous>, transform_indices = @transform_7, window_bounds = array<i64: 1, 128>}, {pipeline_mode = #tpu.pipeline_mode<synchronous>, transform_indices = @transform_8, window_bounds = array<i64: 2048, 256>}, {pipeline_mode = #tpu.pipeline_mode<synchronous>, transform_indices = @transform_9, window_bounds = array<i64: 1, 256>}, {pipeline_mode = #tpu.pipeline_mode<synchronous>, transform_indices = @transform_10, window_bounds = array<i64: 1034, 32>}, {pipeline_mode = #tpu.pipeline_mode<synchronous>, transform_indices = @transform_11, window_bounds = array<i64: 1, 32>}, {transform_indices = @transform_12, window_bounds = array<i64: 2, 32>}]} {
    %c0 = arith.constant 0 : index
    %c0_0 = arith.constant 0 : index
    %c0_1 = arith.constant 0 : index
    %c0_2 = arith.constant 0 : index
    %0 = vector.load %arg1[%c0, %c0_0, %c0_1, %c0_2] : memref<16x16x2x16xf32, #tpu.memory_space<vmem>>, vector<16x16x2x16xf32>
    %1 = vector.shape_cast %0 : vector<16x16x2x16xf32> to vector<512x16xf32>
    %c0_3 = arith.constant 0 : index
    %c0_4 = arith.constant 0 : index
    %2 = vector.load %arg3[%c0_3, %c0_4] : memref<16x32xf32, #tpu.memory_space<vmem>>, vector<16x32xf32>
    %cst = arith.constant dense<0.000000e+00> : vector<512x32xf32>
    %3 = tpu.matmul %1, %2, %cst {dimension_numbers = #tpu.dot_dimension_numbers<[1], [0], [0], [1], [0, 0, 1, 1], [], []>} : vector<512x16xf32>, vector<16x32xf32>, vector<512x32xf32> -> vector<512x32xf32>
    %c0_5 = arith.constant 0 : index
    %c0_6 = arith.constant 0 : index
    %4 = vector.load %arg4[%c0_5, %c0_6] : memref<1x32xf32, #tpu.memory_space<vmem>>, vector<1x32xf32>
    %5 = vector.broadcast %4 : vector<1x32xf32> to vector<512x32xf32>
    %6 = arith.addf %3, %5 : vector<512x32xf32>
    %cst_7 = arith.constant 0.000000e+00 : f32
    %7 = vector.broadcast %cst_7 : f32 to vector<512x32xf32>
    %8 = arith.cmpf oge, %6, %7 : vector<512x32xf32>
    %cst_8 = arith.constant 2.000000e-01 : f32
    %9 = vector.broadcast %cst_8 : f32 to vector<512x32xf32>
    %10 = arith.mulf %9, %6 : vector<512x32xf32>
    %11 = arith.select %8, %6, %10 : vector<512x32xi1>, vector<512x32xf32>
    %12 = vector.shape_cast %11 : vector<512x32xf32> to vector<16x16x2x32xf32>
    %13 = arith.truncf %12 : vector<16x16x2x32xf32> to vector<16x16x2x32xbf16>
    %14 = vector.shape_cast %13 : vector<16x16x2x32xbf16> to vector<8x2x16x2x32xbf16>
    %15 = vector.extract_strided_slice %14 {offsets = [0, 0, 0, 0, 0], sizes = [8, 1, 16, 2, 32], strides = [1, 1, 1, 1, 1]} : vector<8x2x16x2x32xbf16> to vector<8x1x16x2x32xbf16>
    %16 = vector.shape_cast %15 : vector<8x1x16x2x32xbf16> to vector<8x16x2x32xbf16>
    %17 = vector.extract_strided_slice %14 {offsets = [0, 1, 0, 0, 0], sizes = [8, 1, 16, 2, 32], strides = [1, 1, 1, 1, 1]} : vector<8x2x16x2x32xbf16> to vector<8x1x16x2x32xbf16>
    %18 = vector.shape_cast %17 : vector<8x1x16x2x32xbf16> to vector<8x16x2x32xbf16>
    %cst_9 = arith.constant 0.000000e+00 : bf16
    %19 = vector.broadcast %cst_9 : bf16 to vector<1x16x2x32xbf16>
    %20 = vector.extract_strided_slice %18 {offsets = [0, 0, 0, 0], sizes = [7, 16, 2, 32], strides = [1, 1, 1, 1]} : vector<8x16x2x32xbf16> to vector<7x16x2x32xbf16>
    %21 = tpu.concatenate %19, %20 in 0 : vector<1x16x2x32xbf16>, vector<7x16x2x32xbf16> -> vector<8x16x2x32xbf16>
    %22 = vector.shape_cast %21 : vector<8x16x2x32xbf16> to vector<8x8x2x2x32xbf16>
    %23 = vector.extract_strided_slice %22 {offsets = [0, 0, 0, 0, 0], sizes = [8, 8, 1, 2, 32], strides = [1, 1, 1, 1, 1]} : vector<8x8x2x2x32xbf16> to vector<8x8x1x2x32xbf16>
    %24 = vector.shape_cast %23 : vector<8x8x1x2x32xbf16> to vector<8x8x2x32xbf16>
    %25 = vector.extract_strided_slice %22 {offsets = [0, 0, 1, 0, 0], sizes = [8, 8, 1, 2, 32], strides = [1, 1, 1, 1, 1]} : vector<8x8x2x2x32xbf16> to vector<8x8x1x2x32xbf16>
    %26 = vector.shape_cast %25 : vector<8x8x1x2x32xbf16> to vector<8x8x2x32xbf16>
    %cst_10 = arith.constant 0.000000e+00 : bf16
    %27 = vector.broadcast %cst_10 : bf16 to vector<8x1x2x32xbf16>
    %28 = vector.extract_strided_slice %26 {offsets = [0, 0, 0, 0], sizes = [8, 7, 2, 32], strides = [1, 1, 1, 1]} : vector<8x8x2x32xbf16> to vector<8x7x2x32xbf16>
    %29 = tpu.concatenate %27, %28 in 1 : vector<8x1x2x32xbf16>, vector<8x7x2x32xbf16> -> vector<8x8x2x32xbf16>
    %30 = vector.shape_cast %29 : vector<8x8x2x32xbf16> to vector<128x32xbf16>
    %31 = vector.shape_cast %24 : vector<8x8x2x32xbf16> to vector<128x32xbf16>
    %32 = vector.shape_cast %26 : vector<8x8x2x32xbf16> to vector<128x32xbf16>
    %cst_11 = arith.constant 0.000000e+00 : bf16
    %33 = vector.broadcast %cst_11 : bf16 to vector<8x1x2x32xbf16>
    %34 = vector.extract_strided_slice %24 {offsets = [0, 1, 0, 0], sizes = [8, 7, 2, 32], strides = [1, 1, 1, 1]} : vector<8x8x2x32xbf16> to vector<8x7x2x32xbf16>
    %35 = tpu.concatenate %34, %33 in 1 : vector<8x7x2x32xbf16>, vector<8x1x2x32xbf16> -> vector<8x8x2x32xbf16>
    %36 = vector.shape_cast %35 : vector<8x8x2x32xbf16> to vector<128x32xbf16>
    %37 = vector.shape_cast %16 : vector<8x16x2x32xbf16> to vector<8x8x2x2x32xbf16>
    %38 = vector.extract_strided_slice %37 {offsets = [0, 0, 0, 0, 0], sizes = [8, 8, 1, 2, 32], strides = [1, 1, 1, 1, 1]} : vector<8x8x2x2x32xbf16> to vector<8x8x1x2x32xbf16>
    %39 = vector.shape_cast %38 : vector<8x8x1x2x32xbf16> to vector<8x8x2x32xbf16>
    %40 = vector.extract_strided_slice %37 {offsets = [0, 0, 1, 0, 0], sizes = [8, 8, 1, 2, 32], strides = [1, 1, 1, 1, 1]} : vector<8x8x2x2x32xbf16> to vector<8x8x1x2x32xbf16>
    %41 = vector.shape_cast %40 : vector<8x8x1x2x32xbf16> to vector<8x8x2x32xbf16>
    %cst_12 = arith.constant 0.000000e+00 : bf16
    %42 = vector.broadcast %cst_12 : bf16 to vector<8x1x2x32xbf16>
    %43 = vector.extract_strided_slice %41 {offsets = [0, 0, 0, 0], sizes = [8, 7, 2, 32], strides = [1, 1, 1, 1]} : vector<8x8x2x32xbf16> to vector<8x7x2x32xbf16>
    %44 = tpu.concatenate %42, %43 in 1 : vector<8x1x2x32xbf16>, vector<8x7x2x32xbf16> -> vector<8x8x2x32xbf16>
    %45 = vector.shape_cast %44 : vector<8x8x2x32xbf16> to vector<128x32xbf16>
    %46 = vector.shape_cast %39 : vector<8x8x2x32xbf16> to vector<128x32xbf16>
    %47 = vector.shape_cast %41 : vector<8x8x2x32xbf16> to vector<128x32xbf16>
    %cst_13 = arith.constant 0.000000e+00 : bf16
    %48 = vector.broadcast %cst_13 : bf16 to vector<8x1x2x32xbf16>
    %49 = vector.extract_strided_slice %39 {offsets = [0, 1, 0, 0], sizes = [8, 7, 2, 32], strides = [1, 1, 1, 1]} : vector<8x8x2x32xbf16> to vector<8x7x2x32xbf16>
    %50 = tpu.concatenate %49, %48 in 1 : vector<8x7x2x32xbf16>, vector<8x1x2x32xbf16> -> vector<8x8x2x32xbf16>
    %51 = vector.shape_cast %50 : vector<8x8x2x32xbf16> to vector<128x32xbf16>
    %52 = vector.shape_cast %18 : vector<8x16x2x32xbf16> to vector<8x8x2x2x32xbf16>
    %53 = vector.extract_strided_slice %52 {offsets = [0, 0, 0, 0, 0], sizes = [8, 8, 1, 2, 32], strides = [1, 1, 1, 1, 1]} : vector<8x8x2x2x32xbf16> to vector<8x8x1x2x32xbf16>
    %54 = vector.shape_cast %53 : vector<8x8x1x2x32xbf16> to vector<8x8x2x32xbf16>
    %55 = vector.extract_strided_slice %52 {offsets = [0, 0, 1, 0, 0], sizes = [8, 8, 1, 2, 32], strides = [1, 1, 1, 1, 1]} : vector<8x8x2x2x32xbf16> to vector<8x8x1x2x32xbf16>
    %56 = vector.shape_cast %55 : vector<8x8x1x2x32xbf16> to vector<8x8x2x32xbf16>
    %cst_14 = arith.constant 0.000000e+00 : bf16
    %57 = vector.broadcast %cst_14 : bf16 to vector<8x1x2x32xbf16>
    %58 = vector.extract_strided_slice %56 {offsets = [0, 0, 0, 0], sizes = [8, 7, 2, 32], strides = [1, 1, 1, 1]} : vector<8x8x2x32xbf16> to vector<8x7x2x32xbf16>
    %59 = tpu.concatenate %57, %58 in 1 : vector<8x1x2x32xbf16>, vector<8x7x2x32xbf16> -> vector<8x8x2x32xbf16>
    %60 = vector.shape_cast %59 : vector<8x8x2x32xbf16> to vector<128x32xbf16>
    %61 = vector.shape_cast %54 : vector<8x8x2x32xbf16> to vector<128x32xbf16>
    %62 = vector.shape_cast %56 : vector<8x8x2x32xbf16> to vector<128x32xbf16>
    %cst_15 = arith.constant 0.000000e+00 : bf16
    %63 = vector.broadcast %cst_15 : bf16 to vector<8x1x2x32xbf16>
    %64 = vector.extract_strided_slice %54 {offsets = [0, 1, 0, 0], sizes = [8, 7, 2, 32], strides = [1, 1, 1, 1]} : vector<8x8x2x32xbf16> to vector<8x7x2x32xbf16>
    %65 = tpu.concatenate %64, %63 in 1 : vector<8x7x2x32xbf16>, vector<8x1x2x32xbf16> -> vector<8x8x2x32xbf16>
    %66 = vector.shape_cast %65 : vector<8x8x2x32xbf16> to vector<128x32xbf16>
    %cst_16 = arith.constant 0.000000e+00 : bf16
    %67 = vector.broadcast %cst_16 : bf16 to vector<1x16x2x32xbf16>
    %68 = vector.extract_strided_slice %16 {offsets = [1, 0, 0, 0], sizes = [7, 16, 2, 32], strides = [1, 1, 1, 1]} : vector<8x16x2x32xbf16> to vector<7x16x2x32xbf16>
    %69 = tpu.concatenate %68, %67 in 0 : vector<7x16x2x32xbf16>, vector<1x16x2x32xbf16> -> vector<8x16x2x32xbf16>
    %70 = vector.shape_cast %69 : vector<8x16x2x32xbf16> to vector<8x8x2x2x32xbf16>
    %71 = vector.extract_strided_slice %70 {offsets = [0, 0, 0, 0, 0], sizes = [8, 8, 1, 2, 32], strides = [1, 1, 1, 1, 1]} : vector<8x8x2x2x32xbf16> to vector<8x8x1x2x32xbf16>
    %72 = vector.shape_cast %71 : vector<8x8x1x2x32xbf16> to vector<8x8x2x32xbf16>
    %73 = vector.extract_strided_slice %70 {offsets = [0, 0, 1, 0, 0], sizes = [8, 8, 1, 2, 32], strides = [1, 1, 1, 1, 1]} : vector<8x8x2x2x32xbf16> to vector<8x8x1x2x32xbf16>
    %74 = vector.shape_cast %73 : vector<8x8x1x2x32xbf16> to vector<8x8x2x32xbf16>
    %cst_17 = arith.constant 0.000000e+00 : bf16
    %75 = vector.broadcast %cst_17 : bf16 to vector<8x1x2x32xbf16>
    %76 = vector.extract_strided_slice %74 {offsets = [0, 0, 0, 0], sizes = [8, 7, 2, 32], strides = [1, 1, 1, 1]} : vector<8x8x2x32xbf16> to vector<8x7x2x32xbf16>
    %77 = tpu.concatenate %75, %76 in 1 : vector<8x1x2x32xbf16>, vector<8x7x2x32xbf16> -> vector<8x8x2x32xbf16>
    %78 = vector.shape_cast %77 : vector<8x8x2x32xbf16> to vector<128x32xbf16>
    %79 = vector.shape_cast %72 : vector<8x8x2x32xbf16> to vector<128x32xbf16>
    %80 = vector.shape_cast %74 : vector<8x8x2x32xbf16> to vector<128x32xbf16>
    %cst_18 = arith.constant 0.000000e+00 : bf16
    %81 = vector.broadcast %cst_18 : bf16 to vector<8x1x2x32xbf16>
    %82 = vector.extract_strided_slice %72 {offsets = [0, 1, 0, 0], sizes = [8, 7, 2, 32], strides = [1, 1, 1, 1]} : vector<8x8x2x32xbf16> to vector<8x7x2x32xbf16>
    %83 = tpu.concatenate %82, %81 in 1 : vector<8x7x2x32xbf16>, vector<8x1x2x32xbf16> -> vector<8x8x2x32xbf16>
    %84 = vector.shape_cast %83 : vector<8x8x2x32xbf16> to vector<128x32xbf16>
    %85 = tpu.concatenate %30, %31, %32, %36, %45, %46, %47, %51, %60, %61, %62, %66, %78, %79, %80, %84 in 1 : vector<128x32xbf16>, vector<128x32xbf16>, vector<128x32xbf16>, vector<128x32xbf16>, vector<128x32xbf16>, vector<128x32xbf16>, vector<128x32xbf16>, vector<128x32xbf16>, vector<128x32xbf16>, vector<128x32xbf16>, vector<128x32xbf16>, vector<128x32xbf16>, vector<128x32xbf16>, vector<128x32xbf16>, vector<128x32xbf16>, vector<128x32xbf16> -> vector<128x512xbf16>
    %c0_19 = arith.constant 0 : index
    %c0_20 = arith.constant 0 : index
    %86 = vector.load %arg5[%c0_19, %c0_20] : memref<512x64xbf16, #tpu.memory_space<vmem>>, vector<512x64xbf16>
    %cst_21 = arith.constant dense<0.000000e+00> : vector<128x64xf32>
    %87 = tpu.matmul %85, %86, %cst_21 {dimension_numbers = #tpu.dot_dimension_numbers<[1], [0], [0], [1], [0, 0, 1, 1], [], []>} : vector<128x512xbf16>, vector<512x64xbf16>, vector<128x64xf32> -> vector<128x64xf32>
    %c0_22 = arith.constant 0 : index
    %c0_23 = arith.constant 0 : index
    %88 = vector.load %arg6[%c0_22, %c0_23] : memref<1x64xf32, #tpu.memory_space<vmem>>, vector<1x64xf32>
    %89 = vector.broadcast %88 : vector<1x64xf32> to vector<128x64xf32>
    %90 = arith.addf %87, %89 : vector<128x64xf32>
    %cst_24 = arith.constant 0.000000e+00 : f32
    %91 = vector.broadcast %cst_24 : f32 to vector<128x64xf32>
    %92 = arith.cmpf oge, %90, %91 : vector<128x64xf32>
    %cst_25 = arith.constant 2.000000e-01 : f32
    %93 = vector.broadcast %cst_25 : f32 to vector<128x64xf32>
    %94 = arith.mulf %93, %90 : vector<128x64xf32>
    %95 = arith.select %92, %90, %94 : vector<128x64xi1>, vector<128x64xf32>
    %96 = vector.shape_cast %95 : vector<128x64xf32> to vector<8x8x2x64xf32>
    %97 = arith.truncf %96 : vector<8x8x2x64xf32> to vector<8x8x2x64xbf16>
    %98 = vector.shape_cast %97 : vector<8x8x2x64xbf16> to vector<4x2x8x2x64xbf16>
    %99 = vector.extract_strided_slice %98 {offsets = [0, 0, 0, 0, 0], sizes = [4, 1, 8, 2, 64], strides = [1, 1, 1, 1, 1]} : vector<4x2x8x2x64xbf16> to vector<4x1x8x2x64xbf16>
    %100 = vector.shape_cast %99 : vector<4x1x8x2x64xbf16> to vector<4x8x2x64xbf16>
    %101 = vector.extract_strided_slice %98 {offsets = [0, 1, 0, 0, 0], sizes = [4, 1, 8, 2, 64], strides = [1, 1, 1, 1, 1]} : vector<4x2x8x2x64xbf16> to vector<4x1x8x2x64xbf16>
    %102 = vector.shape_cast %101 : vector<4x1x8x2x64xbf16> to vector<4x8x2x64xbf16>
    %cst_26 = arith.constant 0.000000e+00 : bf16
    %103 = vector.broadcast %cst_26 : bf16 to vector<1x8x2x64xbf16>
    %104 = vector.extract_strided_slice %102 {offsets = [0, 0, 0, 0], sizes = [3, 8, 2, 64], strides = [1, 1, 1, 1]} : vector<4x8x2x64xbf16> to vector<3x8x2x64xbf16>
    %105 = tpu.concatenate %103, %104 in 0 : vector<1x8x2x64xbf16>, vector<3x8x2x64xbf16> -> vector<4x8x2x64xbf16>
    %106 = vector.shape_cast %105 : vector<4x8x2x64xbf16> to vector<4x4x2x2x64xbf16>
    %107 = vector.extract_strided_slice %106 {offsets = [0, 0, 0, 0, 0], sizes = [4, 4, 1, 2, 64], strides = [1, 1, 1, 1, 1]} : vector<4x4x2x2x64xbf16> to vector<4x4x1x2x64xbf16>
    %108 = vector.shape_cast %107 : vector<4x4x1x2x64xbf16> to vector<4x4x2x64xbf16>
    %109 = vector.extract_strided_slice %106 {offsets = [0, 0, 1, 0, 0], sizes = [4, 4, 1, 2, 64], strides = [1, 1, 1, 1, 1]} : vector<4x4x2x2x64xbf16> to vector<4x4x1x2x64xbf16>
    %110 = vector.shape_cast %109 : vector<4x4x1x2x64xbf16> to vector<4x4x2x64xbf16>
    %cst_27 = arith.constant 0.000000e+00 : bf16
    %111 = vector.broadcast %cst_27 : bf16 to vector<4x1x2x64xbf16>
    %112 = vector.extract_strided_slice %110 {offsets = [0, 0, 0, 0], sizes = [4, 3, 2, 64], strides = [1, 1, 1, 1]} : vector<4x4x2x64xbf16> to vector<4x3x2x64xbf16>
    %113 = tpu.concatenate %111, %112 in 1 : vector<4x1x2x64xbf16>, vector<4x3x2x64xbf16> -> vector<4x4x2x64xbf16>
    %114 = vector.shape_cast %113 : vector<4x4x2x64xbf16> to vector<32x64xbf16>
    %115 = vector.shape_cast %108 : vector<4x4x2x64xbf16> to vector<32x64xbf16>
    %116 = vector.shape_cast %110 : vector<4x4x2x64xbf16> to vector<32x64xbf16>
    %cst_28 = arith.constant 0.000000e+00 : bf16
    %117 = vector.broadcast %cst_28 : bf16 to vector<4x1x2x64xbf16>
    %118 = vector.extract_strided_slice %108 {offsets = [0, 1, 0, 0], sizes = [4, 3, 2, 64], strides = [1, 1, 1, 1]} : vector<4x4x2x64xbf16> to vector<4x3x2x64xbf16>
    %119 = tpu.concatenate %118, %117 in 1 : vector<4x3x2x64xbf16>, vector<4x1x2x64xbf16> -> vector<4x4x2x64xbf16>
    %120 = vector.shape_cast %119 : vector<4x4x2x64xbf16> to vector<32x64xbf16>
    %121 = vector.shape_cast %100 : vector<4x8x2x64xbf16> to vector<4x4x2x2x64xbf16>
    %122 = vector.extract_strided_slice %121 {offsets = [0, 0, 0, 0, 0], sizes = [4, 4, 1, 2, 64], strides = [1, 1, 1, 1, 1]} : vector<4x4x2x2x64xbf16> to vector<4x4x1x2x64xbf16>
    %123 = vector.shape_cast %122 : vector<4x4x1x2x64xbf16> to vector<4x4x2x64xbf16>
    %124 = vector.extract_strided_slice %121 {offsets = [0, 0, 1, 0, 0], sizes = [4, 4, 1, 2, 64], strides = [1, 1, 1, 1, 1]} : vector<4x4x2x2x64xbf16> to vector<4x4x1x2x64xbf16>
    %125 = vector.shape_cast %124 : vector<4x4x1x2x64xbf16> to vector<4x4x2x64xbf16>
    %cst_29 = arith.constant 0.000000e+00 : bf16
    %126 = vector.broadcast %cst_29 : bf16 to vector<4x1x2x64xbf16>
    %127 = vector.extract_strided_slice %125 {offsets = [0, 0, 0, 0], sizes = [4, 3, 2, 64], strides = [1, 1, 1, 1]} : vector<4x4x2x64xbf16> to vector<4x3x2x64xbf16>
    %128 = tpu.concatenate %126, %127 in 1 : vector<4x1x2x64xbf16>, vector<4x3x2x64xbf16> -> vector<4x4x2x64xbf16>
    %129 = vector.shape_cast %128 : vector<4x4x2x64xbf16> to vector<32x64xbf16>
    %130 = vector.shape_cast %123 : vector<4x4x2x64xbf16> to vector<32x64xbf16>
    %131 = vector.shape_cast %125 : vector<4x4x2x64xbf16> to vector<32x64xbf16>
    %cst_30 = arith.constant 0.000000e+00 : bf16
    %132 = vector.broadcast %cst_30 : bf16 to vector<4x1x2x64xbf16>
    %133 = vector.extract_strided_slice %123 {offsets = [0, 1, 0, 0], sizes = [4, 3, 2, 64], strides = [1, 1, 1, 1]} : vector<4x4x2x64xbf16> to vector<4x3x2x64xbf16>
    %134 = tpu.concatenate %133, %132 in 1 : vector<4x3x2x64xbf16>, vector<4x1x2x64xbf16> -> vector<4x4x2x64xbf16>
    %135 = vector.shape_cast %134 : vector<4x4x2x64xbf16> to vector<32x64xbf16>
    %136 = vector.shape_cast %102 : vector<4x8x2x64xbf16> to vector<4x4x2x2x64xbf16>
    %137 = vector.extract_strided_slice %136 {offsets = [0, 0, 0, 0, 0], sizes = [4, 4, 1, 2, 64], strides = [1, 1, 1, 1, 1]} : vector<4x4x2x2x64xbf16> to vector<4x4x1x2x64xbf16>
    %138 = vector.shape_cast %137 : vector<4x4x1x2x64xbf16> to vector<4x4x2x64xbf16>
    %139 = vector.extract_strided_slice %136 {offsets = [0, 0, 1, 0, 0], sizes = [4, 4, 1, 2, 64], strides = [1, 1, 1, 1, 1]} : vector<4x4x2x2x64xbf16> to vector<4x4x1x2x64xbf16>
    %140 = vector.shape_cast %139 : vector<4x4x1x2x64xbf16> to vector<4x4x2x64xbf16>
    %cst_31 = arith.constant 0.000000e+00 : bf16
    %141 = vector.broadcast %cst_31 : bf16 to vector<4x1x2x64xbf16>
    %142 = vector.extract_strided_slice %140 {offsets = [0, 0, 0, 0], sizes = [4, 3, 2, 64], strides = [1, 1, 1, 1]} : vector<4x4x2x64xbf16> to vector<4x3x2x64xbf16>
    %143 = tpu.concatenate %141, %142 in 1 : vector<4x1x2x64xbf16>, vector<4x3x2x64xbf16> -> vector<4x4x2x64xbf16>
    %144 = vector.shape_cast %143 : vector<4x4x2x64xbf16> to vector<32x64xbf16>
    %145 = vector.shape_cast %138 : vector<4x4x2x64xbf16> to vector<32x64xbf16>
    %146 = vector.shape_cast %140 : vector<4x4x2x64xbf16> to vector<32x64xbf16>
    %cst_32 = arith.constant 0.000000e+00 : bf16
    %147 = vector.broadcast %cst_32 : bf16 to vector<4x1x2x64xbf16>
    %148 = vector.extract_strided_slice %138 {offsets = [0, 1, 0, 0], sizes = [4, 3, 2, 64], strides = [1, 1, 1, 1]} : vector<4x4x2x64xbf16> to vector<4x3x2x64xbf16>
    %149 = tpu.concatenate %148, %147 in 1 : vector<4x3x2x64xbf16>, vector<4x1x2x64xbf16> -> vector<4x4x2x64xbf16>
    %150 = vector.shape_cast %149 : vector<4x4x2x64xbf16> to vector<32x64xbf16>
    %cst_33 = arith.constant 0.000000e+00 : bf16
    %151 = vector.broadcast %cst_33 : bf16 to vector<1x8x2x64xbf16>
    %152 = vector.extract_strided_slice %100 {offsets = [1, 0, 0, 0], sizes = [3, 8, 2, 64], strides = [1, 1, 1, 1]} : vector<4x8x2x64xbf16> to vector<3x8x2x64xbf16>
    %153 = tpu.concatenate %152, %151 in 0 : vector<3x8x2x64xbf16>, vector<1x8x2x64xbf16> -> vector<4x8x2x64xbf16>
    %154 = vector.shape_cast %153 : vector<4x8x2x64xbf16> to vector<4x4x2x2x64xbf16>
    %155 = vector.extract_strided_slice %154 {offsets = [0, 0, 0, 0, 0], sizes = [4, 4, 1, 2, 64], strides = [1, 1, 1, 1, 1]} : vector<4x4x2x2x64xbf16> to vector<4x4x1x2x64xbf16>
    %156 = vector.shape_cast %155 : vector<4x4x1x2x64xbf16> to vector<4x4x2x64xbf16>
    %157 = vector.extract_strided_slice %154 {offsets = [0, 0, 1, 0, 0], sizes = [4, 4, 1, 2, 64], strides = [1, 1, 1, 1, 1]} : vector<4x4x2x2x64xbf16> to vector<4x4x1x2x64xbf16>
    %158 = vector.shape_cast %157 : vector<4x4x1x2x64xbf16> to vector<4x4x2x64xbf16>
    %cst_34 = arith.constant 0.000000e+00 : bf16
    %159 = vector.broadcast %cst_34 : bf16 to vector<4x1x2x64xbf16>
    %160 = vector.extract_strided_slice %158 {offsets = [0, 0, 0, 0], sizes = [4, 3, 2, 64], strides = [1, 1, 1, 1]} : vector<4x4x2x64xbf16> to vector<4x3x2x64xbf16>
    %161 = tpu.concatenate %159, %160 in 1 : vector<4x1x2x64xbf16>, vector<4x3x2x64xbf16> -> vector<4x4x2x64xbf16>
    %162 = vector.shape_cast %161 : vector<4x4x2x64xbf16> to vector<32x64xbf16>
    %163 = vector.shape_cast %156 : vector<4x4x2x64xbf16> to vector<32x64xbf16>
    %164 = vector.shape_cast %158 : vector<4x4x2x64xbf16> to vector<32x64xbf16>
    %cst_35 = arith.constant 0.000000e+00 : bf16
    %165 = vector.broadcast %cst_35 : bf16 to vector<4x1x2x64xbf16>
    %166 = vector.extract_strided_slice %156 {offsets = [0, 1, 0, 0], sizes = [4, 3, 2, 64], strides = [1, 1, 1, 1]} : vector<4x4x2x64xbf16> to vector<4x3x2x64xbf16>
    %167 = tpu.concatenate %166, %165 in 1 : vector<4x3x2x64xbf16>, vector<4x1x2x64xbf16> -> vector<4x4x2x64xbf16>
    %168 = vector.shape_cast %167 : vector<4x4x2x64xbf16> to vector<32x64xbf16>
    %169 = tpu.concatenate %114, %115, %116, %120, %129, %130, %131, %135, %144, %145, %146, %150, %162, %163, %164, %168 in 1 : vector<32x64xbf16>, vector<32x64xbf16>, vector<32x64xbf16>, vector<32x64xbf16>, vector<32x64xbf16>, vector<32x64xbf16>, vector<32x64xbf16>, vector<32x64xbf16>, vector<32x64xbf16>, vector<32x64xbf16>, vector<32x64xbf16>, vector<32x64xbf16>, vector<32x64xbf16>, vector<32x64xbf16>, vector<32x64xbf16>, vector<32x64xbf16> -> vector<32x1024xbf16>
    %c0_36 = arith.constant 0 : index
    %c0_37 = arith.constant 0 : index
    %170 = vector.load %arg7[%c0_36, %c0_37] : memref<1024x128xbf16, #tpu.memory_space<vmem>>, vector<1024x128xbf16>
    %cst_38 = arith.constant dense<0.000000e+00> : vector<32x128xf32>
    %171 = tpu.matmul %169, %170, %cst_38 {dimension_numbers = #tpu.dot_dimension_numbers<[1], [0], [0], [1], [0, 0, 1, 1], [], []>} : vector<32x1024xbf16>, vector<1024x128xbf16>, vector<32x128xf32> -> vector<32x128xf32>
    %c0_39 = arith.constant 0 : index
    %c0_40 = arith.constant 0 : index
    %172 = vector.load %arg8[%c0_39, %c0_40] : memref<1x128xf32, #tpu.memory_space<vmem>>, vector<1x128xf32>
    %173 = vector.broadcast %172 : vector<1x128xf32> to vector<32x128xf32>
    %174 = arith.addf %171, %173 : vector<32x128xf32>
    %cst_41 = arith.constant 0.000000e+00 : f32
    %175 = vector.broadcast %cst_41 : f32 to vector<32x128xf32>
    %176 = arith.cmpf oge, %174, %175 : vector<32x128xf32>
    %cst_42 = arith.constant 2.000000e-01 : f32
    %177 = vector.broadcast %cst_42 : f32 to vector<32x128xf32>
    %178 = arith.mulf %177, %174 : vector<32x128xf32>
    %179 = arith.select %176, %174, %178 : vector<32x128xi1>, vector<32x128xf32>
    %180 = vector.shape_cast %179 : vector<32x128xf32> to vector<4x4x2x128xf32>
    %181 = arith.truncf %180 : vector<4x4x2x128xf32> to vector<4x4x2x128xbf16>
    %182 = vector.shape_cast %181 : vector<4x4x2x128xbf16> to vector<2x2x4x2x128xbf16>
    %183 = vector.extract_strided_slice %182 {offsets = [0, 0, 0, 0, 0], sizes = [2, 1, 4, 2, 128], strides = [1, 1, 1, 1, 1]} : vector<2x2x4x2x128xbf16> to vector<2x1x4x2x128xbf16>
    %184 = vector.shape_cast %183 : vector<2x1x4x2x128xbf16> to vector<2x4x2x128xbf16>
    %185 = vector.extract_strided_slice %182 {offsets = [0, 1, 0, 0, 0], sizes = [2, 1, 4, 2, 128], strides = [1, 1, 1, 1, 1]} : vector<2x2x4x2x128xbf16> to vector<2x1x4x2x128xbf16>
    %186 = vector.shape_cast %185 : vector<2x1x4x2x128xbf16> to vector<2x4x2x128xbf16>
    %cst_43 = arith.constant 0.000000e+00 : bf16
    %187 = vector.broadcast %cst_43 : bf16 to vector<1x4x2x128xbf16>
    %188 = vector.extract_strided_slice %186 {offsets = [0, 0, 0, 0], sizes = [1, 4, 2, 128], strides = [1, 1, 1, 1]} : vector<2x4x2x128xbf16> to vector<1x4x2x128xbf16>
    %189 = tpu.concatenate %187, %188 in 0 : vector<1x4x2x128xbf16>, vector<1x4x2x128xbf16> -> vector<2x4x2x128xbf16>
    %190 = vector.shape_cast %189 : vector<2x4x2x128xbf16> to vector<2x2x2x2x128xbf16>
    %191 = vector.extract_strided_slice %190 {offsets = [0, 0, 0, 0, 0], sizes = [2, 2, 1, 2, 128], strides = [1, 1, 1, 1, 1]} : vector<2x2x2x2x128xbf16> to vector<2x2x1x2x128xbf16>
    %192 = vector.shape_cast %191 : vector<2x2x1x2x128xbf16> to vector<2x2x2x128xbf16>
    %193 = vector.extract_strided_slice %190 {offsets = [0, 0, 1, 0, 0], sizes = [2, 2, 1, 2, 128], strides = [1, 1, 1, 1, 1]} : vector<2x2x2x2x128xbf16> to vector<2x2x1x2x128xbf16>
    %194 = vector.shape_cast %193 : vector<2x2x1x2x128xbf16> to vector<2x2x2x128xbf16>
    %cst_44 = arith.constant 0.000000e+00 : bf16
    %195 = vector.broadcast %cst_44 : bf16 to vector<2x1x2x128xbf16>
    %196 = vector.extract_strided_slice %194 {offsets = [0, 0, 0, 0], sizes = [2, 1, 2, 128], strides = [1, 1, 1, 1]} : vector<2x2x2x128xbf16> to vector<2x1x2x128xbf16>
    %197 = tpu.concatenate %195, %196 in 1 : vector<2x1x2x128xbf16>, vector<2x1x2x128xbf16> -> vector<2x2x2x128xbf16>
    %198 = vector.shape_cast %197 : vector<2x2x2x128xbf16> to vector<8x128xbf16>
    %199 = vector.shape_cast %192 : vector<2x2x2x128xbf16> to vector<8x128xbf16>
    %200 = vector.shape_cast %194 : vector<2x2x2x128xbf16> to vector<8x128xbf16>
    %cst_45 = arith.constant 0.000000e+00 : bf16
    %201 = vector.broadcast %cst_45 : bf16 to vector<2x1x2x128xbf16>
    %202 = vector.extract_strided_slice %192 {offsets = [0, 1, 0, 0], sizes = [2, 1, 2, 128], strides = [1, 1, 1, 1]} : vector<2x2x2x128xbf16> to vector<2x1x2x128xbf16>
    %203 = tpu.concatenate %202, %201 in 1 : vector<2x1x2x128xbf16>, vector<2x1x2x128xbf16> -> vector<2x2x2x128xbf16>
    %204 = vector.shape_cast %203 : vector<2x2x2x128xbf16> to vector<8x128xbf16>
    %205 = vector.shape_cast %184 : vector<2x4x2x128xbf16> to vector<2x2x2x2x128xbf16>
    %206 = vector.extract_strided_slice %205 {offsets = [0, 0, 0, 0, 0], sizes = [2, 2, 1, 2, 128], strides = [1, 1, 1, 1, 1]} : vector<2x2x2x2x128xbf16> to vector<2x2x1x2x128xbf16>
    %207 = vector.shape_cast %206 : vector<2x2x1x2x128xbf16> to vector<2x2x2x128xbf16>
    %208 = vector.extract_strided_slice %205 {offsets = [0, 0, 1, 0, 0], sizes = [2, 2, 1, 2, 128], strides = [1, 1, 1, 1, 1]} : vector<2x2x2x2x128xbf16> to vector<2x2x1x2x128xbf16>
    %209 = vector.shape_cast %208 : vector<2x2x1x2x128xbf16> to vector<2x2x2x128xbf16>
    %cst_46 = arith.constant 0.000000e+00 : bf16
    %210 = vector.broadcast %cst_46 : bf16 to vector<2x1x2x128xbf16>
    %211 = vector.extract_strided_slice %209 {offsets = [0, 0, 0, 0], sizes = [2, 1, 2, 128], strides = [1, 1, 1, 1]} : vector<2x2x2x128xbf16> to vector<2x1x2x128xbf16>
    %212 = tpu.concatenate %210, %211 in 1 : vector<2x1x2x128xbf16>, vector<2x1x2x128xbf16> -> vector<2x2x2x128xbf16>
    %213 = vector.shape_cast %212 : vector<2x2x2x128xbf16> to vector<8x128xbf16>
    %214 = vector.shape_cast %207 : vector<2x2x2x128xbf16> to vector<8x128xbf16>
    %215 = vector.shape_cast %209 : vector<2x2x2x128xbf16> to vector<8x128xbf16>
    %cst_47 = arith.constant 0.000000e+00 : bf16
    %216 = vector.broadcast %cst_47 : bf16 to vector<2x1x2x128xbf16>
    %217 = vector.extract_strided_slice %207 {offsets = [0, 1, 0, 0], sizes = [2, 1, 2, 128], strides = [1, 1, 1, 1]} : vector<2x2x2x128xbf16> to vector<2x1x2x128xbf16>
    %218 = tpu.concatenate %217, %216 in 1 : vector<2x1x2x128xbf16>, vector<2x1x2x128xbf16> -> vector<2x2x2x128xbf16>
    %219 = vector.shape_cast %218 : vector<2x2x2x128xbf16> to vector<8x128xbf16>
    %220 = vector.shape_cast %186 : vector<2x4x2x128xbf16> to vector<2x2x2x2x128xbf16>
    %221 = vector.extract_strided_slice %220 {offsets = [0, 0, 0, 0, 0], sizes = [2, 2, 1, 2, 128], strides = [1, 1, 1, 1, 1]} : vector<2x2x2x2x128xbf16> to vector<2x2x1x2x128xbf16>
    %222 = vector.shape_cast %221 : vector<2x2x1x2x128xbf16> to vector<2x2x2x128xbf16>
    %223 = vector.extract_strided_slice %220 {offsets = [0, 0, 1, 0, 0], sizes = [2, 2, 1, 2, 128], strides = [1, 1, 1, 1, 1]} : vector<2x2x2x2x128xbf16> to vector<2x2x1x2x128xbf16>
    %224 = vector.shape_cast %223 : vector<2x2x1x2x128xbf16> to vector<2x2x2x128xbf16>
    %cst_48 = arith.constant 0.000000e+00 : bf16
    %225 = vector.broadcast %cst_48 : bf16 to vector<2x1x2x128xbf16>
    %226 = vector.extract_strided_slice %224 {offsets = [0, 0, 0, 0], sizes = [2, 1, 2, 128], strides = [1, 1, 1, 1]} : vector<2x2x2x128xbf16> to vector<2x1x2x128xbf16>
    %227 = tpu.concatenate %225, %226 in 1 : vector<2x1x2x128xbf16>, vector<2x1x2x128xbf16> -> vector<2x2x2x128xbf16>
    %228 = vector.shape_cast %227 : vector<2x2x2x128xbf16> to vector<8x128xbf16>
    %229 = vector.shape_cast %222 : vector<2x2x2x128xbf16> to vector<8x128xbf16>
    %230 = vector.shape_cast %224 : vector<2x2x2x128xbf16> to vector<8x128xbf16>
    %cst_49 = arith.constant 0.000000e+00 : bf16
    %231 = vector.broadcast %cst_49 : bf16 to vector<2x1x2x128xbf16>
    %232 = vector.extract_strided_slice %222 {offsets = [0, 1, 0, 0], sizes = [2, 1, 2, 128], strides = [1, 1, 1, 1]} : vector<2x2x2x128xbf16> to vector<2x1x2x128xbf16>
    %233 = tpu.concatenate %232, %231 in 1 : vector<2x1x2x128xbf16>, vector<2x1x2x128xbf16> -> vector<2x2x2x128xbf16>
    %234 = vector.shape_cast %233 : vector<2x2x2x128xbf16> to vector<8x128xbf16>
    %cst_50 = arith.constant 0.000000e+00 : bf16
    %235 = vector.broadcast %cst_50 : bf16 to vector<1x4x2x128xbf16>
    %236 = vector.extract_strided_slice %184 {offsets = [1, 0, 0, 0], sizes = [1, 4, 2, 128], strides = [1, 1, 1, 1]} : vector<2x4x2x128xbf16> to vector<1x4x2x128xbf16>
    %237 = tpu.concatenate %236, %235 in 0 : vector<1x4x2x128xbf16>, vector<1x4x2x128xbf16> -> vector<2x4x2x128xbf16>
    %238 = vector.shape_cast %237 : vector<2x4x2x128xbf16> to vector<2x2x2x2x128xbf16>
    %239 = vector.extract_strided_slice %238 {offsets = [0, 0, 0, 0, 0], sizes = [2, 2, 1, 2, 128], strides = [1, 1, 1, 1, 1]} : vector<2x2x2x2x128xbf16> to vector<2x2x1x2x128xbf16>
    %240 = vector.shape_cast %239 : vector<2x2x1x2x128xbf16> to vector<2x2x2x128xbf16>
    %241 = vector.extract_strided_slice %238 {offsets = [0, 0, 1, 0, 0], sizes = [2, 2, 1, 2, 128], strides = [1, 1, 1, 1, 1]} : vector<2x2x2x2x128xbf16> to vector<2x2x1x2x128xbf16>
    %242 = vector.shape_cast %241 : vector<2x2x1x2x128xbf16> to vector<2x2x2x128xbf16>
    %cst_51 = arith.constant 0.000000e+00 : bf16
    %243 = vector.broadcast %cst_51 : bf16 to vector<2x1x2x128xbf16>
    %244 = vector.extract_strided_slice %242 {offsets = [0, 0, 0, 0], sizes = [2, 1, 2, 128], strides = [1, 1, 1, 1]} : vector<2x2x2x128xbf16> to vector<2x1x2x128xbf16>
    %245 = tpu.concatenate %243, %244 in 1 : vector<2x1x2x128xbf16>, vector<2x1x2x128xbf16> -> vector<2x2x2x128xbf16>
    %246 = vector.shape_cast %245 : vector<2x2x2x128xbf16> to vector<8x128xbf16>
    %247 = vector.shape_cast %240 : vector<2x2x2x128xbf16> to vector<8x128xbf16>
    %248 = vector.shape_cast %242 : vector<2x2x2x128xbf16> to vector<8x128xbf16>
    %cst_52 = arith.constant 0.000000e+00 : bf16
    %249 = vector.broadcast %cst_52 : bf16 to vector<2x1x2x128xbf16>
    %250 = vector.extract_strided_slice %240 {offsets = [0, 1, 0, 0], sizes = [2, 1, 2, 128], strides = [1, 1, 1, 1]} : vector<2x2x2x128xbf16> to vector<2x1x2x128xbf16>
    %251 = tpu.concatenate %250, %249 in 1 : vector<2x1x2x128xbf16>, vector<2x1x2x128xbf16> -> vector<2x2x2x128xbf16>
    %252 = vector.shape_cast %251 : vector<2x2x2x128xbf16> to vector<8x128xbf16>
    %253 = tpu.concatenate %198, %199, %200, %204, %213, %214, %215, %219, %228, %229, %230, %234, %246, %247, %248, %252 in 1 : vector<8x128xbf16>, vector<8x128xbf16>, vector<8x128xbf16>, vector<8x128xbf16>, vector<8x128xbf16>, vector<8x128xbf16>, vector<8x128xbf16>, vector<8x128xbf16>, vector<8x128xbf16>, vector<8x128xbf16>, vector<8x128xbf16>, vector<8x128xbf16>, vector<8x128xbf16>, vector<8x128xbf16>, vector<8x128xbf16>, vector<8x128xbf16> -> vector<8x2048xbf16>
    %c0_53 = arith.constant 0 : index
    %c0_54 = arith.constant 0 : index
    %254 = vector.load %arg9[%c0_53, %c0_54] : memref<2048x256xbf16, #tpu.memory_space<vmem>>, vector<2048x256xbf16>
    %cst_55 = arith.constant dense<0.000000e+00> : vector<8x256xf32>
    %255 = tpu.matmul %253, %254, %cst_55 {dimension_numbers = #tpu.dot_dimension_numbers<[1], [0], [0], [1], [0, 0, 1, 1], [], []>} : vector<8x2048xbf16>, vector<2048x256xbf16>, vector<8x256xf32> -> vector<8x256xf32>
    %c0_56 = arith.constant 0 : index
    %c0_57 = arith.constant 0 : index
    %256 = vector.load %arg10[%c0_56, %c0_57] : memref<1x256xf32, #tpu.memory_space<vmem>>, vector<1x256xf32>
    %257 = vector.broadcast %256 : vector<1x256xf32> to vector<8x256xf32>
    %258 = arith.addf %255, %257 : vector<8x256xf32>
    %cst_58 = arith.constant 0.000000e+00 : f32
    %259 = vector.broadcast %cst_58 : f32 to vector<8x256xf32>
    %260 = arith.cmpf oge, %258, %259 : vector<8x256xf32>
    %cst_59 = arith.constant 2.000000e-01 : f32
    %261 = vector.broadcast %cst_59 : f32 to vector<8x256xf32>
    %262 = arith.mulf %261, %258 : vector<8x256xf32>
    %263 = arith.select %260, %258, %262 : vector<8x256xi1>, vector<8x256xf32>
    %264 = vector.shape_cast %263 : vector<8x256xf32> to vector<2x2x2x256xf32>
    %265 = vector.extract_strided_slice %264 {offsets = [0, 0, 0, 0], sizes = [1, 1, 2, 256], strides = [1, 1, 1, 1]} : vector<2x2x2x256xf32> to vector<1x1x2x256xf32>
    %cst_60 = arith.constant dense<0.000000e+00> : vector<2x256xf32>
    %266 = vector.multi_reduction <add>, %265, %cst_60 [0, 1] : vector<1x1x2x256xf32> to vector<2x256xf32>
    %cst_61 = arith.constant 1.000000e+00 : f32
    %267 = vector.broadcast %cst_61 : f32 to vector<2x256xf32>
    %268 = arith.mulf %266, %267 : vector<2x256xf32>
    %269 = arith.truncf %268 : vector<2x256xf32> to vector<2x256xbf16>
    %270 = vector.extract_strided_slice %264 {offsets = [0, 1, 0, 0], sizes = [1, 1, 2, 256], strides = [1, 1, 1, 1]} : vector<2x2x2x256xf32> to vector<1x1x2x256xf32>
    %cst_62 = arith.constant dense<0.000000e+00> : vector<2x256xf32>
    %271 = vector.multi_reduction <add>, %270, %cst_62 [0, 1] : vector<1x1x2x256xf32> to vector<2x256xf32>
    %cst_63 = arith.constant 1.000000e+00 : f32
    %272 = vector.broadcast %cst_63 : f32 to vector<2x256xf32>
    %273 = arith.mulf %271, %272 : vector<2x256xf32>
    %274 = arith.truncf %273 : vector<2x256xf32> to vector<2x256xbf16>
    %275 = vector.extract_strided_slice %264 {offsets = [1, 0, 0, 0], sizes = [1, 1, 2, 256], strides = [1, 1, 1, 1]} : vector<2x2x2x256xf32> to vector<1x1x2x256xf32>
    %cst_64 = arith.constant dense<0.000000e+00> : vector<2x256xf32>
    %276 = vector.multi_reduction <add>, %275, %cst_64 [0, 1] : vector<1x1x2x256xf32> to vector<2x256xf32>
    %cst_65 = arith.constant 1.000000e+00 : f32
    %277 = vector.broadcast %cst_65 : f32 to vector<2x256xf32>
    %278 = arith.mulf %276, %277 : vector<2x256xf32>
    %279 = arith.truncf %278 : vector<2x256xf32> to vector<2x256xbf16>
    %280 = vector.extract_strided_slice %264 {offsets = [1, 1, 0, 0], sizes = [1, 1, 2, 256], strides = [1, 1, 1, 1]} : vector<2x2x2x256xf32> to vector<1x1x2x256xf32>
    %cst_66 = arith.constant dense<0.000000e+00> : vector<2x256xf32>
    %281 = vector.multi_reduction <add>, %280, %cst_66 [0, 1] : vector<1x1x2x256xf32> to vector<2x256xf32>
    %cst_67 = arith.constant 1.000000e+00 : f32
    %282 = vector.broadcast %cst_67 : f32 to vector<2x256xf32>
    %283 = arith.mulf %281, %282 : vector<2x256xf32>
    %284 = arith.truncf %283 : vector<2x256xf32> to vector<2x256xbf16>
    %c0_68 = arith.constant 0 : index
    %c0_69 = arith.constant 0 : index
    %285 = vector.load %arg2[%c0_68, %c0_69] : memref<2x10xf32, #tpu.memory_space<vmem>>, vector<2x10xf32>
    %286 = arith.truncf %285 : vector<2x10xf32> to vector<2x10xbf16>
    %287 = tpu.concatenate %269, %274, %279, %284, %286 in 1 : vector<2x256xbf16>, vector<2x256xbf16>, vector<2x256xbf16>, vector<2x256xbf16>, vector<2x10xbf16> -> vector<2x1034xbf16>
    %c0_70 = arith.constant 0 : index
    %c0_71 = arith.constant 0 : index
    %288 = vector.load %arg11[%c0_70, %c0_71] : memref<1034x32xbf16, #tpu.memory_space<vmem>>, vector<1034x32xbf16>
    %cst_72 = arith.constant dense<0.000000e+00> : vector<2x32xf32>
    %289 = tpu.matmul %287, %288, %cst_72 {dimension_numbers = #tpu.dot_dimension_numbers<[1], [0], [0], [1], [0, 0, 1, 1], [], []>} : vector<2x1034xbf16>, vector<1034x32xbf16>, vector<2x32xf32> -> vector<2x32xf32>
    %c0_73 = arith.constant 0 : index
    %c0_74 = arith.constant 0 : index
    %290 = vector.load %arg12[%c0_73, %c0_74] : memref<1x32xf32, #tpu.memory_space<vmem>>, vector<1x32xf32>
    %291 = vector.broadcast %290 : vector<1x32xf32> to vector<2x32xf32>
    %292 = arith.addf %289, %291 : vector<2x32xf32>
    %c0_75 = arith.constant 0 : index
    %c0_76 = arith.constant 0 : index
    %293 = vector.load %arg13[%c0_75, %c0_76] : memref<2x32xf32, #tpu.memory_space<vmem>>, vector<2x32xf32>
    tpu.vector_store %arg13[%c0_75, %c0_76], %292 {strides = array<i32>} : memref<2x32xf32, #tpu.memory_space<vmem>>, vector<2x32xf32>,
    return
  }
  func.func @transform_0(%arg0: i32) -> (i32, i32, i32, i32) {
    %c0_i32 = arith.constant 0 : i32
    %c0_i32_0 = arith.constant 0 : i32
    %c0_i32_1 = arith.constant 0 : i32
    %c0_i32_2 = arith.constant 0 : i32
    return %c0_i32, %c0_i32_0, %arg0, %c0_i32_1 : i32, i32, i32, i32
  }
  func.func @transform_1(%arg0: i32) -> (i32, i32) {
    %c0_i32 = arith.constant 0 : i32
    %c0_i32_0 = arith.constant 0 : i32
    return %arg0, %c0_i32 : i32, i32
  }
  func.func @transform_2(%arg0: i32) -> (i32, i32) {
    %c0_i32 = arith.constant 0 : i32
    %c0_i32_0 = arith.constant 0 : i32
    %c0_i32_1 = arith.constant 0 : i32
    return %c0_i32, %c0_i32_0 : i32, i32
  }
  func.func @transform_3(%arg0: i32) -> (i32, i32) {
    %c0_i32 = arith.constant 0 : i32
    %c0_i32_0 = arith.constant 0 : i32
    %c0_i32_1 = arith.constant 0 : i32
    return %c0_i32, %c0_i32_0 : i32, i32
  }
  func.func @transform_4(%arg0: i32) -> (i32, i32) {
    %c0_i32 = arith.constant 0 : i32
    %c0_i32_0 = arith.constant 0 : i32
    %c0_i32_1 = arith.constant 0 : i32
    return %c0_i32, %c0_i32_0 : i32, i32
  }
  func.func @transform_5(%arg0: i32) -> (i32, i32) {
    %c0_i32 = arith.constant 0 : i32
    %c0_i32_0 = arith.constant 0 : i32
    %c0_i32_1 = arith.constant 0 : i32
    return %c0_i32, %c0_i32_0 : i32, i32
  }
  func.func @transform_6(%arg0: i32) -> (i32, i32) {
    %c0_i32 = arith.constant 0 : i32
    %c0_i32_0 = arith.constant 0 : i32
    %c0_i32_1 = arith.constant 0 : i32
    return %c0_i32, %c0_i32_0 : i32, i32
  }
  func.func @transform_7(%arg0: i32) -> (i32, i32) {
    %c0_i32 = arith.constant 0 : i32
    %c0_i32_0 = arith.constant 0 : i32
    %c0_i32_1 = arith.constant 0 : i32
    return %c0_i32, %c0_i32_0 : i32, i32
  }
  func.func @transform_8(%arg0: i32) -> (i32, i32) {
    %c0_i32 = arith.constant 0 : i32
    %c0_i32_0 = arith.constant 0 : i32
    %c0_i32_1 = arith.constant 0 : i32
    return %c0_i32, %c0_i32_0 : i32, i32
  }
  func.func @transform_9(%arg0: i32) -> (i32, i32) {
    %c0_i32 = arith.constant 0 : i32
    %c0_i32_0 = arith.constant 0 : i32
    %c0_i32_1 = arith.constant 0 : i32
    return %c0_i32, %c0_i32_0 : i32, i32
  }
  func.func @transform_10(%arg0: i32) -> (i32, i32) {
    %c0_i32 = arith.constant 0 : i32
    %c0_i32_0 = arith.constant 0 : i32
    %c0_i32_1 = arith.constant 0 : i32
    return %c0_i32, %c0_i32_0 : i32, i32
  }
  func.func @transform_11(%arg0: i32) -> (i32, i32) {
    %c0_i32 = arith.constant 0 : i32
    %c0_i32_0 = arith.constant 0 : i32
    %c0_i32_1 = arith.constant 0 : i32
    return %c0_i32, %c0_i32_0 : i32, i32
  }
  func.func @transform_12(%arg0: i32) -> (i32, i32) {
    %c0_i32 = arith.constant 0 : i32
    %c0_i32_0 = arith.constant 0 : i32
    return %arg0, %c0_i32 : i32, i32
  }
}

</mosaic_0001>

<llo_original>
// kernel: conv_encoder_forward.1
$region0: #{conv_encoder_forward.1}
  #allocation0 [shape = 'u32[]', space=smem, size = 0x4, offset = 0x4, fixed_abs, tag = 'smem constant byte address 0x4 - core index']
  #allocation1 [shape = 'u32[144,128]{1,0:T(1,128)}', space=vmem, size = 0x12000, scoped, tag = 'internal scratch']
  %s0 = inlined_call_operand.vmem [shape: f32[16,16,2,16], index: 0, kind: input, shape index: {}]
  %s1 = inlined_call_operand.vmem [shape: f32[2,10], index: 1, kind: input, shape index: {}]
  %s2 = inlined_call_operand.vmem [shape: f32[16,32], index: 2, kind: input, shape index: {}]
  %s3 = inlined_call_operand.vmem [shape: f32[1,32], index: 3, kind: input, shape index: {}]
  %s4 = inlined_call_operand.vmem [shape: bf16[512,64], index: 4, kind: input, shape index: {}]
  %s5 = inlined_call_operand.vmem [shape: f32[1,64], index: 5, kind: input, shape index: {}]
  %s6 = inlined_call_operand.vmem [shape: bf16[1024,128], index: 6, kind: input, shape index: {}]
  %s7 = inlined_call_operand.vmem [shape: f32[1,128], index: 7, kind: input, shape index: {}]
  %s8 = inlined_call_operand.vmem [shape: bf16[2048,256], index: 8, kind: input, shape index: {}]
  %s9 = inlined_call_operand.vmem [shape: f32[1,256], index: 9, kind: input, shape index: {}]
  %s10 = inlined_call_operand.vmem [shape: bf16[1034,32], index: 10, kind: input, shape index: {}]
  %s11 = inlined_call_operand.vmem [shape: f32[1,32], index: 11, kind: input, shape index: {}]
  %s12 = inlined_call_operand.vmem [shape: f32[2,32], index: 12, kind: output, shape index: {}]
  %s13 = sld [smem:[#allocation0]]
  $region58: #{conv_encoder_forward.1} parent=0
    _
  %s15 = ssub.s32 1, %s13
  %s16 = scalar_select 0, %s15, %s13
  // Predicated region
  $region2: #{conv_encoder_forward.1} parent=0 // pred_check
    _
  $region3: #{conv_encoder_forward.1} parent=0 // pred_check_branch
    %18 = sbr.rel (0) target = $region5
  $region4: #{conv_encoder_forward.1} parent=0 // pred_region
    _
  $region5: #{conv_encoder_forward.1} parent=0 // pred_fallthru
    _
  // Predicated region
  $region6: #{conv_encoder_forward.1} parent=0 // pred_check
    _
  $region7: #{conv_encoder_forward.1} parent=0 // pred_check_branch
    %20 = sbr.rel (0) target = $region9
  $region8: #{conv_encoder_forward.1} parent=0 // pred_region
    _
  $region9: #{conv_encoder_forward.1} parent=0 // pred_fallthru
    _
  // Predicated region
  $region10: #{conv_encoder_forward.1} parent=0 // pred_check
    _
  $region11: #{conv_encoder_forward.1} parent=0 // pred_check_branch
    %22 = sbr.rel (0) target = $region13
  $region12: #{conv_encoder_forward.1} parent=0 // pred_region
    _
  $region13: #{conv_encoder_forward.1} parent=0 // pred_fallthru
    _
  // Predicated region
  $region14: #{conv_encoder_forward.1} parent=0 // pred_check
    _
  $region15: #{conv_encoder_forward.1} parent=0 // pred_check_branch
    %24 = sbr.rel (0) target = $region17
  $region16: #{conv_encoder_forward.1} parent=0 // pred_region
    _
  $region17: #{conv_encoder_forward.1} parent=0 // pred_fallthru
    _
  // Predicated region
  $region18: #{conv_encoder_forward.1} parent=0 // pred_check
    _
  $region19: #{conv_encoder_forward.1} parent=0 // pred_check_branch
    %26 = sbr.rel (0) target = $region21
  $region20: #{conv_encoder_forward.1} parent=0 // pred_region
    _
  $region21: #{conv_encoder_forward.1} parent=0 // pred_fallthru
    _
  // Predicated region
  $region22: #{conv_encoder_forward.1} parent=0 // pred_check
    _
  $region23: #{conv_encoder_forward.1} parent=0 // pred_check_branch
    %28 = sbr.rel (0) target = $region25
  $region24: #{conv_encoder_forward.1} parent=0 // pred_region
    _
  $region25: #{conv_encoder_forward.1} parent=0 // pred_fallthru
    _
  // Predicated region
  $region26: #{conv_encoder_forward.1} parent=0 // pred_check
    _
  $region27: #{conv_encoder_forward.1} parent=0 // pred_check_branch
    %30 = sbr.rel (0) target = $region29
  $region28: #{conv_encoder_forward.1} parent=0 // pred_region
    _
  $region29: #{conv_encoder_forward.1} parent=0 // pred_fallthru
    _
  // Predicated region
  $region30: #{conv_encoder_forward.1} parent=0 // pred_check
    _
  $region31: #{conv_encoder_forward.1} parent=0 // pred_check_branch
    %32 = sbr.rel (0) target = $region33
  $region32: #{conv_encoder_forward.1} parent=0 // pred_region
    _
  $region33: #{conv_encoder_forward.1} parent=0 // pred_fallthru
    _
  // Predicated region
  $region34: #{conv_encoder_forward.1} parent=0 // pred_check
    _
  $region35: #{conv_encoder_forward.1} parent=0 // pred_check_branch
    %34 = sbr.rel (0) target = $region37
  $region36: #{conv_encoder_forward.1} parent=0 // pred_region
    _
  $region37: #{conv_encoder_forward.1} parent=0 // pred_fallthru
    _
  // Predicated region
  $region38: #{conv_encoder_forward.1} parent=0 // pred_check
    _
  $region39: #{conv_encoder_forward.1} parent=0 // pred_check_branch
    %36 = sbr.rel (0) target = $region41
  $region40: #{conv_encoder_forward.1} parent=0 // pred_region
    _
  $region41: #{conv_encoder_forward.1} parent=0 // pred_fallthru
    _
  // Predicated region
  $region42: #{conv_encoder_forward.1} parent=0 // pred_check
    _
  $region43: #{conv_encoder_forward.1} parent=0 // pred_check_branch
    %38 = sbr.rel (0) target = $region45
  $region44: #{conv_encoder_forward.1} parent=0 // pred_region
    _
  $region45: #{conv_encoder_forward.1} parent=0 // pred_fallthru
    _
  // Predicated region
  $region46: #{conv_encoder_forward.1} parent=0 // pred_check
    _
  $region47: #{conv_encoder_forward.1} parent=0 // pred_check_branch
    %40 = sbr.rel (0) target = $region49
  $region48: #{conv_encoder_forward.1} parent=0 // pred_region
    _
  $region49: #{conv_encoder_forward.1} parent=0 // pred_fallthru
    _
  %v42 = vld [vmem:[%s0] sm:$0x3]
  %v43 = vld [vmem:[%s0 + $0x2] sm:$0x3]
  %v44 = vld [vmem:[%s0 + $0x4] sm:$0x3]
  %v45 = vld [vmem:[%s0 + $0x6] sm:$0x3]
  %v46 = vld [vmem:[%s0 + $0x8] sm:$0x3]
  %v47 = vld [vmem:[%s0 + $0xa] sm:$0x3]
  %v48 = vld [vmem:[%s0 + $0xc] sm:$0x3]
  %v49 = vld [vmem:[%s0 + $0xe] sm:$0x3]
  %v50 = vld [vmem:[%s0 + $0x10] sm:$0x3]
  %v51 = vld [vmem:[%s0 + $0x12] sm:$0x3]
  %v52 = vld [vmem:[%s0 + $0x14] sm:$0x3]
  %v53 = vld [vmem:[%s0 + $0x16] sm:$0x3]
  %v54 = vld [vmem:[%s0 + $0x18] sm:$0x3]
  %v55 = vld [vmem:[%s0 + $0x1a] sm:$0x3]
  %v56 = vld [vmem:[%s0 + $0x1c] sm:$0x3]
  %v57 = vld [vmem:[%s0 + $0x1e] sm:$0x3]
  %v58 = vld [vmem:[%s0 + $0x20] sm:$0x3]
  %v59 = vld [vmem:[%s0 + $0x22] sm:$0x3]
  %v60 = vld [vmem:[%s0 + $0x24] sm:$0x3]
  %v61 = vld [vmem:[%s0 + $0x26] sm:$0x3]
  %v62 = vld [vmem:[%s0 + $0x28] sm:$0x3]
  %v63 = vld [vmem:[%s0 + $0x2a] sm:$0x3]
  %v64 = vld [vmem:[%s0 + $0x2c] sm:$0x3]
  %v65 = vld [vmem:[%s0 + $0x2e] sm:$0x3]
  %v66 = vld [vmem:[%s0 + $0x30] sm:$0x3]
  %v67 = vld [vmem:[%s0 + $0x32] sm:$0x3]
  %v68 = vld [vmem:[%s0 + $0x34] sm:$0x3]
  %v69 = vld [vmem:[%s0 + $0x36] sm:$0x3]
  %v70 = vld [vmem:[%s0 + $0x38] sm:$0x3]
  %v71 = vld [vmem:[%s0 + $0x3a] sm:$0x3]
  %v72 = vld [vmem:[%s0 + $0x3c] sm:$0x3]
  %v73 = vld [vmem:[%s0 + $0x3e] sm:$0x3]
  %v74 = vld [vmem:[%s0 + $0x40] sm:$0x3]
  %v75 = vld [vmem:[%s0 + $0x42] sm:$0x3]
  %v76 = vld [vmem:[%s0 + $0x44] sm:$0x3]
  %v77 = vld [vmem:[%s0 + $0x46] sm:$0x3]
  %v78 = vld [vmem:[%s0 + $0x48] sm:$0x3]
  %v79 = vld [vmem:[%s0 + $0x4a] sm:$0x3]
  %v80 = vld [vmem:[%s0 + $0x4c] sm:$0x3]
  %v81 = vld [vmem:[%s0 + $0x4e] sm:$0x3]
  %v82 = vld [vmem:[%s0 + $0x50] sm:$0x3]
  %v83 = vld [vmem:[%s0 + $0x52] sm:$0x3]
  %v84 = vld [vmem:[%s0 + $0x54] sm:$0x3]
  %v85 = vld [vmem:[%s0 + $0x56] sm:$0x3]
  %v86 = vld [vmem:[%s0 + $0x58] sm:$0x3]
  %v87 = vld [vmem:[%s0 + $0x5a] sm:$0x3]
  %v88 = vld [vmem:[%s0 + $0x5c] sm:$0x3]
  %v89 = vld [vmem:[%s0 + $0x5e] sm:$0x3]
  %v90 = vld [vmem:[%s0 + $0x60] sm:$0x3]
  %v91 = vld [vmem:[%s0 + $0x62] sm:$0x3]
  %v92 = vld [vmem:[%s0 + $0x64] sm:$0x3]
  %v93 = vld [vmem:[%s0 + $0x66] sm:$0x3]
  %v94 = vld [vmem:[%s0 + $0x68] sm:$0x3]
  %v95 = vld [vmem:[%s0 + $0x6a] sm:$0x3]
  %v96 = vld [vmem:[%s0 + $0x6c] sm:$0x3]
  %v97 = vld [vmem:[%s0 + $0x6e] sm:$0x3]
  %v98 = vld [vmem:[%s0 + $0x70] sm:$0x3]
  %v99 = vld [vmem:[%s0 + $0x72] sm:$0x3]
  %v100 = vld [vmem:[%s0 + $0x74] sm:$0x3]
  %v101 = vld [vmem:[%s0 + $0x76] sm:$0x3]
  %v102 = vld [vmem:[%s0 + $0x78] sm:$0x3]
  %v103 = vld [vmem:[%s0 + $0x7a] sm:$0x3]
  %v104 = vld [vmem:[%s0 + $0x7c] sm:$0x3]
  %v105 = vld [vmem:[%s0 + $0x7e] sm:$0x3]
  %v106 = vld [vmem:[%s0 + $0x80] sm:$0x3]
  %v107 = vld [vmem:[%s0 + $0x82] sm:$0x3]
  %v108 = vld [vmem:[%s0 + $0x84] sm:$0x3]
  %v109 = vld [vmem:[%s0 + $0x86] sm:$0x3]
  %v110 = vld [vmem:[%s0 + $0x88] sm:$0x3]
  %v111 = vld [vmem:[%s0 + $0x8a] sm:$0x3]
  %v112 = vld [vmem:[%s0 + $0x8c] sm:$0x3]
  %v113 = vld [vmem:[%s0 + $0x8e] sm:$0x3]
  %v114 = vld [vmem:[%s0 + $0x90] sm:$0x3]
  %v115 = vld [vmem:[%s0 + $0x92] sm:$0x3]
  %v116 = vld [vmem:[%s0 + $0x94] sm:$0x3]
  %v117 = vld [vmem:[%s0 + $0x96] sm:$0x3]
  %v118 = vld [vmem:[%s0 + $0x98] sm:$0x3]
  %v119 = vld [vmem:[%s0 + $0x9a] sm:$0x3]
  %v120 = vld [vmem:[%s0 + $0x9c] sm:$0x3]
  %v121 = vld [vmem:[%s0 + $0x9e] sm:$0x3]
  %v122 = vld [vmem:[%s0 + $0xa0] sm:$0x3]
  %v123 = vld [vmem:[%s0 + $0xa2] sm:$0x3]
  %v124 = vld [vmem:[%s0 + $0xa4] sm:$0x3]
  %v125 = vld [vmem:[%s0 + $0xa6] sm:$0x3]
  %v126 = vld [vmem:[%s0 + $0xa8] sm:$0x3]
  %v127 = vld [vmem:[%s0 + $0xaa] sm:$0x3]
  %v128 = vld [vmem:[%s0 + $0xac] sm:$0x3]
  %v129 = vld [vmem:[%s0 + $0xae] sm:$0x3]
  %v130 = vld [vmem:[%s0 + $0xb0] sm:$0x3]
  %v131 = vld [vmem:[%s0 + $0xb2] sm:$0x3]
  %v132 = vld [vmem:[%s0 + $0xb4] sm:$0x3]
  %v133 = vld [vmem:[%s0 + $0xb6] sm:$0x3]
  %v134 = vld [vmem:[%s0 + $0xb8] sm:$0x3]
  %v135 = vld [vmem:[%s0 + $0xba] sm:$0x3]
  %v136 = vld [vmem:[%s0 + $0xbc] sm:$0x3]
  %v137 = vld [vmem:[%s0 + $0xbe] sm:$0x3]
  %v138 = vld [vmem:[%s0 + $0xc0] sm:$0x3]
  %v139 = vld [vmem:[%s0 + $0xc2] sm:$0x3]
  %v140 = vld [vmem:[%s0 + $0xc4] sm:$0x3]
  %v141 = vld [vmem:[%s0 + $0xc6] sm:$0x3]
  %v142 = vld [vmem:[%s0 + $0xc8] sm:$0x3]
  %v143 = vld [vmem:[%s0 + $0xca] sm:$0x3]
  %v144 = vld [vmem:[%s0 + $0xcc] sm:$0x3]
  %v145 = vld [vmem:[%s0 + $0xce] sm:$0x3]
  %v146 = vld [vmem:[%s0 + $0xd0] sm:$0x3]
  %v147 = vld [vmem:[%s0 + $0xd2] sm:$0x3]
  %v148 = vld [vmem:[%s0 + $0xd4] sm:$0x3]
  %v149 = vld [vmem:[%s0 + $0xd6] sm:$0x3]
  %v150 = vld [vmem:[%s0 + $0xd8] sm:$0x3]
  %v151 = vld [vmem:[%s0 + $0xda] sm:$0x3]
  %v152 = vld [vmem:[%s0 + $0xdc] sm:$0x3]
  %v153 = vld [vmem:[%s0 + $0xde] sm:$0x3]
  %v154 = vld [vmem:[%s0 + $0xe0] sm:$0x3]
  %v155 = vld [vmem:[%s0 + $0xe2] sm:$0x3]
  %v156 = vld [vmem:[%s0 + $0xe4] sm:$0x3]
  %v157 = vld [vmem:[%s0 + $0xe6] sm:$0x3]
  %v158 = vld [vmem:[%s0 + $0xe8] sm:$0x3]
  %v159 = vld [vmem:[%s0 + $0xea] sm:$0x3]
  %v160 = vld [vmem:[%s0 + $0xec] sm:$0x3]
  %v161 = vld [vmem:[%s0 + $0xee] sm:$0x3]
  %v162 = vld [vmem:[%s0 + $0xf0] sm:$0x3]
  %v163 = vld [vmem:[%s0 + $0xf2] sm:$0x3]
  %v164 = vld [vmem:[%s0 + $0xf4] sm:$0x3]
  %v165 = vld [vmem:[%s0 + $0xf6] sm:$0x3]
  %v166 = vld [vmem:[%s0 + $0xf8] sm:$0x3]
  %v167 = vld [vmem:[%s0 + $0xfa] sm:$0x3]
  %v168 = vld [vmem:[%s0 + $0xfc] sm:$0x3]
  %v169 = vld [vmem:[%s0 + $0xfe] sm:$0x3]
  %v170 = vld [vmem:[%s0 + $0x100] sm:$0x3]
  %v171 = vld [vmem:[%s0 + $0x102] sm:$0x3]
  %v172 = vld [vmem:[%s0 + $0x104] sm:$0x3]
  %v173 = vld [vmem:[%s0 + $0x106] sm:$0x3]
  %v174 = vld [vmem:[%s0 + $0x108] sm:$0x3]
  %v175 = vld [vmem:[%s0 + $0x10a] sm:$0x3]
  %v176 = vld [vmem:[%s0 + $0x10c] sm:$0x3]
  %v177 = vld [vmem:[%s0 + $0x10e] sm:$0x3]
  %v178 = vld [vmem:[%s0 + $0x110] sm:$0x3]
  %v179 = vld [vmem:[%s0 + $0x112] sm:$0x3]
  %v180 = vld [vmem:[%s0 + $0x114] sm:$0x3]
  %v181 = vld [vmem:[%s0 + $0x116] sm:$0x3]
  %v182 = vld [vmem:[%s0 + $0x118] sm:$0x3]
  %v183 = vld [vmem:[%s0 + $0x11a] sm:$0x3]
  %v184 = vld [vmem:[%s0 + $0x11c] sm:$0x3]
  %v185 = vld [vmem:[%s0 + $0x11e] sm:$0x3]
  %v186 = vld [vmem:[%s0 + $0x120] sm:$0x3]
  %v187 = vld [vmem:[%s0 + $0x122] sm:$0x3]
  %v188 = vld [vmem:[%s0 + $0x124] sm:$0x3]
  %v189 = vld [vmem:[%s0 + $0x126] sm:$0x3]
  %v190 = vld [vmem:[%s0 + $0x128] sm:$0x3]
  %v191 = vld [vmem:[%s0 + $0x12a] sm:$0x3]
  %v192 = vld [vmem:[%s0 + $0x12c] sm:$0x3]
  %v193 = vld [vmem:[%s0 + $0x12e] sm:$0x3]
  %v194 = vld [vmem:[%s0 + $0x130] sm:$0x3]
  %v195 = vld [vmem:[%s0 + $0x132] sm:$0x3]
  %v196 = vld [vmem:[%s0 + $0x134] sm:$0x3]
  %v197 = vld [vmem:[%s0 + $0x136] sm:$0x3]
  %v198 = vld [vmem:[%s0 + $0x138] sm:$0x3]
  %v199 = vld [vmem:[%s0 + $0x13a] sm:$0x3]
  %v200 = vld [vmem:[%s0 + $0x13c] sm:$0x3]
  %v201 = vld [vmem:[%s0 + $0x13e] sm:$0x3]
  %v202 = vld [vmem:[%s0 + $0x140] sm:$0x3]
  %v203 = vld [vmem:[%s0 + $0x142] sm:$0x3]
  %v204 = vld [vmem:[%s0 + $0x144] sm:$0x3]
  %v205 = vld [vmem:[%s0 + $0x146] sm:$0x3]
  %v206 = vld [vmem:[%s0 + $0x148] sm:$0x3]
  %v207 = vld [vmem:[%s0 + $0x14a] sm:$0x3]
  %v208 = vld [vmem:[%s0 + $0x14c] sm:$0x3]
  %v209 = vld [vmem:[%s0 + $0x14e] sm:$0x3]
  %v210 = vld [vmem:[%s0 + $0x150] sm:$0x3]
  %v211 = vld [vmem:[%s0 + $0x152] sm:$0x3]
  %v212 = vld [vmem:[%s0 + $0x154] sm:$0x3]
  %v213 = vld [vmem:[%s0 + $0x156] sm:$0x3]
  %v214 = vld [vmem:[%s0 + $0x158] sm:$0x3]
  %v215 = vld [vmem:[%s0 + $0x15a] sm:$0x3]
  %v216 = vld [vmem:[%s0 + $0x15c] sm:$0x3]
  %v217 = vld [vmem:[%s0 + $0x15e] sm:$0x3]
  %v218 = vld [vmem:[%s0 + $0x160] sm:$0x3]
  %v219 = vld [vmem:[%s0 + $0x162] sm:$0x3]
  %v220 = vld [vmem:[%s0 + $0x164] sm:$0x3]
  %v221 = vld [vmem:[%s0 + $0x166] sm:$0x3]
  %v222 = vld [vmem:[%s0 + $0x168] sm:$0x3]
  %v223 = vld [vmem:[%s0 + $0x16a] sm:$0x3]
  %v224 = vld [vmem:[%s0 + $0x16c] sm:$0x3]
  %v225 = vld [vmem:[%s0 + $0x16e] sm:$0x3]
  %v226 = vld [vmem:[%s0 + $0x170] sm:$0x3]
  %v227 = vld [vmem:[%s0 + $0x172] sm:$0x3]
  %v228 = vld [vmem:[%s0 + $0x174] sm:$0x3]
  %v229 = vld [vmem:[%s0 + $0x176] sm:$0x3]
  %v230 = vld [vmem:[%s0 + $0x178] sm:$0x3]
  %v231 = vld [vmem:[%s0 + $0x17a] sm:$0x3]
  %v232 = vld [vmem:[%s0 + $0x17c] sm:$0x3]
  %v233 = vld [vmem:[%s0 + $0x17e] sm:$0x3]
  %v234 = vld [vmem:[%s0 + $0x180] sm:$0x3]
  %v235 = vld [vmem:[%s0 + $0x182] sm:$0x3]
  %v236 = vld [vmem:[%s0 + $0x184] sm:$0x3]
  %v237 = vld [vmem:[%s0 + $0x186] sm:$0x3]
  %v238 = vld [vmem:[%s0 + $0x188] sm:$0x3]
  %v239 = vld [vmem:[%s0 + $0x18a] sm:$0x3]
  %v240 = vld [vmem:[%s0 + $0x18c] sm:$0x3]
  %v241 = vld [vmem:[%s0 + $0x18e] sm:$0x3]
  %v242 = vld [vmem:[%s0 + $0x190] sm:$0x3]
  %v243 = vld [vmem:[%s0 + $0x192] sm:$0x3]
  %v244 = vld [vmem:[%s0 + $0x194] sm:$0x3]
  %v245 = vld [vmem:[%s0 + $0x196] sm:$0x3]
  %v246 = vld [vmem:[%s0 + $0x198] sm:$0x3]
  %v247 = vld [vmem:[%s0 + $0x19a] sm:$0x3]
  %v248 = vld [vmem:[%s0 + $0x19c] sm:$0x3]
  %v249 = vld [vmem:[%s0 + $0x19e] sm:$0x3]
  %v250 = vld [vmem:[%s0 + $0x1a0] sm:$0x3]
  %v251 = vld [vmem:[%s0 + $0x1a2] sm:$0x3]
  %v252 = vld [vmem:[%s0 + $0x1a4] sm:$0x3]
  %v253 = vld [vmem:[%s0 + $0x1a6] sm:$0x3]
  %v254 = vld [vmem:[%s0 + $0x1a8] sm:$0x3]
  %v255 = vld [vmem:[%s0 + $0x1aa] sm:$0x3]
  %v256 = vld [vmem:[%s0 + $0x1ac] sm:$0x3]
  %v257 = vld [vmem:[%s0 + $0x1ae] sm:$0x3]
  %v258 = vld [vmem:[%s0 + $0x1b0] sm:$0x3]
  %v259 = vld [vmem:[%s0 + $0x1b2] sm:$0x3]
  %v260 = vld [vmem:[%s0 + $0x1b4] sm:$0x3]
  %v261 = vld [vmem:[%s0 + $0x1b6] sm:$0x3]
  %v262 = vld [vmem:[%s0 + $0x1b8] sm:$0x3]
  %v263 = vld [vmem:[%s0 + $0x1ba] sm:$0x3]
  %v264 = vld [vmem:[%s0 + $0x1bc] sm:$0x3]
  %v265 = vld [vmem:[%s0 + $0x1be] sm:$0x3]
  %v266 = vld [vmem:[%s0 + $0x1c0] sm:$0x3]
  %v267 = vld [vmem:[%s0 + $0x1c2] sm:$0x3]
  %v268 = vld [vmem:[%s0 + $0x1c4] sm:$0x3]
  %v269 = vld [vmem:[%s0 + $0x1c6] sm:$0x3]
  %v270 = vld [vmem:[%s0 + $0x1c8] sm:$0x3]
  %v271 = vld [vmem:[%s0 + $0x1ca] sm:$0x3]
  %v272 = vld [vmem:[%s0 + $0x1cc] sm:$0x3]
  %v273 = vld [vmem:[%s0 + $0x1ce] sm:$0x3]
  %v274 = vld [vmem:[%s0 + $0x1d0] sm:$0x3]
  %v275 = vld [vmem:[%s0 + $0x1d2] sm:$0x3]
  %v276 = vld [vmem:[%s0 + $0x1d4] sm:$0x3]
  %v277 = vld [vmem:[%s0 + $0x1d6] sm:$0x3]
  %v278 = vld [vmem:[%s0 + $0x1d8] sm:$0x3]
  %v279 = vld [vmem:[%s0 + $0x1da] sm:$0x3]
  %v280 = vld [vmem:[%s0 + $0x1dc] sm:$0x3]
  %v281 = vld [vmem:[%s0 + $0x1de] sm:$0x3]
  %v282 = vld [vmem:[%s0 + $0x1e0] sm:$0x3]
  %v283 = vld [vmem:[%s0 + $0x1e2] sm:$0x3]
  %v284 = vld [vmem:[%s0 + $0x1e4] sm:$0x3]
  %v285 = vld [vmem:[%s0 + $0x1e6] sm:$0x3]
  %v286 = vld [vmem:[%s0 + $0x1e8] sm:$0x3]
  %v287 = vld [vmem:[%s0 + $0x1ea] sm:$0x3]
  %v288 = vld [vmem:[%s0 + $0x1ec] sm:$0x3]
  %v289 = vld [vmem:[%s0 + $0x1ee] sm:$0x3]
  %v290 = vld [vmem:[%s0 + $0x1f0] sm:$0x3]
  %v291 = vld [vmem:[%s0 + $0x1f2] sm:$0x3]
  %v292 = vld [vmem:[%s0 + $0x1f4] sm:$0x3]
  %v293 = vld [vmem:[%s0 + $0x1f6] sm:$0x3]
  %v294 = vld [vmem:[%s0 + $0x1f8] sm:$0x3]
  %v295 = vld [vmem:[%s0 + $0x1fa] sm:$0x3]
  %v296 = vld [vmem:[%s0 + $0x1fc] sm:$0x3]
  %v297 = vld [vmem:[%s0 + $0x1fe] sm:$0x3]
  %v298 = vld [vmem:[%s2] sm:$0xff]
  %v299 = vld [vmem:[%s2 + $0x8] sm:$0xff]
  %v300 = vld [vmem:[%s3] sm:$0x1]
  %v302 = vlaneseq
  %v303 = vshrl.u32 %v302, 7
  %v304 = vsub.s32 0, %v303
  %v305 = vrot.slane %v300, %v304
  %v563 = vcombine.low %v42, %v43
  %v564 = vcombine.low %v44, %v45
  %v566 = vunpack.c.l.s4 1983009808
  %v567 = vunpack.c.0.s8 %v566
  %v568 = vlaneseq
  %v569 = vshrl.u32 %v568, 7
  %v570 = vsub.s32 %v567, %v569
  %v571 = vrot.slane %v563, %v570
  %v573 = vunpack.c.l.s4 1983009808
  %v574 = vunpack.c.0.s8 %v573
  %v575 = vlaneseq
  %v576 = vshrl.u32 %v575, 7
  %v577 = vsub.s32 %v574, %v576
  %v578 = vrot.slane %v564, %v577
  %v579 = vcombine.low %v571, %v578
  %v580 = vcombine.low %v46, %v47
  %v581 = vcombine.low %v48, %v49
  %v583 = vunpack.c.l.s4 1983009808
  %v584 = vunpack.c.0.s8 %v583
  %v585 = vlaneseq
  %v586 = vshrl.u32 %v585, 7
  %v587 = vsub.s32 %v584, %v586
  %v588 = vrot.slane %v580, %v587
  %v590 = vunpack.c.l.s4 1983009808
  %v591 = vunpack.c.0.s8 %v590
  %v592 = vlaneseq
  %v593 = vshrl.u32 %v592, 7
  %v594 = vsub.s32 %v591, %v593
  %v595 = vrot.slane %v581, %v594
  %v596 = vcombine.low %v588, %v595
  %v597 = vcombine.low %v50, %v51
  %v598 = vcombine.low %v52, %v53
  %v600 = vunpack.c.l.s4 1983009808
  %v601 = vunpack.c.0.s8 %v600
  %v602 = vlaneseq
  %v603 = vshrl.u32 %v602, 7
  %v604 = vsub.s32 %v601, %v603
  %v605 = vrot.slane %v597, %v604
  %v607 = vunpack.c.l.s4 1983009808
  %v608 = vunpack.c.0.s8 %v607
  %v609 = vlaneseq
  %v610 = vshrl.u32 %v609, 7
  %v611 = vsub.s32 %v608, %v610
  %v612 = vrot.slane %v598, %v611
  %v613 = vcombine.low %v605, %v612
  %v614 = vcombine.low %v54, %v55
  %v615 = vcombine.low %v56, %v57
  %v617 = vunpack.c.l.s4 1983009808
  %v618 = vunpack.c.0.s8 %v617
  %v619 = vlaneseq
  %v620 = vshrl.u32 %v619, 7
  %v621 = vsub.s32 %v618, %v620
  %v622 = vrot.slane %v614, %v621
  %v624 = vunpack.c.l.s4 1983009808
  %v625 = vunpack.c.0.s8 %v624
  %v626 = vlaneseq
  %v627 = vshrl.u32 %v626, 7
  %v628 = vsub.s32 %v625, %v627
  %v629 = vrot.slane %v615, %v628
  %v630 = vcombine.low %v622, %v629
  %v631 = vcombine.low %v58, %v59
  %v632 = vcombine.low %v60, %v61
  %v634 = vunpack.c.l.s4 1983009808
  %v635 = vunpack.c.0.s8 %v634
  %v636 = vlaneseq
  %v637 = vshrl.u32 %v636, 7
  %v638 = vsub.s32 %v635, %v637
  %v639 = vrot.slane %v631, %v638
  %v641 = vunpack.c.l.s4 1983009808
  %v642 = vunpack.c.0.s8 %v641
  %v643 = vlaneseq
  %v644 = vshrl.u32 %v643, 7
  %v645 = vsub.s32 %v642, %v644
  %v646 = vrot.slane %v632, %v645
  %v647 = vcombine.low %v639, %v646
  %v648 = vcombine.low %v62, %v63
  %v649 = vcombine.low %v64, %v65
  %v651 = vunpack.c.l.s4 1983009808
  %v652 = vunpack.c.0.s8 %v651
  %v653 = vlaneseq
  %v654 = vshrl.u32 %v653, 7
  %v655 = vsub.s32 %v652, %v654
  %v656 = vrot.slane %v648, %v655
  %v658 = vunpack.c.l.s4 1983009808
  %v659 = vunpack.c.0.s8 %v658
  %v660 = vlaneseq
  %v661 = vshrl.u32 %v660, 7
  %v662 = vsub.s32 %v659, %v661
  %v663 = vrot.slane %v649, %v662
  %v664 = vcombine.low %v656, %v663
  %v665 = vcombine.low %v66, %v67
  %v666 = vcombine.low %v68, %v69
  %v668 = vunpack.c.l.s4 1983009808
  %v669 = vunpack.c.0.s8 %v668
  %v670 = vlaneseq
  %v671 = vshrl.u32 %v670, 7
  %v672 = vsub.s32 %v669, %v671
  %v673 = vrot.slane %v665, %v672
  %v675 = vunpack.c.l.s4 1983009808
  %v676 = vunpack.c.0.s8 %v675
  %v677 = vlaneseq
  %v678 = vshrl.u32 %v677, 7
  %v679 = vsub.s32 %v676, %v678
  %v680 = vrot.slane %v666, %v679
  %v681 = vcombine.low %v673, %v680
  %v682 = vcombine.low %v70, %v71
  %v683 = vcombine.low %v72, %v73
  %v685 = vunpack.c.l.s4 1983009808
  %v686 = vunpack.c.0.s8 %v685
  %v687 = vlaneseq
  %v688 = vshrl.u32 %v687, 7
  %v689 = vsub.s32 %v686, %v688
  %v690 = vrot.slane %v682, %v689
  %v692 = vunpack.c.l.s4 1983009808
  %v693 = vunpack.c.0.s8 %v692
  %v694 = vlaneseq
  %v695 = vshrl.u32 %v694, 7
  %v696 = vsub.s32 %v693, %v695
  %v697 = vrot.slane %v683, %v696
  %v698 = vcombine.low %v690, %v697
  %v699 = vcombine.low %v74, %v75
  %v700 = vcombine.low %v76, %v77
  %v702 = vunpack.c.l.s4 1983009808
  %v703 = vunpack.c.0.s8 %v702
  %v704 = vlaneseq
  %v705 = vshrl.u32 %v704, 7
  %v706 = vsub.s32 %v703, %v705
  %v707 = vrot.slane %v699, %v706
  %v709 = vunpack.c.l.s4 1983009808
  %v710 = vunpack.c.0.s8 %v709
  %v711 = vlaneseq
  %v712 = vshrl.u32 %v711, 7
  %v713 = vsub.s32 %v710, %v712
  %v714 = vrot.slane %v700, %v713
  %v715 = vcombine.low %v707, %v714
  %v716 = vcombine.low %v78, %v79
  %v717 = vcombine.low %v80, %v81
  %v719 = vunpack.c.l.s4 1983009808
  %v720 = vunpack.c.0.s8 %v719
  %v721 = vlaneseq
  %v722 = vshrl.u32 %v721, 7
  %v723 = vsub.s32 %v720, %v722
  %v724 = vrot.slane %v716, %v723
  %v726 = vunpack.c.l.s4 1983009808
  %v727 = vunpack.c.0.s8 %v726
  %v728 = vlaneseq
  %v729 = vshrl.u32 %v728, 7
  %v730 = vsub.s32 %v727, %v729
  %v731 = vrot.slane %v717, %v730
  %v732 = vcombine.low %v724, %v731
  %v733 = vcombine.low %v82, %v83
  %v734 = vcombine.low %v84, %v85
  %v736 = vunpack.c.l.s4 1983009808
  %v737 = vunpack.c.0.s8 %v736
  %v738 = vlaneseq
  %v739 = vshrl.u32 %v738, 7
  %v740 = vsub.s32 %v737, %v739
  %v741 = vrot.slane %v733, %v740
  %v743 = vunpack.c.l.s4 1983009808
  %v744 = vunpack.c.0.s8 %v743
  %v745 = vlaneseq
  %v746 = vshrl.u32 %v745, 7
  %v747 = vsub.s32 %v744, %v746
  %v748 = vrot.slane %v734, %v747
  %v749 = vcombine.low %v741, %v748
  %v750 = vcombine.low %v86, %v87
  %v751 = vcombine.low %v88, %v89
  %v753 = vunpack.c.l.s4 1983009808
  %v754 = vunpack.c.0.s8 %v753
  %v755 = vlaneseq
  %v756 = vshrl.u32 %v755, 7
  %v757 = vsub.s32 %v754, %v756
  %v758 = vrot.slane %v750, %v757
  %v760 = vunpack.c.l.s4 1983009808
  %v761 = vunpack.c.0.s8 %v760
  %v762 = vlaneseq
  %v763 = vshrl.u32 %v762, 7
  %v764 = vsub.s32 %v761, %v763
  %v765 = vrot.slane %v751, %v764
  %v766 = vcombine.low %v758, %v765
  %v767 = vcombine.low %v90, %v91
  %v768 = vcombine.low %v92, %v93
  %v770 = vunpack.c.l.s4 1983009808
  %v771 = vunpack.c.0.s8 %v770
  %v772 = vlaneseq
  %v773 = vshrl.u32 %v772, 7
  %v774 = vsub.s32 %v771, %v773
  %v775 = vrot.slane %v767, %v774
  %v777 = vunpack.c.l.s4 1983009808
  %v778 = vunpack.c.0.s8 %v777
  %v779 = vlaneseq
  %v780 = vshrl.u32 %v779, 7
  %v781 = vsub.s32 %v778, %v780
  %v782 = vrot.slane %v768, %v781
  %v783 = vcombine.low %v775, %v782
  %v784 = vcombine.low %v94, %v95
  %v785 = vcombine.low %v96, %v97
  %v787 = vunpack.c.l.s4 1983009808
  %v788 = vunpack.c.0.s8 %v787
  %v789 = vlaneseq
  %v790 = vshrl.u32 %v789, 7
  %v791 = vsub.s32 %v788, %v790
  %v792 = vrot.slane %v784, %v791
  %v794 = vunpack.c.l.s4 1983009808
  %v795 = vunpack.c.0.s8 %v794
  %v796 = vlaneseq
  %v797 = vshrl.u32 %v796, 7
  %v798 = vsub.s32 %v795, %v797
  %v799 = vrot.slane %v785, %v798
  %v800 = vcombine.low %v792, %v799
  %v801 = vcombine.low %v98, %v99
  %v802 = vcombine.low %v100, %v101
  %v804 = vunpack.c.l.s4 1983009808
  %v805 = vunpack.c.0.s8 %v804
  %v806 = vlaneseq
  %v807 = vshrl.u32 %v806, 7
  %v808 = vsub.s32 %v805, %v807
  %v809 = vrot.slane %v801, %v808
  %v811 = vunpack.c.l.s4 1983009808
  %v812 = vunpack.c.0.s8 %v811
  %v813 = vlaneseq
  %v814 = vshrl.u32 %v813, 7
  %v815 = vsub.s32 %v812, %v814
  %v816 = vrot.slane %v802, %v815
  %v817 = vcombine.low %v809, %v816
  %v818 = vcombine.low %v102, %v103
  %v819 = vcombine.low %v104, %v105
  %v821 = vunpack.c.l.s4 1983009808
  %v822 = vunpack.c.0.s8 %v821
  %v823 = vlaneseq
  %v824 = vshrl.u32 %v823, 7
  %v825 = vsub.s32 %v822, %v824
  %v826 = vrot.slane %v818, %v825
  %v828 = vunpack.c.l.s4 1983009808
  %v829 = vunpack.c.0.s8 %v828
  %v830 = vlaneseq
  %v831 = vshrl.u32 %v830, 7
  %v832 = vsub.s32 %v829, %v831
  %v833 = vrot.slane %v819, %v832
  %v834 = vcombine.low %v826, %v833
  %v835 = vcombine.low %v106, %v107
  %v836 = vcombine.low %v108, %v109
  %v838 = vunpack.c.l.s4 1983009808
  %v839 = vunpack.c.0.s8 %v838
  %v840 = vlaneseq
  %v841 = vshrl.u32 %v840, 7
  %v842 = vsub.s32 %v839, %v841
  %v843 = vrot.slane %v835, %v842
  %v845 = vunpack.c.l.s4 1983009808
  %v846 = vunpack.c.0.s8 %v845
  %v847 = vlaneseq
  %v848 = vshrl.u32 %v847, 7
  %v849 = vsub.s32 %v846, %v848
  %v850 = vrot.slane %v836, %v849
  %v851 = vcombine.low %v843, %v850
  %v852 = vcombine.low %v110, %v111
  %v853 = vcombine.low %v112, %v113
  %v855 = vunpack.c.l.s4 1983009808
  %v856 = vunpack.c.0.s8 %v855
  %v857 = vlaneseq
  %v858 = vshrl.u32 %v857, 7
  %v859 = vsub.s32 %v856, %v858
  %v860 = vrot.slane %v852, %v859
  %v862 = vunpack.c.l.s4 1983009808
  %v863 = vunpack.c.0.s8 %v862
  %v864 = vlaneseq
  %v865 = vshrl.u32 %v864, 7
  %v866 = vsub.s32 %v863, %v865
  %v867 = vrot.slane %v853, %v866
  %v868 = vcombine.low %v860, %v867
  %v869 = vcombine.low %v114, %v115
  %v870 = vcombine.low %v116, %v117
  %v872 = vunpack.c.l.s4 1983009808
  %v873 = vunpack.c.0.s8 %v872
  %v874 = vlaneseq
  %v875 = vshrl.u32 %v874, 7
  %v876 = vsub.s32 %v873, %v875
  %v877 = vrot.slane %v869, %v876
  %v879 = vunpack.c.l.s4 1983009808
  %v880 = vunpack.c.0.s8 %v879
  %v881 = vlaneseq
  %v882 = vshrl.u32 %v881, 7
  %v883 = vsub.s32 %v880, %v882
  %v884 = vrot.slane %v870, %v883
  %v885 = vcombine.low %v877, %v884
  %v886 = vcombine.low %v118, %v119
  %v887 = vcombine.low %v120, %v121
  %v889 = vunpack.c.l.s4 1983009808
  %v890 = vunpack.c.0.s8 %v889
  %v891 = vlaneseq
  %v892 = vshrl.u32 %v891, 7
  %v893 = vsub.s32 %v890, %v892
  %v894 = vrot.slane %v886, %v893
  %v896 = vunpack.c.l.s4 1983009808
  %v897 = vunpack.c.0.s8 %v896
  %v898 = vlaneseq
  %v899 = vshrl.u32 %v898, 7
  %v900 = vsub.s32 %v897, %v899
  %v901 = vrot.slane %v887, %v900
  %v902 = vcombine.low %v894, %v901
  %v903 = vcombine.low %v122, %v123
  %v904 = vcombine.low %v124, %v125
  %v906 = vunpack.c.l.s4 1983009808
  %v907 = vunpack.c.0.s8 %v906
  %v908 = vlaneseq
  %v909 = vshrl.u32 %v908, 7
  %v910 = vsub.s32 %v907, %v909
  %v911 = vrot.slane %v903, %v910
  %v913 = vunpack.c.l.s4 1983009808
  %v914 = vunpack.c.0.s8 %v913
  %v915 = vlaneseq
  %v916 = vshrl.u32 %v915, 7
  %v917 = vsub.s32 %v914, %v916
  %v918 = vrot.slane %v904, %v917
  %v919 = vcombine.low %v911, %v918
  %v920 = vcombine.low %v126, %v127
  %v921 = vcombine.low %v128, %v129
  %v923 = vunpack.c.l.s4 1983009808
  %v924 = vunpack.c.0.s8 %v923
  %v925 = vlaneseq
  %v926 = vshrl.u32 %v925, 7
  %v927 = vsub.s32 %v924, %v926
  %v928 = vrot.slane %v920, %v927
  %v930 = vunpack.c.l.s4 1983009808
  %v931 = vunpack.c.0.s8 %v930
  %v932 = vlaneseq
  %v933 = vshrl.u32 %v932, 7
  %v934 = vsub.s32 %v931, %v933
  %v935 = vrot.slane %v921, %v934
  %v936 = vcombine.low %v928, %v935
  %v937 = vcombine.low %v130, %v131
  %v938 = vcombine.low %v132, %v133
  %v940 = vunpack.c.l.s4 1983009808
  %v941 = vunpack.c.0.s8 %v940
  %v942 = vlaneseq
  %v943 = vshrl.u32 %v942, 7
  %v944 = vsub.s32 %v941, %v943
  %v945 = vrot.slane %v937, %v944
  %v947 = vunpack.c.l.s4 1983009808
  %v948 = vunpack.c.0.s8 %v947
  %v949 = vlaneseq
  %v950 = vshrl.u32 %v949, 7
  %v951 = vsub.s32 %v948, %v950
  %v952 = vrot.slane %v938, %v951
  %v953 = vcombine.low %v945, %v952
  %v954 = vcombine.low %v134, %v135
  %v955 = vcombine.low %v136, %v137
  %v957 = vunpack.c.l.s4 1983009808
  %v958 = vunpack.c.0.s8 %v957
  %v959 = vlaneseq
  %v960 = vshrl.u32 %v959, 7
  %v961 = vsub.s32 %v958, %v960
  %v962 = vrot.slane %v954, %v961
  %v964 = vunpack.c.l.s4 1983009808
  %v965 = vunpack.c.0.s8 %v964
  %v966 = vlaneseq
  %v967 = vshrl.u32 %v966, 7
  %v968 = vsub.s32 %v965, %v967
  %v969 = vrot.slane %v955, %v968
  %v970 = vcombine.low %v962, %v969
  %v971 = vcombine.low %v138, %v139
  %v972 = vcombine.low %v140, %v141
  %v974 = vunpack.c.l.s4 1983009808
  %v975 = vunpack.c.0.s8 %v974
  %v976 = vlaneseq
  %v977 = vshrl.u32 %v976, 7
  %v978 = vsub.s32 %v975, %v977
  %v979 = vrot.slane %v971, %v978
  %v981 = vunpack.c.l.s4 1983009808
  %v982 = vunpack.c.0.s8 %v981
  %v983 = vlaneseq
  %v984 = vshrl.u32 %v983, 7
  %v985 = vsub.s32 %v982, %v984
  %v986 = vrot.slane %v972, %v985
  %v987 = vcombine.low %v979, %v986
  %v988 = vcombine.low %v142, %v143
  %v989 = vcombine.low %v144, %v145
  %v991 = vunpack.c.l.s4 1983009808
  %v992 = vunpack.c.0.s8 %v991
  %v993 = vlaneseq
  %v994 = vshrl.u32 %v993, 7
  %v995 = vsub.s32 %v992, %v994
  %v996 = vrot.slane %v988, %v995
  %v998 = vunpack.c.l.s4 1983009808
  %v999 = vunpack.c.0.s8 %v998
  %v1000 = vlaneseq
  %v1001 = vshrl.u32 %v1000, 7
  %v1002 = vsub.s32 %v999, %v1001
  %v1003 = vrot.slane %v989, %v1002
  %v1004 = vcombine.low %v996, %v1003
  %v1005 = vcombine.low %v146, %v147
  %v1006 = vcombine.low %v148, %v149
  %v1008 = vunpack.c.l.s4 1983009808
  %v1009 = vunpack.c.0.s8 %v1008
  %v1010 = vlaneseq
  %v1011 = vshrl.u32 %v1010, 7
  %v1012 = vsub.s32 %v1009, %v1011
  %v1013 = vrot.slane %v1005, %v1012
  %v1015 = vunpack.c.l.s4 1983009808
  %v1016 = vunpack.c.0.s8 %v1015
  %v1017 = vlaneseq
  %v1018 = vshrl.u32 %v1017, 7
  %v1019 = vsub.s32 %v1016, %v1018
  %v1020 = vrot.slane %v1006, %v1019
  %v1021 = vcombine.low %v1013, %v1020
  %v1022 = vcombine.low %v150, %v151
  %v1023 = vcombine.low %v152, %v153
  %v1025 = vunpack.c.l.s4 1983009808
  %v1026 = vunpack.c.0.s8 %v1025
  %v1027 = vlaneseq
  %v1028 = vshrl.u32 %v1027, 7
  %v1029 = vsub.s32 %v1026, %v1028
  %v1030 = vrot.slane %v1022, %v1029
  %v1032 = vunpack.c.l.s4 1983009808
  %v1033 = vunpack.c.0.s8 %v1032
  %v1034 = vlaneseq
  %v1035 = vshrl.u32 %v1034, 7
  %v1036 = vsub.s32 %v1033, %v1035
  %v1037 = vrot.slane %v1023, %v1036
  %v1038 = vcombine.low %v1030, %v1037
  %v1039 = vcombine.low %v154, %v155
  %v1040 = vcombine.low %v156, %v157
  %v1042 = vunpack.c.l.s4 1983009808
  %v1043 = vunpack.c.0.s8 %v1042
  %v1044 = vlaneseq
  %v1045 = vshrl.u32 %v1044, 7
  %v1046 = vsub.s32 %v1043, %v1045
  %v1047 = vrot.slane %v1039, %v1046
  %v1049 = vunpack.c.l.s4 1983009808
  %v1050 = vunpack.c.0.s8 %v1049
  %v1051 = vlaneseq
  %v1052 = vshrl.u32 %v1051, 7
  %v1053 = vsub.s32 %v1050, %v1052
  %v1054 = vrot.slane %v1040, %v1053
  %v1055 = vcombine.low %v1047, %v1054
  %v1056 = vcombine.low %v158, %v159
  %v1057 = vcombine.low %v160, %v161
  %v1059 = vunpack.c.l.s4 1983009808
  %v1060 = vunpack.c.0.s8 %v1059
  %v1061 = vlaneseq
  %v1062 = vshrl.u32 %v1061, 7
  %v1063 = vsub.s32 %v1060, %v1062
  %v1064 = vrot.slane %v1056, %v1063
  %v1066 = vunpack.c.l.s4 1983009808
  %v1067 = vunpack.c.0.s8 %v1066
  %v1068 = vlaneseq
  %v1069 = vshrl.u32 %v1068, 7
  %v1070 = vsub.s32 %v1067, %v1069
  %v1071 = vrot.slane %v1057, %v1070
  %v1072 = vcombine.low %v1064, %v1071
  %v1073 = vcombine.low %v162, %v163
  %v1074 = vcombine.low %v164, %v165
  %v1076 = vunpack.c.l.s4 1983009808
  %v1077 = vunpack.c.0.s8 %v1076
  %v1078 = vlaneseq
  %v1079 = vshrl.u32 %v1078, 7
  %v1080 = vsub.s32 %v1077, %v1079
  %v1081 = vrot.slane %v1073, %v1080
  %v1083 = vunpack.c.l.s4 1983009808
  %v1084 = vunpack.c.0.s8 %v1083
  %v1085 = vlaneseq
  %v1086 = vshrl.u32 %v1085, 7
  %v1087 = vsub.s32 %v1084, %v1086
  %v1088 = vrot.slane %v1074, %v1087
  %v1089 = vcombine.low %v1081, %v1088
  %v1090 = vcombine.low %v166, %v167
  %v1091 = vcombine.low %v168, %v169
  %v1093 = vunpack.c.l.s4 1983009808
  %v1094 = vunpack.c.0.s8 %v1093
  %v1095 = vlaneseq
  %v1096 = vshrl.u32 %v1095, 7
  %v1097 = vsub.s32 %v1094, %v1096
  %v1098 = vrot.slane %v1090, %v1097
  %v1100 = vunpack.c.l.s4 1983009808
  %v1101 = vunpack.c.0.s8 %v1100
  %v1102 = vlaneseq
  %v1103 = vshrl.u32 %v1102, 7
  %v1104 = vsub.s32 %v1101, %v1103
  %v1105 = vrot.slane %v1091, %v1104
  %v1106 = vcombine.low %v1098, %v1105
  %v1107 = vcombine.low %v170, %v171
  %v1108 = vcombine.low %v172, %v173
  %v1110 = vunpack.c.l.s4 1983009808
  %v1111 = vunpack.c.0.s8 %v1110
  %v1112 = vlaneseq
  %v1113 = vshrl.u32 %v1112, 7
  %v1114 = vsub.s32 %v1111, %v1113
  %v1115 = vrot.slane %v1107, %v1114
  %v1117 = vunpack.c.l.s4 1983009808
  %v1118 = vunpack.c.0.s8 %v1117
  %v1119 = vlaneseq
  %v1120 = vshrl.u32 %v1119, 7
  %v1121 = vsub.s32 %v1118, %v1120
  %v1122 = vrot.slane %v1108, %v1121
  %v1123 = vcombine.low %v1115, %v1122
  %v1124 = vcombine.low %v174, %v175
  %v1125 = vcombine.low %v176, %v177
  %v1127 = vunpack.c.l.s4 1983009808
  %v1128 = vunpack.c.0.s8 %v1127
  %v1129 = vlaneseq
  %v1130 = vshrl.u32 %v1129, 7
  %v1131 = vsub.s32 %v1128, %v1130
  %v1132 = vrot.slane %v1124, %v1131
  %v1134 = vunpack.c.l.s4 1983009808
  %v1135 = vunpack.c.0.s8 %v1134
  %v1136 = vlaneseq
  %v1137 = vshrl.u32 %v1136, 7
  %v1138 = vsub.s32 %v1135, %v1137
  %v1139 = vrot.slane %v1125, %v1138
  %v1140 = vcombine.low %v1132, %v1139
  %v1141 = vcombine.low %v178, %v179
  %v1142 = vcombine.low %v180, %v181
  %v1144 = vunpack.c.l.s4 1983009808
  %v1145 = vunpack.c.0.s8 %v1144
  %v1146 = vlaneseq
  %v1147 = vshrl.u32 %v1146, 7
  %v1148 = vsub.s32 %v1145, %v1147
  %v1149 = vrot.slane %v1141, %v1148
  %v1151 = vunpack.c.l.s4 1983009808
  %v1152 = vunpack.c.0.s8 %v1151
  %v1153 = vlaneseq
  %v1154 = vshrl.u32 %v1153, 7
  %v1155 = vsub.s32 %v1152, %v1154
  %v1156 = vrot.slane %v1142, %v1155
  %v1157 = vcombine.low %v1149, %v1156
  %v1158 = vcombine.low %v182, %v183
  %v1159 = vcombine.low %v184, %v185
  %v1161 = vunpack.c.l.s4 1983009808
  %v1162 = vunpack.c.0.s8 %v1161
  %v1163 = vlaneseq
  %v1164 = vshrl.u32 %v1163, 7
  %v1165 = vsub.s32 %v1162, %v1164
  %v1166 = vrot.slane %v1158, %v1165
  %v1168 = vunpack.c.l.s4 1983009808
  %v1169 = vunpack.c.0.s8 %v1168
  %v1170 = vlaneseq
  %v1171 = vshrl.u32 %v1170, 7
  %v1172 = vsub.s32 %v1169, %v1171
  %v1173 = vrot.slane %v1159, %v1172
  %v1174 = vcombine.low %v1166, %v1173
  %v1175 = vcombine.low %v186, %v187
  %v1176 = vcombine.low %v188, %v189
  %v1178 = vunpack.c.l.s4 1983009808
  %v1179 = vunpack.c.0.s8 %v1178
  %v1180 = vlaneseq
  %v1181 = vshrl.u32 %v1180, 7
  %v1182 = vsub.s32 %v1179, %v1181
  %v1183 = vrot.slane %v1175, %v1182
  %v1185 = vunpack.c.l.s4 1983009808
  %v1186 = vunpack.c.0.s8 %v1185
  %v1187 = vlaneseq
  %v1188 = vshrl.u32 %v1187, 7
  %v1189 = vsub.s32 %v1186, %v1188
  %v1190 = vrot.slane %v1176, %v1189
  %v1191 = vcombine.low %v1183, %v1190
  %v1192 = vcombine.low %v190, %v191
  %v1193 = vcombine.low %v192, %v193
  %v1195 = vunpack.c.l.s4 1983009808
  %v1196 = vunpack.c.0.s8 %v1195
  %v1197 = vlaneseq
  %v1198 = vshrl.u32 %v1197, 7
  %v1199 = vsub.s32 %v1196, %v1198
  %v1200 = vrot.slane %v1192, %v1199
  %v1202 = vunpack.c.l.s4 1983009808
  %v1203 = vunpack.c.0.s8 %v1202
  %v1204 = vlaneseq
  %v1205 = vshrl.u32 %v1204, 7
  %v1206 = vsub.s32 %v1203, %v1205
  %v1207 = vrot.slane %v1193, %v1206
  %v1208 = vcombine.low %v1200, %v1207
  %v1209 = vcombine.low %v194, %v195
  %v1210 = vcombine.low %v196, %v197
  %v1212 = vunpack.c.l.s4 1983009808
  %v1213 = vunpack.c.0.s8 %v1212
  %v1214 = vlaneseq
  %v1215 = vshrl.u32 %v1214, 7
  %v1216 = vsub.s32 %v1213, %v1215
  %v1217 = vrot.slane %v1209, %v1216
  %v1219 = vunpack.c.l.s4 1983009808
  %v1220 = vunpack.c.0.s8 %v1219
  %v1221 = vlaneseq
  %v1222 = vshrl.u32 %v1221, 7
  %v1223 = vsub.s32 %v1220, %v1222
  %v1224 = vrot.slane %v1210, %v1223
  %v1225 = vcombine.low %v1217, %v1224
  %v1226 = vcombine.low %v198, %v199
  %v1227 = vcombine.low %v200, %v201
  %v1229 = vunpack.c.l.s4 1983009808
  %v1230 = vunpack.c.0.s8 %v1229
  %v1231 = vlaneseq
  %v1232 = vshrl.u32 %v1231, 7
  %v1233 = vsub.s32 %v1230, %v1232
  %v1234 = vrot.slane %v1226, %v1233
  %v1236 = vunpack.c.l.s4 1983009808
  %v1237 = vunpack.c.0.s8 %v1236
  %v1238 = vlaneseq
  %v1239 = vshrl.u32 %v1238, 7
  %v1240 = vsub.s32 %v1237, %v1239
  %v1241 = vrot.slane %v1227, %v1240
  %v1242 = vcombine.low %v1234, %v1241
  %v1243 = vcombine.low %v202, %v203
  %v1244 = vcombine.low %v204, %v205
  %v1246 = vunpack.c.l.s4 1983009808
  %v1247 = vunpack.c.0.s8 %v1246
  %v1248 = vlaneseq
  %v1249 = vshrl.u32 %v1248, 7
  %v1250 = vsub.s32 %v1247, %v1249
  %v1251 = vrot.slane %v1243, %v1250
  %v1253 = vunpack.c.l.s4 1983009808
  %v1254 = vunpack.c.0.s8 %v1253
  %v1255 = vlaneseq
  %v1256 = vshrl.u32 %v1255, 7
  %v1257 = vsub.s32 %v1254, %v1256
  %v1258 = vrot.slane %v1244, %v1257
  %v1259 = vcombine.low %v1251, %v1258
  %v1260 = vcombine.low %v206, %v207
  %v1261 = vcombine.low %v208, %v209
  %v1263 = vunpack.c.l.s4 1983009808
  %v1264 = vunpack.c.0.s8 %v1263
  %v1265 = vlaneseq
  %v1266 = vshrl.u32 %v1265, 7
  %v1267 = vsub.s32 %v1264, %v1266
  %v1268 = vrot.slane %v1260, %v1267
  %v1270 = vunpack.c.l.s4 1983009808
  %v1271 = vunpack.c.0.s8 %v1270
  %v1272 = vlaneseq
  %v1273 = vshrl.u32 %v1272, 7
  %v1274 = vsub.s32 %v1271, %v1273
  %v1275 = vrot.slane %v1261, %v1274
  %v1276 = vcombine.low %v1268, %v1275
  %v1277 = vcombine.low %v210, %v211
  %v1278 = vcombine.low %v212, %v213
  %v1280 = vunpack.c.l.s4 1983009808
  %v1281 = vunpack.c.0.s8 %v1280
  %v1282 = vlaneseq
  %v1283 = vshrl.u32 %v1282, 7
  %v1284 = vsub.s32 %v1281, %v1283
  %v1285 = vrot.slane %v1277, %v1284
  %v1287 = vunpack.c.l.s4 1983009808
  %v1288 = vunpack.c.0.s8 %v1287
  %v1289 = vlaneseq
  %v1290 = vshrl.u32 %v1289, 7
  %v1291 = vsub.s32 %v1288, %v1290
  %v1292 = vrot.slane %v1278, %v1291
  %v1293 = vcombine.low %v1285, %v1292
  %v1294 = vcombine.low %v214, %v215
  %v1295 = vcombine.low %v216, %v217
  %v1297 = vunpack.c.l.s4 1983009808
  %v1298 = vunpack.c.0.s8 %v1297
  %v1299 = vlaneseq
  %v1300 = vshrl.u32 %v1299, 7
  %v1301 = vsub.s32 %v1298, %v1300
  %v1302 = vrot.slane %v1294, %v1301
  %v1304 = vunpack.c.l.s4 1983009808
  %v1305 = vunpack.c.0.s8 %v1304
  %v1306 = vlaneseq
  %v1307 = vshrl.u32 %v1306, 7
  %v1308 = vsub.s32 %v1305, %v1307
  %v1309 = vrot.slane %v1295, %v1308
  %v1310 = vcombine.low %v1302, %v1309
  %v1311 = vcombine.low %v218, %v219
  %v1312 = vcombine.low %v220, %v221
  %v1314 = vunpack.c.l.s4 1983009808
  %v1315 = vunpack.c.0.s8 %v1314
  %v1316 = vlaneseq
  %v1317 = vshrl.u32 %v1316, 7
  %v1318 = vsub.s32 %v1315, %v1317
  %v1319 = vrot.slane %v1311, %v1318
  %v1321 = vunpack.c.l.s4 1983009808
  %v1322 = vunpack.c.0.s8 %v1321
  %v1323 = vlaneseq
  %v1324 = vshrl.u32 %v1323, 7
  %v1325 = vsub.s32 %v1322, %v1324
  %v1326 = vrot.slane %v1312, %v1325
  %v1327 = vcombine.low %v1319, %v1326
  %v1328 = vcombine.low %v222, %v223
  %v1329 = vcombine.low %v224, %v225
  %v1331 = vunpack.c.l.s4 1983009808
  %v1332 = vunpack.c.0.s8 %v1331
  %v1333 = vlaneseq
  %v1334 = vshrl.u32 %v1333, 7
  %v1335 = vsub.s32 %v1332, %v1334
  %v1336 = vrot.slane %v1328, %v1335
  %v1338 = vunpack.c.l.s4 1983009808
  %v1339 = vunpack.c.0.s8 %v1338
  %v1340 = vlaneseq
  %v1341 = vshrl.u32 %v1340, 7
  %v1342 = vsub.s32 %v1339, %v1341
  %v1343 = vrot.slane %v1329, %v1342
  %v1344 = vcombine.low %v1336, %v1343
  %v1345 = vcombine.low %v226, %v227
  %v1346 = vcombine.low %v228, %v229
  %v1348 = vunpack.c.l.s4 1983009808
  %v1349 = vunpack.c.0.s8 %v1348
  %v1350 = vlaneseq
  %v1351 = vshrl.u32 %v1350, 7
  %v1352 = vsub.s32 %v1349, %v1351
  %v1353 = vrot.slane %v1345, %v1352
  %v1355 = vunpack.c.l.s4 1983009808
  %v1356 = vunpack.c.0.s8 %v1355
  %v1357 = vlaneseq
  %v1358 = vshrl.u32 %v1357, 7
  %v1359 = vsub.s32 %v1356, %v1358
  %v1360 = vrot.slane %v1346, %v1359
  %v1361 = vcombine.low %v1353, %v1360
  %v1362 = vcombine.low %v230, %v231
  %v1363 = vcombine.low %v232, %v233
  %v1365 = vunpack.c.l.s4 1983009808
  %v1366 = vunpack.c.0.s8 %v1365
  %v1367 = vlaneseq
  %v1368 = vshrl.u32 %v1367, 7
  %v1369 = vsub.s32 %v1366, %v1368
  %v1370 = vrot.slane %v1362, %v1369
  %v1372 = vunpack.c.l.s4 1983009808
  %v1373 = vunpack.c.0.s8 %v1372
  %v1374 = vlaneseq
  %v1375 = vshrl.u32 %v1374, 7
  %v1376 = vsub.s32 %v1373, %v1375
  %v1377 = vrot.slane %v1363, %v1376
  %v1378 = vcombine.low %v1370, %v1377
  %v1379 = vcombine.low %v234, %v235
  %v1380 = vcombine.low %v236, %v237
  %v1382 = vunpack.c.l.s4 1983009808
  %v1383 = vunpack.c.0.s8 %v1382
  %v1384 = vlaneseq
  %v1385 = vshrl.u32 %v1384, 7
  %v1386 = vsub.s32 %v1383, %v1385
  %v1387 = vrot.slane %v1379, %v1386
  %v1389 = vunpack.c.l.s4 1983009808
  %v1390 = vunpack.c.0.s8 %v1389
  %v1391 = vlaneseq
  %v1392 = vshrl.u32 %v1391, 7
  %v1393 = vsub.s32 %v1390, %v1392
  %v1394 = vrot.slane %v1380, %v1393
  %v1395 = vcombine.low %v1387, %v1394
  %v1396 = vcombine.low %v238, %v239
  %v1397 = vcombine.low %v240, %v241
  %v1399 = vunpack.c.l.s4 1983009808
  %v1400 = vunpack.c.0.s8 %v1399
  %v1401 = vlaneseq
  %v1402 = vshrl.u32 %v1401, 7
  %v1403 = vsub.s32 %v1400, %v1402
  %v1404 = vrot.slane %v1396, %v1403
  %v1406 = vunpack.c.l.s4 1983009808
  %v1407 = vunpack.c.0.s8 %v1406
  %v1408 = vlaneseq
  %v1409 = vshrl.u32 %v1408, 7
  %v1410 = vsub.s32 %v1407, %v1409
  %v1411 = vrot.slane %v1397, %v1410
  %v1412 = vcombine.low %v1404, %v1411
  %v1413 = vcombine.low %v242, %v243
  %v1414 = vcombine.low %v244, %v245
  %v1416 = vunpack.c.l.s4 1983009808
  %v1417 = vunpack.c.0.s8 %v1416
  %v1418 = vlaneseq
  %v1419 = vshrl.u32 %v1418, 7
  %v1420 = vsub.s32 %v1417, %v1419
  %v1421 = vrot.slane %v1413, %v1420
  %v1423 = vunpack.c.l.s4 1983009808
  %v1424 = vunpack.c.0.s8 %v1423
  %v1425 = vlaneseq
  %v1426 = vshrl.u32 %v1425, 7
  %v1427 = vsub.s32 %v1424, %v1426
  %v1428 = vrot.slane %v1414, %v1427
  %v1429 = vcombine.low %v1421, %v1428
  %v1430 = vcombine.low %v246, %v247
  %v1431 = vcombine.low %v248, %v249
  %v1433 = vunpack.c.l.s4 1983009808
  %v1434 = vunpack.c.0.s8 %v1433
  %v1435 = vlaneseq
  %v1436 = vshrl.u32 %v1435, 7
  %v1437 = vsub.s32 %v1434, %v1436
  %v1438 = vrot.slane %v1430, %v1437
  %v1440 = vunpack.c.l.s4 1983009808
  %v1441 = vunpack.c.0.s8 %v1440
  %v1442 = vlaneseq
  %v1443 = vshrl.u32 %v1442, 7
  %v1444 = vsub.s32 %v1441, %v1443
  %v1445 = vrot.slane %v1431, %v1444
  %v1446 = vcombine.low %v1438, %v1445
  %v1447 = vcombine.low %v250, %v251
  %v1448 = vcombine.low %v252, %v253
  %v1450 = vunpack.c.l.s4 1983009808
  %v1451 = vunpack.c.0.s8 %v1450
  %v1452 = vlaneseq
  %v1453 = vshrl.u32 %v1452, 7
  %v1454 = vsub.s32 %v1451, %v1453
  %v1455 = vrot.slane %v1447, %v1454
  %v1457 = vunpack.c.l.s4 1983009808
  %v1458 = vunpack.c.0.s8 %v1457
  %v1459 = vlaneseq
  %v1460 = vshrl.u32 %v1459, 7
  %v1461 = vsub.s32 %v1458, %v1460
  %v1462 = vrot.slane %v1448, %v1461
  %v1463 = vcombine.low %v1455, %v1462
  %v1464 = vcombine.low %v254, %v255
  %v1465 = vcombine.low %v256, %v257
  %v1467 = vunpack.c.l.s4 1983009808
  %v1468 = vunpack.c.0.s8 %v1467
  %v1469 = vlaneseq
  %v1470 = vshrl.u32 %v1469, 7
  %v1471 = vsub.s32 %v1468, %v1470
  %v1472 = vrot.slane %v1464, %v1471
  %v1474 = vunpack.c.l.s4 1983009808
  %v1475 = vunpack.c.0.s8 %v1474
  %v1476 = vlaneseq
  %v1477 = vshrl.u32 %v1476, 7
  %v1478 = vsub.s32 %v1475, %v1477
  %v1479 = vrot.slane %v1465, %v1478
  %v1480 = vcombine.low %v1472, %v1479
  %v1481 = vcombine.low %v258, %v259
  %v1482 = vcombine.low %v260, %v261
  %v1484 = vunpack.c.l.s4 1983009808
  %v1485 = vunpack.c.0.s8 %v1484
  %v1486 = vlaneseq
  %v1487 = vshrl.u32 %v1486, 7
  %v1488 = vsub.s32 %v1485, %v1487
  %v1489 = vrot.slane %v1481, %v1488
  %v1491 = vunpack.c.l.s4 1983009808
  %v1492 = vunpack.c.0.s8 %v1491
  %v1493 = vlaneseq
  %v1494 = vshrl.u32 %v1493, 7
  %v1495 = vsub.s32 %v1492, %v1494
  %v1496 = vrot.slane %v1482, %v1495
  %v1497 = vcombine.low %v1489, %v1496
  %v1498 = vcombine.low %v262, %v263
  %v1499 = vcombine.low %v264, %v265
  %v1501 = vunpack.c.l.s4 1983009808
  %v1502 = vunpack.c.0.s8 %v1501
  %v1503 = vlaneseq
  %v1504 = vshrl.u32 %v1503, 7
  %v1505 = vsub.s32 %v1502, %v1504
  %v1506 = vrot.slane %v1498, %v1505
  %v1508 = vunpack.c.l.s4 1983009808
  %v1509 = vunpack.c.0.s8 %v1508
  %v1510 = vlaneseq
  %v1511 = vshrl.u32 %v1510, 7
  %v1512 = vsub.s32 %v1509, %v1511
  %v1513 = vrot.slane %v1499, %v1512
  %v1514 = vcombine.low %v1506, %v1513
  %v1515 = vcombine.low %v266, %v267
  %v1516 = vcombine.low %v268, %v269
  %v1518 = vunpack.c.l.s4 1983009808
  %v1519 = vunpack.c.0.s8 %v1518
  %v1520 = vlaneseq
  %v1521 = vshrl.u32 %v1520, 7
  %v1522 = vsub.s32 %v1519, %v1521
  %v1523 = vrot.slane %v1515, %v1522
  %v1525 = vunpack.c.l.s4 1983009808
  %v1526 = vunpack.c.0.s8 %v1525
  %v1527 = vlaneseq
  %v1528 = vshrl.u32 %v1527, 7
  %v1529 = vsub.s32 %v1526, %v1528
  %v1530 = vrot.slane %v1516, %v1529
  %v1531 = vcombine.low %v1523, %v1530
  %v1532 = vcombine.low %v270, %v271
  %v1533 = vcombine.low %v272, %v273
  %v1535 = vunpack.c.l.s4 1983009808
  %v1536 = vunpack.c.0.s8 %v1535
  %v1537 = vlaneseq
  %v1538 = vshrl.u32 %v1537, 7
  %v1539 = vsub.s32 %v1536, %v1538
  %v1540 = vrot.slane %v1532, %v1539
  %v1542 = vunpack.c.l.s4 1983009808
  %v1543 = vunpack.c.0.s8 %v1542
  %v1544 = vlaneseq
  %v1545 = vshrl.u32 %v1544, 7
  %v1546 = vsub.s32 %v1543, %v1545
  %v1547 = vrot.slane %v1533, %v1546
  %v1548 = vcombine.low %v1540, %v1547
  %v1549 = vcombine.low %v274, %v275
  %v1550 = vcombine.low %v276, %v277
  %v1552 = vunpack.c.l.s4 1983009808
  %v1553 = vunpack.c.0.s8 %v1552
  %v1554 = vlaneseq
  %v1555 = vshrl.u32 %v1554, 7
  %v1556 = vsub.s32 %v1553, %v1555
  %v1557 = vrot.slane %v1549, %v1556
  %v1559 = vunpack.c.l.s4 1983009808
  %v1560 = vunpack.c.0.s8 %v1559
  %v1561 = vlaneseq
  %v1562 = vshrl.u32 %v1561, 7
  %v1563 = vsub.s32 %v1560, %v1562
  %v1564 = vrot.slane %v1550, %v1563
  %v1565 = vcombine.low %v1557, %v1564
  %v1566 = vcombine.low %v278, %v279
  %v1567 = vcombine.low %v280, %v281
  %v1569 = vunpack.c.l.s4 1983009808
  %v1570 = vunpack.c.0.s8 %v1569
  %v1571 = vlaneseq
  %v1572 = vshrl.u32 %v1571, 7
  %v1573 = vsub.s32 %v1570, %v1572
  %v1574 = vrot.slane %v1566, %v1573
  %v1576 = vunpack.c.l.s4 1983009808
  %v1577 = vunpack.c.0.s8 %v1576
  %v1578 = vlaneseq
  %v1579 = vshrl.u32 %v1578, 7
  %v1580 = vsub.s32 %v1577, %v1579
  %v1581 = vrot.slane %v1567, %v1580
  %v1582 = vcombine.low %v1574, %v1581
  %v1583 = vcombine.low %v282, %v283
  %v1584 = vcombine.low %v284, %v285
  %v1586 = vunpack.c.l.s4 1983009808
  %v1587 = vunpack.c.0.s8 %v1586
  %v1588 = vlaneseq
  %v1589 = vshrl.u32 %v1588, 7
  %v1590 = vsub.s32 %v1587, %v1589
  %v1591 = vrot.slane %v1583, %v1590
  %v1593 = vunpack.c.l.s4 1983009808
  %v1594 = vunpack.c.0.s8 %v1593
  %v1595 = vlaneseq
  %v1596 = vshrl.u32 %v1595, 7
  %v1597 = vsub.s32 %v1594, %v1596
  %v1598 = vrot.slane %v1584, %v1597
  %v1599 = vcombine.low %v1591, %v1598
  %v1600 = vcombine.low %v286, %v287
  %v1601 = vcombine.low %v288, %v289
  %v1603 = vunpack.c.l.s4 1983009808
  %v1604 = vunpack.c.0.s8 %v1603
  %v1605 = vlaneseq
  %v1606 = vshrl.u32 %v1605, 7
  %v1607 = vsub.s32 %v1604, %v1606
  %v1608 = vrot.slane %v1600, %v1607
  %v1610 = vunpack.c.l.s4 1983009808
  %v1611 = vunpack.c.0.s8 %v1610
  %v1612 = vlaneseq
  %v1613 = vshrl.u32 %v1612, 7
  %v1614 = vsub.s32 %v1611, %v1613
  %v1615 = vrot.slane %v1601, %v1614
  %v1616 = vcombine.low %v1608, %v1615
  %v1617 = vcombine.low %v290, %v291
  %v1618 = vcombine.low %v292, %v293
  %v1620 = vunpack.c.l.s4 1983009808
  %v1621 = vunpack.c.0.s8 %v1620
  %v1622 = vlaneseq
  %v1623 = vshrl.u32 %v1622, 7
  %v1624 = vsub.s32 %v1621, %v1623
  %v1625 = vrot.slane %v1617, %v1624
  %v1627 = vunpack.c.l.s4 1983009808
  %v1628 = vunpack.c.0.s8 %v1627
  %v1629 = vlaneseq
  %v1630 = vshrl.u32 %v1629, 7
  %v1631 = vsub.s32 %v1628, %v1630
  %v1632 = vrot.slane %v1618, %v1631
  %v1633 = vcombine.low %v1625, %v1632
  %v1634 = vcombine.low %v294, %v295
  %v1635 = vcombine.low %v296, %v297
  %v1637 = vunpack.c.l.s4 1983009808
  %v1638 = vunpack.c.0.s8 %v1637
  %v1639 = vlaneseq
  %v1640 = vshrl.u32 %v1639, 7
  %v1641 = vsub.s32 %v1638, %v1640
  %v1642 = vrot.slane %v1634, %v1641
  %v1644 = vunpack.c.l.s4 1983009808
  %v1645 = vunpack.c.0.s8 %v1644
  %v1646 = vlaneseq
  %v1647 = vshrl.u32 %v1646, 7
  %v1648 = vsub.s32 %v1645, %v1647
  %v1649 = vrot.slane %v1635, %v1648
  %v1650 = vcombine.low %v1642, %v1649
  %vm1651 = vcmask 130048
  %v1652 = vsel %vm1651, %v579, 0
  %v1654 = vsel %vm1651, %v596, 0
  %v1656 = vsel %vm1651, %v613, 0
  %v1658 = vsel %vm1651, %v630, 0
  %v1660 = vsel %vm1651, %v647, 0
  %v1662 = vsel %vm1651, %v664, 0
  %v1664 = vsel %vm1651, %v681, 0
  %v1666 = vsel %vm1651, %v698, 0
  %v1668 = vsel %vm1651, %v715, 0
  %v1670 = vsel %vm1651, %v732, 0
  %v1672 = vsel %vm1651, %v749, 0
  %v1674 = vsel %vm1651, %v766, 0
  %v1676 = vsel %vm1651, %v783, 0
  %v1678 = vsel %vm1651, %v800, 0
  %v1680 = vsel %vm1651, %v817, 0
  %v1682 = vsel %vm1651, %v834, 0
  %v1684 = vsel %vm1651, %v851, 0
  %v1686 = vsel %vm1651, %v868, 0
  %v1688 = vsel %vm1651, %v885, 0
  %v1690 = vsel %vm1651, %v902, 0
  %v1692 = vsel %vm1651, %v919, 0
  %v1694 = vsel %vm1651, %v936, 0
  %v1696 = vsel %vm1651, %v953, 0
  %v1698 = vsel %vm1651, %v970, 0
  %v1700 = vsel %vm1651, %v987, 0
  %v1702 = vsel %vm1651, %v1004, 0
  %v1704 = vsel %vm1651, %v1021, 0
  %v1706 = vsel %vm1651, %v1038, 0
  %v1708 = vsel %vm1651, %v1055, 0
  %v1710 = vsel %vm1651, %v1072, 0
  %v1712 = vsel %vm1651, %v1089, 0
  %v1714 = vsel %vm1651, %v1106, 0
  %v1716 = vsel %vm1651, %v1123, 0
  %v1718 = vsel %vm1651, %v1140, 0
  %v1720 = vsel %vm1651, %v1157, 0
  %v1722 = vsel %vm1651, %v1174, 0
  %v1724 = vsel %vm1651, %v1191, 0
  %v1726 = vsel %vm1651, %v1208, 0
  %v1728 = vsel %vm1651, %v1225, 0
  %v1730 = vsel %vm1651, %v1242, 0
  %v1732 = vsel %vm1651, %v1259, 0
  %v1734 = vsel %vm1651, %v1276, 0
  %v1736 = vsel %vm1651, %v1293, 0
  %v1738 = vsel %vm1651, %v1310, 0
  %v1740 = vsel %vm1651, %v1327, 0
  %v1742 = vsel %vm1651, %v1344, 0
  %v1744 = vsel %vm1651, %v1361, 0
  %v1746 = vsel %vm1651, %v1378, 0
  %v1748 = vsel %vm1651, %v1395, 0
  %v1750 = vsel %vm1651, %v1412, 0
  %v1752 = vsel %vm1651, %v1429, 0
  %v1754 = vsel %vm1651, %v1446, 0
  %v1756 = vsel %vm1651, %v1463, 0
  %v1758 = vsel %vm1651, %v1480, 0
  %v1760 = vsel %vm1651, %v1497, 0
  %v1762 = vsel %vm1651, %v1514, 0
  %v1764 = vsel %vm1651, %v1531, 0
  %v1766 = vsel %vm1651, %v1548, 0
  %v1768 = vsel %vm1651, %v1565, 0
  %v1770 = vsel %vm1651, %v1582, 0
  %v1772 = vsel %vm1651, %v1599, 0
  %v1774 = vsel %vm1651, %v1616, 0
  %v1776 = vsel %vm1651, %v1633, 0
  %v1778 = vsel %vm1651, %v1650, 0
  %1780 = vmatprep.subr.mxu0 0.0
  %1781 = vmatpush1.msra.mxu0 0.0
  %1782 = vmatprep.subr.mxu0 0.0
  %1783 = vmatpush1.msra.mxu0 0.0
  %1784 = vmatprep.subr.mxu0 0.0
  %1785 = vmatpush1.msra.mxu0 0.0
  %1786 = vmatprep.subr.mxu0 0.0
  %1787 = vmatpush1.msra.mxu0 0.0
  %1788 = vmatprep.subr.mxu0 0.0
  %1789 = vmatpush1.msra.mxu0 0.0
  %1790 = vmatprep.subr.mxu0 0.0
  %1791 = vmatpush1.msra.mxu0 0.0
  %1792 = vmatprep.subr.mxu0 0.0
  %1793 = vmatpush1.msra.mxu0 0.0
  %1794 = vmatprep.subr.mxu0 0.0
  %1795 = vmatpush1.msra.mxu0 0.0
  %1796 = vmatprep.subr.mxu0 0.0
  %1797 = vmatpush1.msra.mxu0 0.0
  %1798 = vmatprep.subr.mxu0 0.0
  %1799 = vmatpush1.msra.mxu0 0.0
  %1800 = vmatprep.subr.mxu0 0.0
  %1801 = vmatpush1.msra.mxu0 0.0
  %1802 = vmatprep.subr.mxu0 0.0
  %1803 = vmatpush1.msra.mxu0 0.0
  %1804 = vmatprep.subr.mxu0 0.0
  %1805 = vmatpush1.msra.mxu0 0.0
  %1806 = vmatprep.subr.mxu0 0.0
  %1807 = vmatpush1.msra.mxu0 0.0
  %1808 = vmatprep.subr.mxu0 0.0
  %1809 = vmatpush1.msra.mxu0 %v299
  %1810 = vmatprep.subr.mxu0 0.0
  %1811 = vmatpush1.msra.mxu0 %v298
  %1812 = vmatprep.subr.mxu0 0.0
  %1813 = vmatpush2.msra.mxu0 0.0
  %1814 = vmatprep.subr.mxu0 0.0
  %1815 = vmatpush2.msra.mxu0 0.0
  %1816 = vmatprep.subr.mxu0 0.0
  %1817 = vmatpush2.msra.mxu0 0.0
  %1818 = vmatprep.subr.mxu0 0.0
  %1819 = vmatpush2.msra.mxu0 0.0
  %1820 = vmatprep.subr.mxu0 0.0
  %1821 = vmatpush2.msra.mxu0 0.0
  %1822 = vmatprep.subr.mxu0 0.0
  %1823 = vmatpush2.msra.mxu0 0.0
  %1824 = vmatprep.subr.mxu0 0.0
  %1825 = vmatpush2.msra.mxu0 0.0
  %1826 = vmatprep.subr.mxu0 0.0
  %1827 = vmatpush2.msra.mxu0 0.0
  %1828 = vmatprep.subr.mxu0 0.0
  %1829 = vmatpush2.msra.mxu0 0.0
  %1830 = vmatprep.subr.mxu0 0.0
  %1831 = vmatpush2.msra.mxu0 0.0
  %1832 = vmatprep.subr.mxu0 0.0
  %1833 = vmatpush2.msra.mxu0 0.0
  %1834 = vmatprep.subr.mxu0 0.0
  %1835 = vmatpush2.msra.mxu0 0.0
  %1836 = vmatprep.subr.mxu0 0.0
  %1837 = vmatpush2.msra.mxu0 0.0
  %1838 = vmatprep.subr.mxu0 0.0
  %1839 = vmatpush2.msra.mxu0 0.0
  %1840 = vmatprep.subr.mxu0 0.0
  %1841 = vmatpush2.msra.mxu0 0.0
  %1842 = vmatprep.subr.mxu0 0.0
  %1843 = vmatpush2.msra.mxu0 0.0
  %1844 = vmatprep.mubr.f32.mxu0 0.0
  %1845 = vmatmul.mubr.f32.gmra.mxu0 %v1652
  %v1846 = vpop.f32.mrf.mxu0
  %v1847 = vadd.f32 %v305, %v1846
  %v1848 = vpop.f32.mrf.mxu0
  %1849 = vmatprep.mubr.f32.mxu0 0.0
  %1850 = vmatmul.mubr.f32.gmra.mxu0 %v1654
  %v1851 = vpop.f32.mrf.mxu0
  %v1852 = vadd.f32 %v305, %v1851
  %v1853 = vpop.f32.mrf.mxu0
  %1854 = vmatprep.mubr.f32.mxu0 0.0
  %1855 = vmatmul.mubr.f32.gmra.mxu0 %v1656
  %v1856 = vpop.f32.mrf.mxu0
  %v1857 = vadd.f32 %v305, %v1856
  %v1858 = vpop.f32.mrf.mxu0
  %1859 = vmatprep.mubr.f32.mxu0 0.0
  %1860 = vmatmul.mubr.f32.gmra.mxu0 %v1658
  %v1861 = vpop.f32.mrf.mxu0
  %v1862 = vadd.f32 %v305, %v1861
  %v1863 = vpop.f32.mrf.mxu0
  %1864 = vmatprep.mubr.f32.mxu0 0.0
  %1865 = vmatmul.mubr.f32.gmra.mxu0 %v1660
  %v1866 = vpop.f32.mrf.mxu0
  %v1867 = vadd.f32 %v305, %v1866
  %v1868 = vpop.f32.mrf.mxu0
  %1869 = vmatprep.mubr.f32.mxu0 0.0
  %1870 = vmatmul.mubr.f32.gmra.mxu0 %v1662
  %v1871 = vpop.f32.mrf.mxu0
  %v1872 = vadd.f32 %v305, %v1871
  %v1873 = vpop.f32.mrf.mxu0
  %1874 = vmatprep.mubr.f32.mxu0 0.0
  %1875 = vmatmul.mubr.f32.gmra.mxu0 %v1664
  %v1876 = vpop.f32.mrf.mxu0
  %v1877 = vadd.f32 %v305, %v1876
  %v1878 = vpop.f32.mrf.mxu0
  %1879 = vmatprep.mubr.f32.mxu0 0.0
  %1880 = vmatmul.mubr.f32.gmra.mxu0 %v1666
  %v1881 = vpop.f32.mrf.mxu0
  %v1882 = vadd.f32 %v305, %v1881
  %v1883 = vpop.f32.mrf.mxu0
  %1884 = vmatprep.mubr.f32.mxu0 0.0
  %1885 = vmatmul.mubr.f32.gmra.mxu0 %v1668
  %v1886 = vpop.f32.mrf.mxu0
  %v1887 = vadd.f32 %v305, %v1886
  %v1888 = vpop.f32.mrf.mxu0
  %1889 = vmatprep.mubr.f32.mxu0 0.0
  %1890 = vmatmul.mubr.f32.gmra.mxu0 %v1670
  %v1891 = vpop.f32.mrf.mxu0
  %v1892 = vadd.f32 %v305, %v1891
  %v1893 = vpop.f32.mrf.mxu0
  %1894 = vmatprep.mubr.f32.mxu0 0.0
  %1895 = vmatmul.mubr.f32.gmra.mxu0 %v1672
  %v1896 = vpop.f32.mrf.mxu0
  %v1897 = vadd.f32 %v305, %v1896
  %v1898 = vpop.f32.mrf.mxu0
  %1899 = vmatprep.mubr.f32.mxu0 0.0
  %1900 = vmatmul.mubr.f32.gmra.mxu0 %v1674
  %v1901 = vpop.f32.mrf.mxu0
  %v1902 = vadd.f32 %v305, %v1901
  %v1903 = vpop.f32.mrf.mxu0
  %1904 = vmatprep.mubr.f32.mxu0 0.0
  %1905 = vmatmul.mubr.f32.gmra.mxu0 %v1676
  %v1906 = vpop.f32.mrf.mxu0
  %v1907 = vadd.f32 %v305, %v1906
  %v1908 = vpop.f32.mrf.mxu0
  %1909 = vmatprep.mubr.f32.mxu0 0.0
  %1910 = vmatmul.mubr.f32.gmra.mxu0 %v1678
  %v1911 = vpop.f32.mrf.mxu0
  %v1912 = vadd.f32 %v305, %v1911
  %v1913 = vpop.f32.mrf.mxu0
  %1914 = vmatprep.mubr.f32.mxu0 0.0
  %1915 = vmatmul.mubr.f32.gmra.mxu0 %v1680
  %v1916 = vpop.f32.mrf.mxu0
  %v1917 = vadd.f32 %v305, %v1916
  %v1918 = vpop.f32.mrf.mxu0
  %1919 = vmatprep.mubr.f32.mxu0 0.0
  %1920 = vmatmul.mubr.f32.gmra.mxu0 %v1682
  %v1921 = vpop.f32.mrf.mxu0
  %v1922 = vadd.f32 %v305, %v1921
  %v1923 = vpop.f32.mrf.mxu0
  %1924 = vmatprep.mubr.f32.mxu0 0.0
  %1925 = vmatmul.mubr.f32.gmra.mxu0 %v1684
  %v1926 = vpop.f32.mrf.mxu0
  %v1927 = vadd.f32 %v305, %v1926
  %v1928 = vpop.f32.mrf.mxu0
  %1929 = vmatprep.mubr.f32.mxu0 0.0
  %1930 = vmatmul.mubr.f32.gmra.mxu0 %v1686
  %v1931 = vpop.f32.mrf.mxu0
  %v1932 = vadd.f32 %v305, %v1931
  %v1933 = vpop.f32.mrf.mxu0
  %1934 = vmatprep.mubr.f32.mxu0 0.0
  %1935 = vmatmul.mubr.f32.gmra.mxu0 %v1688
  %v1936 = vpop.f32.mrf.mxu0
  %v1937 = vadd.f32 %v305, %v1936
  %v1938 = vpop.f32.mrf.mxu0
  %1939 = vmatprep.mubr.f32.mxu0 0.0
  %1940 = vmatmul.mubr.f32.gmra.mxu0 %v1690
  %v1941 = vpop.f32.mrf.mxu0
  %v1942 = vadd.f32 %v305, %v1941
  %v1943 = vpop.f32.mrf.mxu0
  %1944 = vmatprep.mubr.f32.mxu0 0.0
  %1945 = vmatmul.mubr.f32.gmra.mxu0 %v1692
  %v1946 = vpop.f32.mrf.mxu0
  %v1947 = vadd.f32 %v305, %v1946
  %v1948 = vpop.f32.mrf.mxu0
  %1949 = vmatprep.mubr.f32.mxu0 0.0
  %1950 = vmatmul.mubr.f32.gmra.mxu0 %v1694
  %v1951 = vpop.f32.mrf.mxu0
  %v1952 = vadd.f32 %v305, %v1951
  %v1953 = vpop.f32.mrf.mxu0
  %1954 = vmatprep.mubr.f32.mxu0 0.0
  %1955 = vmatmul.mubr.f32.gmra.mxu0 %v1696
  %v1956 = vpop.f32.mrf.mxu0
  %v1957 = vadd.f32 %v305, %v1956
  %v1958 = vpop.f32.mrf.mxu0
  %1959 = vmatprep.mubr.f32.mxu0 0.0
  %1960 = vmatmul.mubr.f32.gmra.mxu0 %v1698
  %v1961 = vpop.f32.mrf.mxu0
  %v1962 = vadd.f32 %v305, %v1961
  %v1963 = vpop.f32.mrf.mxu0
  %1964 = vmatprep.mubr.f32.mxu0 0.0
  %1965 = vmatmul.mubr.f32.gmra.mxu0 %v1700
  %v1966 = vpop.f32.mrf.mxu0
  %v1967 = vadd.f32 %v305, %v1966
  %v1968 = vpop.f32.mrf.mxu0
  %1969 = vmatprep.mubr.f32.mxu0 0.0
  %1970 = vmatmul.mubr.f32.gmra.mxu0 %v1702
  %v1971 = vpop.f32.mrf.mxu0
  %v1972 = vadd.f32 %v305, %v1971
  %v1973 = vpop.f32.mrf.mxu0
  %1974 = vmatprep.mubr.f32.mxu0 0.0
  %1975 = vmatmul.mubr.f32.gmra.mxu0 %v1704
  %v1976 = vpop.f32.mrf.mxu0
  %v1977 = vadd.f32 %v305, %v1976
  %v1978 = vpop.f32.mrf.mxu0
  %1979 = vmatprep.mubr.f32.mxu0 0.0
  %1980 = vmatmul.mubr.f32.gmra.mxu0 %v1706
  %v1981 = vpop.f32.mrf.mxu0
  %v1982 = vadd.f32 %v305, %v1981
  %v1983 = vpop.f32.mrf.mxu0
  %1984 = vmatprep.mubr.f32.mxu0 0.0
  %1985 = vmatmul.mubr.f32.gmra.mxu0 %v1708
  %v1986 = vpop.f32.mrf.mxu0
  %v1987 = vadd.f32 %v305, %v1986
  %v1988 = vpop.f32.mrf.mxu0
  %1989 = vmatprep.mubr.f32.mxu0 0.0
  %1990 = vmatmul.mubr.f32.gmra.mxu0 %v1710
  %v1991 = vpop.f32.mrf.mxu0
  %v1992 = vadd.f32 %v305, %v1991
  %v1993 = vpop.f32.mrf.mxu0
  %1994 = vmatprep.mubr.f32.mxu0 0.0
  %1995 = vmatmul.mubr.f32.gmra.mxu0 %v1712
  %v1996 = vpop.f32.mrf.mxu0
  %v1997 = vadd.f32 %v305, %v1996
  %v1998 = vpop.f32.mrf.mxu0
  %1999 = vmatprep.mubr.f32.mxu0 0.0
  %2000 = vmatmul.mubr.f32.gmra.mxu0 %v1714
  %v2001 = vpop.f32.mrf.mxu0
  %v2002 = vadd.f32 %v305, %v2001
  %v2003 = vpop.f32.mrf.mxu0
  %2004 = vmatprep.mubr.f32.mxu0 0.0
  %2005 = vmatmul.mubr.f32.gmra.mxu0 %v1716
  %v2006 = vpop.f32.mrf.mxu0
  %v2007 = vadd.f32 %v305, %v2006
  %v2008 = vpop.f32.mrf.mxu0
  %2009 = vmatprep.mubr.f32.mxu0 0.0
  %2010 = vmatmul.mubr.f32.gmra.mxu0 %v1718
  %v2011 = vpop.f32.mrf.mxu0
  %v2012 = vadd.f32 %v305, %v2011
  %v2013 = vpop.f32.mrf.mxu0
  %2014 = vmatprep.mubr.f32.mxu0 0.0
  %2015 = vmatmul.mubr.f32.gmra.mxu0 %v1720
  %v2016 = vpop.f32.mrf.mxu0
  %v2017 = vadd.f32 %v305, %v2016
  %v2018 = vpop.f32.mrf.mxu0
  %2019 = vmatprep.mubr.f32.mxu0 0.0
  %2020 = vmatmul.mubr.f32.gmra.mxu0 %v1722
  %v2021 = vpop.f32.mrf.mxu0
  %v2022 = vadd.f32 %v305, %v2021
  %v2023 = vpop.f32.mrf.mxu0
  %2024 = vmatprep.mubr.f32.mxu0 0.0
  %2025 = vmatmul.mubr.f32.gmra.mxu0 %v1724
  %v2026 = vpop.f32.mrf.mxu0
  %v2027 = vadd.f32 %v305, %v2026
  %v2028 = vpop.f32.mrf.mxu0
  %2029 = vmatprep.mubr.f32.mxu0 0.0
  %2030 = vmatmul.mubr.f32.gmra.mxu0 %v1726
  %v2031 = vpop.f32.mrf.mxu0
  %v2032 = vadd.f32 %v305, %v2031
  %v2033 = vpop.f32.mrf.mxu0
  %2034 = vmatprep.mubr.f32.mxu0 0.0
  %2035 = vmatmul.mubr.f32.gmra.mxu0 %v1728
  %v2036 = vpop.f32.mrf.mxu0
  %v2037 = vadd.f32 %v305, %v2036
  %v2038 = vpop.f32.mrf.mxu0
  %2039 = vmatprep.mubr.f32.mxu0 0.0
  %2040 = vmatmul.mubr.f32.gmra.mxu0 %v1730
  %v2041 = vpop.f32.mrf.mxu0
  %v2042 = vadd.f32 %v305, %v2041
  %v2043 = vpop.f32.mrf.mxu0
  %2044 = vmatprep.mubr.f32.mxu0 0.0
  %2045 = vmatmul.mubr.f32.gmra.mxu0 %v1732
  %v2046 = vpop.f32.mrf.mxu0
  %v2047 = vadd.f32 %v305, %v2046
  %v2048 = vpop.f32.mrf.mxu0
  %2049 = vmatprep.mubr.f32.mxu0 0.0
  %2050 = vmatmul.mubr.f32.gmra.mxu0 %v1734
  %v2051 = vpop.f32.mrf.mxu0
  %v2052 = vadd.f32 %v305, %v2051
  %v2053 = vpop.f32.mrf.mxu0
  %2054 = vmatprep.mubr.f32.mxu0 0.0
  %2055 = vmatmul.mubr.f32.gmra.mxu0 %v1736
  %v2056 = vpop.f32.mrf.mxu0
  %v2057 = vadd.f32 %v305, %v2056
  %v2058 = vpop.f32.mrf.mxu0
  %2059 = vmatprep.mubr.f32.mxu0 0.0
  %2060 = vmatmul.mubr.f32.gmra.mxu0 %v1738
  %v2061 = vpop.f32.mrf.mxu0
  %v2062 = vadd.f32 %v305, %v2061
  %v2063 = vpop.f32.mrf.mxu0
  %2064 = vmatprep.mubr.f32.mxu0 0.0
  %2065 = vmatmul.mubr.f32.gmra.mxu0 %v1740
  %v2066 = vpop.f32.mrf.mxu0
  %v2067 = vadd.f32 %v305, %v2066
  %v2068 = vpop.f32.mrf.mxu0
  %2069 = vmatprep.mubr.f32.mxu0 0.0
  %2070 = vmatmul.mubr.f32.gmra.mxu0 %v1742
  %v2071 = vpop.f32.mrf.mxu0
  %v2072 = vadd.f32 %v305, %v2071
  %v2073 = vpop.f32.mrf.mxu0
  %2074 = vmatprep.mubr.f32.mxu0 0.0
  %2075 = vmatmul.mubr.f32.gmra.mxu0 %v1744
  %v2076 = vpop.f32.mrf.mxu0
  %v2077 = vadd.f32 %v305, %v2076
  %v2078 = vpop.f32.mrf.mxu0
  %2079 = vmatprep.mubr.f32.mxu0 0.0
  %2080 = vmatmul.mubr.f32.gmra.mxu0 %v1746
  %v2081 = vpop.f32.mrf.mxu0
  %v2082 = vadd.f32 %v305, %v2081
  %v2083 = vpop.f32.mrf.mxu0
  %2084 = vmatprep.mubr.f32.mxu0 0.0
  %2085 = vmatmul.mubr.f32.gmra.mxu0 %v1748
  %v2086 = vpop.f32.mrf.mxu0
  %v2087 = vadd.f32 %v305, %v2086
  %v2088 = vpop.f32.mrf.mxu0
  %2089 = vmatprep.mubr.f32.mxu0 0.0
  %2090 = vmatmul.mubr.f32.gmra.mxu0 %v1750
  %v2091 = vpop.f32.mrf.mxu0
  %v2092 = vadd.f32 %v305, %v2091
  %v2093 = vpop.f32.mrf.mxu0
  %2094 = vmatprep.mubr.f32.mxu0 0.0
  %2095 = vmatmul.mubr.f32.gmra.mxu0 %v1752
  %v2096 = vpop.f32.mrf.mxu0
  %v2097 = vadd.f32 %v305, %v2096
  %v2098 = vpop.f32.mrf.mxu0
  %2099 = vmatprep.mubr.f32.mxu0 0.0
  %2100 = vmatmul.mubr.f32.gmra.mxu0 %v1754
  %v2101 = vpop.f32.mrf.mxu0
  %v2102 = vadd.f32 %v305, %v2101
  %v2103 = vpop.f32.mrf.mxu0
  %2104 = vmatprep.mubr.f32.mxu0 0.0
  %2105 = vmatmul.mubr.f32.gmra.mxu0 %v1756
  %v2106 = vpop.f32.mrf.mxu0
  %v2107 = vadd.f32 %v305, %v2106
  %v2108 = vpop.f32.mrf.mxu0
  %2109 = vmatprep.mubr.f32.mxu0 0.0
  %2110 = vmatmul.mubr.f32.gmra.mxu0 %v1758
  %v2111 = vpop.f32.mrf.mxu0
  %v2112 = vadd.f32 %v305, %v2111
  %v2113 = vpop.f32.mrf.mxu0
  %2114 = vmatprep.mubr.f32.mxu0 0.0
  %2115 = vmatmul.mubr.f32.gmra.mxu0 %v1760
  %v2116 = vpop.f32.mrf.mxu0
  %v2117 = vadd.f32 %v305, %v2116
  %v2118 = vpop.f32.mrf.mxu0
  %2119 = vmatprep.mubr.f32.mxu0 0.0
  %2120 = vmatmul.mubr.f32.gmra.mxu0 %v1762
  %v2121 = vpop.f32.mrf.mxu0
  %v2122 = vadd.f32 %v305, %v2121
  %v2123 = vpop.f32.mrf.mxu0
  %2124 = vmatprep.mubr.f32.mxu0 0.0
  %2125 = vmatmul.mubr.f32.gmra.mxu0 %v1764
  %v2126 = vpop.f32.mrf.mxu0
  %v2127 = vadd.f32 %v305, %v2126
  %v2128 = vpop.f32.mrf.mxu0
  %2129 = vmatprep.mubr.f32.mxu0 0.0
  %2130 = vmatmul.mubr.f32.gmra.mxu0 %v1766
  %v2131 = vpop.f32.mrf.mxu0
  %v2132 = vadd.f32 %v305, %v2131
  %v2133 = vpop.f32.mrf.mxu0
  %2134 = vmatprep.mubr.f32.mxu0 0.0
  %2135 = vmatmul.mubr.f32.gmra.mxu0 %v1768
  %v2136 = vpop.f32.mrf.mxu0
  %v2137 = vadd.f32 %v305, %v2136
  %v2138 = vpop.f32.mrf.mxu0
  %2139 = vmatprep.mubr.f32.mxu0 0.0
  %2140 = vmatmul.mubr.f32.gmra.mxu0 %v1770
  %v2141 = vpop.f32.mrf.mxu0
  %v2142 = vadd.f32 %v305, %v2141
  %v2143 = vpop.f32.mrf.mxu0
  %2144 = vmatprep.mubr.f32.mxu0 0.0
  %2145 = vmatmul.mubr.f32.gmra.mxu0 %v1772
  %v2146 = vpop.f32.mrf.mxu0
  %v2147 = vadd.f32 %v305, %v2146
  %v2148 = vpop.f32.mrf.mxu0
  %2149 = vmatprep.mubr.f32.mxu0 0.0
  %2150 = vmatmul.mubr.f32.gmra.mxu0 %v1774
  %v2151 = vpop.f32.mrf.mxu0
  %v2152 = vadd.f32 %v305, %v2151
  %v2153 = vpop.f32.mrf.mxu0
  %2154 = vmatprep.mubr.f32.mxu0 0.0
  %2155 = vmatmul.mubr.f32.gmra.mxu0 %v1776
  %v2156 = vpop.f32.mrf.mxu0
  %v2157 = vadd.f32 %v305, %v2156
  %v2158 = vpop.f32.mrf.mxu0
  %2159 = vmatprep.mubr.f32.mxu0 0.0
  %2160 = vmatmul.mubr.f32.gmra.mxu0 %v1778
  %v2161 = vpop.f32.mrf.mxu0
  %v2162 = vadd.f32 %v305, %v2161
  %v2163 = vpop.f32.mrf.mxu0
  %2164 = vdwg.mxu0
  %vm2165 = vcmp.ge.f32.partialorder %v1847, 0.0
  %vm2166 = vcmp.ge.f32.partialorder %v1852, 0.0
  %vm2167 = vcmp.ge.f32.partialorder %v1857, 0.0
  %vm2168 = vcmp.ge.f32.partialorder %v1862, 0.0
  %vm2169 = vcmp.ge.f32.partialorder %v1867, 0.0
  %vm2170 = vcmp.ge.f32.partialorder %v1872, 0.0
  %vm2171 = vcmp.ge.f32.partialorder %v1877, 0.0
  %vm2172 = vcmp.ge.f32.partialorder %v1882, 0.0
  %vm2173 = vcmp.ge.f32.partialorder %v1887, 0.0
  %vm2174 = vcmp.ge.f32.partialorder %v1892, 0.0
  %vm2175 = vcmp.ge.f32.partialorder %v1897, 0.0
  %vm2176 = vcmp.ge.f32.partialorder %v1902, 0.0
  %vm2177 = vcmp.ge.f32.partialorder %v1907, 0.0
  %vm2178 = vcmp.ge.f32.partialorder %v1912, 0.0
  %vm2179 = vcmp.ge.f32.partialorder %v1917, 0.0
  %vm2180 = vcmp.ge.f32.partialorder %v1922, 0.0
  %vm2181 = vcmp.ge.f32.partialorder %v1927, 0.0
  %vm2182 = vcmp.ge.f32.partialorder %v1932, 0.0
  %vm2183 = vcmp.ge.f32.partialorder %v1937, 0.0
  %vm2184 = vcmp.ge.f32.partialorder %v1942, 0.0
  %vm2185 = vcmp.ge.f32.partialorder %v1947, 0.0
  %vm2186 = vcmp.ge.f32.partialorder %v1952, 0.0
  %vm2187 = vcmp.ge.f32.partialorder %v1957, 0.0
  %vm2188 = vcmp.ge.f32.partialorder %v1962, 0.0
  %vm2189 = vcmp.ge.f32.partialorder %v1967, 0.0
  %vm2190 = vcmp.ge.f32.partialorder %v1972, 0.0
  %vm2191 = vcmp.ge.f32.partialorder %v1977, 0.0
  %vm2192 = vcmp.ge.f32.partialorder %v1982, 0.0
  %vm2193 = vcmp.ge.f32.partialorder %v1987, 0.0
  %vm2194 = vcmp.ge.f32.partialorder %v1992, 0.0
  %vm2195 = vcmp.ge.f32.partialorder %v1997, 0.0
  %vm2196 = vcmp.ge.f32.partialorder %v2002, 0.0
  %vm2197 = vcmp.ge.f32.partialorder %v2007, 0.0
  %vm2198 = vcmp.ge.f32.partialorder %v2012, 0.0
  %vm2199 = vcmp.ge.f32.partialorder %v2017, 0.0
  %vm2200 = vcmp.ge.f32.partialorder %v2022, 0.0
  %vm2201 = vcmp.ge.f32.partialorder %v2027, 0.0
  %vm2202 = vcmp.ge.f32.partialorder %v2032, 0.0
  %vm2203 = vcmp.ge.f32.partialorder %v2037, 0.0
  %vm2204 = vcmp.ge.f32.partialorder %v2042, 0.0
  %vm2205 = vcmp.ge.f32.partialorder %v2047, 0.0
  %vm2206 = vcmp.ge.f32.partialorder %v2052, 0.0
  %vm2207 = vcmp.ge.f32.partialorder %v2057, 0.0
  %vm2208 = vcmp.ge.f32.partialorder %v2062, 0.0
  %vm2209 = vcmp.ge.f32.partialorder %v2067, 0.0
  %vm2210 = vcmp.ge.f32.partialorder %v2072, 0.0
  %vm2211 = vcmp.ge.f32.partialorder %v2077, 0.0
  %vm2212 = vcmp.ge.f32.partialorder %v2082, 0.0
  %vm2213 = vcmp.ge.f32.partialorder %v2087, 0.0
  %vm2214 = vcmp.ge.f32.partialorder %v2092, 0.0
  %vm2215 = vcmp.ge.f32.partialorder %v2097, 0.0
  %vm2216 = vcmp.ge.f32.partialorder %v2102, 0.0
  %vm2217 = vcmp.ge.f32.partialorder %v2107, 0.0
  %vm2218 = vcmp.ge.f32.partialorder %v2112, 0.0
  %vm2219 = vcmp.ge.f32.partialorder %v2117, 0.0
  %vm2220 = vcmp.ge.f32.partialorder %v2122, 0.0
  %vm2221 = vcmp.ge.f32.partialorder %v2127, 0.0
  %vm2222 = vcmp.ge.f32.partialorder %v2132, 0.0
  %vm2223 = vcmp.ge.f32.partialorder %v2137, 0.0
  %vm2224 = vcmp.ge.f32.partialorder %v2142, 0.0
  %vm2225 = vcmp.ge.f32.partialorder %v2147, 0.0
  %vm2226 = vcmp.ge.f32.partialorder %v2152, 0.0
  %vm2227 = vcmp.ge.f32.partialorder %v2157, 0.0
  %vm2228 = vcmp.ge.f32.partialorder %v2162, 0.0
  %v2229 = vmul.f32 %v1847, 0.2
  %v2230 = vmul.f32 %v1852, 0.2
  %v2231 = vmul.f32 %v1857, 0.2
  %v2232 = vmul.f32 %v1862, 0.2
  %v2233 = vmul.f32 %v1867, 0.2
  %v2234 = vmul.f32 %v1872, 0.2
  %v2235 = vmul.f32 %v1877, 0.2
  %v2236 = vmul.f32 %v1882, 0.2
  %v2237 = vmul.f32 %v1887, 0.2
  %v2238 = vmul.f32 %v1892, 0.2
  %v2239 = vmul.f32 %v1897, 0.2
  %v2240 = vmul.f32 %v1902, 0.2
  %v2241 = vmul.f32 %v1907, 0.2
  %v2242 = vmul.f32 %v1912, 0.2
  %v2243 = vmul.f32 %v1917, 0.2
  %v2244 = vmul.f32 %v1922, 0.2
  %v2245 = vmul.f32 %v1927, 0.2
  %v2246 = vmul.f32 %v1932, 0.2
  %v2247 = vmul.f32 %v1937, 0.2
  %v2248 = vmul.f32 %v1942, 0.2
  %v2249 = vmul.f32 %v1947, 0.2
  %v2250 = vmul.f32 %v1952, 0.2
  %v2251 = vmul.f32 %v1957, 0.2
  %v2252 = vmul.f32 %v1962, 0.2
  %v2253 = vmul.f32 %v1967, 0.2
  %v2254 = vmul.f32 %v1972, 0.2
  %v2255 = vmul.f32 %v1977, 0.2
  %v2256 = vmul.f32 %v1982, 0.2
  %v2257 = vmul.f32 %v1987, 0.2
  %v2258 = vmul.f32 %v1992, 0.2
  %v2259 = vmul.f32 %v1997, 0.2
  %v2260 = vmul.f32 %v2002, 0.2
  %v2261 = vmul.f32 %v2007, 0.2
  %v2262 = vmul.f32 %v2012, 0.2
  %v2263 = vmul.f32 %v2017, 0.2
  %v2264 = vmul.f32 %v2022, 0.2
  %v2265 = vmul.f32 %v2027, 0.2
  %v2266 = vmul.f32 %v2032, 0.2
  %v2267 = vmul.f32 %v2037, 0.2
  %v2268 = vmul.f32 %v2042, 0.2
  %v2269 = vmul.f32 %v2047, 0.2
  %v2270 = vmul.f32 %v2052, 0.2
  %v2271 = vmul.f32 %v2057, 0.2
  %v2272 = vmul.f32 %v2062, 0.2
  %v2273 = vmul.f32 %v2067, 0.2
  %v2274 = vmul.f32 %v2072, 0.2
  %v2275 = vmul.f32 %v2077, 0.2
  %v2276 = vmul.f32 %v2082, 0.2
  %v2277 = vmul.f32 %v2087, 0.2
  %v2278 = vmul.f32 %v2092, 0.2
  %v2279 = vmul.f32 %v2097, 0.2
  %v2280 = vmul.f32 %v2102, 0.2
  %v2281 = vmul.f32 %v2107, 0.2
  %v2282 = vmul.f32 %v2112, 0.2
  %v2283 = vmul.f32 %v2117, 0.2
  %v2284 = vmul.f32 %v2122, 0.2
  %v2285 = vmul.f32 %v2127, 0.2
  %v2286 = vmul.f32 %v2132, 0.2
  %v2287 = vmul.f32 %v2137, 0.2
  %v2288 = vmul.f32 %v2142, 0.2
  %v2289 = vmul.f32 %v2147, 0.2
  %v2290 = vmul.f32 %v2152, 0.2
  %v2291 = vmul.f32 %v2157, 0.2
  %v2292 = vmul.f32 %v2162, 0.2
  %v2293 = vsel %vm2165, %v1847, %v2229
  %v2294 = vsel %vm2166, %v1852, %v2230
  %v2295 = vsel %vm2167, %v1857, %v2231
  %v2296 = vsel %vm2168, %v1862, %v2232
  %v2297 = vsel %vm2169, %v1867, %v2233
  %v2298 = vsel %vm2170, %v1872, %v2234
  %v2299 = vsel %vm2171, %v1877, %v2235
  %v2300 = vsel %vm2172, %v1882, %v2236
  %v2301 = vsel %vm2173, %v1887, %v2237
  %v2302 = vsel %vm2174, %v1892, %v2238
  %v2303 = vsel %vm2175, %v1897, %v2239
  %v2304 = vsel %vm2176, %v1902, %v2240
  %v2305 = vsel %vm2177, %v1907, %v2241
  %v2306 = vsel %vm2178, %v1912, %v2242
  %v2307 = vsel %vm2179, %v1917, %v2243
  %v2308 = vsel %vm2180, %v1922, %v2244
  %v2309 = vsel %vm2181, %v1927, %v2245
  %v2310 = vsel %vm2182, %v1932, %v2246
  %v2311 = vsel %vm2183, %v1937, %v2247
  %v2312 = vsel %vm2184, %v1942, %v2248
  %v2313 = vsel %vm2185, %v1947, %v2249
  %v2314 = vsel %vm2186, %v1952, %v2250
  %v2315 = vsel %vm2187, %v1957, %v2251
  %v2316 = vsel %vm2188, %v1962, %v2252
  %v2317 = vsel %vm2189, %v1967, %v2253
  %v2318 = vsel %vm2190, %v1972, %v2254
  %v2319 = vsel %vm2191, %v1977, %v2255
  %v2320 = vsel %vm2192, %v1982, %v2256
  %v2321 = vsel %vm2193, %v1987, %v2257
  %v2322 = vsel %vm2194, %v1992, %v2258
  %v2323 = vsel %vm2195, %v1997, %v2259
  %v2324 = vsel %vm2196, %v2002, %v2260
  %v2325 = vsel %vm2197, %v2007, %v2261
  %v2326 = vsel %vm2198, %v2012, %v2262
  %v2327 = vsel %vm2199, %v2017, %v2263
  %v2328 = vsel %vm2200, %v2022, %v2264
  %v2329 = vsel %vm2201, %v2027, %v2265
  %v2330 = vsel %vm2202, %v2032, %v2266
  %v2331 = vsel %vm2203, %v2037, %v2267
  %v2332 = vsel %vm2204, %v2042, %v2268
  %v2333 = vsel %vm2205, %v2047, %v2269
  %v2334 = vsel %vm2206, %v2052, %v2270
  %v2335 = vsel %vm2207, %v2057, %v2271
  %v2336 = vsel %vm2208, %v2062, %v2272
  %v2337 = vsel %vm2209, %v2067, %v2273
  %v2338 = vsel %vm2210, %v2072, %v2274
  %v2339 = vsel %vm2211, %v2077, %v2275
  %v2340 = vsel %vm2212, %v2082, %v2276
  %v2341 = vsel %vm2213, %v2087, %v2277
  %v2342 = vsel %vm2214, %v2092, %v2278
  %v2343 = vsel %vm2215, %v2097, %v2279
  %v2344 = vsel %vm2216, %v2102, %v2280
  %v2345 = vsel %vm2217, %v2107, %v2281
  %v2346 = vsel %vm2218, %v2112, %v2282
  %v2347 = vsel %vm2219, %v2117, %v2283
  %v2348 = vsel %vm2220, %v2122, %v2284
  %v2349 = vsel %vm2221, %v2127, %v2285
  %v2350 = vsel %vm2222, %v2132, %v2286
  %v2351 = vsel %vm2223, %v2137, %v2287
  %v2352 = vsel %vm2224, %v2142, %v2288
  %v2353 = vsel %vm2225, %v2147, %v2289
  %v2354 = vsel %vm2226, %v2152, %v2290
  %v2355 = vsel %vm2227, %v2157, %v2291
  %v2356 = vsel %vm2228, %v2162, %v2292
  %v2421 = vcombine.high %v2293, %v2293
  %v2423 = vunpack.c.l.s4 1983009808
  %v2424 = vunpack.c.0.s8 %v2423
  %v2425 = vlaneseq
  %v2426 = vshrl.u32 %v2425, 7
  %v2427 = vsub.s32 %v2424, %v2426
  %v2428 = vrot.slane %v2293, %v2427
  %v2430 = vunpack.c.l.s4 1983009808
  %v2431 = vunpack.c.0.s8 %v2430
  %v2432 = vlaneseq
  %v2433 = vshrl.u32 %v2432, 7
  %v2434 = vsub.s32 %v2431, %v2433
  %v2435 = vrot.slane %v2421, %v2434
  %v2436 = vcombine.high %v2428, %v2428
  %v2437 = vcombine.high %v2435, %v2435
  %v2438 = vcombine.high %v2294, %v2294
  %v2440 = vunpack.c.l.s4 1983009808
  %v2441 = vunpack.c.0.s8 %v2440
  %v2442 = vlaneseq
  %v2443 = vshrl.u32 %v2442, 7
  %v2444 = vsub.s32 %v2441, %v2443
  %v2445 = vrot.slane %v2294, %v2444
  %v2447 = vunpack.c.l.s4 1983009808
  %v2448 = vunpack.c.0.s8 %v2447
  %v2449 = vlaneseq
  %v2450 = vshrl.u32 %v2449, 7
  %v2451 = vsub.s32 %v2448, %v2450
  %v2452 = vrot.slane %v2438, %v2451
  %v2453 = vcombine.high %v2445, %v2445
  %v2454 = vcombine.high %v2452, %v2452
  %v2455 = vcombine.high %v2295, %v2295
  %v2457 = vunpack.c.l.s4 1983009808
  %v2458 = vunpack.c.0.s8 %v2457
  %v2459 = vlaneseq
  %v2460 = vshrl.u32 %v2459, 7
  %v2461 = vsub.s32 %v2458, %v2460
  %v2462 = vrot.slane %v2295, %v2461
  %v2464 = vunpack.c.l.s4 1983009808
  %v2465 = vunpack.c.0.s8 %v2464
  %v2466 = vlaneseq
  %v2467 = vshrl.u32 %v2466, 7
  %v2468 = vsub.s32 %v2465, %v2467
  %v2469 = vrot.slane %v2455, %v2468
  %v2470 = vcombine.high %v2462, %v2462
  %v2471 = vcombine.high %v2469, %v2469
  %v2472 = vcombine.high %v2296, %v2296
  %v2474 = vunpack.c.l.s4 1983009808
  %v2475 = vunpack.c.0.s8 %v2474
  %v2476 = vlaneseq
  %v2477 = vshrl.u32 %v2476, 7
  %v2478 = vsub.s32 %v2475, %v2477
  %v2479 = vrot.slane %v2296, %v2478
  %v2481 = vunpack.c.l.s4 1983009808
  %v2482 = vunpack.c.0.s8 %v2481
  %v2483 = vlaneseq
  %v2484 = vshrl.u32 %v2483, 7
  %v2485 = vsub.s32 %v2482, %v2484
  %v2486 = vrot.slane %v2472, %v2485
  %v2487 = vcombine.high %v2479, %v2479
  %v2488 = vcombine.high %v2486, %v2486
  %v2489 = vcombine.high %v2297, %v2297
  %v2491 = vunpack.c.l.s4 1983009808
  %v2492 = vunpack.c.0.s8 %v2491
  %v2493 = vlaneseq
  %v2494 = vshrl.u32 %v2493, 7
  %v2495 = vsub.s32 %v2492, %v2494
  %v2496 = vrot.slane %v2297, %v2495
  %v2498 = vunpack.c.l.s4 1983009808
  %v2499 = vunpack.c.0.s8 %v2498
  %v2500 = vlaneseq
  %v2501 = vshrl.u32 %v2500, 7
  %v2502 = vsub.s32 %v2499, %v2501
  %v2503 = vrot.slane %v2489, %v2502
  %v2504 = vcombine.high %v2496, %v2496
  %v2505 = vcombine.high %v2503, %v2503
  %v2506 = vcombine.high %v2298, %v2298
  %v2508 = vunpack.c.l.s4 1983009808
  %v2509 = vunpack.c.0.s8 %v2508
  %v2510 = vlaneseq
  %v2511 = vshrl.u32 %v2510, 7
  %v2512 = vsub.s32 %v2509, %v2511
  %v2513 = vrot.slane %v2298, %v2512
  %v2515 = vunpack.c.l.s4 1983009808
  %v2516 = vunpack.c.0.s8 %v2515
  %v2517 = vlaneseq
  %v2518 = vshrl.u32 %v2517, 7
  %v2519 = vsub.s32 %v2516, %v2518
  %v2520 = vrot.slane %v2506, %v2519
  %v2521 = vcombine.high %v2513, %v2513
  %v2522 = vcombine.high %v2520, %v2520
  %v2523 = vcombine.high %v2299, %v2299
  %v2525 = vunpack.c.l.s4 1983009808
  %v2526 = vunpack.c.0.s8 %v2525
  %v2527 = vlaneseq
  %v2528 = vshrl.u32 %v2527, 7
  %v2529 = vsub.s32 %v2526, %v2528
  %v2530 = vrot.slane %v2299, %v2529
  %v2532 = vunpack.c.l.s4 1983009808
  %v2533 = vunpack.c.0.s8 %v2532
  %v2534 = vlaneseq
  %v2535 = vshrl.u32 %v2534, 7
  %v2536 = vsub.s32 %v2533, %v2535
  %v2537 = vrot.slane %v2523, %v2536
  %v2538 = vcombine.high %v2530, %v2530
  %v2539 = vcombine.high %v2537, %v2537
  %v2540 = vcombine.high %v2300, %v2300
  %v2542 = vunpack.c.l.s4 1983009808
  %v2543 = vunpack.c.0.s8 %v2542
  %v2544 = vlaneseq
  %v2545 = vshrl.u32 %v2544, 7
  %v2546 = vsub.s32 %v2543, %v2545
  %v2547 = vrot.slane %v2300, %v2546
  %v2549 = vunpack.c.l.s4 1983009808
  %v2550 = vunpack.c.0.s8 %v2549
  %v2551 = vlaneseq
  %v2552 = vshrl.u32 %v2551, 7
  %v2553 = vsub.s32 %v2550, %v2552
  %v2554 = vrot.slane %v2540, %v2553
  %v2555 = vcombine.high %v2547, %v2547
  %v2556 = vcombine.high %v2554, %v2554
  %v2557 = vcombine.high %v2301, %v2301
  %v2559 = vunpack.c.l.s4 1983009808
  %v2560 = vunpack.c.0.s8 %v2559
  %v2561 = vlaneseq
  %v2562 = vshrl.u32 %v2561, 7
  %v2563 = vsub.s32 %v2560, %v2562
  %v2564 = vrot.slane %v2301, %v2563
  %v2566 = vunpack.c.l.s4 1983009808
  %v2567 = vunpack.c.0.s8 %v2566
  %v2568 = vlaneseq
  %v2569 = vshrl.u32 %v2568, 7
  %v2570 = vsub.s32 %v2567, %v2569
  %v2571 = vrot.slane %v2557, %v2570
  %v2572 = vcombine.high %v2564, %v2564
  %v2573 = vcombine.high %v2571, %v2571
  %v2574 = vcombine.high %v2302, %v2302
  %v2576 = vunpack.c.l.s4 1983009808
  %v2577 = vunpack.c.0.s8 %v2576
  %v2578 = vlaneseq
  %v2579 = vshrl.u32 %v2578, 7
  %v2580 = vsub.s32 %v2577, %v2579
  %v2581 = vrot.slane %v2302, %v2580
  %v2583 = vunpack.c.l.s4 1983009808
  %v2584 = vunpack.c.0.s8 %v2583
  %v2585 = vlaneseq
  %v2586 = vshrl.u32 %v2585, 7
  %v2587 = vsub.s32 %v2584, %v2586
  %v2588 = vrot.slane %v2574, %v2587
  %v2589 = vcombine.high %v2581, %v2581
  %v2590 = vcombine.high %v2588, %v2588
  %v2591 = vcombine.high %v2303, %v2303
  %v2593 = vunpack.c.l.s4 1983009808
  %v2594 = vunpack.c.0.s8 %v2593
  %v2595 = vlaneseq
  %v2596 = vshrl.u32 %v2595, 7
  %v2597 = vsub.s32 %v2594, %v2596
  %v2598 = vrot.slane %v2303, %v2597
  %v2600 = vunpack.c.l.s4 1983009808
  %v2601 = vunpack.c.0.s8 %v2600
  %v2602 = vlaneseq
  %v2603 = vshrl.u32 %v2602, 7
  %v2604 = vsub.s32 %v2601, %v2603
  %v2605 = vrot.slane %v2591, %v2604
  %v2606 = vcombine.high %v2598, %v2598
  %v2607 = vcombine.high %v2605, %v2605
  %v2608 = vcombine.high %v2304, %v2304
  %v2610 = vunpack.c.l.s4 1983009808
  %v2611 = vunpack.c.0.s8 %v2610
  %v2612 = vlaneseq
  %v2613 = vshrl.u32 %v2612, 7
  %v2614 = vsub.s32 %v2611, %v2613
  %v2615 = vrot.slane %v2304, %v2614
  %v2617 = vunpack.c.l.s4 1983009808
  %v2618 = vunpack.c.0.s8 %v2617
  %v2619 = vlaneseq
  %v2620 = vshrl.u32 %v2619, 7
  %v2621 = vsub.s32 %v2618, %v2620
  %v2622 = vrot.slane %v2608, %v2621
  %v2623 = vcombine.high %v2615, %v2615
  %v2624 = vcombine.high %v2622, %v2622
  %v2625 = vcombine.high %v2305, %v2305
  %v2627 = vunpack.c.l.s4 1983009808
  %v2628 = vunpack.c.0.s8 %v2627
  %v2629 = vlaneseq
  %v2630 = vshrl.u32 %v2629, 7
  %v2631 = vsub.s32 %v2628, %v2630
  %v2632 = vrot.slane %v2305, %v2631
  %v2634 = vunpack.c.l.s4 1983009808
  %v2635 = vunpack.c.0.s8 %v2634
  %v2636 = vlaneseq
  %v2637 = vshrl.u32 %v2636, 7
  %v2638 = vsub.s32 %v2635, %v2637
  %v2639 = vrot.slane %v2625, %v2638
  %v2640 = vcombine.high %v2632, %v2632
  %v2641 = vcombine.high %v2639, %v2639
  %v2642 = vcombine.high %v2306, %v2306
  %v2644 = vunpack.c.l.s4 1983009808
  %v2645 = vunpack.c.0.s8 %v2644
  %v2646 = vlaneseq
  %v2647 = vshrl.u32 %v2646, 7
  %v2648 = vsub.s32 %v2645, %v2647
  %v2649 = vrot.slane %v2306, %v2648
  %v2651 = vunpack.c.l.s4 1983009808
  %v2652 = vunpack.c.0.s8 %v2651
  %v2653 = vlaneseq
  %v2654 = vshrl.u32 %v2653, 7
  %v2655 = vsub.s32 %v2652, %v2654
  %v2656 = vrot.slane %v2642, %v2655
  %v2657 = vcombine.high %v2649, %v2649
  %v2658 = vcombine.high %v2656, %v2656
  %v2659 = vcombine.high %v2307, %v2307
  %v2661 = vunpack.c.l.s4 1983009808
  %v2662 = vunpack.c.0.s8 %v2661
  %v2663 = vlaneseq
  %v2664 = vshrl.u32 %v2663, 7
  %v2665 = vsub.s32 %v2662, %v2664
  %v2666 = vrot.slane %v2307, %v2665
  %v2668 = vunpack.c.l.s4 1983009808
  %v2669 = vunpack.c.0.s8 %v2668
  %v2670 = vlaneseq
  %v2671 = vshrl.u32 %v2670, 7
  %v2672 = vsub.s32 %v2669, %v2671
  %v2673 = vrot.slane %v2659, %v2672
  %v2674 = vcombine.high %v2666, %v2666
  %v2675 = vcombine.high %v2673, %v2673
  %v2676 = vcombine.high %v2308, %v2308
  %v2678 = vunpack.c.l.s4 1983009808
  %v2679 = vunpack.c.0.s8 %v2678
  %v2680 = vlaneseq
  %v2681 = vshrl.u32 %v2680, 7
  %v2682 = vsub.s32 %v2679, %v2681
  %v2683 = vrot.slane %v2308, %v2682
  %v2685 = vunpack.c.l.s4 1983009808
  %v2686 = vunpack.c.0.s8 %v2685
  %v2687 = vlaneseq
  %v2688 = vshrl.u32 %v2687, 7
  %v2689 = vsub.s32 %v2686, %v2688
  %v2690 = vrot.slane %v2676, %v2689
  %v2691 = vcombine.high %v2683, %v2683
  %v2692 = vcombine.high %v2690, %v2690
  %v2693 = vcombine.high %v2309, %v2309
  %v2695 = vunpack.c.l.s4 1983009808
  %v2696 = vunpack.c.0.s8 %v2695
  %v2697 = vlaneseq
  %v2698 = vshrl.u32 %v2697, 7
  %v2699 = vsub.s32 %v2696, %v2698
  %v2700 = vrot.slane %v2309, %v2699
  %v2702 = vunpack.c.l.s4 1983009808
  %v2703 = vunpack.c.0.s8 %v2702
  %v2704 = vlaneseq
  %v2705 = vshrl.u32 %v2704, 7
  %v2706 = vsub.s32 %v2703, %v2705
  %v2707 = vrot.slane %v2693, %v2706
  %v2708 = vcombine.high %v2700, %v2700
  %v2709 = vcombine.high %v2707, %v2707
  %v2710 = vcombine.high %v2310, %v2310
  %v2712 = vunpack.c.l.s4 1983009808
  %v2713 = vunpack.c.0.s8 %v2712
  %v2714 = vlaneseq
  %v2715 = vshrl.u32 %v2714, 7
  %v2716 = vsub.s32 %v2713, %v2715
  %v2717 = vrot.slane %v2310, %v2716
  %v2719 = vunpack.c.l.s4 1983009808
  %v2720 = vunpack.c.0.s8 %v2719
  %v2721 = vlaneseq
  %v2722 = vshrl.u32 %v2721, 7
  %v2723 = vsub.s32 %v2720, %v2722
  %v2724 = vrot.slane %v2710, %v2723
  %v2725 = vcombine.high %v2717, %v2717
  %v2726 = vcombine.high %v2724, %v2724
  %v2727 = vcombine.high %v2311, %v2311
  %v2729 = vunpack.c.l.s4 1983009808
  %v2730 = vunpack.c.0.s8 %v2729
  %v2731 = vlaneseq
  %v2732 = vshrl.u32 %v2731, 7
  %v2733 = vsub.s32 %v2730, %v2732
  %v2734 = vrot.slane %v2311, %v2733
  %v2736 = vunpack.c.l.s4 1983009808
  %v2737 = vunpack.c.0.s8 %v2736
  %v2738 = vlaneseq
  %v2739 = vshrl.u32 %v2738, 7
  %v2740 = vsub.s32 %v2737, %v2739
  %v2741 = vrot.slane %v2727, %v2740
  %v2742 = vcombine.high %v2734, %v2734
  %v2743 = vcombine.high %v2741, %v2741
  %v2744 = vcombine.high %v2312, %v2312
  %v2746 = vunpack.c.l.s4 1983009808
  %v2747 = vunpack.c.0.s8 %v2746
  %v2748 = vlaneseq
  %v2749 = vshrl.u32 %v2748, 7
  %v2750 = vsub.s32 %v2747, %v2749
  %v2751 = vrot.slane %v2312, %v2750
  %v2753 = vunpack.c.l.s4 1983009808
  %v2754 = vunpack.c.0.s8 %v2753
  %v2755 = vlaneseq
  %v2756 = vshrl.u32 %v2755, 7
  %v2757 = vsub.s32 %v2754, %v2756
  %v2758 = vrot.slane %v2744, %v2757
  %v2759 = vcombine.high %v2751, %v2751
  %v2760 = vcombine.high %v2758, %v2758
  %v2761 = vcombine.high %v2313, %v2313
  %v2763 = vunpack.c.l.s4 1983009808
  %v2764 = vunpack.c.0.s8 %v2763
  %v2765 = vlaneseq
  %v2766 = vshrl.u32 %v2765, 7
  %v2767 = vsub.s32 %v2764, %v2766
  %v2768 = vrot.slane %v2313, %v2767
  %v2770 = vunpack.c.l.s4 1983009808
  %v2771 = vunpack.c.0.s8 %v2770
  %v2772 = vlaneseq
  %v2773 = vshrl.u32 %v2772, 7
  %v2774 = vsub.s32 %v2771, %v2773
  %v2775 = vrot.slane %v2761, %v2774
  %v2776 = vcombine.high %v2768, %v2768
  %v2777 = vcombine.high %v2775, %v2775
  %v2778 = vcombine.high %v2314, %v2314
  %v2780 = vunpack.c.l.s4 1983009808
  %v2781 = vunpack.c.0.s8 %v2780
  %v2782 = vlaneseq
  %v2783 = vshrl.u32 %v2782, 7
  %v2784 = vsub.s32 %v2781, %v2783
  %v2785 = vrot.slane %v2314, %v2784
  %v2787 = vunpack.c.l.s4 1983009808
  %v2788 = vunpack.c.0.s8 %v2787
  %v2789 = vlaneseq
  %v2790 = vshrl.u32 %v2789, 7
  %v2791 = vsub.s32 %v2788, %v2790
  %v2792 = vrot.slane %v2778, %v2791
  %v2793 = vcombine.high %v2785, %v2785
  %v2794 = vcombine.high %v2792, %v2792
  %v2795 = vcombine.high %v2315, %v2315
  %v2797 = vunpack.c.l.s4 1983009808
  %v2798 = vunpack.c.0.s8 %v2797
  %v2799 = vlaneseq
  %v2800 = vshrl.u32 %v2799, 7
  %v2801 = vsub.s32 %v2798, %v2800
  %v2802 = vrot.slane %v2315, %v2801
  %v2804 = vunpack.c.l.s4 1983009808
  %v2805 = vunpack.c.0.s8 %v2804
  %v2806 = vlaneseq
  %v2807 = vshrl.u32 %v2806, 7
  %v2808 = vsub.s32 %v2805, %v2807
  %v2809 = vrot.slane %v2795, %v2808
  %v2810 = vcombine.high %v2802, %v2802
  %v2811 = vcombine.high %v2809, %v2809
  %v2812 = vcombine.high %v2316, %v2316
  %v2814 = vunpack.c.l.s4 1983009808
  %v2815 = vunpack.c.0.s8 %v2814
  %v2816 = vlaneseq
  %v2817 = vshrl.u32 %v2816, 7
  %v2818 = vsub.s32 %v2815, %v2817
  %v2819 = vrot.slane %v2316, %v2818
  %v2821 = vunpack.c.l.s4 1983009808
  %v2822 = vunpack.c.0.s8 %v2821
  %v2823 = vlaneseq
  %v2824 = vshrl.u32 %v2823, 7
  %v2825 = vsub.s32 %v2822, %v2824
  %v2826 = vrot.slane %v2812, %v2825
  %v2827 = vcombine.high %v2819, %v2819
  %v2828 = vcombine.high %v2826, %v2826
  %v2829 = vcombine.high %v2317, %v2317
  %v2831 = vunpack.c.l.s4 1983009808
  %v2832 = vunpack.c.0.s8 %v2831
  %v2833 = vlaneseq
  %v2834 = vshrl.u32 %v2833, 7
  %v2835 = vsub.s32 %v2832, %v2834
  %v2836 = vrot.slane %v2317, %v2835
  %v2838 = vunpack.c.l.s4 1983009808
  %v2839 = vunpack.c.0.s8 %v2838
  %v2840 = vlaneseq
  %v2841 = vshrl.u32 %v2840, 7
  %v2842 = vsub.s32 %v2839, %v2841
  %v2843 = vrot.slane %v2829, %v2842
  %v2844 = vcombine.high %v2836, %v2836
  %v2845 = vcombine.high %v2843, %v2843
  %v2846 = vcombine.high %v2318, %v2318
  %v2848 = vunpack.c.l.s4 1983009808
  %v2849 = vunpack.c.0.s8 %v2848
  %v2850 = vlaneseq
  %v2851 = vshrl.u32 %v2850, 7
  %v2852 = vsub.s32 %v2849, %v2851
  %v2853 = vrot.slane %v2318, %v2852
  %v2855 = vunpack.c.l.s4 1983009808
  %v2856 = vunpack.c.0.s8 %v2855
  %v2857 = vlaneseq
  %v2858 = vshrl.u32 %v2857, 7
  %v2859 = vsub.s32 %v2856, %v2858
  %v2860 = vrot.slane %v2846, %v2859
  %v2861 = vcombine.high %v2853, %v2853
  %v2862 = vcombine.high %v2860, %v2860
  %v2863 = vcombine.high %v2319, %v2319
  %v2865 = vunpack.c.l.s4 1983009808
  %v2866 = vunpack.c.0.s8 %v2865
  %v2867 = vlaneseq
  %v2868 = vshrl.u32 %v2867, 7
  %v2869 = vsub.s32 %v2866, %v2868
  %v2870 = vrot.slane %v2319, %v2869
  %v2872 = vunpack.c.l.s4 1983009808
  %v2873 = vunpack.c.0.s8 %v2872
  %v2874 = vlaneseq
  %v2875 = vshrl.u32 %v2874, 7
  %v2876 = vsub.s32 %v2873, %v2875
  %v2877 = vrot.slane %v2863, %v2876
  %v2878 = vcombine.high %v2870, %v2870
  %v2879 = vcombine.high %v2877, %v2877
  %v2880 = vcombine.high %v2320, %v2320
  %v2882 = vunpack.c.l.s4 1983009808
  %v2883 = vunpack.c.0.s8 %v2882
  %v2884 = vlaneseq
  %v2885 = vshrl.u32 %v2884, 7
  %v2886 = vsub.s32 %v2883, %v2885
  %v2887 = vrot.slane %v2320, %v2886
  %v2889 = vunpack.c.l.s4 1983009808
  %v2890 = vunpack.c.0.s8 %v2889
  %v2891 = vlaneseq
  %v2892 = vshrl.u32 %v2891, 7
  %v2893 = vsub.s32 %v2890, %v2892
  %v2894 = vrot.slane %v2880, %v2893
  %v2895 = vcombine.high %v2887, %v2887
  %v2896 = vcombine.high %v2894, %v2894
  %v2897 = vcombine.high %v2321, %v2321
  %v2899 = vunpack.c.l.s4 1983009808
  %v2900 = vunpack.c.0.s8 %v2899
  %v2901 = vlaneseq
  %v2902 = vshrl.u32 %v2901, 7
  %v2903 = vsub.s32 %v2900, %v2902
  %v2904 = vrot.slane %v2321, %v2903
  %v2906 = vunpack.c.l.s4 1983009808
  %v2907 = vunpack.c.0.s8 %v2906
  %v2908 = vlaneseq
  %v2909 = vshrl.u32 %v2908, 7
  %v2910 = vsub.s32 %v2907, %v2909
  %v2911 = vrot.slane %v2897, %v2910
  %v2912 = vcombine.high %v2904, %v2904
  %v2913 = vcombine.high %v2911, %v2911
  %v2914 = vcombine.high %v2322, %v2322
  %v2916 = vunpack.c.l.s4 1983009808
  %v2917 = vunpack.c.0.s8 %v2916
  %v2918 = vlaneseq
  %v2919 = vshrl.u32 %v2918, 7
  %v2920 = vsub.s32 %v2917, %v2919
  %v2921 = vrot.slane %v2322, %v2920
  %v2923 = vunpack.c.l.s4 1983009808
  %v2924 = vunpack.c.0.s8 %v2923
  %v2925 = vlaneseq
  %v2926 = vshrl.u32 %v2925, 7
  %v2927 = vsub.s32 %v2924, %v2926
  %v2928 = vrot.slane %v2914, %v2927
  %v2929 = vcombine.high %v2921, %v2921
  %v2930 = vcombine.high %v2928, %v2928
  %v2931 = vcombine.high %v2323, %v2323
  %v2933 = vunpack.c.l.s4 1983009808
  %v2934 = vunpack.c.0.s8 %v2933
  %v2935 = vlaneseq
  %v2936 = vshrl.u32 %v2935, 7
  %v2937 = vsub.s32 %v2934, %v2936
  %v2938 = vrot.slane %v2323, %v2937
  %v2940 = vunpack.c.l.s4 1983009808
  %v2941 = vunpack.c.0.s8 %v2940
  %v2942 = vlaneseq
  %v2943 = vshrl.u32 %v2942, 7
  %v2944 = vsub.s32 %v2941, %v2943
  %v2945 = vrot.slane %v2931, %v2944
  %v2946 = vcombine.high %v2938, %v2938
  %v2947 = vcombine.high %v2945, %v2945
  %v2948 = vcombine.high %v2324, %v2324
  %v2950 = vunpack.c.l.s4 1983009808
  %v2951 = vunpack.c.0.s8 %v2950
  %v2952 = vlaneseq
  %v2953 = vshrl.u32 %v2952, 7
  %v2954 = vsub.s32 %v2951, %v2953
  %v2955 = vrot.slane %v2324, %v2954
  %v2957 = vunpack.c.l.s4 1983009808
  %v2958 = vunpack.c.0.s8 %v2957
  %v2959 = vlaneseq
  %v2960 = vshrl.u32 %v2959, 7
  %v2961 = vsub.s32 %v2958, %v2960
  %v2962 = vrot.slane %v2948, %v2961
  %v2963 = vcombine.high %v2955, %v2955
  %v2964 = vcombine.high %v2962, %v2962
  %v2965 = vcombine.high %v2325, %v2325
  %v2967 = vunpack.c.l.s4 1983009808
  %v2968 = vunpack.c.0.s8 %v2967
  %v2969 = vlaneseq
  %v2970 = vshrl.u32 %v2969, 7
  %v2971 = vsub.s32 %v2968, %v2970
  %v2972 = vrot.slane %v2325, %v2971
  %v2974 = vunpack.c.l.s4 1983009808
  %v2975 = vunpack.c.0.s8 %v2974
  %v2976 = vlaneseq
  %v2977 = vshrl.u32 %v2976, 7
  %v2978 = vsub.s32 %v2975, %v2977
  %v2979 = vrot.slane %v2965, %v2978
  %v2980 = vcombine.high %v2972, %v2972
  %v2981 = vcombine.high %v2979, %v2979
  %v2982 = vcombine.high %v2326, %v2326
  %v2984 = vunpack.c.l.s4 1983009808
  %v2985 = vunpack.c.0.s8 %v2984
  %v2986 = vlaneseq
  %v2987 = vshrl.u32 %v2986, 7
  %v2988 = vsub.s32 %v2985, %v2987
  %v2989 = vrot.slane %v2326, %v2988
  %v2991 = vunpack.c.l.s4 1983009808
  %v2992 = vunpack.c.0.s8 %v2991
  %v2993 = vlaneseq
  %v2994 = vshrl.u32 %v2993, 7
  %v2995 = vsub.s32 %v2992, %v2994
  %v2996 = vrot.slane %v2982, %v2995
  %v2997 = vcombine.high %v2989, %v2989
  %v2998 = vcombine.high %v2996, %v2996
  %v2999 = vcombine.high %v2327, %v2327
  %v3001 = vunpack.c.l.s4 1983009808
  %v3002 = vunpack.c.0.s8 %v3001
  %v3003 = vlaneseq
  %v3004 = vshrl.u32 %v3003, 7
  %v3005 = vsub.s32 %v3002, %v3004
  %v3006 = vrot.slane %v2327, %v3005
  %v3008 = vunpack.c.l.s4 1983009808
  %v3009 = vunpack.c.0.s8 %v3008
  %v3010 = vlaneseq
  %v3011 = vshrl.u32 %v3010, 7
  %v3012 = vsub.s32 %v3009, %v3011
  %v3013 = vrot.slane %v2999, %v3012
  %v3014 = vcombine.high %v3006, %v3006
  %v3015 = vcombine.high %v3013, %v3013
  %v3016 = vcombine.high %v2328, %v2328
  %v3018 = vunpack.c.l.s4 1983009808
  %v3019 = vunpack.c.0.s8 %v3018
  %v3020 = vlaneseq
  %v3021 = vshrl.u32 %v3020, 7
  %v3022 = vsub.s32 %v3019, %v3021
  %v3023 = vrot.slane %v2328, %v3022
  %v3025 = vunpack.c.l.s4 1983009808
  %v3026 = vunpack.c.0.s8 %v3025
  %v3027 = vlaneseq
  %v3028 = vshrl.u32 %v3027, 7
  %v3029 = vsub.s32 %v3026, %v3028
  %v3030 = vrot.slane %v3016, %v3029
  %v3031 = vcombine.high %v3023, %v3023
  %v3032 = vcombine.high %v3030, %v3030
  %v3033 = vcombine.high %v2329, %v2329
  %v3035 = vunpack.c.l.s4 1983009808
  %v3036 = vunpack.c.0.s8 %v3035
  %v3037 = vlaneseq
  %v3038 = vshrl.u32 %v3037, 7
  %v3039 = vsub.s32 %v3036, %v3038
  %v3040 = vrot.slane %v2329, %v3039
  %v3042 = vunpack.c.l.s4 1983009808
  %v3043 = vunpack.c.0.s8 %v3042
  %v3044 = vlaneseq
  %v3045 = vshrl.u32 %v3044, 7
  %v3046 = vsub.s32 %v3043, %v3045
  %v3047 = vrot.slane %v3033, %v3046
  %v3048 = vcombine.high %v3040, %v3040
  %v3049 = vcombine.high %v3047, %v3047
  %v3050 = vcombine.high %v2330, %v2330
  %v3052 = vunpack.c.l.s4 1983009808
  %v3053 = vunpack.c.0.s8 %v3052
  %v3054 = vlaneseq
  %v3055 = vshrl.u32 %v3054, 7
  %v3056 = vsub.s32 %v3053, %v3055
  %v3057 = vrot.slane %v2330, %v3056
  %v3059 = vunpack.c.l.s4 1983009808
  %v3060 = vunpack.c.0.s8 %v3059
  %v3061 = vlaneseq
  %v3062 = vshrl.u32 %v3061, 7
  %v3063 = vsub.s32 %v3060, %v3062
  %v3064 = vrot.slane %v3050, %v3063
  %v3065 = vcombine.high %v3057, %v3057
  %v3066 = vcombine.high %v3064, %v3064
  %v3067 = vcombine.high %v2331, %v2331
  %v3069 = vunpack.c.l.s4 1983009808
  %v3070 = vunpack.c.0.s8 %v3069
  %v3071 = vlaneseq
  %v3072 = vshrl.u32 %v3071, 7
  %v3073 = vsub.s32 %v3070, %v3072
  %v3074 = vrot.slane %v2331, %v3073
  %v3076 = vunpack.c.l.s4 1983009808
  %v3077 = vunpack.c.0.s8 %v3076
  %v3078 = vlaneseq
  %v3079 = vshrl.u32 %v3078, 7
  %v3080 = vsub.s32 %v3077, %v3079
  %v3081 = vrot.slane %v3067, %v3080
  %v3082 = vcombine.high %v3074, %v3074
  %v3083 = vcombine.high %v3081, %v3081
  %v3084 = vcombine.high %v2332, %v2332
  %v3086 = vunpack.c.l.s4 1983009808
  %v3087 = vunpack.c.0.s8 %v3086
  %v3088 = vlaneseq
  %v3089 = vshrl.u32 %v3088, 7
  %v3090 = vsub.s32 %v3087, %v3089
  %v3091 = vrot.slane %v2332, %v3090
  %v3093 = vunpack.c.l.s4 1983009808
  %v3094 = vunpack.c.0.s8 %v3093
  %v3095 = vlaneseq
  %v3096 = vshrl.u32 %v3095, 7
  %v3097 = vsub.s32 %v3094, %v3096
  %v3098 = vrot.slane %v3084, %v3097
  %v3099 = vcombine.high %v3091, %v3091
  %v3100 = vcombine.high %v3098, %v3098
  %v3101 = vcombine.high %v2333, %v2333
  %v3103 = vunpack.c.l.s4 1983009808
  %v3104 = vunpack.c.0.s8 %v3103
  %v3105 = vlaneseq
  %v3106 = vshrl.u32 %v3105, 7
  %v3107 = vsub.s32 %v3104, %v3106
  %v3108 = vrot.slane %v2333, %v3107
  %v3110 = vunpack.c.l.s4 1983009808
  %v3111 = vunpack.c.0.s8 %v3110
  %v3112 = vlaneseq
  %v3113 = vshrl.u32 %v3112, 7
  %v3114 = vsub.s32 %v3111, %v3113
  %v3115 = vrot.slane %v3101, %v3114
  %v3116 = vcombine.high %v3108, %v3108
  %v3117 = vcombine.high %v3115, %v3115
  %v3118 = vcombine.high %v2334, %v2334
  %v3120 = vunpack.c.l.s4 1983009808
  %v3121 = vunpack.c.0.s8 %v3120
  %v3122 = vlaneseq
  %v3123 = vshrl.u32 %v3122, 7
  %v3124 = vsub.s32 %v3121, %v3123
  %v3125 = vrot.slane %v2334, %v3124
  %v3127 = vunpack.c.l.s4 1983009808
  %v3128 = vunpack.c.0.s8 %v3127
  %v3129 = vlaneseq
  %v3130 = vshrl.u32 %v3129, 7
  %v3131 = vsub.s32 %v3128, %v3130
  %v3132 = vrot.slane %v3118, %v3131
  %v3133 = vcombine.high %v3125, %v3125
  %v3134 = vcombine.high %v3132, %v3132
  %v3135 = vcombine.high %v2335, %v2335
  %v3137 = vunpack.c.l.s4 1983009808
  %v3138 = vunpack.c.0.s8 %v3137
  %v3139 = vlaneseq
  %v3140 = vshrl.u32 %v3139, 7
  %v3141 = vsub.s32 %v3138, %v3140
  %v3142 = vrot.slane %v2335, %v3141
  %v3144 = vunpack.c.l.s4 1983009808
  %v3145 = vunpack.c.0.s8 %v3144
  %v3146 = vlaneseq
  %v3147 = vshrl.u32 %v3146, 7
  %v3148 = vsub.s32 %v3145, %v3147
  %v3149 = vrot.slane %v3135, %v3148
  %v3150 = vcombine.high %v3142, %v3142
  %v3151 = vcombine.high %v3149, %v3149
  %v3152 = vcombine.high %v2336, %v2336
  %v3154 = vunpack.c.l.s4 1983009808
  %v3155 = vunpack.c.0.s8 %v3154
  %v3156 = vlaneseq
  %v3157 = vshrl.u32 %v3156, 7
  %v3158 = vsub.s32 %v3155, %v3157
  %v3159 = vrot.slane %v2336, %v3158
  %v3161 = vunpack.c.l.s4 1983009808
  %v3162 = vunpack.c.0.s8 %v3161
  %v3163 = vlaneseq
  %v3164 = vshrl.u32 %v3163, 7
  %v3165 = vsub.s32 %v3162, %v3164
  %v3166 = vrot.slane %v3152, %v3165
  %v3167 = vcombine.high %v3159, %v3159
  %v3168 = vcombine.high %v3166, %v3166
  %v3169 = vcombine.high %v2337, %v2337
  %v3171 = vunpack.c.l.s4 1983009808
  %v3172 = vunpack.c.0.s8 %v3171
  %v3173 = vlaneseq
  %v3174 = vshrl.u32 %v3173, 7
  %v3175 = vsub.s32 %v3172, %v3174
  %v3176 = vrot.slane %v2337, %v3175
  %v3178 = vunpack.c.l.s4 1983009808
  %v3179 = vunpack.c.0.s8 %v3178
  %v3180 = vlaneseq
  %v3181 = vshrl.u32 %v3180, 7
  %v3182 = vsub.s32 %v3179, %v3181
  %v3183 = vrot.slane %v3169, %v3182
  %v3184 = vcombine.high %v3176, %v3176
  %v3185 = vcombine.high %v3183, %v3183
  %v3186 = vcombine.high %v2338, %v2338
  %v3188 = vunpack.c.l.s4 1983009808
  %v3189 = vunpack.c.0.s8 %v3188
  %v3190 = vlaneseq
  %v3191 = vshrl.u32 %v3190, 7
  %v3192 = vsub.s32 %v3189, %v3191
  %v3193 = vrot.slane %v2338, %v3192
  %v3195 = vunpack.c.l.s4 1983009808
  %v3196 = vunpack.c.0.s8 %v3195
  %v3197 = vlaneseq
  %v3198 = vshrl.u32 %v3197, 7
  %v3199 = vsub.s32 %v3196, %v3198
  %v3200 = vrot.slane %v3186, %v3199
  %v3201 = vcombine.high %v3193, %v3193
  %v3202 = vcombine.high %v3200, %v3200
  %v3203 = vcombine.high %v2339, %v2339
  %v3205 = vunpack.c.l.s4 1983009808
  %v3206 = vunpack.c.0.s8 %v3205
  %v3207 = vlaneseq
  %v3208 = vshrl.u32 %v3207, 7
  %v3209 = vsub.s32 %v3206, %v3208
  %v3210 = vrot.slane %v2339, %v3209
  %v3212 = vunpack.c.l.s4 1983009808
  %v3213 = vunpack.c.0.s8 %v3212
  %v3214 = vlaneseq
  %v3215 = vshrl.u32 %v3214, 7
  %v3216 = vsub.s32 %v3213, %v3215
  %v3217 = vrot.slane %v3203, %v3216
  %v3218 = vcombine.high %v3210, %v3210
  %v3219 = vcombine.high %v3217, %v3217
  %v3220 = vcombine.high %v2340, %v2340
  %v3222 = vunpack.c.l.s4 1983009808
  %v3223 = vunpack.c.0.s8 %v3222
  %v3224 = vlaneseq
  %v3225 = vshrl.u32 %v3224, 7
  %v3226 = vsub.s32 %v3223, %v3225
  %v3227 = vrot.slane %v2340, %v3226
  %v3229 = vunpack.c.l.s4 1983009808
  %v3230 = vunpack.c.0.s8 %v3229
  %v3231 = vlaneseq
  %v3232 = vshrl.u32 %v3231, 7
  %v3233 = vsub.s32 %v3230, %v3232
  %v3234 = vrot.slane %v3220, %v3233
  %v3235 = vcombine.high %v3227, %v3227
  %v3236 = vcombine.high %v3234, %v3234
  %v3237 = vcombine.high %v2341, %v2341
  %v3239 = vunpack.c.l.s4 1983009808
  %v3240 = vunpack.c.0.s8 %v3239
  %v3241 = vlaneseq
  %v3242 = vshrl.u32 %v3241, 7
  %v3243 = vsub.s32 %v3240, %v3242
  %v3244 = vrot.slane %v2341, %v3243
  %v3246 = vunpack.c.l.s4 1983009808
  %v3247 = vunpack.c.0.s8 %v3246
  %v3248 = vlaneseq
  %v3249 = vshrl.u32 %v3248, 7
  %v3250 = vsub.s32 %v3247, %v3249
  %v3251 = vrot.slane %v3237, %v3250
  %v3252 = vcombine.high %v3244, %v3244
  %v3253 = vcombine.high %v3251, %v3251
  %v3254 = vcombine.high %v2342, %v2342
  %v3256 = vunpack.c.l.s4 1983009808
  %v3257 = vunpack.c.0.s8 %v3256
  %v3258 = vlaneseq
  %v3259 = vshrl.u32 %v3258, 7
  %v3260 = vsub.s32 %v3257, %v3259
  %v3261 = vrot.slane %v2342, %v3260
  %v3263 = vunpack.c.l.s4 1983009808
  %v3264 = vunpack.c.0.s8 %v3263
  %v3265 = vlaneseq
  %v3266 = vshrl.u32 %v3265, 7
  %v3267 = vsub.s32 %v3264, %v3266
  %v3268 = vrot.slane %v3254, %v3267
  %v3269 = vcombine.high %v3261, %v3261
  %v3270 = vcombine.high %v3268, %v3268
  %v3271 = vcombine.high %v2343, %v2343
  %v3273 = vunpack.c.l.s4 1983009808
  %v3274 = vunpack.c.0.s8 %v3273
  %v3275 = vlaneseq
  %v3276 = vshrl.u32 %v3275, 7
  %v3277 = vsub.s32 %v3274, %v3276
  %v3278 = vrot.slane %v2343, %v3277
  %v3280 = vunpack.c.l.s4 1983009808
  %v3281 = vunpack.c.0.s8 %v3280
  %v3282 = vlaneseq
  %v3283 = vshrl.u32 %v3282, 7
  %v3284 = vsub.s32 %v3281, %v3283
  %v3285 = vrot.slane %v3271, %v3284
  %v3286 = vcombine.high %v3278, %v3278
  %v3287 = vcombine.high %v3285, %v3285
  %v3288 = vcombine.high %v2344, %v2344
  %v3290 = vunpack.c.l.s4 1983009808
  %v3291 = vunpack.c.0.s8 %v3290
  %v3292 = vlaneseq
  %v3293 = vshrl.u32 %v3292, 7
  %v3294 = vsub.s32 %v3291, %v3293
  %v3295 = vrot.slane %v2344, %v3294
  %v3297 = vunpack.c.l.s4 1983009808
  %v3298 = vunpack.c.0.s8 %v3297
  %v3299 = vlaneseq
  %v3300 = vshrl.u32 %v3299, 7
  %v3301 = vsub.s32 %v3298, %v3300
  %v3302 = vrot.slane %v3288, %v3301
  %v3303 = vcombine.high %v3295, %v3295
  %v3304 = vcombine.high %v3302, %v3302
  %v3305 = vcombine.high %v2345, %v2345
  %v3307 = vunpack.c.l.s4 1983009808
  %v3308 = vunpack.c.0.s8 %v3307
  %v3309 = vlaneseq
  %v3310 = vshrl.u32 %v3309, 7
  %v3311 = vsub.s32 %v3308, %v3310
  %v3312 = vrot.slane %v2345, %v3311
  %v3314 = vunpack.c.l.s4 1983009808
  %v3315 = vunpack.c.0.s8 %v3314
  %v3316 = vlaneseq
  %v3317 = vshrl.u32 %v3316, 7
  %v3318 = vsub.s32 %v3315, %v3317
  %v3319 = vrot.slane %v3305, %v3318
  %v3320 = vcombine.high %v3312, %v3312
  %v3321 = vcombine.high %v3319, %v3319
  %v3322 = vcombine.high %v2346, %v2346
  %v3324 = vunpack.c.l.s4 1983009808
  %v3325 = vunpack.c.0.s8 %v3324
  %v3326 = vlaneseq
  %v3327 = vshrl.u32 %v3326, 7
  %v3328 = vsub.s32 %v3325, %v3327
  %v3329 = vrot.slane %v2346, %v3328
  %v3331 = vunpack.c.l.s4 1983009808
  %v3332 = vunpack.c.0.s8 %v3331
  %v3333 = vlaneseq
  %v3334 = vshrl.u32 %v3333, 7
  %v3335 = vsub.s32 %v3332, %v3334
  %v3336 = vrot.slane %v3322, %v3335
  %v3337 = vcombine.high %v3329, %v3329
  %v3338 = vcombine.high %v3336, %v3336
  %v3339 = vcombine.high %v2347, %v2347
  %v3341 = vunpack.c.l.s4 1983009808
  %v3342 = vunpack.c.0.s8 %v3341
  %v3343 = vlaneseq
  %v3344 = vshrl.u32 %v3343, 7
  %v3345 = vsub.s32 %v3342, %v3344
  %v3346 = vrot.slane %v2347, %v3345
  %v3348 = vunpack.c.l.s4 1983009808
  %v3349 = vunpack.c.0.s8 %v3348
  %v3350 = vlaneseq
  %v3351 = vshrl.u32 %v3350, 7
  %v3352 = vsub.s32 %v3349, %v3351
  %v3353 = vrot.slane %v3339, %v3352
  %v3354 = vcombine.high %v3346, %v3346
  %v3355 = vcombine.high %v3353, %v3353
  %v3356 = vcombine.high %v2348, %v2348
  %v3358 = vunpack.c.l.s4 1983009808
  %v3359 = vunpack.c.0.s8 %v3358
  %v3360 = vlaneseq
  %v3361 = vshrl.u32 %v3360, 7
  %v3362 = vsub.s32 %v3359, %v3361
  %v3363 = vrot.slane %v2348, %v3362
  %v3365 = vunpack.c.l.s4 1983009808
  %v3366 = vunpack.c.0.s8 %v3365
  %v3367 = vlaneseq
  %v3368 = vshrl.u32 %v3367, 7
  %v3369 = vsub.s32 %v3366, %v3368
  %v3370 = vrot.slane %v3356, %v3369
  %v3371 = vcombine.high %v3363, %v3363
  %v3372 = vcombine.high %v3370, %v3370
  %v3373 = vcombine.high %v2349, %v2349
  %v3375 = vunpack.c.l.s4 1983009808
  %v3376 = vunpack.c.0.s8 %v3375
  %v3377 = vlaneseq
  %v3378 = vshrl.u32 %v3377, 7
  %v3379 = vsub.s32 %v3376, %v3378
  %v3380 = vrot.slane %v2349, %v3379
  %v3382 = vunpack.c.l.s4 1983009808
  %v3383 = vunpack.c.0.s8 %v3382
  %v3384 = vlaneseq
  %v3385 = vshrl.u32 %v3384, 7
  %v3386 = vsub.s32 %v3383, %v3385
  %v3387 = vrot.slane %v3373, %v3386
  %v3388 = vcombine.high %v3380, %v3380
  %v3389 = vcombine.high %v3387, %v3387
  %v3390 = vcombine.high %v2350, %v2350
  %v3392 = vunpack.c.l.s4 1983009808
  %v3393 = vunpack.c.0.s8 %v3392
  %v3394 = vlaneseq
  %v3395 = vshrl.u32 %v3394, 7
  %v3396 = vsub.s32 %v3393, %v3395
  %v3397 = vrot.slane %v2350, %v3396
  %v3399 = vunpack.c.l.s4 1983009808
  %v3400 = vunpack.c.0.s8 %v3399
  %v3401 = vlaneseq
  %v3402 = vshrl.u32 %v3401, 7
  %v3403 = vsub.s32 %v3400, %v3402
  %v3404 = vrot.slane %v3390, %v3403
  %v3405 = vcombine.high %v3397, %v3397
  %v3406 = vcombine.high %v3404, %v3404
  %v3407 = vcombine.high %v2351, %v2351
  %v3409 = vunpack.c.l.s4 1983009808
  %v3410 = vunpack.c.0.s8 %v3409
  %v3411 = vlaneseq
  %v3412 = vshrl.u32 %v3411, 7
  %v3413 = vsub.s32 %v3410, %v3412
  %v3414 = vrot.slane %v2351, %v3413
  %v3416 = vunpack.c.l.s4 1983009808
  %v3417 = vunpack.c.0.s8 %v3416
  %v3418 = vlaneseq
  %v3419 = vshrl.u32 %v3418, 7
  %v3420 = vsub.s32 %v3417, %v3419
  %v3421 = vrot.slane %v3407, %v3420
  %v3422 = vcombine.high %v3414, %v3414
  %v3423 = vcombine.high %v3421, %v3421
  %v3424 = vcombine.high %v2352, %v2352
  %v3426 = vunpack.c.l.s4 1983009808
  %v3427 = vunpack.c.0.s8 %v3426
  %v3428 = vlaneseq
  %v3429 = vshrl.u32 %v3428, 7
  %v3430 = vsub.s32 %v3427, %v3429
  %v3431 = vrot.slane %v2352, %v3430
  %v3433 = vunpack.c.l.s4 1983009808
  %v3434 = vunpack.c.0.s8 %v3433
  %v3435 = vlaneseq
  %v3436 = vshrl.u32 %v3435, 7
  %v3437 = vsub.s32 %v3434, %v3436
  %v3438 = vrot.slane %v3424, %v3437
  %v3439 = vcombine.high %v3431, %v3431
  %v3440 = vcombine.high %v3438, %v3438
  %v3441 = vcombine.high %v2353, %v2353
  %v3443 = vunpack.c.l.s4 1983009808
  %v3444 = vunpack.c.0.s8 %v3443
  %v3445 = vlaneseq
  %v3446 = vshrl.u32 %v3445, 7
  %v3447 = vsub.s32 %v3444, %v3446
  %v3448 = vrot.slane %v2353, %v3447
  %v3450 = vunpack.c.l.s4 1983009808
  %v3451 = vunpack.c.0.s8 %v3450
  %v3452 = vlaneseq
  %v3453 = vshrl.u32 %v3452, 7
  %v3454 = vsub.s32 %v3451, %v3453
  %v3455 = vrot.slane %v3441, %v3454
  %v3456 = vcombine.high %v3448, %v3448
  %v3457 = vcombine.high %v3455, %v3455
  %v3458 = vcombine.high %v2354, %v2354
  %v3460 = vunpack.c.l.s4 1983009808
  %v3461 = vunpack.c.0.s8 %v3460
  %v3462 = vlaneseq
  %v3463 = vshrl.u32 %v3462, 7
  %v3464 = vsub.s32 %v3461, %v3463
  %v3465 = vrot.slane %v2354, %v3464
  %v3467 = vunpack.c.l.s4 1983009808
  %v3468 = vunpack.c.0.s8 %v3467
  %v3469 = vlaneseq
  %v3470 = vshrl.u32 %v3469, 7
  %v3471 = vsub.s32 %v3468, %v3470
  %v3472 = vrot.slane %v3458, %v3471
  %v3473 = vcombine.high %v3465, %v3465
  %v3474 = vcombine.high %v3472, %v3472
  %v3475 = vcombine.high %v2355, %v2355
  %v3477 = vunpack.c.l.s4 1983009808
  %v3478 = vunpack.c.0.s8 %v3477
  %v3479 = vlaneseq
  %v3480 = vshrl.u32 %v3479, 7
  %v3481 = vsub.s32 %v3478, %v3480
  %v3482 = vrot.slane %v2355, %v3481
  %v3484 = vunpack.c.l.s4 1983009808
  %v3485 = vunpack.c.0.s8 %v3484
  %v3486 = vlaneseq
  %v3487 = vshrl.u32 %v3486, 7
  %v3488 = vsub.s32 %v3485, %v3487
  %v3489 = vrot.slane %v3475, %v3488
  %v3490 = vcombine.high %v3482, %v3482
  %v3491 = vcombine.high %v3489, %v3489
  %v3492 = vcombine.high %v2356, %v2356
  %v3494 = vunpack.c.l.s4 1983009808
  %v3495 = vunpack.c.0.s8 %v3494
  %v3496 = vlaneseq
  %v3497 = vshrl.u32 %v3496, 7
  %v3498 = vsub.s32 %v3495, %v3497
  %v3499 = vrot.slane %v2356, %v3498
  %v3501 = vunpack.c.l.s4 1983009808
  %v3502 = vunpack.c.0.s8 %v3501
  %v3503 = vlaneseq
  %v3504 = vshrl.u32 %v3503, 7
  %v3505 = vsub.s32 %v3502, %v3504
  %v3506 = vrot.slane %v3492, %v3505
  %v3507 = vcombine.high %v3499, %v3499
  %v3508 = vcombine.high %v3506, %v3506
  %v3765 = vpack.c.bf16 %v2428, %v2428
  %v3766 = vpack.c.bf16 %v2436, %v2436
  %v3767 = vpack.c.bf16 %v2435, %v2435
  %v3768 = vpack.c.bf16 %v2437, %v2437
  %v3769 = vpack.c.bf16 %v2445, %v2445
  %v3770 = vpack.c.bf16 %v2453, %v2453
  %v3771 = vpack.c.bf16 %v2452, %v2452
  %v3772 = vpack.c.bf16 %v2454, %v2454
  %v3773 = vpack.c.bf16 %v2462, %v2462
  %v3774 = vpack.c.bf16 %v2470, %v2470
  %v3775 = vpack.c.bf16 %v2469, %v2469
  %v3776 = vpack.c.bf16 %v2471, %v2471
  %v3777 = vpack.c.bf16 %v2479, %v2479
  %v3778 = vpack.c.bf16 %v2487, %v2487
  %v3779 = vpack.c.bf16 %v2486, %v2486
  %v3780 = vpack.c.bf16 %v2488, %v2488
  %v3781 = vpack.c.bf16 %v2496, %v2496
  %v3782 = vpack.c.bf16 %v2504, %v2504
  %v3783 = vpack.c.bf16 %v2503, %v2503
  %v3784 = vpack.c.bf16 %v2505, %v2505
  %v3785 = vpack.c.bf16 %v2513, %v2513
  %v3786 = vpack.c.bf16 %v2521, %v2521
  %v3787 = vpack.c.bf16 %v2520, %v2520
  %v3788 = vpack.c.bf16 %v2522, %v2522
  %v3789 = vpack.c.bf16 %v2530, %v2530
  %v3790 = vpack.c.bf16 %v2538, %v2538
  %v3791 = vpack.c.bf16 %v2537, %v2537
  %v3792 = vpack.c.bf16 %v2539, %v2539
  %v3793 = vpack.c.bf16 %v2547, %v2547
  %v3794 = vpack.c.bf16 %v2555, %v2555
  %v3795 = vpack.c.bf16 %v2554, %v2554
  %v3796 = vpack.c.bf16 %v2556, %v2556
  %v3797 = vpack.c.bf16 %v2564, %v2564
  %v3798 = vpack.c.bf16 %v2572, %v2572
  %v3799 = vpack.c.bf16 %v2571, %v2571
  %v3800 = vpack.c.bf16 %v2573, %v2573
  %v3801 = vpack.c.bf16 %v2581, %v2581
  %v3802 = vpack.c.bf16 %v2589, %v2589
  %v3803 = vpack.c.bf16 %v2588, %v2588
  %v3804 = vpack.c.bf16 %v2590, %v2590
  %v3805 = vpack.c.bf16 %v2598, %v2598
  %v3806 = vpack.c.bf16 %v2606, %v2606
  %v3807 = vpack.c.bf16 %v2605, %v2605
  %v3808 = vpack.c.bf16 %v2607, %v2607
  %v3809 = vpack.c.bf16 %v2615, %v2615
  %v3810 = vpack.c.bf16 %v2623, %v2623
  %v3811 = vpack.c.bf16 %v2622, %v2622
  %v3812 = vpack.c.bf16 %v2624, %v2624
  %v3813 = vpack.c.bf16 %v2632, %v2632
  %v3814 = vpack.c.bf16 %v2640, %v2640
  %v3815 = vpack.c.bf16 %v2639, %v2639
  %v3816 = vpack.c.bf16 %v2641, %v2641
  %v3817 = vpack.c.bf16 %v2649, %v2649
  %v3818 = vpack.c.bf16 %v2657, %v2657
  %v3819 = vpack.c.bf16 %v2656, %v2656
  %v3820 = vpack.c.bf16 %v2658, %v2658
  %v3821 = vpack.c.bf16 %v2666, %v2666
  %v3822 = vpack.c.bf16 %v2674, %v2674
  %v3823 = vpack.c.bf16 %v2673, %v2673
  %v3824 = vpack.c.bf16 %v2675, %v2675
  %v3825 = vpack.c.bf16 %v2683, %v2683
  %v3826 = vpack.c.bf16 %v2691, %v2691
  %v3827 = vpack.c.bf16 %v2690, %v2690
  %v3828 = vpack.c.bf16 %v2692, %v2692
  %v3829 = vpack.c.bf16 %v2700, %v2700
  %v3830 = vpack.c.bf16 %v2708, %v2708
  %v3831 = vpack.c.bf16 %v2707, %v2707
  %v3832 = vpack.c.bf16 %v2709, %v2709
  %v3833 = vpack.c.bf16 %v2717, %v2717
  %v3834 = vpack.c.bf16 %v2725, %v2725
  %v3835 = vpack.c.bf16 %v2724, %v2724
  %v3836 = vpack.c.bf16 %v2726, %v2726
  %v3837 = vpack.c.bf16 %v2734, %v2734
  %v3838 = vpack.c.bf16 %v2742, %v2742
  %v3839 = vpack.c.bf16 %v2741, %v2741
  %v3840 = vpack.c.bf16 %v2743, %v2743
  %v3841 = vpack.c.bf16 %v2751, %v2751
  %v3842 = vpack.c.bf16 %v2759, %v2759
  %v3843 = vpack.c.bf16 %v2758, %v2758
  %v3844 = vpack.c.bf16 %v2760, %v2760
  %v3845 = vpack.c.bf16 %v2768, %v2768
  %v3846 = vpack.c.bf16 %v2776, %v2776
  %v3847 = vpack.c.bf16 %v2775, %v2775
  %v3848 = vpack.c.bf16 %v2777, %v2777
  %v3849 = vpack.c.bf16 %v2785, %v2785
  %v3850 = vpack.c.bf16 %v2793, %v2793
  %v3851 = vpack.c.bf16 %v2792, %v2792
  %v3852 = vpack.c.bf16 %v2794, %v2794
  %v3853 = vpack.c.bf16 %v2802, %v2802
  %v3854 = vpack.c.bf16 %v2810, %v2810
  %v3855 = vpack.c.bf16 %v2809, %v2809
  %v3856 = vpack.c.bf16 %v2811, %v2811
  %v3857 = vpack.c.bf16 %v2819, %v2819
  %v3858 = vpack.c.bf16 %v2827, %v2827
  %v3859 = vpack.c.bf16 %v2826, %v2826
  %v3860 = vpack.c.bf16 %v2828, %v2828
  %v3861 = vpack.c.bf16 %v2836, %v2836
  %v3862 = vpack.c.bf16 %v2844, %v2844
  %v3863 = vpack.c.bf16 %v2843, %v2843
  %v3864 = vpack.c.bf16 %v2845, %v2845
  %v3865 = vpack.c.bf16 %v2853, %v2853
  %v3866 = vpack.c.bf16 %v2861, %v2861
  %v3867 = vpack.c.bf16 %v2860, %v2860
  %v3868 = vpack.c.bf16 %v2862, %v2862
  %v3869 = vpack.c.bf16 %v2870, %v2870
  %v3870 = vpack.c.bf16 %v2878, %v2878
  %v3871 = vpack.c.bf16 %v2877, %v2877
  %v3872 = vpack.c.bf16 %v2879, %v2879
  %v3873 = vpack.c.bf16 %v2887, %v2887
  %v3874 = vpack.c.bf16 %v2895, %v2895
  %v3875 = vpack.c.bf16 %v2894, %v2894
  %v3876 = vpack.c.bf16 %v2896, %v2896
  %v3877 = vpack.c.bf16 %v2904, %v2904
  %v3878 = vpack.c.bf16 %v2912, %v2912
  %v3879 = vpack.c.bf16 %v2911, %v2911
  %v3880 = vpack.c.bf16 %v2913, %v2913
  %v3881 = vpack.c.bf16 %v2921, %v2921
  %v3882 = vpack.c.bf16 %v2929, %v2929
  %v3883 = vpack.c.bf16 %v2928, %v2928
  %v3884 = vpack.c.bf16 %v2930, %v2930
  %v3885 = vpack.c.bf16 %v2938, %v2938
  %v3886 = vpack.c.bf16 %v2946, %v2946
  %v3887 = vpack.c.bf16 %v2945, %v2945
  %v3888 = vpack.c.bf16 %v2947, %v2947
  %v3889 = vpack.c.bf16 %v2955, %v2955
  %v3890 = vpack.c.bf16 %v2963, %v2963
  %v3891 = vpack.c.bf16 %v2962, %v2962
  %v3892 = vpack.c.bf16 %v2964, %v2964
  %v3893 = vpack.c.bf16 %v2972, %v2972
  %v3894 = vpack.c.bf16 %v2980, %v2980
  %v3895 = vpack.c.bf16 %v2979, %v2979
  %v3896 = vpack.c.bf16 %v2981, %v2981
  %v3897 = vpack.c.bf16 %v2989, %v2989
  %v3898 = vpack.c.bf16 %v2997, %v2997
  %v3899 = vpack.c.bf16 %v2996, %v2996
  %v3900 = vpack.c.bf16 %v2998, %v2998
  %v3901 = vpack.c.bf16 %v3006, %v3006
  %v3902 = vpack.c.bf16 %v3014, %v3014
  %v3903 = vpack.c.bf16 %v3013, %v3013
  %v3904 = vpack.c.bf16 %v3015, %v3015
  %v3905 = vpack.c.bf16 %v3023, %v3023
  %v3906 = vpack.c.bf16 %v3031, %v3031
  %v3907 = vpack.c.bf16 %v3030, %v3030
  %v3908 = vpack.c.bf16 %v3032, %v3032
  %v3909 = vpack.c.bf16 %v3040, %v3040
  %v3910 = vpack.c.bf16 %v3048, %v3048
  %v3911 = vpack.c.bf16 %v3047, %v3047
  %v3912 = vpack.c.bf16 %v3049, %v3049
  %v3913 = vpack.c.bf16 %v3057, %v3057
  %v3914 = vpack.c.bf16 %v3065, %v3065
  %v3915 = vpack.c.bf16 %v3064, %v3064
  %v3916 = vpack.c.bf16 %v3066, %v3066
  %v3917 = vpack.c.bf16 %v3074, %v3074
  %v3918 = vpack.c.bf16 %v3082, %v3082
  %v3919 = vpack.c.bf16 %v3081, %v3081
  %v3920 = vpack.c.bf16 %v3083, %v3083
  %v3921 = vpack.c.bf16 %v3091, %v3091
  %v3922 = vpack.c.bf16 %v3099, %v3099
  %v3923 = vpack.c.bf16 %v3098, %v3098
  %v3924 = vpack.c.bf16 %v3100, %v3100
  %v3925 = vpack.c.bf16 %v3108, %v3108
  %v3926 = vpack.c.bf16 %v3116, %v3116
  %v3927 = vpack.c.bf16 %v3115, %v3115
  %v3928 = vpack.c.bf16 %v3117, %v3117
  %v3929 = vpack.c.bf16 %v3125, %v3125
  %v3930 = vpack.c.bf16 %v3133, %v3133
  %v3931 = vpack.c.bf16 %v3132, %v3132
  %v3932 = vpack.c.bf16 %v3134, %v3134
  %v3933 = vpack.c.bf16 %v3142, %v3142
  %v3934 = vpack.c.bf16 %v3150, %v3150
  %v3935 = vpack.c.bf16 %v3149, %v3149
  %v3936 = vpack.c.bf16 %v3151, %v3151
  %v3937 = vpack.c.bf16 %v3159, %v3159
  %v3938 = vpack.c.bf16 %v3167, %v3167
  %v3939 = vpack.c.bf16 %v3166, %v3166
  %v3940 = vpack.c.bf16 %v3168, %v3168
  %v3941 = vpack.c.bf16 %v3176, %v3176
  %v3942 = vpack.c.bf16 %v3184, %v3184
  %v3943 = vpack.c.bf16 %v3183, %v3183
  %v3944 = vpack.c.bf16 %v3185, %v3185
  %v3945 = vpack.c.bf16 %v3193, %v3193
  %v3946 = vpack.c.bf16 %v3201, %v3201
  %v3947 = vpack.c.bf16 %v3200, %v3200
  %v3948 = vpack.c.bf16 %v3202, %v3202
  %v3949 = vpack.c.bf16 %v3210, %v3210
  %v3950 = vpack.c.bf16 %v3218, %v3218
  %v3951 = vpack.c.bf16 %v3217, %v3217
  %v3952 = vpack.c.bf16 %v3219, %v3219
  %v3953 = vpack.c.bf16 %v3227, %v3227
  %v3954 = vpack.c.bf16 %v3235, %v3235
  %v3955 = vpack.c.bf16 %v3234, %v3234
  %v3956 = vpack.c.bf16 %v3236, %v3236
  %v3957 = vpack.c.bf16 %v3244, %v3244
  %v3958 = vpack.c.bf16 %v3252, %v3252
  %v3959 = vpack.c.bf16 %v3251, %v3251
  %v3960 = vpack.c.bf16 %v3253, %v3253
  %v3961 = vpack.c.bf16 %v3261, %v3261
  %v3962 = vpack.c.bf16 %v3269, %v3269
  %v3963 = vpack.c.bf16 %v3268, %v3268
  %v3964 = vpack.c.bf16 %v3270, %v3270
  %v3965 = vpack.c.bf16 %v3278, %v3278
  %v3966 = vpack.c.bf16 %v3286, %v3286
  %v3967 = vpack.c.bf16 %v3285, %v3285
  %v3968 = vpack.c.bf16 %v3287, %v3287
  %v3969 = vpack.c.bf16 %v3295, %v3295
  %v3970 = vpack.c.bf16 %v3303, %v3303
  %v3971 = vpack.c.bf16 %v3302, %v3302
  %v3972 = vpack.c.bf16 %v3304, %v3304
  %v3973 = vpack.c.bf16 %v3312, %v3312
  %v3974 = vpack.c.bf16 %v3320, %v3320
  %v3975 = vpack.c.bf16 %v3319, %v3319
  %v3976 = vpack.c.bf16 %v3321, %v3321
  %v3977 = vpack.c.bf16 %v3329, %v3329
  %v3978 = vpack.c.bf16 %v3337, %v3337
  %v3979 = vpack.c.bf16 %v3336, %v3336
  %v3980 = vpack.c.bf16 %v3338, %v3338
  %v3981 = vpack.c.bf16 %v3346, %v3346
  %v3982 = vpack.c.bf16 %v3354, %v3354
  %v3983 = vpack.c.bf16 %v3353, %v3353
  %v3984 = vpack.c.bf16 %v3355, %v3355
  %v3985 = vpack.c.bf16 %v3363, %v3363
  %v3986 = vpack.c.bf16 %v3371, %v3371
  %v3987 = vpack.c.bf16 %v3370, %v3370
  %v3988 = vpack.c.bf16 %v3372, %v3372
  %v3989 = vpack.c.bf16 %v3380, %v3380
  %v3990 = vpack.c.bf16 %v3388, %v3388
  %v3991 = vpack.c.bf16 %v3387, %v3387
  %v3992 = vpack.c.bf16 %v3389, %v3389
  %v3993 = vpack.c.bf16 %v3397, %v3397
  %v3994 = vpack.c.bf16 %v3405, %v3405
  %v3995 = vpack.c.bf16 %v3404, %v3404
  %v3996 = vpack.c.bf16 %v3406, %v3406
  %v3997 = vpack.c.bf16 %v3414, %v3414
  %v3998 = vpack.c.bf16 %v3422, %v3422
  %v3999 = vpack.c.bf16 %v3421, %v3421
  %v4000 = vpack.c.bf16 %v3423, %v3423
  %v4001 = vpack.c.bf16 %v3431, %v3431
  %v4002 = vpack.c.bf16 %v3439, %v3439
  %v4003 = vpack.c.bf16 %v3438, %v3438
  %v4004 = vpack.c.bf16 %v3440, %v3440
  %v4005 = vpack.c.bf16 %v3448, %v3448
  %v4006 = vpack.c.bf16 %v3456, %v3456
  %v4007 = vpack.c.bf16 %v3455, %v3455
  %v4008 = vpack.c.bf16 %v3457, %v3457
  %v4009 = vpack.c.bf16 %v3465, %v3465
  %v4010 = vpack.c.bf16 %v3473, %v3473
  %v4011 = vpack.c.bf16 %v3472, %v3472
  %v4012 = vpack.c.bf16 %v3474, %v3474
  %v4013 = vpack.c.bf16 %v3482, %v3482
  %v4014 = vpack.c.bf16 %v3490, %v3490
  %v4015 = vpack.c.bf16 %v3489, %v3489
  %v4016 = vpack.c.bf16 %v3491, %v3491
  %v4017 = vpack.c.bf16 %v3499, %v3499
  %v4018 = vpack.c.bf16 %v3507, %v3507
  %v4019 = vpack.c.bf16 %v3506, %v3506
  %v4020 = vpack.c.bf16 %v3508, %v3508
  %v4071 = vcombine.low 0, 0
  %v4073 = vunpack.c.l.s4 1966171168
  %v4074 = vunpack.c.0.s8 %v4073
  %v4075 = vlaneseq
  %v4076 = vshrl.u32 %v4075, 7
  %v4077 = vsub.s32 %v4074, %v4076
  %v4078 = vrot.slane %v4071, %v4077
  %v4079 = vcombine.low %v4078, %v4078
  %v4081 = vunpack.c.l.s4 1966171168
  %v4082 = vunpack.c.0.s8 %v4081
  %v4083 = vlaneseq
  %v4084 = vshrl.u32 %v4083, 7
  %v4085 = vsub.s32 %v4082, %v4084
  %v4086 = vrot.slane %v4079, %v4085
  %v4087 = vcombine.low %v4086, %v4086
  %v4088 = vcombine.low 0, %v3782
  %v4089 = vcombine.low %v3784, %v3786
  %v4090 = vcombine.low %v3788, %v3790
  %v4091 = vcombine.low %v3792, %v3794
  %v4093 = vunpack.c.l.s4 1966171168
  %v4094 = vunpack.c.0.s8 %v4093
  %v4095 = vlaneseq
  %v4096 = vshrl.u32 %v4095, 7
  %v4097 = vsub.s32 %v4094, %v4096
  %v4098 = vrot.slane %v4088, %v4097
  %v4100 = vunpack.c.l.s4 1966171168
  %v4101 = vunpack.c.0.s8 %v4100
  %v4102 = vlaneseq
  %v4103 = vshrl.u32 %v4102, 7
  %v4104 = vsub.s32 %v4101, %v4103
  %v4105 = vrot.slane %v4089, %v4104
  %v4107 = vunpack.c.l.s4 1966171168
  %v4108 = vunpack.c.0.s8 %v4107
  %v4109 = vlaneseq
  %v4110 = vshrl.u32 %v4109, 7
  %v4111 = vsub.s32 %v4108, %v4110
  %v4112 = vrot.slane %v4090, %v4111
  %v4114 = vunpack.c.l.s4 1966171168
  %v4115 = vunpack.c.0.s8 %v4114
  %v4116 = vlaneseq
  %v4117 = vshrl.u32 %v4116, 7
  %v4118 = vsub.s32 %v4115, %v4117
  %v4119 = vrot.slane %v4091, %v4118
  %v4120 = vcombine.low %v4098, %v4105
  %v4121 = vcombine.low %v4112, %v4119
  %v4123 = vunpack.c.l.s4 1966171168
  %v4124 = vunpack.c.0.s8 %v4123
  %v4125 = vlaneseq
  %v4126 = vshrl.u32 %v4125, 7
  %v4127 = vsub.s32 %v4124, %v4126
  %v4128 = vrot.slane %v4120, %v4127
  %v4130 = vunpack.c.l.s4 1966171168
  %v4131 = vunpack.c.0.s8 %v4130
  %v4132 = vlaneseq
  %v4133 = vshrl.u32 %v4132, 7
  %v4134 = vsub.s32 %v4131, %v4133
  %v4135 = vrot.slane %v4121, %v4134
  %v4136 = vcombine.low %v4128, %v4135
  %v4137 = vcombine.low 0, %v3814
  %v4138 = vcombine.low %v3816, %v3818
  %v4139 = vcombine.low %v3820, %v3822
  %v4140 = vcombine.low %v3824, %v3826
  %v4142 = vunpack.c.l.s4 1966171168
  %v4143 = vunpack.c.0.s8 %v4142
  %v4144 = vlaneseq
  %v4145 = vshrl.u32 %v4144, 7
  %v4146 = vsub.s32 %v4143, %v4145
  %v4147 = vrot.slane %v4137, %v4146
  %v4149 = vunpack.c.l.s4 1966171168
  %v4150 = vunpack.c.0.s8 %v4149
  %v4151 = vlaneseq
  %v4152 = vshrl.u32 %v4151, 7
  %v4153 = vsub.s32 %v4150, %v4152
  %v4154 = vrot.slane %v4138, %v4153
  %v4156 = vunpack.c.l.s4 1966171168
  %v4157 = vunpack.c.0.s8 %v4156
  %v4158 = vlaneseq
  %v4159 = vshrl.u32 %v4158, 7
  %v4160 = vsub.s32 %v4157, %v4159
  %v4161 = vrot.slane %v4139, %v4160
  %v4163 = vunpack.c.l.s4 1966171168
  %v4164 = vunpack.c.0.s8 %v4163
  %v4165 = vlaneseq
  %v4166 = vshrl.u32 %v4165, 7
  %v4167 = vsub.s32 %v4164, %v4166
  %v4168 = vrot.slane %v4140, %v4167
  %v4169 = vcombine.low %v4147, %v4154
  %v4170 = vcombine.low %v4161, %v4168
  %v4172 = vunpack.c.l.s4 1966171168
  %v4173 = vunpack.c.0.s8 %v4172
  %v4174 = vlaneseq
  %v4175 = vshrl.u32 %v4174, 7
  %v4176 = vsub.s32 %v4173, %v4175
  %v4177 = vrot.slane %v4169, %v4176
  %v4179 = vunpack.c.l.s4 1966171168
  %v4180 = vunpack.c.0.s8 %v4179
  %v4181 = vlaneseq
  %v4182 = vshrl.u32 %v4181, 7
  %v4183 = vsub.s32 %v4180, %v4182
  %v4184 = vrot.slane %v4170, %v4183
  %v4185 = vcombine.low %v4177, %v4184
  %v4186 = vcombine.low 0, %v3846
  %v4187 = vcombine.low %v3848, %v3850
  %v4188 = vcombine.low %v3852, %v3854
  %v4189 = vcombine.low %v3856, %v3858
  %v4191 = vunpack.c.l.s4 1966171168
  %v4192 = vunpack.c.0.s8 %v4191
  %v4193 = vlaneseq
  %v4194 = vshrl.u32 %v4193, 7
  %v4195 = vsub.s32 %v4192, %v4194
  %v4196 = vrot.slane %v4186, %v4195
  %v4198 = vunpack.c.l.s4 1966171168
  %v4199 = vunpack.c.0.s8 %v4198
  %v4200 = vlaneseq
  %v4201 = vshrl.u32 %v4200, 7
  %v4202 = vsub.s32 %v4199, %v4201
  %v4203 = vrot.slane %v4187, %v4202
  %v4205 = vunpack.c.l.s4 1966171168
  %v4206 = vunpack.c.0.s8 %v4205
  %v4207 = vlaneseq
  %v4208 = vshrl.u32 %v4207, 7
  %v4209 = vsub.s32 %v4206, %v4208
  %v4210 = vrot.slane %v4188, %v4209
  %v4212 = vunpack.c.l.s4 1966171168
  %v4213 = vunpack.c.0.s8 %v4212
  %v4214 = vlaneseq
  %v4215 = vshrl.u32 %v4214, 7
  %v4216 = vsub.s32 %v4213, %v4215
  %v4217 = vrot.slane %v4189, %v4216
  %v4218 = vcombine.low %v4196, %v4203
  %v4219 = vcombine.low %v4210, %v4217
  %v4221 = vunpack.c.l.s4 1966171168
  %v4222 = vunpack.c.0.s8 %v4221
  %v4223 = vlaneseq
  %v4224 = vshrl.u32 %v4223, 7
  %v4225 = vsub.s32 %v4222, %v4224
  %v4226 = vrot.slane %v4218, %v4225
  %v4228 = vunpack.c.l.s4 1966171168
  %v4229 = vunpack.c.0.s8 %v4228
  %v4230 = vlaneseq
  %v4231 = vshrl.u32 %v4230, 7
  %v4232 = vsub.s32 %v4229, %v4231
  %v4233 = vrot.slane %v4219, %v4232
  %v4234 = vcombine.low %v4226, %v4233
  %v4235 = vcombine.low 0, %v3878
  %v4236 = vcombine.low %v3880, %v3882
  %v4237 = vcombine.low %v3884, %v3886
  %v4238 = vcombine.low %v3888, %v3890
  %v4240 = vunpack.c.l.s4 1966171168
  %v4241 = vunpack.c.0.s8 %v4240
  %v4242 = vlaneseq
  %v4243 = vshrl.u32 %v4242, 7
  %v4244 = vsub.s32 %v4241, %v4243
  %v4245 = vrot.slane %v4235, %v4244
  %v4247 = vunpack.c.l.s4 1966171168
  %v4248 = vunpack.c.0.s8 %v4247
  %v4249 = vlaneseq
  %v4250 = vshrl.u32 %v4249, 7
  %v4251 = vsub.s32 %v4248, %v4250
  %v4252 = vrot.slane %v4236, %v4251
  %v4254 = vunpack.c.l.s4 1966171168
  %v4255 = vunpack.c.0.s8 %v4254
  %v4256 = vlaneseq
  %v4257 = vshrl.u32 %v4256, 7
  %v4258 = vsub.s32 %v4255, %v4257
  %v4259 = vrot.slane %v4237, %v4258
  %v4261 = vunpack.c.l.s4 1966171168
  %v4262 = vunpack.c.0.s8 %v4261
  %v4263 = vlaneseq
  %v4264 = vshrl.u32 %v4263, 7
  %v4265 = vsub.s32 %v4262, %v4264
  %v4266 = vrot.slane %v4238, %v4265
  %v4267 = vcombine.low %v4245, %v4252
  %v4268 = vcombine.low %v4259, %v4266
  %v4270 = vunpack.c.l.s4 1966171168
  %v4271 = vunpack.c.0.s8 %v4270
  %v4272 = vlaneseq
  %v4273 = vshrl.u32 %v4272, 7
  %v4274 = vsub.s32 %v4271, %v4273
  %v4275 = vrot.slane %v4267, %v4274
  %v4277 = vunpack.c.l.s4 1966171168
  %v4278 = vunpack.c.0.s8 %v4277
  %v4279 = vlaneseq
  %v4280 = vshrl.u32 %v4279, 7
  %v4281 = vsub.s32 %v4278, %v4280
  %v4282 = vrot.slane %v4268, %v4281
  %v4283 = vcombine.low %v4275, %v4282
  %v4284 = vcombine.low 0, %v3910
  %v4285 = vcombine.low %v3912, %v3914
  %v4286 = vcombine.low %v3916, %v3918
  %v4287 = vcombine.low %v3920, %v3922
  %v4289 = vunpack.c.l.s4 1966171168
  %v4290 = vunpack.c.0.s8 %v4289
  %v4291 = vlaneseq
  %v4292 = vshrl.u32 %v4291, 7
  %v4293 = vsub.s32 %v4290, %v4292
  %v4294 = vrot.slane %v4284, %v4293
  %v4296 = vunpack.c.l.s4 1966171168
  %v4297 = vunpack.c.0.s8 %v4296
  %v4298 = vlaneseq
  %v4299 = vshrl.u32 %v4298, 7
  %v4300 = vsub.s32 %v4297, %v4299
  %v4301 = vrot.slane %v4285, %v4300
  %v4303 = vunpack.c.l.s4 1966171168
  %v4304 = vunpack.c.0.s8 %v4303
  %v4305 = vlaneseq
  %v4306 = vshrl.u32 %v4305, 7
  %v4307 = vsub.s32 %v4304, %v4306
  %v4308 = vrot.slane %v4286, %v4307
  %v4310 = vunpack.c.l.s4 1966171168
  %v4311 = vunpack.c.0.s8 %v4310
  %v4312 = vlaneseq
  %v4313 = vshrl.u32 %v4312, 7
  %v4314 = vsub.s32 %v4311, %v4313
  %v4315 = vrot.slane %v4287, %v4314
  %v4316 = vcombine.low %v4294, %v4301
  %v4317 = vcombine.low %v4308, %v4315
  %v4319 = vunpack.c.l.s4 1966171168
  %v4320 = vunpack.c.0.s8 %v4319
  %v4321 = vlaneseq
  %v4322 = vshrl.u32 %v4321, 7
  %v4323 = vsub.s32 %v4320, %v4322
  %v4324 = vrot.slane %v4316, %v4323
  %v4326 = vunpack.c.l.s4 1966171168
  %v4327 = vunpack.c.0.s8 %v4326
  %v4328 = vlaneseq
  %v4329 = vshrl.u32 %v4328, 7
  %v4330 = vsub.s32 %v4327, %v4329
  %v4331 = vrot.slane %v4317, %v4330
  %v4332 = vcombine.low %v4324, %v4331
  %v4333 = vcombine.low 0, %v3942
  %v4334 = vcombine.low %v3944, %v3946
  %v4335 = vcombine.low %v3948, %v3950
  %v4336 = vcombine.low %v3952, %v3954
  %v4338 = vunpack.c.l.s4 1966171168
  %v4339 = vunpack.c.0.s8 %v4338
  %v4340 = vlaneseq
  %v4341 = vshrl.u32 %v4340, 7
  %v4342 = vsub.s32 %v4339, %v4341
  %v4343 = vrot.slane %v4333, %v4342
  %v4345 = vunpack.c.l.s4 1966171168
  %v4346 = vunpack.c.0.s8 %v4345
  %v4347 = vlaneseq
  %v4348 = vshrl.u32 %v4347, 7
  %v4349 = vsub.s32 %v4346, %v4348
  %v4350 = vrot.slane %v4334, %v4349
  %v4352 = vunpack.c.l.s4 1966171168
  %v4353 = vunpack.c.0.s8 %v4352
  %v4354 = vlaneseq
  %v4355 = vshrl.u32 %v4354, 7
  %v4356 = vsub.s32 %v4353, %v4355
  %v4357 = vrot.slane %v4335, %v4356
  %v4359 = vunpack.c.l.s4 1966171168
  %v4360 = vunpack.c.0.s8 %v4359
  %v4361 = vlaneseq
  %v4362 = vshrl.u32 %v4361, 7
  %v4363 = vsub.s32 %v4360, %v4362
  %v4364 = vrot.slane %v4336, %v4363
  %v4365 = vcombine.low %v4343, %v4350
  %v4366 = vcombine.low %v4357, %v4364
  %v4368 = vunpack.c.l.s4 1966171168
  %v4369 = vunpack.c.0.s8 %v4368
  %v4370 = vlaneseq
  %v4371 = vshrl.u32 %v4370, 7
  %v4372 = vsub.s32 %v4369, %v4371
  %v4373 = vrot.slane %v4365, %v4372
  %v4375 = vunpack.c.l.s4 1966171168
  %v4376 = vunpack.c.0.s8 %v4375
  %v4377 = vlaneseq
  %v4378 = vshrl.u32 %v4377, 7
  %v4379 = vsub.s32 %v4376, %v4378
  %v4380 = vrot.slane %v4366, %v4379
  %v4381 = vcombine.low %v4373, %v4380
  %v4382 = vcombine.low 0, %v3974
  %v4383 = vcombine.low %v3976, %v3978
  %v4384 = vcombine.low %v3980, %v3982
  %v4385 = vcombine.low %v3984, %v3986
  %v4387 = vunpack.c.l.s4 1966171168
  %v4388 = vunpack.c.0.s8 %v4387
  %v4389 = vlaneseq
  %v4390 = vshrl.u32 %v4389, 7
  %v4391 = vsub.s32 %v4388, %v4390
  %v4392 = vrot.slane %v4382, %v4391
  %v4394 = vunpack.c.l.s4 1966171168
  %v4395 = vunpack.c.0.s8 %v4394
  %v4396 = vlaneseq
  %v4397 = vshrl.u32 %v4396, 7
  %v4398 = vsub.s32 %v4395, %v4397
  %v4399 = vrot.slane %v4383, %v4398
  %v4401 = vunpack.c.l.s4 1966171168
  %v4402 = vunpack.c.0.s8 %v4401
  %v4403 = vlaneseq
  %v4404 = vshrl.u32 %v4403, 7
  %v4405 = vsub.s32 %v4402, %v4404
  %v4406 = vrot.slane %v4384, %v4405
  %v4408 = vunpack.c.l.s4 1966171168
  %v4409 = vunpack.c.0.s8 %v4408
  %v4410 = vlaneseq
  %v4411 = vshrl.u32 %v4410, 7
  %v4412 = vsub.s32 %v4409, %v4411
  %v4413 = vrot.slane %v4385, %v4412
  %v4414 = vcombine.low %v4392, %v4399
  %v4415 = vcombine.low %v4406, %v4413
  %v4417 = vunpack.c.l.s4 1966171168
  %v4418 = vunpack.c.0.s8 %v4417
  %v4419 = vlaneseq
  %v4420 = vshrl.u32 %v4419, 7
  %v4421 = vsub.s32 %v4418, %v4420
  %v4422 = vrot.slane %v4414, %v4421
  %v4424 = vunpack.c.l.s4 1966171168
  %v4425 = vunpack.c.0.s8 %v4424
  %v4426 = vlaneseq
  %v4427 = vshrl.u32 %v4426, 7
  %v4428 = vsub.s32 %v4425, %v4427
  %v4429 = vrot.slane %v4415, %v4428
  %v4430 = vcombine.low %v4422, %v4429
  %v4487 = vcombine.low %v3781, %v3783
  %v4488 = vcombine.low %v3785, %v3787
  %v4489 = vcombine.low %v3789, %v3791
  %v4490 = vcombine.low %v3793, %v3795
  %v4492 = vunpack.c.l.s4 1966171168
  %v4493 = vunpack.c.0.s8 %v4492
  %v4494 = vlaneseq
  %v4495 = vshrl.u32 %v4494, 7
  %v4496 = vsub.s32 %v4493, %v4495
  %v4497 = vrot.slane %v4487, %v4496
  %v4499 = vunpack.c.l.s4 1966171168
  %v4500 = vunpack.c.0.s8 %v4499
  %v4501 = vlaneseq
  %v4502 = vshrl.u32 %v4501, 7
  %v4503 = vsub.s32 %v4500, %v4502
  %v4504 = vrot.slane %v4488, %v4503
  %v4506 = vunpack.c.l.s4 1966171168
  %v4507 = vunpack.c.0.s8 %v4506
  %v4508 = vlaneseq
  %v4509 = vshrl.u32 %v4508, 7
  %v4510 = vsub.s32 %v4507, %v4509
  %v4511 = vrot.slane %v4489, %v4510
  %v4513 = vunpack.c.l.s4 1966171168
  %v4514 = vunpack.c.0.s8 %v4513
  %v4515 = vlaneseq
  %v4516 = vshrl.u32 %v4515, 7
  %v4517 = vsub.s32 %v4514, %v4516
  %v4518 = vrot.slane %v4490, %v4517
  %v4519 = vcombine.low %v4497, %v4504
  %v4520 = vcombine.low %v4511, %v4518
  %v4522 = vunpack.c.l.s4 1966171168
  %v4523 = vunpack.c.0.s8 %v4522
  %v4524 = vlaneseq
  %v4525 = vshrl.u32 %v4524, 7
  %v4526 = vsub.s32 %v4523, %v4525
  %v4527 = vrot.slane %v4519, %v4526
  %v4529 = vunpack.c.l.s4 1966171168
  %v4530 = vunpack.c.0.s8 %v4529
  %v4531 = vlaneseq
  %v4532 = vshrl.u32 %v4531, 7
  %v4533 = vsub.s32 %v4530, %v4532
  %v4534 = vrot.slane %v4520, %v4533
  %v4535 = vcombine.low %v4527, %v4534
  %v4536 = vcombine.low %v3813, %v3815
  %v4537 = vcombine.low %v3817, %v3819
  %v4538 = vcombine.low %v3821, %v3823
  %v4539 = vcombine.low %v3825, %v3827
  %v4541 = vunpack.c.l.s4 1966171168
  %v4542 = vunpack.c.0.s8 %v4541
  %v4543 = vlaneseq
  %v4544 = vshrl.u32 %v4543, 7
  %v4545 = vsub.s32 %v4542, %v4544
  %v4546 = vrot.slane %v4536, %v4545
  %v4548 = vunpack.c.l.s4 1966171168
  %v4549 = vunpack.c.0.s8 %v4548
  %v4550 = vlaneseq
  %v4551 = vshrl.u32 %v4550, 7
  %v4552 = vsub.s32 %v4549, %v4551
  %v4553 = vrot.slane %v4537, %v4552
  %v4555 = vunpack.c.l.s4 1966171168
  %v4556 = vunpack.c.0.s8 %v4555
  %v4557 = vlaneseq
  %v4558 = vshrl.u32 %v4557, 7
  %v4559 = vsub.s32 %v4556, %v4558
  %v4560 = vrot.slane %v4538, %v4559
  %v4562 = vunpack.c.l.s4 1966171168
  %v4563 = vunpack.c.0.s8 %v4562
  %v4564 = vlaneseq
  %v4565 = vshrl.u32 %v4564, 7
  %v4566 = vsub.s32 %v4563, %v4565
  %v4567 = vrot.slane %v4539, %v4566
  %v4568 = vcombine.low %v4546, %v4553
  %v4569 = vcombine.low %v4560, %v4567
  %v4571 = vunpack.c.l.s4 1966171168
  %v4572 = vunpack.c.0.s8 %v4571
  %v4573 = vlaneseq
  %v4574 = vshrl.u32 %v4573, 7
  %v4575 = vsub.s32 %v4572, %v4574
  %v4576 = vrot.slane %v4568, %v4575
  %v4578 = vunpack.c.l.s4 1966171168
  %v4579 = vunpack.c.0.s8 %v4578
  %v4580 = vlaneseq
  %v4581 = vshrl.u32 %v4580, 7
  %v4582 = vsub.s32 %v4579, %v4581
  %v4583 = vrot.slane %v4569, %v4582
  %v4584 = vcombine.low %v4576, %v4583
  %v4585 = vcombine.low %v3845, %v3847
  %v4586 = vcombine.low %v3849, %v3851
  %v4587 = vcombine.low %v3853, %v3855
  %v4588 = vcombine.low %v3857, %v3859
  %v4590 = vunpack.c.l.s4 1966171168
  %v4591 = vunpack.c.0.s8 %v4590
  %v4592 = vlaneseq
  %v4593 = vshrl.u32 %v4592, 7
  %v4594 = vsub.s32 %v4591, %v4593
  %v4595 = vrot.slane %v4585, %v4594
  %v4597 = vunpack.c.l.s4 1966171168
  %v4598 = vunpack.c.0.s8 %v4597
  %v4599 = vlaneseq
  %v4600 = vshrl.u32 %v4599, 7
  %v4601 = vsub.s32 %v4598, %v4600
  %v4602 = vrot.slane %v4586, %v4601
  %v4604 = vunpack.c.l.s4 1966171168
  %v4605 = vunpack.c.0.s8 %v4604
  %v4606 = vlaneseq
  %v4607 = vshrl.u32 %v4606, 7
  %v4608 = vsub.s32 %v4605, %v4607
  %v4609 = vrot.slane %v4587, %v4608
  %v4611 = vunpack.c.l.s4 1966171168
  %v4612 = vunpack.c.0.s8 %v4611
  %v4613 = vlaneseq
  %v4614 = vshrl.u32 %v4613, 7
  %v4615 = vsub.s32 %v4612, %v4614
  %v4616 = vrot.slane %v4588, %v4615
  %v4617 = vcombine.low %v4595, %v4602
  %v4618 = vcombine.low %v4609, %v4616
  %v4620 = vunpack.c.l.s4 1966171168
  %v4621 = vunpack.c.0.s8 %v4620
  %v4622 = vlaneseq
  %v4623 = vshrl.u32 %v4622, 7
  %v4624 = vsub.s32 %v4621, %v4623
  %v4625 = vrot.slane %v4617, %v4624
  %v4627 = vunpack.c.l.s4 1966171168
  %v4628 = vunpack.c.0.s8 %v4627
  %v4629 = vlaneseq
  %v4630 = vshrl.u32 %v4629, 7
  %v4631 = vsub.s32 %v4628, %v4630
  %v4632 = vrot.slane %v4618, %v4631
  %v4633 = vcombine.low %v4625, %v4632
  %v4634 = vcombine.low %v3877, %v3879
  %v4635 = vcombine.low %v3881, %v3883
  %v4636 = vcombine.low %v3885, %v3887
  %v4637 = vcombine.low %v3889, %v3891
  %v4639 = vunpack.c.l.s4 1966171168
  %v4640 = vunpack.c.0.s8 %v4639
  %v4641 = vlaneseq
  %v4642 = vshrl.u32 %v4641, 7
  %v4643 = vsub.s32 %v4640, %v4642
  %v4644 = vrot.slane %v4634, %v4643
  %v4646 = vunpack.c.l.s4 1966171168
  %v4647 = vunpack.c.0.s8 %v4646
  %v4648 = vlaneseq
  %v4649 = vshrl.u32 %v4648, 7
  %v4650 = vsub.s32 %v4647, %v4649
  %v4651 = vrot.slane %v4635, %v4650
  %v4653 = vunpack.c.l.s4 1966171168
  %v4654 = vunpack.c.0.s8 %v4653
  %v4655 = vlaneseq
  %v4656 = vshrl.u32 %v4655, 7
  %v4657 = vsub.s32 %v4654, %v4656
  %v4658 = vrot.slane %v4636, %v4657
  %v4660 = vunpack.c.l.s4 1966171168
  %v4661 = vunpack.c.0.s8 %v4660
  %v4662 = vlaneseq
  %v4663 = vshrl.u32 %v4662, 7
  %v4664 = vsub.s32 %v4661, %v4663
  %v4665 = vrot.slane %v4637, %v4664
  %v4666 = vcombine.low %v4644, %v4651
  %v4667 = vcombine.low %v4658, %v4665
  %v4669 = vunpack.c.l.s4 1966171168
  %v4670 = vunpack.c.0.s8 %v4669
  %v4671 = vlaneseq
  %v4672 = vshrl.u32 %v4671, 7
  %v4673 = vsub.s32 %v4670, %v4672
  %v4674 = vrot.slane %v4666, %v4673
  %v4676 = vunpack.c.l.s4 1966171168
  %v4677 = vunpack.c.0.s8 %v4676
  %v4678 = vlaneseq
  %v4679 = vshrl.u32 %v4678, 7
  %v4680 = vsub.s32 %v4677, %v4679
  %v4681 = vrot.slane %v4667, %v4680
  %v4682 = vcombine.low %v4674, %v4681
  %v4683 = vcombine.low %v3909, %v3911
  %v4684 = vcombine.low %v3913, %v3915
  %v4685 = vcombine.low %v3917, %v3919
  %v4686 = vcombine.low %v3921, %v3923
  %v4688 = vunpack.c.l.s4 1966171168
  %v4689 = vunpack.c.0.s8 %v4688
  %v4690 = vlaneseq
  %v4691 = vshrl.u32 %v4690, 7
  %v4692 = vsub.s32 %v4689, %v4691
  %v4693 = vrot.slane %v4683, %v4692
  %v4695 = vunpack.c.l.s4 1966171168
  %v4696 = vunpack.c.0.s8 %v4695
  %v4697 = vlaneseq
  %v4698 = vshrl.u32 %v4697, 7
  %v4699 = vsub.s32 %v4696, %v4698
  %v4700 = vrot.slane %v4684, %v4699
  %v4702 = vunpack.c.l.s4 1966171168
  %v4703 = vunpack.c.0.s8 %v4702
  %v4704 = vlaneseq
  %v4705 = vshrl.u32 %v4704, 7
  %v4706 = vsub.s32 %v4703, %v4705
  %v4707 = vrot.slane %v4685, %v4706
  %v4709 = vunpack.c.l.s4 1966171168
  %v4710 = vunpack.c.0.s8 %v4709
  %v4711 = vlaneseq
  %v4712 = vshrl.u32 %v4711, 7
  %v4713 = vsub.s32 %v4710, %v4712
  %v4714 = vrot.slane %v4686, %v4713
  %v4715 = vcombine.low %v4693, %v4700
  %v4716 = vcombine.low %v4707, %v4714
  %v4718 = vunpack.c.l.s4 1966171168
  %v4719 = vunpack.c.0.s8 %v4718
  %v4720 = vlaneseq
  %v4721 = vshrl.u32 %v4720, 7
  %v4722 = vsub.s32 %v4719, %v4721
  %v4723 = vrot.slane %v4715, %v4722
  %v4725 = vunpack.c.l.s4 1966171168
  %v4726 = vunpack.c.0.s8 %v4725
  %v4727 = vlaneseq
  %v4728 = vshrl.u32 %v4727, 7
  %v4729 = vsub.s32 %v4726, %v4728
  %v4730 = vrot.slane %v4716, %v4729
  %v4731 = vcombine.low %v4723, %v4730
  %v4732 = vcombine.low %v3941, %v3943
  %v4733 = vcombine.low %v3945, %v3947
  %v4734 = vcombine.low %v3949, %v3951
  %v4735 = vcombine.low %v3953, %v3955
  %v4737 = vunpack.c.l.s4 1966171168
  %v4738 = vunpack.c.0.s8 %v4737
  %v4739 = vlaneseq
  %v4740 = vshrl.u32 %v4739, 7
  %v4741 = vsub.s32 %v4738, %v4740
  %v4742 = vrot.slane %v4732, %v4741
  %v4744 = vunpack.c.l.s4 1966171168
  %v4745 = vunpack.c.0.s8 %v4744
  %v4746 = vlaneseq
  %v4747 = vshrl.u32 %v4746, 7
  %v4748 = vsub.s32 %v4745, %v4747
  %v4749 = vrot.slane %v4733, %v4748
  %v4751 = vunpack.c.l.s4 1966171168
  %v4752 = vunpack.c.0.s8 %v4751
  %v4753 = vlaneseq
  %v4754 = vshrl.u32 %v4753, 7
  %v4755 = vsub.s32 %v4752, %v4754
  %v4756 = vrot.slane %v4734, %v4755
  %v4758 = vunpack.c.l.s4 1966171168
  %v4759 = vunpack.c.0.s8 %v4758
  %v4760 = vlaneseq
  %v4761 = vshrl.u32 %v4760, 7
  %v4762 = vsub.s32 %v4759, %v4761
  %v4763 = vrot.slane %v4735, %v4762
  %v4764 = vcombine.low %v4742, %v4749
  %v4765 = vcombine.low %v4756, %v4763
  %v4767 = vunpack.c.l.s4 1966171168
  %v4768 = vunpack.c.0.s8 %v4767
  %v4769 = vlaneseq
  %v4770 = vshrl.u32 %v4769, 7
  %v4771 = vsub.s32 %v4768, %v4770
  %v4772 = vrot.slane %v4764, %v4771
  %v4774 = vunpack.c.l.s4 1966171168
  %v4775 = vunpack.c.0.s8 %v4774
  %v4776 = vlaneseq
  %v4777 = vshrl.u32 %v4776, 7
  %v4778 = vsub.s32 %v4775, %v4777
  %v4779 = vrot.slane %v4765, %v4778
  %v4780 = vcombine.low %v4772, %v4779
  %v4781 = vcombine.low %v3973, %v3975
  %v4782 = vcombine.low %v3977, %v3979
  %v4783 = vcombine.low %v3981, %v3983
  %v4784 = vcombine.low %v3985, %v3987
  %v4786 = vunpack.c.l.s4 1966171168
  %v4787 = vunpack.c.0.s8 %v4786
  %v4788 = vlaneseq
  %v4789 = vshrl.u32 %v4788, 7
  %v4790 = vsub.s32 %v4787, %v4789
  %v4791 = vrot.slane %v4781, %v4790
  %v4793 = vunpack.c.l.s4 1966171168
  %v4794 = vunpack.c.0.s8 %v4793
  %v4795 = vlaneseq
  %v4796 = vshrl.u32 %v4795, 7
  %v4797 = vsub.s32 %v4794, %v4796
  %v4798 = vrot.slane %v4782, %v4797
  %v4800 = vunpack.c.l.s4 1966171168
  %v4801 = vunpack.c.0.s8 %v4800
  %v4802 = vlaneseq
  %v4803 = vshrl.u32 %v4802, 7
  %v4804 = vsub.s32 %v4801, %v4803
  %v4805 = vrot.slane %v4783, %v4804
  %v4807 = vunpack.c.l.s4 1966171168
  %v4808 = vunpack.c.0.s8 %v4807
  %v4809 = vlaneseq
  %v4810 = vshrl.u32 %v4809, 7
  %v4811 = vsub.s32 %v4808, %v4810
  %v4812 = vrot.slane %v4784, %v4811
  %v4813 = vcombine.low %v4791, %v4798
  %v4814 = vcombine.low %v4805, %v4812
  %v4816 = vunpack.c.l.s4 1966171168
  %v4817 = vunpack.c.0.s8 %v4816
  %v4818 = vlaneseq
  %v4819 = vshrl.u32 %v4818, 7
  %v4820 = vsub.s32 %v4817, %v4819
  %v4821 = vrot.slane %v4813, %v4820
  %v4823 = vunpack.c.l.s4 1966171168
  %v4824 = vunpack.c.0.s8 %v4823
  %v4825 = vlaneseq
  %v4826 = vshrl.u32 %v4825, 7
  %v4827 = vsub.s32 %v4824, %v4826
  %v4828 = vrot.slane %v4814, %v4827
  %v4829 = vcombine.low %v4821, %v4828
  %4830 = vrot.lane.b32.xlu0 %v4087, 32
  %v4831 = vpop.permute.xlu0 %4830
  %4832 = vrot.lane.b32.xlu0 %v4535, 32
  %v4833 = vpop.permute.xlu0 %4832
  %4834 = vrot.lane.b32.xlu0 %v4584, 32
  %v4835 = vpop.permute.xlu0 %4834
  %4836 = vrot.lane.b32.xlu0 %v4633, 32
  %v4837 = vpop.permute.xlu0 %4836
  %4838 = vrot.lane.b32.xlu0 %v4682, 32
  %v4839 = vpop.permute.xlu0 %4838
  %4840 = vrot.lane.b32.xlu0 %v4731, 32
  %v4841 = vpop.permute.xlu0 %4840
  %4842 = vrot.lane.b32.xlu0 %v4780, 32
  %v4843 = vpop.permute.xlu0 %4842
  %4844 = vrot.lane.b32.xlu0 %v4829, 32
  %v4845 = vpop.permute.xlu0 %4844
  %v4853 = vcombine.low %v3782, %v3784
  %v4854 = vcombine.low %v3786, %v3788
  %v4855 = vcombine.low %v3790, %v3792
  %v4856 = vcombine.low %v3794, %v3796
  %v4858 = vunpack.c.l.s4 1966171168
  %v4859 = vunpack.c.0.s8 %v4858
  %v4860 = vlaneseq
  %v4861 = vshrl.u32 %v4860, 7
  %v4862 = vsub.s32 %v4859, %v4861
  %v4863 = vrot.slane %v4853, %v4862
  %v4865 = vunpack.c.l.s4 1966171168
  %v4866 = vunpack.c.0.s8 %v4865
  %v4867 = vlaneseq
  %v4868 = vshrl.u32 %v4867, 7
  %v4869 = vsub.s32 %v4866, %v4868
  %v4870 = vrot.slane %v4854, %v4869
  %v4872 = vunpack.c.l.s4 1966171168
  %v4873 = vunpack.c.0.s8 %v4872
  %v4874 = vlaneseq
  %v4875 = vshrl.u32 %v4874, 7
  %v4876 = vsub.s32 %v4873, %v4875
  %v4877 = vrot.slane %v4855, %v4876
  %v4879 = vunpack.c.l.s4 1966171168
  %v4880 = vunpack.c.0.s8 %v4879
  %v4881 = vlaneseq
  %v4882 = vshrl.u32 %v4881, 7
  %v4883 = vsub.s32 %v4880, %v4882
  %v4884 = vrot.slane %v4856, %v4883
  %v4885 = vcombine.low %v4863, %v4870
  %v4886 = vcombine.low %v4877, %v4884
  %v4888 = vunpack.c.l.s4 1966171168
  %v4889 = vunpack.c.0.s8 %v4888
  %v4890 = vlaneseq
  %v4891 = vshrl.u32 %v4890, 7
  %v4892 = vsub.s32 %v4889, %v4891
  %v4893 = vrot.slane %v4885, %v4892
  %v4895 = vunpack.c.l.s4 1966171168
  %v4896 = vunpack.c.0.s8 %v4895
  %v4897 = vlaneseq
  %v4898 = vshrl.u32 %v4897, 7
  %v4899 = vsub.s32 %v4896, %v4898
  %v4900 = vrot.slane %v4886, %v4899
  %v4901 = vcombine.low %v4893, %v4900
  %v4902 = vcombine.low %v3814, %v3816
  %v4903 = vcombine.low %v3818, %v3820
  %v4904 = vcombine.low %v3822, %v3824
  %v4905 = vcombine.low %v3826, %v3828
  %v4907 = vunpack.c.l.s4 1966171168
  %v4908 = vunpack.c.0.s8 %v4907
  %v4909 = vlaneseq
  %v4910 = vshrl.u32 %v4909, 7
  %v4911 = vsub.s32 %v4908, %v4910
  %v4912 = vrot.slane %v4902, %v4911
  %v4914 = vunpack.c.l.s4 1966171168
  %v4915 = vunpack.c.0.s8 %v4914
  %v4916 = vlaneseq
  %v4917 = vshrl.u32 %v4916, 7
  %v4918 = vsub.s32 %v4915, %v4917
  %v4919 = vrot.slane %v4903, %v4918
  %v4921 = vunpack.c.l.s4 1966171168
  %v4922 = vunpack.c.0.s8 %v4921
  %v4923 = vlaneseq
  %v4924 = vshrl.u32 %v4923, 7
  %v4925 = vsub.s32 %v4922, %v4924
  %v4926 = vrot.slane %v4904, %v4925
  %v4928 = vunpack.c.l.s4 1966171168
  %v4929 = vunpack.c.0.s8 %v4928
  %v4930 = vlaneseq
  %v4931 = vshrl.u32 %v4930, 7
  %v4932 = vsub.s32 %v4929, %v4931
  %v4933 = vrot.slane %v4905, %v4932
  %v4934 = vcombine.low %v4912, %v4919
  %v4935 = vcombine.low %v4926, %v4933
  %v4937 = vunpack.c.l.s4 1966171168
  %v4938 = vunpack.c.0.s8 %v4937
  %v4939 = vlaneseq
  %v4940 = vshrl.u32 %v4939, 7
  %v4941 = vsub.s32 %v4938, %v4940
  %v4942 = vrot.slane %v4934, %v4941
  %v4944 = vunpack.c.l.s4 1966171168
  %v4945 = vunpack.c.0.s8 %v4944
  %v4946 = vlaneseq
  %v4947 = vshrl.u32 %v4946, 7
  %v4948 = vsub.s32 %v4945, %v4947
  %v4949 = vrot.slane %v4935, %v4948
  %v4950 = vcombine.low %v4942, %v4949
  %v4951 = vcombine.low %v3846, %v3848
  %v4952 = vcombine.low %v3850, %v3852
  %v4953 = vcombine.low %v3854, %v3856
  %v4954 = vcombine.low %v3858, %v3860
  %v4956 = vunpack.c.l.s4 1966171168
  %v4957 = vunpack.c.0.s8 %v4956
  %v4958 = vlaneseq
  %v4959 = vshrl.u32 %v4958, 7
  %v4960 = vsub.s32 %v4957, %v4959
  %v4961 = vrot.slane %v4951, %v4960
  %v4963 = vunpack.c.l.s4 1966171168
  %v4964 = vunpack.c.0.s8 %v4963
  %v4965 = vlaneseq
  %v4966 = vshrl.u32 %v4965, 7
  %v4967 = vsub.s32 %v4964, %v4966
  %v4968 = vrot.slane %v4952, %v4967
  %v4970 = vunpack.c.l.s4 1966171168
  %v4971 = vunpack.c.0.s8 %v4970
  %v4972 = vlaneseq
  %v4973 = vshrl.u32 %v4972, 7
  %v4974 = vsub.s32 %v4971, %v4973
  %v4975 = vrot.slane %v4953, %v4974
  %v4977 = vunpack.c.l.s4 1966171168
  %v4978 = vunpack.c.0.s8 %v4977
  %v4979 = vlaneseq
  %v4980 = vshrl.u32 %v4979, 7
  %v4981 = vsub.s32 %v4978, %v4980
  %v4982 = vrot.slane %v4954, %v4981
  %v4983 = vcombine.low %v4961, %v4968
  %v4984 = vcombine.low %v4975, %v4982
  %v4986 = vunpack.c.l.s4 1966171168
  %v4987 = vunpack.c.0.s8 %v4986
  %v4988 = vlaneseq
  %v4989 = vshrl.u32 %v4988, 7
  %v4990 = vsub.s32 %v4987, %v4989
  %v4991 = vrot.slane %v4983, %v4990
  %v4993 = vunpack.c.l.s4 1966171168
  %v4994 = vunpack.c.0.s8 %v4993
  %v4995 = vlaneseq
  %v4996 = vshrl.u32 %v4995, 7
  %v4997 = vsub.s32 %v4994, %v4996
  %v4998 = vrot.slane %v4984, %v4997
  %v4999 = vcombine.low %v4991, %v4998
  %v5000 = vcombine.low %v3878, %v3880
  %v5001 = vcombine.low %v3882, %v3884
  %v5002 = vcombine.low %v3886, %v3888
  %v5003 = vcombine.low %v3890, %v3892
  %v5005 = vunpack.c.l.s4 1966171168
  %v5006 = vunpack.c.0.s8 %v5005
  %v5007 = vlaneseq
  %v5008 = vshrl.u32 %v5007, 7
  %v5009 = vsub.s32 %v5006, %v5008
  %v5010 = vrot.slane %v5000, %v5009
  %v5012 = vunpack.c.l.s4 1966171168
  %v5013 = vunpack.c.0.s8 %v5012
  %v5014 = vlaneseq
  %v5015 = vshrl.u32 %v5014, 7
  %v5016 = vsub.s32 %v5013, %v5015
  %v5017 = vrot.slane %v5001, %v5016
  %v5019 = vunpack.c.l.s4 1966171168
  %v5020 = vunpack.c.0.s8 %v5019
  %v5021 = vlaneseq
  %v5022 = vshrl.u32 %v5021, 7
  %v5023 = vsub.s32 %v5020, %v5022
  %v5024 = vrot.slane %v5002, %v5023
  %v5026 = vunpack.c.l.s4 1966171168
  %v5027 = vunpack.c.0.s8 %v5026
  %v5028 = vlaneseq
  %v5029 = vshrl.u32 %v5028, 7
  %v5030 = vsub.s32 %v5027, %v5029
  %v5031 = vrot.slane %v5003, %v5030
  %v5032 = vcombine.low %v5010, %v5017
  %v5033 = vcombine.low %v5024, %v5031
  %v5035 = vunpack.c.l.s4 1966171168
  %v5036 = vunpack.c.0.s8 %v5035
  %v5037 = vlaneseq
  %v5038 = vshrl.u32 %v5037, 7
  %v5039 = vsub.s32 %v5036, %v5038
  %v5040 = vrot.slane %v5032, %v5039
  %v5042 = vunpack.c.l.s4 1966171168
  %v5043 = vunpack.c.0.s8 %v5042
  %v5044 = vlaneseq
  %v5045 = vshrl.u32 %v5044, 7
  %v5046 = vsub.s32 %v5043, %v5045
  %v5047 = vrot.slane %v5033, %v5046
  %v5048 = vcombine.low %v5040, %v5047
  %v5049 = vcombine.low %v3910, %v3912
  %v5050 = vcombine.low %v3914, %v3916
  %v5051 = vcombine.low %v3918, %v3920
  %v5052 = vcombine.low %v3922, %v3924
  %v5054 = vunpack.c.l.s4 1966171168
  %v5055 = vunpack.c.0.s8 %v5054
  %v5056 = vlaneseq
  %v5057 = vshrl.u32 %v5056, 7
  %v5058 = vsub.s32 %v5055, %v5057
  %v5059 = vrot.slane %v5049, %v5058
  %v5061 = vunpack.c.l.s4 1966171168
  %v5062 = vunpack.c.0.s8 %v5061
  %v5063 = vlaneseq
  %v5064 = vshrl.u32 %v5063, 7
  %v5065 = vsub.s32 %v5062, %v5064
  %v5066 = vrot.slane %v5050, %v5065
  %v5068 = vunpack.c.l.s4 1966171168
  %v5069 = vunpack.c.0.s8 %v5068
  %v5070 = vlaneseq
  %v5071 = vshrl.u32 %v5070, 7
  %v5072 = vsub.s32 %v5069, %v5071
  %v5073 = vrot.slane %v5051, %v5072
  %v5075 = vunpack.c.l.s4 1966171168
  %v5076 = vunpack.c.0.s8 %v5075
  %v5077 = vlaneseq
  %v5078 = vshrl.u32 %v5077, 7
  %v5079 = vsub.s32 %v5076, %v5078
  %v5080 = vrot.slane %v5052, %v5079
  %v5081 = vcombine.low %v5059, %v5066
  %v5082 = vcombine.low %v5073, %v5080
  %v5084 = vunpack.c.l.s4 1966171168
  %v5085 = vunpack.c.0.s8 %v5084
  %v5086 = vlaneseq
  %v5087 = vshrl.u32 %v5086, 7
  %v5088 = vsub.s32 %v5085, %v5087
  %v5089 = vrot.slane %v5081, %v5088
  %v5091 = vunpack.c.l.s4 1966171168
  %v5092 = vunpack.c.0.s8 %v5091
  %v5093 = vlaneseq
  %v5094 = vshrl.u32 %v5093, 7
  %v5095 = vsub.s32 %v5092, %v5094
  %v5096 = vrot.slane %v5082, %v5095
  %v5097 = vcombine.low %v5089, %v5096
  %v5098 = vcombine.low %v3942, %v3944
  %v5099 = vcombine.low %v3946, %v3948
  %v5100 = vcombine.low %v3950, %v3952
  %v5101 = vcombine.low %v3954, %v3956
  %v5103 = vunpack.c.l.s4 1966171168
  %v5104 = vunpack.c.0.s8 %v5103
  %v5105 = vlaneseq
  %v5106 = vshrl.u32 %v5105, 7
  %v5107 = vsub.s32 %v5104, %v5106
  %v5108 = vrot.slane %v5098, %v5107
  %v5110 = vunpack.c.l.s4 1966171168
  %v5111 = vunpack.c.0.s8 %v5110
  %v5112 = vlaneseq
  %v5113 = vshrl.u32 %v5112, 7
  %v5114 = vsub.s32 %v5111, %v5113
  %v5115 = vrot.slane %v5099, %v5114
  %v5117 = vunpack.c.l.s4 1966171168
  %v5118 = vunpack.c.0.s8 %v5117
  %v5119 = vlaneseq
  %v5120 = vshrl.u32 %v5119, 7
  %v5121 = vsub.s32 %v5118, %v5120
  %v5122 = vrot.slane %v5100, %v5121
  %v5124 = vunpack.c.l.s4 1966171168
  %v5125 = vunpack.c.0.s8 %v5124
  %v5126 = vlaneseq
  %v5127 = vshrl.u32 %v5126, 7
  %v5128 = vsub.s32 %v5125, %v5127
  %v5129 = vrot.slane %v5101, %v5128
  %v5130 = vcombine.low %v5108, %v5115
  %v5131 = vcombine.low %v5122, %v5129
  %v5133 = vunpack.c.l.s4 1966171168
  %v5134 = vunpack.c.0.s8 %v5133
  %v5135 = vlaneseq
  %v5136 = vshrl.u32 %v5135, 7
  %v5137 = vsub.s32 %v5134, %v5136
  %v5138 = vrot.slane %v5130, %v5137
  %v5140 = vunpack.c.l.s4 1966171168
  %v5141 = vunpack.c.0.s8 %v5140
  %v5142 = vlaneseq
  %v5143 = vshrl.u32 %v5142, 7
  %v5144 = vsub.s32 %v5141, %v5143
  %v5145 = vrot.slane %v5131, %v5144
  %v5146 = vcombine.low %v5138, %v5145
  %v5147 = vcombine.low %v3974, %v3976
  %v5148 = vcombine.low %v3978, %v3980
  %v5149 = vcombine.low %v3982, %v3984
  %v5150 = vcombine.low %v3986, %v3988
  %v5152 = vunpack.c.l.s4 1966171168
  %v5153 = vunpack.c.0.s8 %v5152
  %v5154 = vlaneseq
  %v5155 = vshrl.u32 %v5154, 7
  %v5156 = vsub.s32 %v5153, %v5155
  %v5157 = vrot.slane %v5147, %v5156
  %v5159 = vunpack.c.l.s4 1966171168
  %v5160 = vunpack.c.0.s8 %v5159
  %v5161 = vlaneseq
  %v5162 = vshrl.u32 %v5161, 7
  %v5163 = vsub.s32 %v5160, %v5162
  %v5164 = vrot.slane %v5148, %v5163
  %v5166 = vunpack.c.l.s4 1966171168
  %v5167 = vunpack.c.0.s8 %v5166
  %v5168 = vlaneseq
  %v5169 = vshrl.u32 %v5168, 7
  %v5170 = vsub.s32 %v5167, %v5169
  %v5171 = vrot.slane %v5149, %v5170
  %v5173 = vunpack.c.l.s4 1966171168
  %v5174 = vunpack.c.0.s8 %v5173
  %v5175 = vlaneseq
  %v5176 = vshrl.u32 %v5175, 7
  %v5177 = vsub.s32 %v5174, %v5176
  %v5178 = vrot.slane %v5150, %v5177
  %v5179 = vcombine.low %v5157, %v5164
  %v5180 = vcombine.low %v5171, %v5178
  %v5182 = vunpack.c.l.s4 1966171168
  %v5183 = vunpack.c.0.s8 %v5182
  %v5184 = vlaneseq
  %v5185 = vshrl.u32 %v5184, 7
  %v5186 = vsub.s32 %v5183, %v5185
  %v5187 = vrot.slane %v5179, %v5186
  %v5189 = vunpack.c.l.s4 1966171168
  %v5190 = vunpack.c.0.s8 %v5189
  %v5191 = vlaneseq
  %v5192 = vshrl.u32 %v5191, 7
  %v5193 = vsub.s32 %v5190, %v5192
  %v5194 = vrot.slane %v5180, %v5193
  %v5195 = vcombine.low %v5187, %v5194
  %5196 = vrot.lane.b32.xlu0 %v4087, 64
  %v5197 = vpop.permute.xlu0 %5196
  %5198 = vrot.lane.b32.xlu0 %v4901, 64
  %v5199 = vpop.permute.xlu0 %5198
  %5200 = vrot.lane.b32.xlu0 %v4950, 64
  %v5201 = vpop.permute.xlu0 %5200
  %5202 = vrot.lane.b32.xlu0 %v4999, 64
  %v5203 = vpop.permute.xlu0 %5202
  %5204 = vrot.lane.b32.xlu0 %v5048, 64
  %v5205 = vpop.permute.xlu0 %5204
  %5206 = vrot.lane.b32.xlu0 %v5097, 64
  %v5207 = vpop.permute.xlu0 %5206
  %5208 = vrot.lane.b32.xlu0 %v5146, 64
  %v5209 = vpop.permute.xlu0 %5208
  %5210 = vrot.lane.b32.xlu0 %v5195, 64
  %v5211 = vpop.permute.xlu0 %5210
  %v5212 = vcombine.low %v3783, %v3785
  %v5213 = vcombine.low %v3787, %v3789
  %v5214 = vcombine.low %v3791, %v3793
  %v5215 = vcombine.low %v3795, 0
  %v5217 = vunpack.c.l.s4 1966171168
  %v5218 = vunpack.c.0.s8 %v5217
  %v5219 = vlaneseq
  %v5220 = vshrl.u32 %v5219, 7
  %v5221 = vsub.s32 %v5218, %v5220
  %v5222 = vrot.slane %v5212, %v5221
  %v5224 = vunpack.c.l.s4 1966171168
  %v5225 = vunpack.c.0.s8 %v5224
  %v5226 = vlaneseq
  %v5227 = vshrl.u32 %v5226, 7
  %v5228 = vsub.s32 %v5225, %v5227
  %v5229 = vrot.slane %v5213, %v5228
  %v5231 = vunpack.c.l.s4 1966171168
  %v5232 = vunpack.c.0.s8 %v5231
  %v5233 = vlaneseq
  %v5234 = vshrl.u32 %v5233, 7
  %v5235 = vsub.s32 %v5232, %v5234
  %v5236 = vrot.slane %v5214, %v5235
  %v5238 = vunpack.c.l.s4 1966171168
  %v5239 = vunpack.c.0.s8 %v5238
  %v5240 = vlaneseq
  %v5241 = vshrl.u32 %v5240, 7
  %v5242 = vsub.s32 %v5239, %v5241
  %v5243 = vrot.slane %v5215, %v5242
  %v5244 = vcombine.low %v5222, %v5229
  %v5245 = vcombine.low %v5236, %v5243
  %v5247 = vunpack.c.l.s4 1966171168
  %v5248 = vunpack.c.0.s8 %v5247
  %v5249 = vlaneseq
  %v5250 = vshrl.u32 %v5249, 7
  %v5251 = vsub.s32 %v5248, %v5250
  %v5252 = vrot.slane %v5244, %v5251
  %v5254 = vunpack.c.l.s4 1966171168
  %v5255 = vunpack.c.0.s8 %v5254
  %v5256 = vlaneseq
  %v5257 = vshrl.u32 %v5256, 7
  %v5258 = vsub.s32 %v5255, %v5257
  %v5259 = vrot.slane %v5245, %v5258
  %v5260 = vcombine.low %v5252, %v5259
  %v5261 = vcombine.low %v3815, %v3817
  %v5262 = vcombine.low %v3819, %v3821
  %v5263 = vcombine.low %v3823, %v3825
  %v5264 = vcombine.low %v3827, 0
  %v5266 = vunpack.c.l.s4 1966171168
  %v5267 = vunpack.c.0.s8 %v5266
  %v5268 = vlaneseq
  %v5269 = vshrl.u32 %v5268, 7
  %v5270 = vsub.s32 %v5267, %v5269
  %v5271 = vrot.slane %v5261, %v5270
  %v5273 = vunpack.c.l.s4 1966171168
  %v5274 = vunpack.c.0.s8 %v5273
  %v5275 = vlaneseq
  %v5276 = vshrl.u32 %v5275, 7
  %v5277 = vsub.s32 %v5274, %v5276
  %v5278 = vrot.slane %v5262, %v5277
  %v5280 = vunpack.c.l.s4 1966171168
  %v5281 = vunpack.c.0.s8 %v5280
  %v5282 = vlaneseq
  %v5283 = vshrl.u32 %v5282, 7
  %v5284 = vsub.s32 %v5281, %v5283
  %v5285 = vrot.slane %v5263, %v5284
  %v5287 = vunpack.c.l.s4 1966171168
  %v5288 = vunpack.c.0.s8 %v5287
  %v5289 = vlaneseq
  %v5290 = vshrl.u32 %v5289, 7
  %v5291 = vsub.s32 %v5288, %v5290
  %v5292 = vrot.slane %v5264, %v5291
  %v5293 = vcombine.low %v5271, %v5278
  %v5294 = vcombine.low %v5285, %v5292
  %v5296 = vunpack.c.l.s4 1966171168
  %v5297 = vunpack.c.0.s8 %v5296
  %v5298 = vlaneseq
  %v5299 = vshrl.u32 %v5298, 7
  %v5300 = vsub.s32 %v5297, %v5299
  %v5301 = vrot.slane %v5293, %v5300
  %v5303 = vunpack.c.l.s4 1966171168
  %v5304 = vunpack.c.0.s8 %v5303
  %v5305 = vlaneseq
  %v5306 = vshrl.u32 %v5305, 7
  %v5307 = vsub.s32 %v5304, %v5306
  %v5308 = vrot.slane %v5294, %v5307
  %v5309 = vcombine.low %v5301, %v5308
  %v5310 = vcombine.low %v3847, %v3849
  %v5311 = vcombine.low %v3851, %v3853
  %v5312 = vcombine.low %v3855, %v3857
  %v5313 = vcombine.low %v3859, 0
  %v5315 = vunpack.c.l.s4 1966171168
  %v5316 = vunpack.c.0.s8 %v5315
  %v5317 = vlaneseq
  %v5318 = vshrl.u32 %v5317, 7
  %v5319 = vsub.s32 %v5316, %v5318
  %v5320 = vrot.slane %v5310, %v5319
  %v5322 = vunpack.c.l.s4 1966171168
  %v5323 = vunpack.c.0.s8 %v5322
  %v5324 = vlaneseq
  %v5325 = vshrl.u32 %v5324, 7
  %v5326 = vsub.s32 %v5323, %v5325
  %v5327 = vrot.slane %v5311, %v5326
  %v5329 = vunpack.c.l.s4 1966171168
  %v5330 = vunpack.c.0.s8 %v5329
  %v5331 = vlaneseq
  %v5332 = vshrl.u32 %v5331, 7
  %v5333 = vsub.s32 %v5330, %v5332
  %v5334 = vrot.slane %v5312, %v5333
  %v5336 = vunpack.c.l.s4 1966171168
  %v5337 = vunpack.c.0.s8 %v5336
  %v5338 = vlaneseq
  %v5339 = vshrl.u32 %v5338, 7
  %v5340 = vsub.s32 %v5337, %v5339
  %v5341 = vrot.slane %v5313, %v5340
  %v5342 = vcombine.low %v5320, %v5327
  %v5343 = vcombine.low %v5334, %v5341
  %v5345 = vunpack.c.l.s4 1966171168
  %v5346 = vunpack.c.0.s8 %v5345
  %v5347 = vlaneseq
  %v5348 = vshrl.u32 %v5347, 7
  %v5349 = vsub.s32 %v5346, %v5348
  %v5350 = vrot.slane %v5342, %v5349
  %v5352 = vunpack.c.l.s4 1966171168
  %v5353 = vunpack.c.0.s8 %v5352
  %v5354 = vlaneseq
  %v5355 = vshrl.u32 %v5354, 7
  %v5356 = vsub.s32 %v5353, %v5355
  %v5357 = vrot.slane %v5343, %v5356
  %v5358 = vcombine.low %v5350, %v5357
  %v5359 = vcombine.low %v3879, %v3881
  %v5360 = vcombine.low %v3883, %v3885
  %v5361 = vcombine.low %v3887, %v3889
  %v5362 = vcombine.low %v3891, 0
  %v5364 = vunpack.c.l.s4 1966171168
  %v5365 = vunpack.c.0.s8 %v5364
  %v5366 = vlaneseq
  %v5367 = vshrl.u32 %v5366, 7
  %v5368 = vsub.s32 %v5365, %v5367
  %v5369 = vrot.slane %v5359, %v5368
  %v5371 = vunpack.c.l.s4 1966171168
  %v5372 = vunpack.c.0.s8 %v5371
  %v5373 = vlaneseq
  %v5374 = vshrl.u32 %v5373, 7
  %v5375 = vsub.s32 %v5372, %v5374
  %v5376 = vrot.slane %v5360, %v5375
  %v5378 = vunpack.c.l.s4 1966171168
  %v5379 = vunpack.c.0.s8 %v5378
  %v5380 = vlaneseq
  %v5381 = vshrl.u32 %v5380, 7
  %v5382 = vsub.s32 %v5379, %v5381
  %v5383 = vrot.slane %v5361, %v5382
  %v5385 = vunpack.c.l.s4 1966171168
  %v5386 = vunpack.c.0.s8 %v5385
  %v5387 = vlaneseq
  %v5388 = vshrl.u32 %v5387, 7
  %v5389 = vsub.s32 %v5386, %v5388
  %v5390 = vrot.slane %v5362, %v5389
  %v5391 = vcombine.low %v5369, %v5376
  %v5392 = vcombine.low %v5383, %v5390
  %v5394 = vunpack.c.l.s4 1966171168
  %v5395 = vunpack.c.0.s8 %v5394
  %v5396 = vlaneseq
  %v5397 = vshrl.u32 %v5396, 7
  %v5398 = vsub.s32 %v5395, %v5397
  %v5399 = vrot.slane %v5391, %v5398
  %v5401 = vunpack.c.l.s4 1966171168
  %v5402 = vunpack.c.0.s8 %v5401
  %v5403 = vlaneseq
  %v5404 = vshrl.u32 %v5403, 7
  %v5405 = vsub.s32 %v5402, %v5404
  %v5406 = vrot.slane %v5392, %v5405
  %v5407 = vcombine.low %v5399, %v5406
  %v5408 = vcombine.low %v3911, %v3913
  %v5409 = vcombine.low %v3915, %v3917
  %v5410 = vcombine.low %v3919, %v3921
  %v5411 = vcombine.low %v3923, 0
  %v5413 = vunpack.c.l.s4 1966171168
  %v5414 = vunpack.c.0.s8 %v5413
  %v5415 = vlaneseq
  %v5416 = vshrl.u32 %v5415, 7
  %v5417 = vsub.s32 %v5414, %v5416
  %v5418 = vrot.slane %v5408, %v5417
  %v5420 = vunpack.c.l.s4 1966171168
  %v5421 = vunpack.c.0.s8 %v5420
  %v5422 = vlaneseq
  %v5423 = vshrl.u32 %v5422, 7
  %v5424 = vsub.s32 %v5421, %v5423
  %v5425 = vrot.slane %v5409, %v5424
  %v5427 = vunpack.c.l.s4 1966171168
  %v5428 = vunpack.c.0.s8 %v5427
  %v5429 = vlaneseq
  %v5430 = vshrl.u32 %v5429, 7
  %v5431 = vsub.s32 %v5428, %v5430
  %v5432 = vrot.slane %v5410, %v5431
  %v5434 = vunpack.c.l.s4 1966171168
  %v5435 = vunpack.c.0.s8 %v5434
  %v5436 = vlaneseq
  %v5437 = vshrl.u32 %v5436, 7
  %v5438 = vsub.s32 %v5435, %v5437
  %v5439 = vrot.slane %v5411, %v5438
  %v5440 = vcombine.low %v5418, %v5425
  %v5441 = vcombine.low %v5432, %v5439
  %v5443 = vunpack.c.l.s4 1966171168
  %v5444 = vunpack.c.0.s8 %v5443
  %v5445 = vlaneseq
  %v5446 = vshrl.u32 %v5445, 7
  %v5447 = vsub.s32 %v5444, %v5446
  %v5448 = vrot.slane %v5440, %v5447
  %v5450 = vunpack.c.l.s4 1966171168
  %v5451 = vunpack.c.0.s8 %v5450
  %v5452 = vlaneseq
  %v5453 = vshrl.u32 %v5452, 7
  %v5454 = vsub.s32 %v5451, %v5453
  %v5455 = vrot.slane %v5441, %v5454
  %v5456 = vcombine.low %v5448, %v5455
  %v5457 = vcombine.low %v3943, %v3945
  %v5458 = vcombine.low %v3947, %v3949
  %v5459 = vcombine.low %v3951, %v3953
  %v5460 = vcombine.low %v3955, 0
  %v5462 = vunpack.c.l.s4 1966171168
  %v5463 = vunpack.c.0.s8 %v5462
  %v5464 = vlaneseq
  %v5465 = vshrl.u32 %v5464, 7
  %v5466 = vsub.s32 %v5463, %v5465
  %v5467 = vrot.slane %v5457, %v5466
  %v5469 = vunpack.c.l.s4 1966171168
  %v5470 = vunpack.c.0.s8 %v5469
  %v5471 = vlaneseq
  %v5472 = vshrl.u32 %v5471, 7
  %v5473 = vsub.s32 %v5470, %v5472
  %v5474 = vrot.slane %v5458, %v5473
  %v5476 = vunpack.c.l.s4 1966171168
  %v5477 = vunpack.c.0.s8 %v5476
  %v5478 = vlaneseq
  %v5479 = vshrl.u32 %v5478, 7
  %v5480 = vsub.s32 %v5477, %v5479
  %v5481 = vrot.slane %v5459, %v5480
  %v5483 = vunpack.c.l.s4 1966171168
  %v5484 = vunpack.c.0.s8 %v5483
  %v5485 = vlaneseq
  %v5486 = vshrl.u32 %v5485, 7
  %v5487 = vsub.s32 %v5484, %v5486
  %v5488 = vrot.slane %v5460, %v5487
  %v5489 = vcombine.low %v5467, %v5474
  %v5490 = vcombine.low %v5481, %v5488
  %v5492 = vunpack.c.l.s4 1966171168
  %v5493 = vunpack.c.0.s8 %v5492
  %v5494 = vlaneseq
  %v5495 = vshrl.u32 %v5494, 7
  %v5496 = vsub.s32 %v5493, %v5495
  %v5497 = vrot.slane %v5489, %v5496
  %v5499 = vunpack.c.l.s4 1966171168
  %v5500 = vunpack.c.0.s8 %v5499
  %v5501 = vlaneseq
  %v5502 = vshrl.u32 %v5501, 7
  %v5503 = vsub.s32 %v5500, %v5502
  %v5504 = vrot.slane %v5490, %v5503
  %v5505 = vcombine.low %v5497, %v5504
  %v5506 = vcombine.low %v3975, %v3977
  %v5507 = vcombine.low %v3979, %v3981
  %v5508 = vcombine.low %v3983, %v3985
  %v5509 = vcombine.low %v3987, 0
  %v5511 = vunpack.c.l.s4 1966171168
  %v5512 = vunpack.c.0.s8 %v5511
  %v5513 = vlaneseq
  %v5514 = vshrl.u32 %v5513, 7
  %v5515 = vsub.s32 %v5512, %v5514
  %v5516 = vrot.slane %v5506, %v5515
  %v5518 = vunpack.c.l.s4 1966171168
  %v5519 = vunpack.c.0.s8 %v5518
  %v5520 = vlaneseq
  %v5521 = vshrl.u32 %v5520, 7
  %v5522 = vsub.s32 %v5519, %v5521
  %v5523 = vrot.slane %v5507, %v5522
  %v5525 = vunpack.c.l.s4 1966171168
  %v5526 = vunpack.c.0.s8 %v5525
  %v5527 = vlaneseq
  %v5528 = vshrl.u32 %v5527, 7
  %v5529 = vsub.s32 %v5526, %v5528
  %v5530 = vrot.slane %v5508, %v5529
  %v5532 = vunpack.c.l.s4 1966171168
  %v5533 = vunpack.c.0.s8 %v5532
  %v5534 = vlaneseq
  %v5535 = vshrl.u32 %v5534, 7
  %v5536 = vsub.s32 %v5533, %v5535
  %v5537 = vrot.slane %v5509, %v5536
  %v5538 = vcombine.low %v5516, %v5523
  %v5539 = vcombine.low %v5530, %v5537
  %v5541 = vunpack.c.l.s4 1966171168
  %v5542 = vunpack.c.0.s8 %v5541
  %v5543 = vlaneseq
  %v5544 = vshrl.u32 %v5543, 7
  %v5545 = vsub.s32 %v5542, %v5544
  %v5546 = vrot.slane %v5538, %v5545
  %v5548 = vunpack.c.l.s4 1966171168
  %v5549 = vunpack.c.0.s8 %v5548
  %v5550 = vlaneseq
  %v5551 = vshrl.u32 %v5550, 7
  %v5552 = vsub.s32 %v5549, %v5551
  %v5553 = vrot.slane %v5539, %v5552
  %v5554 = vcombine.low %v5546, %v5553
  %5555 = vrot.lane.b32.xlu0 %v4087, 96
  %v5556 = vpop.permute.xlu0 %5555
  %5557 = vrot.lane.b32.xlu0 %v5260, 96
  %v5558 = vpop.permute.xlu0 %5557
  %5559 = vrot.lane.b32.xlu0 %v5309, 96
  %v5560 = vpop.permute.xlu0 %5559
  %5561 = vrot.lane.b32.xlu0 %v5358, 96
  %v5562 = vpop.permute.xlu0 %5561
  %5563 = vrot.lane.b32.xlu0 %v5407, 96
  %v5564 = vpop.permute.xlu0 %5563
  %5565 = vrot.lane.b32.xlu0 %v5456, 96
  %v5566 = vpop.permute.xlu0 %5565
  %5567 = vrot.lane.b32.xlu0 %v5505, 96
  %v5568 = vpop.permute.xlu0 %5567
  %5569 = vrot.lane.b32.xlu0 %v5554, 96
  %v5570 = vpop.permute.xlu0 %5569
  %v5627 = vcombine.low 0, %v3766
  %v5628 = vcombine.low %v3768, %v3770
  %v5629 = vcombine.low %v3772, %v3774
  %v5630 = vcombine.low %v3776, %v3778
  %v5632 = vunpack.c.l.s4 1966171168
  %v5633 = vunpack.c.0.s8 %v5632
  %v5634 = vlaneseq
  %v5635 = vshrl.u32 %v5634, 7
  %v5636 = vsub.s32 %v5633, %v5635
  %v5637 = vrot.slane %v5627, %v5636
  %v5639 = vunpack.c.l.s4 1966171168
  %v5640 = vunpack.c.0.s8 %v5639
  %v5641 = vlaneseq
  %v5642 = vshrl.u32 %v5641, 7
  %v5643 = vsub.s32 %v5640, %v5642
  %v5644 = vrot.slane %v5628, %v5643
  %v5646 = vunpack.c.l.s4 1966171168
  %v5647 = vunpack.c.0.s8 %v5646
  %v5648 = vlaneseq
  %v5649 = vshrl.u32 %v5648, 7
  %v5650 = vsub.s32 %v5647, %v5649
  %v5651 = vrot.slane %v5629, %v5650
  %v5653 = vunpack.c.l.s4 1966171168
  %v5654 = vunpack.c.0.s8 %v5653
  %v5655 = vlaneseq
  %v5656 = vshrl.u32 %v5655, 7
  %v5657 = vsub.s32 %v5654, %v5656
  %v5658 = vrot.slane %v5630, %v5657
  %v5659 = vcombine.low %v5637, %v5644
  %v5660 = vcombine.low %v5651, %v5658
  %v5662 = vunpack.c.l.s4 1966171168
  %v5663 = vunpack.c.0.s8 %v5662
  %v5664 = vlaneseq
  %v5665 = vshrl.u32 %v5664, 7
  %v5666 = vsub.s32 %v5663, %v5665
  %v5667 = vrot.slane %v5659, %v5666
  %v5669 = vunpack.c.l.s4 1966171168
  %v5670 = vunpack.c.0.s8 %v5669
  %v5671 = vlaneseq
  %v5672 = vshrl.u32 %v5671, 7
  %v5673 = vsub.s32 %v5670, %v5672
  %v5674 = vrot.slane %v5660, %v5673
  %v5675 = vcombine.low %v5667, %v5674
  %v5676 = vcombine.low 0, %v3798
  %v5677 = vcombine.low %v3800, %v3802
  %v5678 = vcombine.low %v3804, %v3806
  %v5679 = vcombine.low %v3808, %v3810
  %v5681 = vunpack.c.l.s4 1966171168
  %v5682 = vunpack.c.0.s8 %v5681
  %v5683 = vlaneseq
  %v5684 = vshrl.u32 %v5683, 7
  %v5685 = vsub.s32 %v5682, %v5684
  %v5686 = vrot.slane %v5676, %v5685
  %v5688 = vunpack.c.l.s4 1966171168
  %v5689 = vunpack.c.0.s8 %v5688
  %v5690 = vlaneseq
  %v5691 = vshrl.u32 %v5690, 7
  %v5692 = vsub.s32 %v5689, %v5691
  %v5693 = vrot.slane %v5677, %v5692
  %v5695 = vunpack.c.l.s4 1966171168
  %v5696 = vunpack.c.0.s8 %v5695
  %v5697 = vlaneseq
  %v5698 = vshrl.u32 %v5697, 7
  %v5699 = vsub.s32 %v5696, %v5698
  %v5700 = vrot.slane %v5678, %v5699
  %v5702 = vunpack.c.l.s4 1966171168
  %v5703 = vunpack.c.0.s8 %v5702
  %v5704 = vlaneseq
  %v5705 = vshrl.u32 %v5704, 7
  %v5706 = vsub.s32 %v5703, %v5705
  %v5707 = vrot.slane %v5679, %v5706
  %v5708 = vcombine.low %v5686, %v5693
  %v5709 = vcombine.low %v5700, %v5707
  %v5711 = vunpack.c.l.s4 1966171168
  %v5712 = vunpack.c.0.s8 %v5711
  %v5713 = vlaneseq
  %v5714 = vshrl.u32 %v5713, 7
  %v5715 = vsub.s32 %v5712, %v5714
  %v5716 = vrot.slane %v5708, %v5715
  %v5718 = vunpack.c.l.s4 1966171168
  %v5719 = vunpack.c.0.s8 %v5718
  %v5720 = vlaneseq
  %v5721 = vshrl.u32 %v5720, 7
  %v5722 = vsub.s32 %v5719, %v5721
  %v5723 = vrot.slane %v5709, %v5722
  %v5724 = vcombine.low %v5716, %v5723
  %v5725 = vcombine.low 0, %v3830
  %v5726 = vcombine.low %v3832, %v3834
  %v5727 = vcombine.low %v3836, %v3838
  %v5728 = vcombine.low %v3840, %v3842
  %v5730 = vunpack.c.l.s4 1966171168
  %v5731 = vunpack.c.0.s8 %v5730
  %v5732 = vlaneseq
  %v5733 = vshrl.u32 %v5732, 7
  %v5734 = vsub.s32 %v5731, %v5733
  %v5735 = vrot.slane %v5725, %v5734
  %v5737 = vunpack.c.l.s4 1966171168
  %v5738 = vunpack.c.0.s8 %v5737
  %v5739 = vlaneseq
  %v5740 = vshrl.u32 %v5739, 7
  %v5741 = vsub.s32 %v5738, %v5740
  %v5742 = vrot.slane %v5726, %v5741
  %v5744 = vunpack.c.l.s4 1966171168
  %v5745 = vunpack.c.0.s8 %v5744
  %v5746 = vlaneseq
  %v5747 = vshrl.u32 %v5746, 7
  %v5748 = vsub.s32 %v5745, %v5747
  %v5749 = vrot.slane %v5727, %v5748
  %v5751 = vunpack.c.l.s4 1966171168
  %v5752 = vunpack.c.0.s8 %v5751
  %v5753 = vlaneseq
  %v5754 = vshrl.u32 %v5753, 7
  %v5755 = vsub.s32 %v5752, %v5754
  %v5756 = vrot.slane %v5728, %v5755
  %v5757 = vcombine.low %v5735, %v5742
  %v5758 = vcombine.low %v5749, %v5756
  %v5760 = vunpack.c.l.s4 1966171168
  %v5761 = vunpack.c.0.s8 %v5760
  %v5762 = vlaneseq
  %v5763 = vshrl.u32 %v5762, 7
  %v5764 = vsub.s32 %v5761, %v5763
  %v5765 = vrot.slane %v5757, %v5764
  %v5767 = vunpack.c.l.s4 1966171168
  %v5768 = vunpack.c.0.s8 %v5767
  %v5769 = vlaneseq
  %v5770 = vshrl.u32 %v5769, 7
  %v5771 = vsub.s32 %v5768, %v5770
  %v5772 = vrot.slane %v5758, %v5771
  %v5773 = vcombine.low %v5765, %v5772
  %v5774 = vcombine.low 0, %v3862
  %v5775 = vcombine.low %v3864, %v3866
  %v5776 = vcombine.low %v3868, %v3870
  %v5777 = vcombine.low %v3872, %v3874
  %v5779 = vunpack.c.l.s4 1966171168
  %v5780 = vunpack.c.0.s8 %v5779
  %v5781 = vlaneseq
  %v5782 = vshrl.u32 %v5781, 7
  %v5783 = vsub.s32 %v5780, %v5782
  %v5784 = vrot.slane %v5774, %v5783
  %v5786 = vunpack.c.l.s4 1966171168
  %v5787 = vunpack.c.0.s8 %v5786
  %v5788 = vlaneseq
  %v5789 = vshrl.u32 %v5788, 7
  %v5790 = vsub.s32 %v5787, %v5789
  %v5791 = vrot.slane %v5775, %v5790
  %v5793 = vunpack.c.l.s4 1966171168
  %v5794 = vunpack.c.0.s8 %v5793
  %v5795 = vlaneseq
  %v5796 = vshrl.u32 %v5795, 7
  %v5797 = vsub.s32 %v5794, %v5796
  %v5798 = vrot.slane %v5776, %v5797
  %v5800 = vunpack.c.l.s4 1966171168
  %v5801 = vunpack.c.0.s8 %v5800
  %v5802 = vlaneseq
  %v5803 = vshrl.u32 %v5802, 7
  %v5804 = vsub.s32 %v5801, %v5803
  %v5805 = vrot.slane %v5777, %v5804
  %v5806 = vcombine.low %v5784, %v5791
  %v5807 = vcombine.low %v5798, %v5805
  %v5809 = vunpack.c.l.s4 1966171168
  %v5810 = vunpack.c.0.s8 %v5809
  %v5811 = vlaneseq
  %v5812 = vshrl.u32 %v5811, 7
  %v5813 = vsub.s32 %v5810, %v5812
  %v5814 = vrot.slane %v5806, %v5813
  %v5816 = vunpack.c.l.s4 1966171168
  %v5817 = vunpack.c.0.s8 %v5816
  %v5818 = vlaneseq
  %v5819 = vshrl.u32 %v5818, 7
  %v5820 = vsub.s32 %v5817, %v5819
  %v5821 = vrot.slane %v5807, %v5820
  %v5822 = vcombine.low %v5814, %v5821
  %v5823 = vcombine.low 0, %v3894
  %v5824 = vcombine.low %v3896, %v3898
  %v5825 = vcombine.low %v3900, %v3902
  %v5826 = vcombine.low %v3904, %v3906
  %v5828 = vunpack.c.l.s4 1966171168
  %v5829 = vunpack.c.0.s8 %v5828
  %v5830 = vlaneseq
  %v5831 = vshrl.u32 %v5830, 7
  %v5832 = vsub.s32 %v5829, %v5831
  %v5833 = vrot.slane %v5823, %v5832
  %v5835 = vunpack.c.l.s4 1966171168
  %v5836 = vunpack.c.0.s8 %v5835
  %v5837 = vlaneseq
  %v5838 = vshrl.u32 %v5837, 7
  %v5839 = vsub.s32 %v5836, %v5838
  %v5840 = vrot.slane %v5824, %v5839
  %v5842 = vunpack.c.l.s4 1966171168
  %v5843 = vunpack.c.0.s8 %v5842
  %v5844 = vlaneseq
  %v5845 = vshrl.u32 %v5844, 7
  %v5846 = vsub.s32 %v5843, %v5845
  %v5847 = vrot.slane %v5825, %v5846
  %v5849 = vunpack.c.l.s4 1966171168
  %v5850 = vunpack.c.0.s8 %v5849
  %v5851 = vlaneseq
  %v5852 = vshrl.u32 %v5851, 7
  %v5853 = vsub.s32 %v5850, %v5852
  %v5854 = vrot.slane %v5826, %v5853
  %v5855 = vcombine.low %v5833, %v5840
  %v5856 = vcombine.low %v5847, %v5854
  %v5858 = vunpack.c.l.s4 1966171168
  %v5859 = vunpack.c.0.s8 %v5858
  %v5860 = vlaneseq
  %v5861 = vshrl.u32 %v5860, 7
  %v5862 = vsub.s32 %v5859, %v5861
  %v5863 = vrot.slane %v5855, %v5862
  %v5865 = vunpack.c.l.s4 1966171168
  %v5866 = vunpack.c.0.s8 %v5865
  %v5867 = vlaneseq
  %v5868 = vshrl.u32 %v5867, 7
  %v5869 = vsub.s32 %v5866, %v5868
  %v5870 = vrot.slane %v5856, %v5869
  %v5871 = vcombine.low %v5863, %v5870
  %v5872 = vcombine.low 0, %v3926
  %v5873 = vcombine.low %v3928, %v3930
  %v5874 = vcombine.low %v3932, %v3934
  %v5875 = vcombine.low %v3936, %v3938
  %v5877 = vunpack.c.l.s4 1966171168
  %v5878 = vunpack.c.0.s8 %v5877
  %v5879 = vlaneseq
  %v5880 = vshrl.u32 %v5879, 7
  %v5881 = vsub.s32 %v5878, %v5880
  %v5882 = vrot.slane %v5872, %v5881
  %v5884 = vunpack.c.l.s4 1966171168
  %v5885 = vunpack.c.0.s8 %v5884
  %v5886 = vlaneseq
  %v5887 = vshrl.u32 %v5886, 7
  %v5888 = vsub.s32 %v5885, %v5887
  %v5889 = vrot.slane %v5873, %v5888
  %v5891 = vunpack.c.l.s4 1966171168
  %v5892 = vunpack.c.0.s8 %v5891
  %v5893 = vlaneseq
  %v5894 = vshrl.u32 %v5893, 7
  %v5895 = vsub.s32 %v5892, %v5894
  %v5896 = vrot.slane %v5874, %v5895
  %v5898 = vunpack.c.l.s4 1966171168
  %v5899 = vunpack.c.0.s8 %v5898
  %v5900 = vlaneseq
  %v5901 = vshrl.u32 %v5900, 7
  %v5902 = vsub.s32 %v5899, %v5901
  %v5903 = vrot.slane %v5875, %v5902
  %v5904 = vcombine.low %v5882, %v5889
  %v5905 = vcombine.low %v5896, %v5903
  %v5907 = vunpack.c.l.s4 1966171168
  %v5908 = vunpack.c.0.s8 %v5907
  %v5909 = vlaneseq
  %v5910 = vshrl.u32 %v5909, 7
  %v5911 = vsub.s32 %v5908, %v5910
  %v5912 = vrot.slane %v5904, %v5911
  %v5914 = vunpack.c.l.s4 1966171168
  %v5915 = vunpack.c.0.s8 %v5914
  %v5916 = vlaneseq
  %v5917 = vshrl.u32 %v5916, 7
  %v5918 = vsub.s32 %v5915, %v5917
  %v5919 = vrot.slane %v5905, %v5918
  %v5920 = vcombine.low %v5912, %v5919
  %v5921 = vcombine.low 0, %v3958
  %v5922 = vcombine.low %v3960, %v3962
  %v5923 = vcombine.low %v3964, %v3966
  %v5924 = vcombine.low %v3968, %v3970
  %v5926 = vunpack.c.l.s4 1966171168
  %v5927 = vunpack.c.0.s8 %v5926
  %v5928 = vlaneseq
  %v5929 = vshrl.u32 %v5928, 7
  %v5930 = vsub.s32 %v5927, %v5929
  %v5931 = vrot.slane %v5921, %v5930
  %v5933 = vunpack.c.l.s4 1966171168
  %v5934 = vunpack.c.0.s8 %v5933
  %v5935 = vlaneseq
  %v5936 = vshrl.u32 %v5935, 7
  %v5937 = vsub.s32 %v5934, %v5936
  %v5938 = vrot.slane %v5922, %v5937
  %v5940 = vunpack.c.l.s4 1966171168
  %v5941 = vunpack.c.0.s8 %v5940
  %v5942 = vlaneseq
  %v5943 = vshrl.u32 %v5942, 7
  %v5944 = vsub.s32 %v5941, %v5943
  %v5945 = vrot.slane %v5923, %v5944
  %v5947 = vunpack.c.l.s4 1966171168
  %v5948 = vunpack.c.0.s8 %v5947
  %v5949 = vlaneseq
  %v5950 = vshrl.u32 %v5949, 7
  %v5951 = vsub.s32 %v5948, %v5950
  %v5952 = vrot.slane %v5924, %v5951
  %v5953 = vcombine.low %v5931, %v5938
  %v5954 = vcombine.low %v5945, %v5952
  %v5956 = vunpack.c.l.s4 1966171168
  %v5957 = vunpack.c.0.s8 %v5956
  %v5958 = vlaneseq
  %v5959 = vshrl.u32 %v5958, 7
  %v5960 = vsub.s32 %v5957, %v5959
  %v5961 = vrot.slane %v5953, %v5960
  %v5963 = vunpack.c.l.s4 1966171168
  %v5964 = vunpack.c.0.s8 %v5963
  %v5965 = vlaneseq
  %v5966 = vshrl.u32 %v5965, 7
  %v5967 = vsub.s32 %v5964, %v5966
  %v5968 = vrot.slane %v5954, %v5967
  %v5969 = vcombine.low %v5961, %v5968
  %v5970 = vcombine.low 0, %v3990
  %v5971 = vcombine.low %v3992, %v3994
  %v5972 = vcombine.low %v3996, %v3998
  %v5973 = vcombine.low %v4000, %v4002
  %v5975 = vunpack.c.l.s4 1966171168
  %v5976 = vunpack.c.0.s8 %v5975
  %v5977 = vlaneseq
  %v5978 = vshrl.u32 %v5977, 7
  %v5979 = vsub.s32 %v5976, %v5978
  %v5980 = vrot.slane %v5970, %v5979
  %v5982 = vunpack.c.l.s4 1966171168
  %v5983 = vunpack.c.0.s8 %v5982
  %v5984 = vlaneseq
  %v5985 = vshrl.u32 %v5984, 7
  %v5986 = vsub.s32 %v5983, %v5985
  %v5987 = vrot.slane %v5971, %v5986
  %v5989 = vunpack.c.l.s4 1966171168
  %v5990 = vunpack.c.0.s8 %v5989
  %v5991 = vlaneseq
  %v5992 = vshrl.u32 %v5991, 7
  %v5993 = vsub.s32 %v5990, %v5992
  %v5994 = vrot.slane %v5972, %v5993
  %v5996 = vunpack.c.l.s4 1966171168
  %v5997 = vunpack.c.0.s8 %v5996
  %v5998 = vlaneseq
  %v5999 = vshrl.u32 %v5998, 7
  %v6000 = vsub.s32 %v5997, %v5999
  %v6001 = vrot.slane %v5973, %v6000
  %v6002 = vcombine.low %v5980, %v5987
  %v6003 = vcombine.low %v5994, %v6001
  %v6005 = vunpack.c.l.s4 1966171168
  %v6006 = vunpack.c.0.s8 %v6005
  %v6007 = vlaneseq
  %v6008 = vshrl.u32 %v6007, 7
  %v6009 = vsub.s32 %v6006, %v6008
  %v6010 = vrot.slane %v6002, %v6009
  %v6012 = vunpack.c.l.s4 1966171168
  %v6013 = vunpack.c.0.s8 %v6012
  %v6014 = vlaneseq
  %v6015 = vshrl.u32 %v6014, 7
  %v6016 = vsub.s32 %v6013, %v6015
  %v6017 = vrot.slane %v6003, %v6016
  %v6018 = vcombine.low %v6010, %v6017
  %v6083 = vcombine.low %v3765, %v3767
  %v6084 = vcombine.low %v3769, %v3771
  %v6085 = vcombine.low %v3773, %v3775
  %v6086 = vcombine.low %v3777, %v3779
  %v6088 = vunpack.c.l.s4 1966171168
  %v6089 = vunpack.c.0.s8 %v6088
  %v6090 = vlaneseq
  %v6091 = vshrl.u32 %v6090, 7
  %v6092 = vsub.s32 %v6089, %v6091
  %v6093 = vrot.slane %v6083, %v6092
  %v6095 = vunpack.c.l.s4 1966171168
  %v6096 = vunpack.c.0.s8 %v6095
  %v6097 = vlaneseq
  %v6098 = vshrl.u32 %v6097, 7
  %v6099 = vsub.s32 %v6096, %v6098
  %v6100 = vrot.slane %v6084, %v6099
  %v6102 = vunpack.c.l.s4 1966171168
  %v6103 = vunpack.c.0.s8 %v6102
  %v6104 = vlaneseq
  %v6105 = vshrl.u32 %v6104, 7
  %v6106 = vsub.s32 %v6103, %v6105
  %v6107 = vrot.slane %v6085, %v6106
  %v6109 = vunpack.c.l.s4 1966171168
  %v6110 = vunpack.c.0.s8 %v6109
  %v6111 = vlaneseq
  %v6112 = vshrl.u32 %v6111, 7
  %v6113 = vsub.s32 %v6110, %v6112
  %v6114 = vrot.slane %v6086, %v6113
  %v6115 = vcombine.low %v6093, %v6100
  %v6116 = vcombine.low %v6107, %v6114
  %v6118 = vunpack.c.l.s4 1966171168
  %v6119 = vunpack.c.0.s8 %v6118
  %v6120 = vlaneseq
  %v6121 = vshrl.u32 %v6120, 7
  %v6122 = vsub.s32 %v6119, %v6121
  %v6123 = vrot.slane %v6115, %v6122
  %v6125 = vunpack.c.l.s4 1966171168
  %v6126 = vunpack.c.0.s8 %v6125
  %v6127 = vlaneseq
  %v6128 = vshrl.u32 %v6127, 7
  %v6129 = vsub.s32 %v6126, %v6128
  %v6130 = vrot.slane %v6116, %v6129
  %v6131 = vcombine.low %v6123, %v6130
  %v6132 = vcombine.low %v3797, %v3799
  %v6133 = vcombine.low %v3801, %v3803
  %v6134 = vcombine.low %v3805, %v3807
  %v6135 = vcombine.low %v3809, %v3811
  %v6137 = vunpack.c.l.s4 1966171168
  %v6138 = vunpack.c.0.s8 %v6137
  %v6139 = vlaneseq
  %v6140 = vshrl.u32 %v6139, 7
  %v6141 = vsub.s32 %v6138, %v6140
  %v6142 = vrot.slane %v6132, %v6141
  %v6144 = vunpack.c.l.s4 1966171168
  %v6145 = vunpack.c.0.s8 %v6144
  %v6146 = vlaneseq
  %v6147 = vshrl.u32 %v6146, 7
  %v6148 = vsub.s32 %v6145, %v6147
  %v6149 = vrot.slane %v6133, %v6148
  %v6151 = vunpack.c.l.s4 1966171168
  %v6152 = vunpack.c.0.s8 %v6151
  %v6153 = vlaneseq
  %v6154 = vshrl.u32 %v6153, 7
  %v6155 = vsub.s32 %v6152, %v6154
  %v6156 = vrot.slane %v6134, %v6155
  %v6158 = vunpack.c.l.s4 1966171168
  %v6159 = vunpack.c.0.s8 %v6158
  %v6160 = vlaneseq
  %v6161 = vshrl.u32 %v6160, 7
  %v6162 = vsub.s32 %v6159, %v6161
  %v6163 = vrot.slane %v6135, %v6162
  %v6164 = vcombine.low %v6142, %v6149
  %v6165 = vcombine.low %v6156, %v6163
  %v6167 = vunpack.c.l.s4 1966171168
  %v6168 = vunpack.c.0.s8 %v6167
  %v6169 = vlaneseq
  %v6170 = vshrl.u32 %v6169, 7
  %v6171 = vsub.s32 %v6168, %v6170
  %v6172 = vrot.slane %v6164, %v6171
  %v6174 = vunpack.c.l.s4 1966171168
  %v6175 = vunpack.c.0.s8 %v6174
  %v6176 = vlaneseq
  %v6177 = vshrl.u32 %v6176, 7
  %v6178 = vsub.s32 %v6175, %v6177
  %v6179 = vrot.slane %v6165, %v6178
  %v6180 = vcombine.low %v6172, %v6179
  %v6181 = vcombine.low %v3829, %v3831
  %v6182 = vcombine.low %v3833, %v3835
  %v6183 = vcombine.low %v3837, %v3839
  %v6184 = vcombine.low %v3841, %v3843
  %v6186 = vunpack.c.l.s4 1966171168
  %v6187 = vunpack.c.0.s8 %v6186
  %v6188 = vlaneseq
  %v6189 = vshrl.u32 %v6188, 7
  %v6190 = vsub.s32 %v6187, %v6189
  %v6191 = vrot.slane %v6181, %v6190
  %v6193 = vunpack.c.l.s4 1966171168
  %v6194 = vunpack.c.0.s8 %v6193
  %v6195 = vlaneseq
  %v6196 = vshrl.u32 %v6195, 7
  %v6197 = vsub.s32 %v6194, %v6196
  %v6198 = vrot.slane %v6182, %v6197
  %v6200 = vunpack.c.l.s4 1966171168
  %v6201 = vunpack.c.0.s8 %v6200
  %v6202 = vlaneseq
  %v6203 = vshrl.u32 %v6202, 7
  %v6204 = vsub.s32 %v6201, %v6203
  %v6205 = vrot.slane %v6183, %v6204
  %v6207 = vunpack.c.l.s4 1966171168
  %v6208 = vunpack.c.0.s8 %v6207
  %v6209 = vlaneseq
  %v6210 = vshrl.u32 %v6209, 7
  %v6211 = vsub.s32 %v6208, %v6210
  %v6212 = vrot.slane %v6184, %v6211
  %v6213 = vcombine.low %v6191, %v6198
  %v6214 = vcombine.low %v6205, %v6212
  %v6216 = vunpack.c.l.s4 1966171168
  %v6217 = vunpack.c.0.s8 %v6216
  %v6218 = vlaneseq
  %v6219 = vshrl.u32 %v6218, 7
  %v6220 = vsub.s32 %v6217, %v6219
  %v6221 = vrot.slane %v6213, %v6220
  %v6223 = vunpack.c.l.s4 1966171168
  %v6224 = vunpack.c.0.s8 %v6223
  %v6225 = vlaneseq
  %v6226 = vshrl.u32 %v6225, 7
  %v6227 = vsub.s32 %v6224, %v6226
  %v6228 = vrot.slane %v6214, %v6227
  %v6229 = vcombine.low %v6221, %v6228
  %v6230 = vcombine.low %v3861, %v3863
  %v6231 = vcombine.low %v3865, %v3867
  %v6232 = vcombine.low %v3869, %v3871
  %v6233 = vcombine.low %v3873, %v3875
  %v6235 = vunpack.c.l.s4 1966171168
  %v6236 = vunpack.c.0.s8 %v6235
  %v6237 = vlaneseq
  %v6238 = vshrl.u32 %v6237, 7
  %v6239 = vsub.s32 %v6236, %v6238
  %v6240 = vrot.slane %v6230, %v6239
  %v6242 = vunpack.c.l.s4 1966171168
  %v6243 = vunpack.c.0.s8 %v6242
  %v6244 = vlaneseq
  %v6245 = vshrl.u32 %v6244, 7
  %v6246 = vsub.s32 %v6243, %v6245
  %v6247 = vrot.slane %v6231, %v6246
  %v6249 = vunpack.c.l.s4 1966171168
  %v6250 = vunpack.c.0.s8 %v6249
  %v6251 = vlaneseq
  %v6252 = vshrl.u32 %v6251, 7
  %v6253 = vsub.s32 %v6250, %v6252
  %v6254 = vrot.slane %v6232, %v6253
  %v6256 = vunpack.c.l.s4 1966171168
  %v6257 = vunpack.c.0.s8 %v6256
  %v6258 = vlaneseq
  %v6259 = vshrl.u32 %v6258, 7
  %v6260 = vsub.s32 %v6257, %v6259
  %v6261 = vrot.slane %v6233, %v6260
  %v6262 = vcombine.low %v6240, %v6247
  %v6263 = vcombine.low %v6254, %v6261
  %v6265 = vunpack.c.l.s4 1966171168
  %v6266 = vunpack.c.0.s8 %v6265
  %v6267 = vlaneseq
  %v6268 = vshrl.u32 %v6267, 7
  %v6269 = vsub.s32 %v6266, %v6268
  %v6270 = vrot.slane %v6262, %v6269
  %v6272 = vunpack.c.l.s4 1966171168
  %v6273 = vunpack.c.0.s8 %v6272
  %v6274 = vlaneseq
  %v6275 = vshrl.u32 %v6274, 7
  %v6276 = vsub.s32 %v6273, %v6275
  %v6277 = vrot.slane %v6263, %v6276
  %v6278 = vcombine.low %v6270, %v6277
  %v6279 = vcombine.low %v3893, %v3895
  %v6280 = vcombine.low %v3897, %v3899
  %v6281 = vcombine.low %v3901, %v3903
  %v6282 = vcombine.low %v3905, %v3907
  %v6284 = vunpack.c.l.s4 1966171168
  %v6285 = vunpack.c.0.s8 %v6284
  %v6286 = vlaneseq
  %v6287 = vshrl.u32 %v6286, 7
  %v6288 = vsub.s32 %v6285, %v6287
  %v6289 = vrot.slane %v6279, %v6288
  %v6291 = vunpack.c.l.s4 1966171168
  %v6292 = vunpack.c.0.s8 %v6291
  %v6293 = vlaneseq
  %v6294 = vshrl.u32 %v6293, 7
  %v6295 = vsub.s32 %v6292, %v6294
  %v6296 = vrot.slane %v6280, %v6295
  %v6298 = vunpack.c.l.s4 1966171168
  %v6299 = vunpack.c.0.s8 %v6298
  %v6300 = vlaneseq
  %v6301 = vshrl.u32 %v6300, 7
  %v6302 = vsub.s32 %v6299, %v6301
  %v6303 = vrot.slane %v6281, %v6302
  %v6305 = vunpack.c.l.s4 1966171168
  %v6306 = vunpack.c.0.s8 %v6305
  %v6307 = vlaneseq
  %v6308 = vshrl.u32 %v6307, 7
  %v6309 = vsub.s32 %v6306, %v6308
  %v6310 = vrot.slane %v6282, %v6309
  %v6311 = vcombine.low %v6289, %v6296
  %v6312 = vcombine.low %v6303, %v6310
  %v6314 = vunpack.c.l.s4 1966171168
  %v6315 = vunpack.c.0.s8 %v6314
  %v6316 = vlaneseq
  %v6317 = vshrl.u32 %v6316, 7
  %v6318 = vsub.s32 %v6315, %v6317
  %v6319 = vrot.slane %v6311, %v6318
  %v6321 = vunpack.c.l.s4 1966171168
  %v6322 = vunpack.c.0.s8 %v6321
  %v6323 = vlaneseq
  %v6324 = vshrl.u32 %v6323, 7
  %v6325 = vsub.s32 %v6322, %v6324
  %v6326 = vrot.slane %v6312, %v6325
  %v6327 = vcombine.low %v6319, %v6326
  %v6328 = vcombine.low %v3925, %v3927
  %v6329 = vcombine.low %v3929, %v3931
  %v6330 = vcombine.low %v3933, %v3935
  %v6331 = vcombine.low %v3937, %v3939
  %v6333 = vunpack.c.l.s4 1966171168
  %v6334 = vunpack.c.0.s8 %v6333
  %v6335 = vlaneseq
  %v6336 = vshrl.u32 %v6335, 7
  %v6337 = vsub.s32 %v6334, %v6336
  %v6338 = vrot.slane %v6328, %v6337
  %v6340 = vunpack.c.l.s4 1966171168
  %v6341 = vunpack.c.0.s8 %v6340
  %v6342 = vlaneseq
  %v6343 = vshrl.u32 %v6342, 7
  %v6344 = vsub.s32 %v6341, %v6343
  %v6345 = vrot.slane %v6329, %v6344
  %v6347 = vunpack.c.l.s4 1966171168
  %v6348 = vunpack.c.0.s8 %v6347
  %v6349 = vlaneseq
  %v6350 = vshrl.u32 %v6349, 7
  %v6351 = vsub.s32 %v6348, %v6350
  %v6352 = vrot.slane %v6330, %v6351
  %v6354 = vunpack.c.l.s4 1966171168
  %v6355 = vunpack.c.0.s8 %v6354
  %v6356 = vlaneseq
  %v6357 = vshrl.u32 %v6356, 7
  %v6358 = vsub.s32 %v6355, %v6357
  %v6359 = vrot.slane %v6331, %v6358
  %v6360 = vcombine.low %v6338, %v6345
  %v6361 = vcombine.low %v6352, %v6359
  %v6363 = vunpack.c.l.s4 1966171168
  %v6364 = vunpack.c.0.s8 %v6363
  %v6365 = vlaneseq
  %v6366 = vshrl.u32 %v6365, 7
  %v6367 = vsub.s32 %v6364, %v6366
  %v6368 = vrot.slane %v6360, %v6367
  %v6370 = vunpack.c.l.s4 1966171168
  %v6371 = vunpack.c.0.s8 %v6370
  %v6372 = vlaneseq
  %v6373 = vshrl.u32 %v6372, 7
  %v6374 = vsub.s32 %v6371, %v6373
  %v6375 = vrot.slane %v6361, %v6374
  %v6376 = vcombine.low %v6368, %v6375
  %v6377 = vcombine.low %v3957, %v3959
  %v6378 = vcombine.low %v3961, %v3963
  %v6379 = vcombine.low %v3965, %v3967
  %v6380 = vcombine.low %v3969, %v3971
  %v6382 = vunpack.c.l.s4 1966171168
  %v6383 = vunpack.c.0.s8 %v6382
  %v6384 = vlaneseq
  %v6385 = vshrl.u32 %v6384, 7
  %v6386 = vsub.s32 %v6383, %v6385
  %v6387 = vrot.slane %v6377, %v6386
  %v6389 = vunpack.c.l.s4 1966171168
  %v6390 = vunpack.c.0.s8 %v6389
  %v6391 = vlaneseq
  %v6392 = vshrl.u32 %v6391, 7
  %v6393 = vsub.s32 %v6390, %v6392
  %v6394 = vrot.slane %v6378, %v6393
  %v6396 = vunpack.c.l.s4 1966171168
  %v6397 = vunpack.c.0.s8 %v6396
  %v6398 = vlaneseq
  %v6399 = vshrl.u32 %v6398, 7
  %v6400 = vsub.s32 %v6397, %v6399
  %v6401 = vrot.slane %v6379, %v6400
  %v6403 = vunpack.c.l.s4 1966171168
  %v6404 = vunpack.c.0.s8 %v6403
  %v6405 = vlaneseq
  %v6406 = vshrl.u32 %v6405, 7
  %v6407 = vsub.s32 %v6404, %v6406
  %v6408 = vrot.slane %v6380, %v6407
  %v6409 = vcombine.low %v6387, %v6394
  %v6410 = vcombine.low %v6401, %v6408
  %v6412 = vunpack.c.l.s4 1966171168
  %v6413 = vunpack.c.0.s8 %v6412
  %v6414 = vlaneseq
  %v6415 = vshrl.u32 %v6414, 7
  %v6416 = vsub.s32 %v6413, %v6415
  %v6417 = vrot.slane %v6409, %v6416
  %v6419 = vunpack.c.l.s4 1966171168
  %v6420 = vunpack.c.0.s8 %v6419
  %v6421 = vlaneseq
  %v6422 = vshrl.u32 %v6421, 7
  %v6423 = vsub.s32 %v6420, %v6422
  %v6424 = vrot.slane %v6410, %v6423
  %v6425 = vcombine.low %v6417, %v6424
  %v6426 = vcombine.low %v3989, %v3991
  %v6427 = vcombine.low %v3993, %v3995
  %v6428 = vcombine.low %v3997, %v3999
  %v6429 = vcombine.low %v4001, %v4003
  %v6431 = vunpack.c.l.s4 1966171168
  %v6432 = vunpack.c.0.s8 %v6431
  %v6433 = vlaneseq
  %v6434 = vshrl.u32 %v6433, 7
  %v6435 = vsub.s32 %v6432, %v6434
  %v6436 = vrot.slane %v6426, %v6435
  %v6438 = vunpack.c.l.s4 1966171168
  %v6439 = vunpack.c.0.s8 %v6438
  %v6440 = vlaneseq
  %v6441 = vshrl.u32 %v6440, 7
  %v6442 = vsub.s32 %v6439, %v6441
  %v6443 = vrot.slane %v6427, %v6442
  %v6445 = vunpack.c.l.s4 1966171168
  %v6446 = vunpack.c.0.s8 %v6445
  %v6447 = vlaneseq
  %v6448 = vshrl.u32 %v6447, 7
  %v6449 = vsub.s32 %v6446, %v6448
  %v6450 = vrot.slane %v6428, %v6449
  %v6452 = vunpack.c.l.s4 1966171168
  %v6453 = vunpack.c.0.s8 %v6452
  %v6454 = vlaneseq
  %v6455 = vshrl.u32 %v6454, 7
  %v6456 = vsub.s32 %v6453, %v6455
  %v6457 = vrot.slane %v6429, %v6456
  %v6458 = vcombine.low %v6436, %v6443
  %v6459 = vcombine.low %v6450, %v6457
  %v6461 = vunpack.c.l.s4 1966171168
  %v6462 = vunpack.c.0.s8 %v6461
  %v6463 = vlaneseq
  %v6464 = vshrl.u32 %v6463, 7
  %v6465 = vsub.s32 %v6462, %v6464
  %v6466 = vrot.slane %v6458, %v6465
  %v6468 = vunpack.c.l.s4 1966171168
  %v6469 = vunpack.c.0.s8 %v6468
  %v6470 = vlaneseq
  %v6471 = vshrl.u32 %v6470, 7
  %v6472 = vsub.s32 %v6469, %v6471
  %v6473 = vrot.slane %v6459, %v6472
  %v6474 = vcombine.low %v6466, %v6473
  %6475 = vrot.lane.b32.xlu0 %v6131, 32
  %v6476 = vpop.permute.xlu0 %6475
  %6477 = vrot.lane.b32.xlu0 %v6180, 32
  %v6478 = vpop.permute.xlu0 %6477
  %6479 = vrot.lane.b32.xlu0 %v6229, 32
  %v6480 = vpop.permute.xlu0 %6479
  %6481 = vrot.lane.b32.xlu0 %v6278, 32
  %v6482 = vpop.permute.xlu0 %6481
  %6483 = vrot.lane.b32.xlu0 %v6327, 32
  %v6484 = vpop.permute.xlu0 %6483
  %6485 = vrot.lane.b32.xlu0 %v6376, 32
  %v6486 = vpop.permute.xlu0 %6485
  %6487 = vrot.lane.b32.xlu0 %v6425, 32
  %v6488 = vpop.permute.xlu0 %6487
  %6489 = vrot.lane.b32.xlu0 %v6474, 32
  %v6490 = vpop.permute.xlu0 %6489
  %v6499 = vcombine.low %v3766, %v3768
  %v6500 = vcombine.low %v3770, %v3772
  %v6501 = vcombine.low %v3774, %v3776
  %v6502 = vcombine.low %v3778, %v3780
  %v6504 = vunpack.c.l.s4 1966171168
  %v6505 = vunpack.c.0.s8 %v6504
  %v6506 = vlaneseq
  %v6507 = vshrl.u32 %v6506, 7
  %v6508 = vsub.s32 %v6505, %v6507
  %v6509 = vrot.slane %v6499, %v6508
  %v6511 = vunpack.c.l.s4 1966171168
  %v6512 = vunpack.c.0.s8 %v6511
  %v6513 = vlaneseq
  %v6514 = vshrl.u32 %v6513, 7
  %v6515 = vsub.s32 %v6512, %v6514
  %v6516 = vrot.slane %v6500, %v6515
  %v6518 = vunpack.c.l.s4 1966171168
  %v6519 = vunpack.c.0.s8 %v6518
  %v6520 = vlaneseq
  %v6521 = vshrl.u32 %v6520, 7
  %v6522 = vsub.s32 %v6519, %v6521
  %v6523 = vrot.slane %v6501, %v6522
  %v6525 = vunpack.c.l.s4 1966171168
  %v6526 = vunpack.c.0.s8 %v6525
  %v6527 = vlaneseq
  %v6528 = vshrl.u32 %v6527, 7
  %v6529 = vsub.s32 %v6526, %v6528
  %v6530 = vrot.slane %v6502, %v6529
  %v6531 = vcombine.low %v6509, %v6516
  %v6532 = vcombine.low %v6523, %v6530
  %v6534 = vunpack.c.l.s4 1966171168
  %v6535 = vunpack.c.0.s8 %v6534
  %v6536 = vlaneseq
  %v6537 = vshrl.u32 %v6536, 7
  %v6538 = vsub.s32 %v6535, %v6537
  %v6539 = vrot.slane %v6531, %v6538
  %v6541 = vunpack.c.l.s4 1966171168
  %v6542 = vunpack.c.0.s8 %v6541
  %v6543 = vlaneseq
  %v6544 = vshrl.u32 %v6543, 7
  %v6545 = vsub.s32 %v6542, %v6544
  %v6546 = vrot.slane %v6532, %v6545
  %v6547 = vcombine.low %v6539, %v6546
  %v6548 = vcombine.low %v3798, %v3800
  %v6549 = vcombine.low %v3802, %v3804
  %v6550 = vcombine.low %v3806, %v3808
  %v6551 = vcombine.low %v3810, %v3812
  %v6553 = vunpack.c.l.s4 1966171168
  %v6554 = vunpack.c.0.s8 %v6553
  %v6555 = vlaneseq
  %v6556 = vshrl.u32 %v6555, 7
  %v6557 = vsub.s32 %v6554, %v6556
  %v6558 = vrot.slane %v6548, %v6557
  %v6560 = vunpack.c.l.s4 1966171168
  %v6561 = vunpack.c.0.s8 %v6560
  %v6562 = vlaneseq
  %v6563 = vshrl.u32 %v6562, 7
  %v6564 = vsub.s32 %v6561, %v6563
  %v6565 = vrot.slane %v6549, %v6564
  %v6567 = vunpack.c.l.s4 1966171168
  %v6568 = vunpack.c.0.s8 %v6567
  %v6569 = vlaneseq
  %v6570 = vshrl.u32 %v6569, 7
  %v6571 = vsub.s32 %v6568, %v6570
  %v6572 = vrot.slane %v6550, %v6571
  %v6574 = vunpack.c.l.s4 1966171168
  %v6575 = vunpack.c.0.s8 %v6574
  %v6576 = vlaneseq
  %v6577 = vshrl.u32 %v6576, 7
  %v6578 = vsub.s32 %v6575, %v6577
  %v6579 = vrot.slane %v6551, %v6578
  %v6580 = vcombine.low %v6558, %v6565
  %v6581 = vcombine.low %v6572, %v6579
  %v6583 = vunpack.c.l.s4 1966171168
  %v6584 = vunpack.c.0.s8 %v6583
  %v6585 = vlaneseq
  %v6586 = vshrl.u32 %v6585, 7
  %v6587 = vsub.s32 %v6584, %v6586
  %v6588 = vrot.slane %v6580, %v6587
  %v6590 = vunpack.c.l.s4 1966171168
  %v6591 = vunpack.c.0.s8 %v6590
  %v6592 = vlaneseq
  %v6593 = vshrl.u32 %v6592, 7
  %v6594 = vsub.s32 %v6591, %v6593
  %v6595 = vrot.slane %v6581, %v6594
  %v6596 = vcombine.low %v6588, %v6595
  %v6597 = vcombine.low %v3830, %v3832
  %v6598 = vcombine.low %v3834, %v3836
  %v6599 = vcombine.low %v3838, %v3840
  %v6600 = vcombine.low %v3842, %v3844
  %v6602 = vunpack.c.l.s4 1966171168
  %v6603 = vunpack.c.0.s8 %v6602
  %v6604 = vlaneseq
  %v6605 = vshrl.u32 %v6604, 7
  %v6606 = vsub.s32 %v6603, %v6605
  %v6607 = vrot.slane %v6597, %v6606
  %v6609 = vunpack.c.l.s4 1966171168
  %v6610 = vunpack.c.0.s8 %v6609
  %v6611 = vlaneseq
  %v6612 = vshrl.u32 %v6611, 7
  %v6613 = vsub.s32 %v6610, %v6612
  %v6614 = vrot.slane %v6598, %v6613
  %v6616 = vunpack.c.l.s4 1966171168
  %v6617 = vunpack.c.0.s8 %v6616
  %v6618 = vlaneseq
  %v6619 = vshrl.u32 %v6618, 7
  %v6620 = vsub.s32 %v6617, %v6619
  %v6621 = vrot.slane %v6599, %v6620
  %v6623 = vunpack.c.l.s4 1966171168
  %v6624 = vunpack.c.0.s8 %v6623
  %v6625 = vlaneseq
  %v6626 = vshrl.u32 %v6625, 7
  %v6627 = vsub.s32 %v6624, %v6626
  %v6628 = vrot.slane %v6600, %v6627
  %v6629 = vcombine.low %v6607, %v6614
  %v6630 = vcombine.low %v6621, %v6628
  %v6632 = vunpack.c.l.s4 1966171168
  %v6633 = vunpack.c.0.s8 %v6632
  %v6634 = vlaneseq
  %v6635 = vshrl.u32 %v6634, 7
  %v6636 = vsub.s32 %v6633, %v6635
  %v6637 = vrot.slane %v6629, %v6636
  %v6639 = vunpack.c.l.s4 1966171168
  %v6640 = vunpack.c.0.s8 %v6639
  %v6641 = vlaneseq
  %v6642 = vshrl.u32 %v6641, 7
  %v6643 = vsub.s32 %v6640, %v6642
  %v6644 = vrot.slane %v6630, %v6643
  %v6645 = vcombine.low %v6637, %v6644
  %v6646 = vcombine.low %v3862, %v3864
  %v6647 = vcombine.low %v3866, %v3868
  %v6648 = vcombine.low %v3870, %v3872
  %v6649 = vcombine.low %v3874, %v3876
  %v6651 = vunpack.c.l.s4 1966171168
  %v6652 = vunpack.c.0.s8 %v6651
  %v6653 = vlaneseq
  %v6654 = vshrl.u32 %v6653, 7
  %v6655 = vsub.s32 %v6652, %v6654
  %v6656 = vrot.slane %v6646, %v6655
  %v6658 = vunpack.c.l.s4 1966171168
  %v6659 = vunpack.c.0.s8 %v6658
  %v6660 = vlaneseq
  %v6661 = vshrl.u32 %v6660, 7
  %v6662 = vsub.s32 %v6659, %v6661
  %v6663 = vrot.slane %v6647, %v6662
  %v6665 = vunpack.c.l.s4 1966171168
  %v6666 = vunpack.c.0.s8 %v6665
  %v6667 = vlaneseq
  %v6668 = vshrl.u32 %v6667, 7
  %v6669 = vsub.s32 %v6666, %v6668
  %v6670 = vrot.slane %v6648, %v6669
  %v6672 = vunpack.c.l.s4 1966171168
  %v6673 = vunpack.c.0.s8 %v6672
  %v6674 = vlaneseq
  %v6675 = vshrl.u32 %v6674, 7
  %v6676 = vsub.s32 %v6673, %v6675
  %v6677 = vrot.slane %v6649, %v6676
  %v6678 = vcombine.low %v6656, %v6663
  %v6679 = vcombine.low %v6670, %v6677
  %v6681 = vunpack.c.l.s4 1966171168
  %v6682 = vunpack.c.0.s8 %v6681
  %v6683 = vlaneseq
  %v6684 = vshrl.u32 %v6683, 7
  %v6685 = vsub.s32 %v6682, %v6684
  %v6686 = vrot.slane %v6678, %v6685
  %v6688 = vunpack.c.l.s4 1966171168
  %v6689 = vunpack.c.0.s8 %v6688
  %v6690 = vlaneseq
  %v6691 = vshrl.u32 %v6690, 7
  %v6692 = vsub.s32 %v6689, %v6691
  %v6693 = vrot.slane %v6679, %v6692
  %v6694 = vcombine.low %v6686, %v6693
  %v6695 = vcombine.low %v3894, %v3896
  %v6696 = vcombine.low %v3898, %v3900
  %v6697 = vcombine.low %v3902, %v3904
  %v6698 = vcombine.low %v3906, %v3908
  %v6700 = vunpack.c.l.s4 1966171168
  %v6701 = vunpack.c.0.s8 %v6700
  %v6702 = vlaneseq
  %v6703 = vshrl.u32 %v6702, 7
  %v6704 = vsub.s32 %v6701, %v6703
  %v6705 = vrot.slane %v6695, %v6704
  %v6707 = vunpack.c.l.s4 1966171168
  %v6708 = vunpack.c.0.s8 %v6707
  %v6709 = vlaneseq
  %v6710 = vshrl.u32 %v6709, 7
  %v6711 = vsub.s32 %v6708, %v6710
  %v6712 = vrot.slane %v6696, %v6711
  %v6714 = vunpack.c.l.s4 1966171168
  %v6715 = vunpack.c.0.s8 %v6714
  %v6716 = vlaneseq
  %v6717 = vshrl.u32 %v6716, 7
  %v6718 = vsub.s32 %v6715, %v6717
  %v6719 = vrot.slane %v6697, %v6718
  %v6721 = vunpack.c.l.s4 1966171168
  %v6722 = vunpack.c.0.s8 %v6721
  %v6723 = vlaneseq
  %v6724 = vshrl.u32 %v6723, 7
  %v6725 = vsub.s32 %v6722, %v6724
  %v6726 = vrot.slane %v6698, %v6725
  %v6727 = vcombine.low %v6705, %v6712
  %v6728 = vcombine.low %v6719, %v6726
  %v6730 = vunpack.c.l.s4 1966171168
  %v6731 = vunpack.c.0.s8 %v6730
  %v6732 = vlaneseq
  %v6733 = vshrl.u32 %v6732, 7
  %v6734 = vsub.s32 %v6731, %v6733
  %v6735 = vrot.slane %v6727, %v6734
  %v6737 = vunpack.c.l.s4 1966171168
  %v6738 = vunpack.c.0.s8 %v6737
  %v6739 = vlaneseq
  %v6740 = vshrl.u32 %v6739, 7
  %v6741 = vsub.s32 %v6738, %v6740
  %v6742 = vrot.slane %v6728, %v6741
  %v6743 = vcombine.low %v6735, %v6742
  %v6744 = vcombine.low %v3926, %v3928
  %v6745 = vcombine.low %v3930, %v3932
  %v6746 = vcombine.low %v3934, %v3936
  %v6747 = vcombine.low %v3938, %v3940
  %v6749 = vunpack.c.l.s4 1966171168
  %v6750 = vunpack.c.0.s8 %v6749
  %v6751 = vlaneseq
  %v6752 = vshrl.u32 %v6751, 7
  %v6753 = vsub.s32 %v6750, %v6752
  %v6754 = vrot.slane %v6744, %v6753
  %v6756 = vunpack.c.l.s4 1966171168
  %v6757 = vunpack.c.0.s8 %v6756
  %v6758 = vlaneseq
  %v6759 = vshrl.u32 %v6758, 7
  %v6760 = vsub.s32 %v6757, %v6759
  %v6761 = vrot.slane %v6745, %v6760
  %v6763 = vunpack.c.l.s4 1966171168
  %v6764 = vunpack.c.0.s8 %v6763
  %v6765 = vlaneseq
  %v6766 = vshrl.u32 %v6765, 7
  %v6767 = vsub.s32 %v6764, %v6766
  %v6768 = vrot.slane %v6746, %v6767
  %v6770 = vunpack.c.l.s4 1966171168
  %v6771 = vunpack.c.0.s8 %v6770
  %v6772 = vlaneseq
  %v6773 = vshrl.u32 %v6772, 7
  %v6774 = vsub.s32 %v6771, %v6773
  %v6775 = vrot.slane %v6747, %v6774
  %v6776 = vcombine.low %v6754, %v6761
  %v6777 = vcombine.low %v6768, %v6775
  %v6779 = vunpack.c.l.s4 1966171168
  %v6780 = vunpack.c.0.s8 %v6779
  %v6781 = vlaneseq
  %v6782 = vshrl.u32 %v6781, 7
  %v6783 = vsub.s32 %v6780, %v6782
  %v6784 = vrot.slane %v6776, %v6783
  %v6786 = vunpack.c.l.s4 1966171168
  %v6787 = vunpack.c.0.s8 %v6786
  %v6788 = vlaneseq
  %v6789 = vshrl.u32 %v6788, 7
  %v6790 = vsub.s32 %v6787, %v6789
  %v6791 = vrot.slane %v6777, %v6790
  %v6792 = vcombine.low %v6784, %v6791
  %v6793 = vcombine.low %v3958, %v3960
  %v6794 = vcombine.low %v3962, %v3964
  %v6795 = vcombine.low %v3966, %v3968
  %v6796 = vcombine.low %v3970, %v3972
  %v6798 = vunpack.c.l.s4 1966171168
  %v6799 = vunpack.c.0.s8 %v6798
  %v6800 = vlaneseq
  %v6801 = vshrl.u32 %v6800, 7
  %v6802 = vsub.s32 %v6799, %v6801
  %v6803 = vrot.slane %v6793, %v6802
  %v6805 = vunpack.c.l.s4 1966171168
  %v6806 = vunpack.c.0.s8 %v6805
  %v6807 = vlaneseq
  %v6808 = vshrl.u32 %v6807, 7
  %v6809 = vsub.s32 %v6806, %v6808
  %v6810 = vrot.slane %v6794, %v6809
  %v6812 = vunpack.c.l.s4 1966171168
  %v6813 = vunpack.c.0.s8 %v6812
  %v6814 = vlaneseq
  %v6815 = vshrl.u32 %v6814, 7
  %v6816 = vsub.s32 %v6813, %v6815
  %v6817 = vrot.slane %v6795, %v6816
  %v6819 = vunpack.c.l.s4 1966171168
  %v6820 = vunpack.c.0.s8 %v6819
  %v6821 = vlaneseq
  %v6822 = vshrl.u32 %v6821, 7
  %v6823 = vsub.s32 %v6820, %v6822
  %v6824 = vrot.slane %v6796, %v6823
  %v6825 = vcombine.low %v6803, %v6810
  %v6826 = vcombine.low %v6817, %v6824
  %v6828 = vunpack.c.l.s4 1966171168
  %v6829 = vunpack.c.0.s8 %v6828
  %v6830 = vlaneseq
  %v6831 = vshrl.u32 %v6830, 7
  %v6832 = vsub.s32 %v6829, %v6831
  %v6833 = vrot.slane %v6825, %v6832
  %v6835 = vunpack.c.l.s4 1966171168
  %v6836 = vunpack.c.0.s8 %v6835
  %v6837 = vlaneseq
  %v6838 = vshrl.u32 %v6837, 7
  %v6839 = vsub.s32 %v6836, %v6838
  %v6840 = vrot.slane %v6826, %v6839
  %v6841 = vcombine.low %v6833, %v6840
  %v6842 = vcombine.low %v3990, %v3992
  %v6843 = vcombine.low %v3994, %v3996
  %v6844 = vcombine.low %v3998, %v4000
  %v6845 = vcombine.low %v4002, %v4004
  %v6847 = vunpack.c.l.s4 1966171168
  %v6848 = vunpack.c.0.s8 %v6847
  %v6849 = vlaneseq
  %v6850 = vshrl.u32 %v6849, 7
  %v6851 = vsub.s32 %v6848, %v6850
  %v6852 = vrot.slane %v6842, %v6851
  %v6854 = vunpack.c.l.s4 1966171168
  %v6855 = vunpack.c.0.s8 %v6854
  %v6856 = vlaneseq
  %v6857 = vshrl.u32 %v6856, 7
  %v6858 = vsub.s32 %v6855, %v6857
  %v6859 = vrot.slane %v6843, %v6858
  %v6861 = vunpack.c.l.s4 1966171168
  %v6862 = vunpack.c.0.s8 %v6861
  %v6863 = vlaneseq
  %v6864 = vshrl.u32 %v6863, 7
  %v6865 = vsub.s32 %v6862, %v6864
  %v6866 = vrot.slane %v6844, %v6865
  %v6868 = vunpack.c.l.s4 1966171168
  %v6869 = vunpack.c.0.s8 %v6868
  %v6870 = vlaneseq
  %v6871 = vshrl.u32 %v6870, 7
  %v6872 = vsub.s32 %v6869, %v6871
  %v6873 = vrot.slane %v6845, %v6872
  %v6874 = vcombine.low %v6852, %v6859
  %v6875 = vcombine.low %v6866, %v6873
  %v6877 = vunpack.c.l.s4 1966171168
  %v6878 = vunpack.c.0.s8 %v6877
  %v6879 = vlaneseq
  %v6880 = vshrl.u32 %v6879, 7
  %v6881 = vsub.s32 %v6878, %v6880
  %v6882 = vrot.slane %v6874, %v6881
  %v6884 = vunpack.c.l.s4 1966171168
  %v6885 = vunpack.c.0.s8 %v6884
  %v6886 = vlaneseq
  %v6887 = vshrl.u32 %v6886, 7
  %v6888 = vsub.s32 %v6885, %v6887
  %v6889 = vrot.slane %v6875, %v6888
  %v6890 = vcombine.low %v6882, %v6889
  %6891 = vrot.lane.b32.xlu0 %v6547, 64
  %v6892 = vpop.permute.xlu0 %6891
  %6893 = vrot.lane.b32.xlu0 %v6596, 64
  %v6894 = vpop.permute.xlu0 %6893
  %6895 = vrot.lane.b32.xlu0 %v6645, 64
  %v6896 = vpop.permute.xlu0 %6895
  %6897 = vrot.lane.b32.xlu0 %v6694, 64
  %v6898 = vpop.permute.xlu0 %6897
  %6899 = vrot.lane.b32.xlu0 %v6743, 64
  %v6900 = vpop.permute.xlu0 %6899
  %6901 = vrot.lane.b32.xlu0 %v6792, 64
  %v6902 = vpop.permute.xlu0 %6901
  %6903 = vrot.lane.b32.xlu0 %v6841, 64
  %v6904 = vpop.permute.xlu0 %6903
  %6905 = vrot.lane.b32.xlu0 %v6890, 64
  %v6906 = vpop.permute.xlu0 %6905
  %v6907 = vcombine.low %v3767, %v3769
  %v6908 = vcombine.low %v3771, %v3773
  %v6909 = vcombine.low %v3775, %v3777
  %v6910 = vcombine.low %v3779, 0
  %v6912 = vunpack.c.l.s4 1966171168
  %v6913 = vunpack.c.0.s8 %v6912
  %v6914 = vlaneseq
  %v6915 = vshrl.u32 %v6914, 7
  %v6916 = vsub.s32 %v6913, %v6915
  %v6917 = vrot.slane %v6907, %v6916
  %v6919 = vunpack.c.l.s4 1966171168
  %v6920 = vunpack.c.0.s8 %v6919
  %v6921 = vlaneseq
  %v6922 = vshrl.u32 %v6921, 7
  %v6923 = vsub.s32 %v6920, %v6922
  %v6924 = vrot.slane %v6908, %v6923
  %v6926 = vunpack.c.l.s4 1966171168
  %v6927 = vunpack.c.0.s8 %v6926
  %v6928 = vlaneseq
  %v6929 = vshrl.u32 %v6928, 7
  %v6930 = vsub.s32 %v6927, %v6929
  %v6931 = vrot.slane %v6909, %v6930
  %v6933 = vunpack.c.l.s4 1966171168
  %v6934 = vunpack.c.0.s8 %v6933
  %v6935 = vlaneseq
  %v6936 = vshrl.u32 %v6935, 7
  %v6937 = vsub.s32 %v6934, %v6936
  %v6938 = vrot.slane %v6910, %v6937
  %v6939 = vcombine.low %v6917, %v6924
  %v6940 = vcombine.low %v6931, %v6938
  %v6942 = vunpack.c.l.s4 1966171168
  %v6943 = vunpack.c.0.s8 %v6942
  %v6944 = vlaneseq
  %v6945 = vshrl.u32 %v6944, 7
  %v6946 = vsub.s32 %v6943, %v6945
  %v6947 = vrot.slane %v6939, %v6946
  %v6949 = vunpack.c.l.s4 1966171168
  %v6950 = vunpack.c.0.s8 %v6949
  %v6951 = vlaneseq
  %v6952 = vshrl.u32 %v6951, 7
  %v6953 = vsub.s32 %v6950, %v6952
  %v6954 = vrot.slane %v6940, %v6953
  %v6955 = vcombine.low %v6947, %v6954
  %v6956 = vcombine.low %v3799, %v3801
  %v6957 = vcombine.low %v3803, %v3805
  %v6958 = vcombine.low %v3807, %v3809
  %v6959 = vcombine.low %v3811, 0
  %v6961 = vunpack.c.l.s4 1966171168
  %v6962 = vunpack.c.0.s8 %v6961
  %v6963 = vlaneseq
  %v6964 = vshrl.u32 %v6963, 7
  %v6965 = vsub.s32 %v6962, %v6964
  %v6966 = vrot.slane %v6956, %v6965
  %v6968 = vunpack.c.l.s4 1966171168
  %v6969 = vunpack.c.0.s8 %v6968
  %v6970 = vlaneseq
  %v6971 = vshrl.u32 %v6970, 7
  %v6972 = vsub.s32 %v6969, %v6971
  %v6973 = vrot.slane %v6957, %v6972
  %v6975 = vunpack.c.l.s4 1966171168
  %v6976 = vunpack.c.0.s8 %v6975
  %v6977 = vlaneseq
  %v6978 = vshrl.u32 %v6977, 7
  %v6979 = vsub.s32 %v6976, %v6978
  %v6980 = vrot.slane %v6958, %v6979
  %v6982 = vunpack.c.l.s4 1966171168
  %v6983 = vunpack.c.0.s8 %v6982
  %v6984 = vlaneseq
  %v6985 = vshrl.u32 %v6984, 7
  %v6986 = vsub.s32 %v6983, %v6985
  %v6987 = vrot.slane %v6959, %v6986
  %v6988 = vcombine.low %v6966, %v6973
  %v6989 = vcombine.low %v6980, %v6987
  %v6991 = vunpack.c.l.s4 1966171168
  %v6992 = vunpack.c.0.s8 %v6991
  %v6993 = vlaneseq
  %v6994 = vshrl.u32 %v6993, 7
  %v6995 = vsub.s32 %v6992, %v6994
  %v6996 = vrot.slane %v6988, %v6995
  %v6998 = vunpack.c.l.s4 1966171168
  %v6999 = vunpack.c.0.s8 %v6998
  %v7000 = vlaneseq
  %v7001 = vshrl.u32 %v7000, 7
  %v7002 = vsub.s32 %v6999, %v7001
  %v7003 = vrot.slane %v6989, %v7002
  %v7004 = vcombine.low %v6996, %v7003
  %v7005 = vcombine.low %v3831, %v3833
  %v7006 = vcombine.low %v3835, %v3837
  %v7007 = vcombine.low %v3839, %v3841
  %v7008 = vcombine.low %v3843, 0
  %v7010 = vunpack.c.l.s4 1966171168
  %v7011 = vunpack.c.0.s8 %v7010
  %v7012 = vlaneseq
  %v7013 = vshrl.u32 %v7012, 7
  %v7014 = vsub.s32 %v7011, %v7013
  %v7015 = vrot.slane %v7005, %v7014
  %v7017 = vunpack.c.l.s4 1966171168
  %v7018 = vunpack.c.0.s8 %v7017
  %v7019 = vlaneseq
  %v7020 = vshrl.u32 %v7019, 7
  %v7021 = vsub.s32 %v7018, %v7020
  %v7022 = vrot.slane %v7006, %v7021
  %v7024 = vunpack.c.l.s4 1966171168
  %v7025 = vunpack.c.0.s8 %v7024
  %v7026 = vlaneseq
  %v7027 = vshrl.u32 %v7026, 7
  %v7028 = vsub.s32 %v7025, %v7027
  %v7029 = vrot.slane %v7007, %v7028
  %v7031 = vunpack.c.l.s4 1966171168
  %v7032 = vunpack.c.0.s8 %v7031
  %v7033 = vlaneseq
  %v7034 = vshrl.u32 %v7033, 7
  %v7035 = vsub.s32 %v7032, %v7034
  %v7036 = vrot.slane %v7008, %v7035
  %v7037 = vcombine.low %v7015, %v7022
  %v7038 = vcombine.low %v7029, %v7036
  %v7040 = vunpack.c.l.s4 1966171168
  %v7041 = vunpack.c.0.s8 %v7040
  %v7042 = vlaneseq
  %v7043 = vshrl.u32 %v7042, 7
  %v7044 = vsub.s32 %v7041, %v7043
  %v7045 = vrot.slane %v7037, %v7044
  %v7047 = vunpack.c.l.s4 1966171168
  %v7048 = vunpack.c.0.s8 %v7047
  %v7049 = vlaneseq
  %v7050 = vshrl.u32 %v7049, 7
  %v7051 = vsub.s32 %v7048, %v7050
  %v7052 = vrot.slane %v7038, %v7051
  %v7053 = vcombine.low %v7045, %v7052
  %v7054 = vcombine.low %v3863, %v3865
  %v7055 = vcombine.low %v3867, %v3869
  %v7056 = vcombine.low %v3871, %v3873
  %v7057 = vcombine.low %v3875, 0
  %v7059 = vunpack.c.l.s4 1966171168
  %v7060 = vunpack.c.0.s8 %v7059
  %v7061 = vlaneseq
  %v7062 = vshrl.u32 %v7061, 7
  %v7063 = vsub.s32 %v7060, %v7062
  %v7064 = vrot.slane %v7054, %v7063
  %v7066 = vunpack.c.l.s4 1966171168
  %v7067 = vunpack.c.0.s8 %v7066
  %v7068 = vlaneseq
  %v7069 = vshrl.u32 %v7068, 7
  %v7070 = vsub.s32 %v7067, %v7069
  %v7071 = vrot.slane %v7055, %v7070
  %v7073 = vunpack.c.l.s4 1966171168
  %v7074 = vunpack.c.0.s8 %v7073
  %v7075 = vlaneseq
  %v7076 = vshrl.u32 %v7075, 7
  %v7077 = vsub.s32 %v7074, %v7076
  %v7078 = vrot.slane %v7056, %v7077
  %v7080 = vunpack.c.l.s4 1966171168
  %v7081 = vunpack.c.0.s8 %v7080
  %v7082 = vlaneseq
  %v7083 = vshrl.u32 %v7082, 7
  %v7084 = vsub.s32 %v7081, %v7083
  %v7085 = vrot.slane %v7057, %v7084
  %v7086 = vcombine.low %v7064, %v7071
  %v7087 = vcombine.low %v7078, %v7085
  %v7089 = vunpack.c.l.s4 1966171168
  %v7090 = vunpack.c.0.s8 %v7089
  %v7091 = vlaneseq
  %v7092 = vshrl.u32 %v7091, 7
  %v7093 = vsub.s32 %v7090, %v7092
  %v7094 = vrot.slane %v7086, %v7093
  %v7096 = vunpack.c.l.s4 1966171168
  %v7097 = vunpack.c.0.s8 %v7096
  %v7098 = vlaneseq
  %v7099 = vshrl.u32 %v7098, 7
  %v7100 = vsub.s32 %v7097, %v7099
  %v7101 = vrot.slane %v7087, %v7100
  %v7102 = vcombine.low %v7094, %v7101
  %v7103 = vcombine.low %v3895, %v3897
  %v7104 = vcombine.low %v3899, %v3901
  %v7105 = vcombine.low %v3903, %v3905
  %v7106 = vcombine.low %v3907, 0
  %v7108 = vunpack.c.l.s4 1966171168
  %v7109 = vunpack.c.0.s8 %v7108
  %v7110 = vlaneseq
  %v7111 = vshrl.u32 %v7110, 7
  %v7112 = vsub.s32 %v7109, %v7111
  %v7113 = vrot.slane %v7103, %v7112
  %v7115 = vunpack.c.l.s4 1966171168
  %v7116 = vunpack.c.0.s8 %v7115
  %v7117 = vlaneseq
  %v7118 = vshrl.u32 %v7117, 7
  %v7119 = vsub.s32 %v7116, %v7118
  %v7120 = vrot.slane %v7104, %v7119
  %v7122 = vunpack.c.l.s4 1966171168
  %v7123 = vunpack.c.0.s8 %v7122
  %v7124 = vlaneseq
  %v7125 = vshrl.u32 %v7124, 7
  %v7126 = vsub.s32 %v7123, %v7125
  %v7127 = vrot.slane %v7105, %v7126
  %v7129 = vunpack.c.l.s4 1966171168
  %v7130 = vunpack.c.0.s8 %v7129
  %v7131 = vlaneseq
  %v7132 = vshrl.u32 %v7131, 7
  %v7133 = vsub.s32 %v7130, %v7132
  %v7134 = vrot.slane %v7106, %v7133
  %v7135 = vcombine.low %v7113, %v7120
  %v7136 = vcombine.low %v7127, %v7134
  %v7138 = vunpack.c.l.s4 1966171168
  %v7139 = vunpack.c.0.s8 %v7138
  %v7140 = vlaneseq
  %v7141 = vshrl.u32 %v7140, 7
  %v7142 = vsub.s32 %v7139, %v7141
  %v7143 = vrot.slane %v7135, %v7142
  %v7145 = vunpack.c.l.s4 1966171168
  %v7146 = vunpack.c.0.s8 %v7145
  %v7147 = vlaneseq
  %v7148 = vshrl.u32 %v7147, 7
  %v7149 = vsub.s32 %v7146, %v7148
  %v7150 = vrot.slane %v7136, %v7149
  %v7151 = vcombine.low %v7143, %v7150
  %v7152 = vcombine.low %v3927, %v3929
  %v7153 = vcombine.low %v3931, %v3933
  %v7154 = vcombine.low %v3935, %v3937
  %v7155 = vcombine.low %v3939, 0
  %v7157 = vunpack.c.l.s4 1966171168
  %v7158 = vunpack.c.0.s8 %v7157
  %v7159 = vlaneseq
  %v7160 = vshrl.u32 %v7159, 7
  %v7161 = vsub.s32 %v7158, %v7160
  %v7162 = vrot.slane %v7152, %v7161
  %v7164 = vunpack.c.l.s4 1966171168
  %v7165 = vunpack.c.0.s8 %v7164
  %v7166 = vlaneseq
  %v7167 = vshrl.u32 %v7166, 7
  %v7168 = vsub.s32 %v7165, %v7167
  %v7169 = vrot.slane %v7153, %v7168
  %v7171 = vunpack.c.l.s4 1966171168
  %v7172 = vunpack.c.0.s8 %v7171
  %v7173 = vlaneseq
  %v7174 = vshrl.u32 %v7173, 7
  %v7175 = vsub.s32 %v7172, %v7174
  %v7176 = vrot.slane %v7154, %v7175
  %v7178 = vunpack.c.l.s4 1966171168
  %v7179 = vunpack.c.0.s8 %v7178
  %v7180 = vlaneseq
  %v7181 = vshrl.u32 %v7180, 7
  %v7182 = vsub.s32 %v7179, %v7181
  %v7183 = vrot.slane %v7155, %v7182
  %v7184 = vcombine.low %v7162, %v7169
  %v7185 = vcombine.low %v7176, %v7183
  %v7187 = vunpack.c.l.s4 1966171168
  %v7188 = vunpack.c.0.s8 %v7187
  %v7189 = vlaneseq
  %v7190 = vshrl.u32 %v7189, 7
  %v7191 = vsub.s32 %v7188, %v7190
  %v7192 = vrot.slane %v7184, %v7191
  %v7194 = vunpack.c.l.s4 1966171168
  %v7195 = vunpack.c.0.s8 %v7194
  %v7196 = vlaneseq
  %v7197 = vshrl.u32 %v7196, 7
  %v7198 = vsub.s32 %v7195, %v7197
  %v7199 = vrot.slane %v7185, %v7198
  %v7200 = vcombine.low %v7192, %v7199
  %v7201 = vcombine.low %v3959, %v3961
  %v7202 = vcombine.low %v3963, %v3965
  %v7203 = vcombine.low %v3967, %v3969
  %v7204 = vcombine.low %v3971, 0
  %v7206 = vunpack.c.l.s4 1966171168
  %v7207 = vunpack.c.0.s8 %v7206
  %v7208 = vlaneseq
  %v7209 = vshrl.u32 %v7208, 7
  %v7210 = vsub.s32 %v7207, %v7209
  %v7211 = vrot.slane %v7201, %v7210
  %v7213 = vunpack.c.l.s4 1966171168
  %v7214 = vunpack.c.0.s8 %v7213
  %v7215 = vlaneseq
  %v7216 = vshrl.u32 %v7215, 7
  %v7217 = vsub.s32 %v7214, %v7216
  %v7218 = vrot.slane %v7202, %v7217
  %v7220 = vunpack.c.l.s4 1966171168
  %v7221 = vunpack.c.0.s8 %v7220
  %v7222 = vlaneseq
  %v7223 = vshrl.u32 %v7222, 7
  %v7224 = vsub.s32 %v7221, %v7223
  %v7225 = vrot.slane %v7203, %v7224
  %v7227 = vunpack.c.l.s4 1966171168
  %v7228 = vunpack.c.0.s8 %v7227
  %v7229 = vlaneseq
  %v7230 = vshrl.u32 %v7229, 7
  %v7231 = vsub.s32 %v7228, %v7230
  %v7232 = vrot.slane %v7204, %v7231
  %v7233 = vcombine.low %v7211, %v7218
  %v7234 = vcombine.low %v7225, %v7232
  %v7236 = vunpack.c.l.s4 1966171168
  %v7237 = vunpack.c.0.s8 %v7236
  %v7238 = vlaneseq
  %v7239 = vshrl.u32 %v7238, 7
  %v7240 = vsub.s32 %v7237, %v7239
  %v7241 = vrot.slane %v7233, %v7240
  %v7243 = vunpack.c.l.s4 1966171168
  %v7244 = vunpack.c.0.s8 %v7243
  %v7245 = vlaneseq
  %v7246 = vshrl.u32 %v7245, 7
  %v7247 = vsub.s32 %v7244, %v7246
  %v7248 = vrot.slane %v7234, %v7247
  %v7249 = vcombine.low %v7241, %v7248
  %v7250 = vcombine.low %v3991, %v3993
  %v7251 = vcombine.low %v3995, %v3997
  %v7252 = vcombine.low %v3999, %v4001
  %v7253 = vcombine.low %v4003, 0
  %v7255 = vunpack.c.l.s4 1966171168
  %v7256 = vunpack.c.0.s8 %v7255
  %v7257 = vlaneseq
  %v7258 = vshrl.u32 %v7257, 7
  %v7259 = vsub.s32 %v7256, %v7258
  %v7260 = vrot.slane %v7250, %v7259
  %v7262 = vunpack.c.l.s4 1966171168
  %v7263 = vunpack.c.0.s8 %v7262
  %v7264 = vlaneseq
  %v7265 = vshrl.u32 %v7264, 7
  %v7266 = vsub.s32 %v7263, %v7265
  %v7267 = vrot.slane %v7251, %v7266
  %v7269 = vunpack.c.l.s4 1966171168
  %v7270 = vunpack.c.0.s8 %v7269
  %v7271 = vlaneseq
  %v7272 = vshrl.u32 %v7271, 7
  %v7273 = vsub.s32 %v7270, %v7272
  %v7274 = vrot.slane %v7252, %v7273
  %v7276 = vunpack.c.l.s4 1966171168
  %v7277 = vunpack.c.0.s8 %v7276
  %v7278 = vlaneseq
  %v7279 = vshrl.u32 %v7278, 7
  %v7280 = vsub.s32 %v7277, %v7279
  %v7281 = vrot.slane %v7253, %v7280
  %v7282 = vcombine.low %v7260, %v7267
  %v7283 = vcombine.low %v7274, %v7281
  %v7285 = vunpack.c.l.s4 1966171168
  %v7286 = vunpack.c.0.s8 %v7285
  %v7287 = vlaneseq
  %v7288 = vshrl.u32 %v7287, 7
  %v7289 = vsub.s32 %v7286, %v7288
  %v7290 = vrot.slane %v7282, %v7289
  %v7292 = vunpack.c.l.s4 1966171168
  %v7293 = vunpack.c.0.s8 %v7292
  %v7294 = vlaneseq
  %v7295 = vshrl.u32 %v7294, 7
  %v7296 = vsub.s32 %v7293, %v7295
  %v7297 = vrot.slane %v7283, %v7296
  %v7298 = vcombine.low %v7290, %v7297
  %7299 = vrot.lane.b32.xlu0 %v6955, 96
  %v7300 = vpop.permute.xlu0 %7299
  %7301 = vrot.lane.b32.xlu0 %v7004, 96
  %v7302 = vpop.permute.xlu0 %7301
  %7303 = vrot.lane.b32.xlu0 %v7053, 96
  %v7304 = vpop.permute.xlu0 %7303
  %7305 = vrot.lane.b32.xlu0 %v7102, 96
  %v7306 = vpop.permute.xlu0 %7305
  %7307 = vrot.lane.b32.xlu0 %v7151, 96
  %v7308 = vpop.permute.xlu0 %7307
  %7309 = vrot.lane.b32.xlu0 %v7200, 96
  %v7310 = vpop.permute.xlu0 %7309
  %7311 = vrot.lane.b32.xlu0 %v7249, 96
  %v7312 = vpop.permute.xlu0 %7311
  %7313 = vrot.lane.b32.xlu0 %v7298, 96
  %v7314 = vpop.permute.xlu0 %7313
  %v7322 = vcombine.low 0, %v4006
  %v7323 = vcombine.low %v4008, %v4010
  %v7324 = vcombine.low %v4012, %v4014
  %v7325 = vcombine.low %v4016, %v4018
  %v7327 = vunpack.c.l.s4 1966171168
  %v7328 = vunpack.c.0.s8 %v7327
  %v7329 = vlaneseq
  %v7330 = vshrl.u32 %v7329, 7
  %v7331 = vsub.s32 %v7328, %v7330
  %v7332 = vrot.slane %v7322, %v7331
  %v7334 = vunpack.c.l.s4 1966171168
  %v7335 = vunpack.c.0.s8 %v7334
  %v7336 = vlaneseq
  %v7337 = vshrl.u32 %v7336, 7
  %v7338 = vsub.s32 %v7335, %v7337
  %v7339 = vrot.slane %v7323, %v7338
  %v7341 = vunpack.c.l.s4 1966171168
  %v7342 = vunpack.c.0.s8 %v7341
  %v7343 = vlaneseq
  %v7344 = vshrl.u32 %v7343, 7
  %v7345 = vsub.s32 %v7342, %v7344
  %v7346 = vrot.slane %v7324, %v7345
  %v7348 = vunpack.c.l.s4 1966171168
  %v7349 = vunpack.c.0.s8 %v7348
  %v7350 = vlaneseq
  %v7351 = vshrl.u32 %v7350, 7
  %v7352 = vsub.s32 %v7349, %v7351
  %v7353 = vrot.slane %v7325, %v7352
  %v7354 = vcombine.low %v7332, %v7339
  %v7355 = vcombine.low %v7346, %v7353
  %v7357 = vunpack.c.l.s4 1966171168
  %v7358 = vunpack.c.0.s8 %v7357
  %v7359 = vlaneseq
  %v7360 = vshrl.u32 %v7359, 7
  %v7361 = vsub.s32 %v7358, %v7360
  %v7362 = vrot.slane %v7354, %v7361
  %v7364 = vunpack.c.l.s4 1966171168
  %v7365 = vunpack.c.0.s8 %v7364
  %v7366 = vlaneseq
  %v7367 = vshrl.u32 %v7366, 7
  %v7368 = vsub.s32 %v7365, %v7367
  %v7369 = vrot.slane %v7355, %v7368
  %v7370 = vcombine.low %v7362, %v7369
  %v7379 = vcombine.low %v4005, %v4007
  %v7380 = vcombine.low %v4009, %v4011
  %v7381 = vcombine.low %v4013, %v4015
  %v7382 = vcombine.low %v4017, %v4019
  %v7384 = vunpack.c.l.s4 1966171168
  %v7385 = vunpack.c.0.s8 %v7384
  %v7386 = vlaneseq
  %v7387 = vshrl.u32 %v7386, 7
  %v7388 = vsub.s32 %v7385, %v7387
  %v7389 = vrot.slane %v7379, %v7388
  %v7391 = vunpack.c.l.s4 1966171168
  %v7392 = vunpack.c.0.s8 %v7391
  %v7393 = vlaneseq
  %v7394 = vshrl.u32 %v7393, 7
  %v7395 = vsub.s32 %v7392, %v7394
  %v7396 = vrot.slane %v7380, %v7395
  %v7398 = vunpack.c.l.s4 1966171168
  %v7399 = vunpack.c.0.s8 %v7398
  %v7400 = vlaneseq
  %v7401 = vshrl.u32 %v7400, 7
  %v7402 = vsub.s32 %v7399, %v7401
  %v7403 = vrot.slane %v7381, %v7402
  %v7405 = vunpack.c.l.s4 1966171168
  %v7406 = vunpack.c.0.s8 %v7405
  %v7407 = vlaneseq
  %v7408 = vshrl.u32 %v7407, 7
  %v7409 = vsub.s32 %v7406, %v7408
  %v7410 = vrot.slane %v7382, %v7409
  %v7411 = vcombine.low %v7389, %v7396
  %v7412 = vcombine.low %v7403, %v7410
  %v7414 = vunpack.c.l.s4 1966171168
  %v7415 = vunpack.c.0.s8 %v7414
  %v7416 = vlaneseq
  %v7417 = vshrl.u32 %v7416, 7
  %v7418 = vsub.s32 %v7415, %v7417
  %v7419 = vrot.slane %v7411, %v7418
  %v7421 = vunpack.c.l.s4 1966171168
  %v7422 = vunpack.c.0.s8 %v7421
  %v7423 = vlaneseq
  %v7424 = vshrl.u32 %v7423, 7
  %v7425 = vsub.s32 %v7422, %v7424
  %v7426 = vrot.slane %v7412, %v7425
  %v7427 = vcombine.low %v7419, %v7426
  %7428 = vrot.lane.b32.xlu0 %v7427, 32
  %v7429 = vpop.permute.xlu0 %7428
  %v7431 = vcombine.low %v4006, %v4008
  %v7432 = vcombine.low %v4010, %v4012
  %v7433 = vcombine.low %v4014, %v4016
  %v7434 = vcombine.low %v4018, %v4020
  %v7436 = vunpack.c.l.s4 1966171168
  %v7437 = vunpack.c.0.s8 %v7436
  %v7438 = vlaneseq
  %v7439 = vshrl.u32 %v7438, 7
  %v7440 = vsub.s32 %v7437, %v7439
  %v7441 = vrot.slane %v7431, %v7440
  %v7443 = vunpack.c.l.s4 1966171168
  %v7444 = vunpack.c.0.s8 %v7443
  %v7445 = vlaneseq
  %v7446 = vshrl.u32 %v7445, 7
  %v7447 = vsub.s32 %v7444, %v7446
  %v7448 = vrot.slane %v7432, %v7447
  %v7450 = vunpack.c.l.s4 1966171168
  %v7451 = vunpack.c.0.s8 %v7450
  %v7452 = vlaneseq
  %v7453 = vshrl.u32 %v7452, 7
  %v7454 = vsub.s32 %v7451, %v7453
  %v7455 = vrot.slane %v7433, %v7454
  %v7457 = vunpack.c.l.s4 1966171168
  %v7458 = vunpack.c.0.s8 %v7457
  %v7459 = vlaneseq
  %v7460 = vshrl.u32 %v7459, 7
  %v7461 = vsub.s32 %v7458, %v7460
  %v7462 = vrot.slane %v7434, %v7461
  %v7463 = vcombine.low %v7441, %v7448
  %v7464 = vcombine.low %v7455, %v7462
  %v7466 = vunpack.c.l.s4 1966171168
  %v7467 = vunpack.c.0.s8 %v7466
  %v7468 = vlaneseq
  %v7469 = vshrl.u32 %v7468, 7
  %v7470 = vsub.s32 %v7467, %v7469
  %v7471 = vrot.slane %v7463, %v7470
  %v7473 = vunpack.c.l.s4 1966171168
  %v7474 = vunpack.c.0.s8 %v7473
  %v7475 = vlaneseq
  %v7476 = vshrl.u32 %v7475, 7
  %v7477 = vsub.s32 %v7474, %v7476
  %v7478 = vrot.slane %v7464, %v7477
  %v7479 = vcombine.low %v7471, %v7478
  %7480 = vrot.lane.b32.xlu0 %v7479, 64
  %v7481 = vpop.permute.xlu0 %7480
  %v7482 = vcombine.low %v4007, %v4009
  %v7483 = vcombine.low %v4011, %v4013
  %v7484 = vcombine.low %v4015, %v4017
  %v7485 = vcombine.low %v4019, 0
  %v7487 = vunpack.c.l.s4 1966171168
  %v7488 = vunpack.c.0.s8 %v7487
  %v7489 = vlaneseq
  %v7490 = vshrl.u32 %v7489, 7
  %v7491 = vsub.s32 %v7488, %v7490
  %v7492 = vrot.slane %v7482, %v7491
  %v7494 = vunpack.c.l.s4 1966171168
  %v7495 = vunpack.c.0.s8 %v7494
  %v7496 = vlaneseq
  %v7497 = vshrl.u32 %v7496, 7
  %v7498 = vsub.s32 %v7495, %v7497
  %v7499 = vrot.slane %v7483, %v7498
  %v7501 = vunpack.c.l.s4 1966171168
  %v7502 = vunpack.c.0.s8 %v7501
  %v7503 = vlaneseq
  %v7504 = vshrl.u32 %v7503, 7
  %v7505 = vsub.s32 %v7502, %v7504
  %v7506 = vrot.slane %v7484, %v7505
  %v7508 = vunpack.c.l.s4 1966171168
  %v7509 = vunpack.c.0.s8 %v7508
  %v7510 = vlaneseq
  %v7511 = vshrl.u32 %v7510, 7
  %v7512 = vsub.s32 %v7509, %v7511
  %v7513 = vrot.slane %v7485, %v7512
  %v7514 = vcombine.low %v7492, %v7499
  %v7515 = vcombine.low %v7506, %v7513
  %v7517 = vunpack.c.l.s4 1966171168
  %v7518 = vunpack.c.0.s8 %v7517
  %v7519 = vlaneseq
  %v7520 = vshrl.u32 %v7519, 7
  %v7521 = vsub.s32 %v7518, %v7520
  %v7522 = vrot.slane %v7514, %v7521
  %v7524 = vunpack.c.l.s4 1966171168
  %v7525 = vunpack.c.0.s8 %v7524
  %v7526 = vlaneseq
  %v7527 = vshrl.u32 %v7526, 7
  %v7528 = vsub.s32 %v7525, %v7527
  %v7529 = vrot.slane %v7515, %v7528
  %v7530 = vcombine.low %v7522, %v7529
  %7531 = vrot.lane.b32.xlu0 %v7530, 96
  %v7532 = vpop.permute.xlu0 %7531
  %vm7533 = vcmask 261120
  %v7536 = vsel %vm7533, %v4087, %v4831
  %v7539 = vsel %vm7533, %v4136, %v4833
  %v7542 = vsel %vm7533, %v4185, %v4835
  %v7545 = vsel %vm7533, %v4234, %v4837
  %v7548 = vsel %vm7533, %v4283, %v4839
  %v7551 = vsel %vm7533, %v4332, %v4841
  %v7554 = vsel %vm7533, %v4381, %v4843
  %v7557 = vsel %vm7533, %v4430, %v4845
  %vm7558 = vcmask 523264
  %v7560 = vsel %vm7558, %v7536, %v5197
  %v7562 = vsel %vm7558, %v7539, %v5199
  %v7564 = vsel %vm7558, %v7542, %v5201
  %v7566 = vsel %vm7558, %v7545, %v5203
  %v7568 = vsel %vm7558, %v7548, %v5205
  %v7570 = vsel %vm7558, %v7551, %v5207
  %v7572 = vsel %vm7558, %v7554, %v5209
  %v7574 = vsel %vm7558, %v7557, %v5211
  %vm7575 = vcmask 785408
  %v7577 = vsel %vm7575, %v7560, %v5556
  %v7580 = vsel %vm7575, %v7562, %v5558
  %v7583 = vsel %vm7575, %v7564, %v5560
  %v7586 = vsel %vm7575, %v7566, %v5562
  %v7589 = vsel %vm7575, %v7568, %v5564
  %v7592 = vsel %vm7575, %v7570, %v5566
  %v7595 = vsel %vm7575, %v7572, %v5568
  %v7598 = vsel %vm7575, %v7574, %v5570
  %v7602 = vsel %vm7533, %v5675, %v6476
  %v7605 = vsel %vm7533, %v5724, %v6478
  %v7608 = vsel %vm7533, %v5773, %v6480
  %v7611 = vsel %vm7533, %v5822, %v6482
  %v7614 = vsel %vm7533, %v5871, %v6484
  %v7617 = vsel %vm7533, %v5920, %v6486
  %v7620 = vsel %vm7533, %v5969, %v6488
  %v7623 = vsel %vm7533, %v6018, %v6490
  %v7625 = vsel %vm7558, %v7602, %v6892
  %v7627 = vsel %vm7558, %v7605, %v6894
  %v7629 = vsel %vm7558, %v7608, %v6896
  %v7631 = vsel %vm7558, %v7611, %v6898
  %v7633 = vsel %vm7558, %v7614, %v6900
  %v7635 = vsel %vm7558, %v7617, %v6902
  %v7637 = vsel %vm7558, %v7620, %v6904
  %v7639 = vsel %vm7558, %v7623, %v6906
  %v7641 = vsel %vm7575, %v7625, %v7300
  %v7644 = vsel %vm7575, %v7627, %v7302
  %v7647 = vsel %vm7575, %v7629, %v7304
  %v7650 = vsel %vm7575, %v7631, %v7306
  %v7653 = vsel %vm7575, %v7633, %v7308
  %v7656 = vsel %vm7575, %v7635, %v7310
  %v7659 = vsel %vm7575, %v7637, %v7312
  %v7662 = vsel %vm7575, %v7639, %v7314
  %v7666 = vsel %vm7533, %v7370, %v7429
  %v7668 = vsel %vm7558, %v7666, %v7481
  %v7670 = vsel %vm7575, %v7668, %v7532
  %v7672 = vld [vmem:[%s4] sm:$0xf]
  %v7673 = vld [vmem:[%s4 + $0x4] sm:$0xf]
  %v7674 = vld [vmem:[%s4 + $0x8] sm:$0xf]
  %v7675 = vld [vmem:[%s4 + $0xc] sm:$0xf]
  %v7676 = vld [vmem:[%s4 + $0x10] sm:$0xf]
  %v7677 = vld [vmem:[%s4 + $0x14] sm:$0xf]
  %v7678 = vld [vmem:[%s4 + $0x18] sm:$0xf]
  %v7679 = vld [vmem:[%s4 + $0x1c] sm:$0xf]
  %v7680 = vld [vmem:[%s4 + $0x20] sm:$0xf]
  %v7681 = vld [vmem:[%s4 + $0x24] sm:$0xf]
  %v7682 = vld [vmem:[%s4 + $0x28] sm:$0xf]
  %v7683 = vld [vmem:[%s4 + $0x2c] sm:$0xf]
  %v7684 = vld [vmem:[%s4 + $0x30] sm:$0xf]
  %v7685 = vld [vmem:[%s4 + $0x34] sm:$0xf]
  %v7686 = vld [vmem:[%s4 + $0x38] sm:$0xf]
  %v7687 = vld [vmem:[%s4 + $0x3c] sm:$0xf]
  %v7688 = vld [vmem:[%s4 + $0x40] sm:$0xf]
  %v7689 = vld [vmem:[%s4 + $0x44] sm:$0xf]
  %v7690 = vld [vmem:[%s4 + $0x48] sm:$0xf]
  %v7691 = vld [vmem:[%s4 + $0x4c] sm:$0xf]
  %v7692 = vld [vmem:[%s4 + $0x50] sm:$0xf]
  %v7693 = vld [vmem:[%s4 + $0x54] sm:$0xf]
  %v7694 = vld [vmem:[%s4 + $0x58] sm:$0xf]
  %v7695 = vld [vmem:[%s4 + $0x5c] sm:$0xf]
  %v7696 = vld [vmem:[%s4 + $0x60] sm:$0xf]
  %v7697 = vld [vmem:[%s4 + $0x64] sm:$0xf]
  %v7698 = vld [vmem:[%s4 + $0x68] sm:$0xf]
  %v7699 = vld [vmem:[%s4 + $0x6c] sm:$0xf]
  %v7700 = vld [vmem:[%s4 + $0x70] sm:$0xf]
  %v7701 = vld [vmem:[%s4 + $0x74] sm:$0xf]
  %v7702 = vld [vmem:[%s4 + $0x78] sm:$0xf]
  %v7703 = vld [vmem:[%s4 + $0x7c] sm:$0xf]
  %v7704 = vld [vmem:[%s4 + $0x80] sm:$0xf]
  %v7705 = vld [vmem:[%s4 + $0x84] sm:$0xf]
  %v7706 = vld [vmem:[%s4 + $0x88] sm:$0xf]
  %v7707 = vld [vmem:[%s4 + $0x8c] sm:$0xf]
  %v7708 = vld [vmem:[%s4 + $0x90] sm:$0xf]
  %v7709 = vld [vmem:[%s4 + $0x94] sm:$0xf]
  %v7710 = vld [vmem:[%s4 + $0x98] sm:$0xf]
  %v7711 = vld [vmem:[%s4 + $0x9c] sm:$0xf]
  %v7712 = vld [vmem:[%s4 + $0xa0] sm:$0xf]
  %v7713 = vld [vmem:[%s4 + $0xa4] sm:$0xf]
  %v7714 = vld [vmem:[%s4 + $0xa8] sm:$0xf]
  %v7715 = vld [vmem:[%s4 + $0xac] sm:$0xf]
  %v7716 = vld [vmem:[%s4 + $0xb0] sm:$0xf]
  %v7717 = vld [vmem:[%s4 + $0xb4] sm:$0xf]
  %v7718 = vld [vmem:[%s4 + $0xb8] sm:$0xf]
  %v7719 = vld [vmem:[%s4 + $0xbc] sm:$0xf]
  %v7720 = vld [vmem:[%s4 + $0xc0] sm:$0xf]
  %v7721 = vld [vmem:[%s4 + $0xc4] sm:$0xf]
  %v7722 = vld [vmem:[%s4 + $0xc8] sm:$0xf]
  %v7723 = vld [vmem:[%s4 + $0xcc] sm:$0xf]
  %v7724 = vld [vmem:[%s4 + $0xd0] sm:$0xf]
  %v7725 = vld [vmem:[%s4 + $0xd4] sm:$0xf]
  %v7726 = vld [vmem:[%s4 + $0xd8] sm:$0xf]
  %v7727 = vld [vmem:[%s4 + $0xdc] sm:$0xf]
  %v7728 = vld [vmem:[%s4 + $0xe0] sm:$0xf]
  %v7729 = vld [vmem:[%s4 + $0xe4] sm:$0xf]
  %v7730 = vld [vmem:[%s4 + $0xe8] sm:$0xf]
  %v7731 = vld [vmem:[%s4 + $0xec] sm:$0xf]
  %v7732 = vld [vmem:[%s4 + $0xf0] sm:$0xf]
  %v7733 = vld [vmem:[%s4 + $0xf4] sm:$0xf]
  %v7734 = vld [vmem:[%s4 + $0xf8] sm:$0xf]
  %v7735 = vld [vmem:[%s4 + $0xfc] sm:$0xf]
  %v7736 = vld [vmem:[%s5] sm:$0x1]
  %v7738 = vlaneseq
  %v7739 = vshrl.u32 %v7738, 7
  %v7740 = vsub.s32 0, %v7739
  %v7741 = vrot.slane %v7736, %v7740
  %v7807 = vunpack.c.l.b16 %v7672
  %v7808 = vunpack.c.l.b16 %v7673
  %v7809 = vunpack.c.l.b16 %v7674
  %v7810 = vunpack.c.l.b16 %v7675
  %v7811 = vunpack.c.l.b16 %v7676
  %v7812 = vunpack.c.l.b16 %v7677
  %v7813 = vunpack.c.l.b16 %v7678
  %v7814 = vunpack.c.l.b16 %v7679
  %v7815 = vunpack.c.l.b16 %v7680
  %v7816 = vunpack.c.l.b16 %v7681
  %v7817 = vunpack.c.l.b16 %v7682
  %v7818 = vunpack.c.l.b16 %v7683
  %v7819 = vunpack.c.l.b16 %v7684
  %v7820 = vunpack.c.l.b16 %v7685
  %v7821 = vunpack.c.l.b16 %v7686
  %v7822 = vunpack.c.l.b16 %v7687
  %v7823 = vunpack.c.l.b16 %v7688
  %v7824 = vunpack.c.l.b16 %v7689
  %v7825 = vunpack.c.l.b16 %v7690
  %v7826 = vunpack.c.l.b16 %v7691
  %v7827 = vunpack.c.l.b16 %v7692
  %v7828 = vunpack.c.l.b16 %v7693
  %v7829 = vunpack.c.l.b16 %v7694
  %v7830 = vunpack.c.l.b16 %v7695
  %v7831 = vunpack.c.l.b16 %v7696
  %v7832 = vunpack.c.l.b16 %v7697
  %v7833 = vunpack.c.l.b16 %v7698
  %v7834 = vunpack.c.l.b16 %v7699
  %v7835 = vunpack.c.l.b16 %v7700
  %v7836 = vunpack.c.l.b16 %v7701
  %v7837 = vunpack.c.l.b16 %v7702
  %v7838 = vunpack.c.l.b16 %v7703
  %v7839 = vunpack.c.l.b16 %v7704
  %v7840 = vunpack.c.l.b16 %v7705
  %v7841 = vunpack.c.l.b16 %v7706
  %v7842 = vunpack.c.l.b16 %v7707
  %v7843 = vunpack.c.l.b16 %v7708
  %v7844 = vunpack.c.l.b16 %v7709
  %v7845 = vunpack.c.l.b16 %v7710
  %v7846 = vunpack.c.l.b16 %v7711
  %v7847 = vunpack.c.l.b16 %v7712
  %v7848 = vunpack.c.l.b16 %v7713
  %v7849 = vunpack.c.l.b16 %v7714
  %v7850 = vunpack.c.l.b16 %v7715
  %v7851 = vunpack.c.l.b16 %v7716
  %v7852 = vunpack.c.l.b16 %v7717
  %v7853 = vunpack.c.l.b16 %v7718
  %v7854 = vunpack.c.l.b16 %v7719
  %v7855 = vunpack.c.l.b16 %v7720
  %v7856 = vunpack.c.l.b16 %v7721
  %v7857 = vunpack.c.l.b16 %v7722
  %v7858 = vunpack.c.l.b16 %v7723
  %v7859 = vunpack.c.l.b16 %v7724
  %v7860 = vunpack.c.l.b16 %v7725
  %v7861 = vunpack.c.l.b16 %v7726
  %v7862 = vunpack.c.l.b16 %v7727
  %v7863 = vunpack.c.l.b16 %v7728
  %v7864 = vunpack.c.l.b16 %v7729
  %v7865 = vunpack.c.l.b16 %v7730
  %v7866 = vunpack.c.l.b16 %v7731
  %v7867 = vunpack.c.l.b16 %v7732
  %v7868 = vunpack.c.l.b16 %v7733
  %v7869 = vunpack.c.l.b16 %v7734
  %v7870 = vunpack.c.l.b16 %v7735
  %v7871 = vpack.c.b16 %v7808, %v7807
  %v7872 = vpack.c.b16 %v7810, %v7809
  %v7873 = vpack.c.b16 %v7812, %v7811
  %v7874 = vpack.c.b16 %v7814, %v7813
  %v7875 = vpack.c.b16 %v7816, %v7815
  %v7876 = vpack.c.b16 %v7818, %v7817
  %v7877 = vpack.c.b16 %v7820, %v7819
  %v7878 = vpack.c.b16 %v7822, %v7821
  %v7879 = vpack.c.b16 %v7824, %v7823
  %v7880 = vpack.c.b16 %v7826, %v7825
  %v7881 = vpack.c.b16 %v7828, %v7827
  %v7882 = vpack.c.b16 %v7830, %v7829
  %v7883 = vpack.c.b16 %v7832, %v7831
  %v7884 = vpack.c.b16 %v7834, %v7833
  %v7885 = vpack.c.b16 %v7836, %v7835
  %v7886 = vpack.c.b16 %v7838, %v7837
  %v7887 = vpack.c.b16 %v7840, %v7839
  %v7888 = vpack.c.b16 %v7842, %v7841
  %v7889 = vpack.c.b16 %v7844, %v7843
  %v7890 = vpack.c.b16 %v7846, %v7845
  %v7891 = vpack.c.b16 %v7848, %v7847
  %v7892 = vpack.c.b16 %v7850, %v7849
  %v7893 = vpack.c.b16 %v7852, %v7851
  %v7894 = vpack.c.b16 %v7854, %v7853
  %v7895 = vpack.c.b16 %v7856, %v7855
  %v7896 = vpack.c.b16 %v7858, %v7857
  %v7897 = vpack.c.b16 %v7860, %v7859
  %v7898 = vpack.c.b16 %v7862, %v7861
  %v7899 = vpack.c.b16 %v7864, %v7863
  %v7900 = vpack.c.b16 %v7866, %v7865
  %v7901 = vpack.c.b16 %v7868, %v7867
  %v7902 = vpack.c.b16 %v7870, %v7869
  %7935 = vmatprep.subr.bf16.mxu0 0
  %7936 = vmatpush1.bf16.msra.mxu0 %v7878
  %7937 = vmatprep.subr.bf16.mxu0 0
  %7938 = vmatpush1.bf16.msra.mxu0 %v7877
  %7939 = vmatprep.subr.bf16.mxu0 0
  %7940 = vmatpush1.bf16.msra.mxu0 %v7876
  %7941 = vmatprep.subr.bf16.mxu0 0
  %7942 = vmatpush1.bf16.msra.mxu0 %v7875
  %7943 = vmatprep.subr.bf16.mxu0 0
  %7944 = vmatpush1.bf16.msra.mxu0 %v7874
  %7945 = vmatprep.subr.bf16.mxu0 0
  %7946 = vmatpush1.bf16.msra.mxu0 %v7873
  %7947 = vmatprep.subr.bf16.mxu0 0
  %7948 = vmatpush1.bf16.msra.mxu0 %v7872
  %7949 = vmatprep.subr.bf16.mxu0 0
  %7950 = vmatpush1.bf16.msra.mxu0 %v7871
  %7951 = vmatprep.subr.bf16.mxu0 0
  %7952 = vmatpush2.bf16.msra.mxu0 %v7886
  %7953 = vmatprep.subr.bf16.mxu0 0
  %7954 = vmatpush2.bf16.msra.mxu0 %v7885
  %7955 = vmatprep.subr.bf16.mxu0 0
  %7956 = vmatpush2.bf16.msra.mxu0 %v7884
  %7957 = vmatprep.subr.bf16.mxu0 0
  %7958 = vmatpush2.bf16.msra.mxu0 %v7883
  %7959 = vmatprep.subr.bf16.mxu0 0
  %7960 = vmatpush2.bf16.msra.mxu0 %v7882
  %7961 = vmatprep.subr.bf16.mxu0 0
  %7962 = vmatpush2.bf16.msra.mxu0 %v7881
  %7963 = vmatprep.subr.bf16.mxu0 0
  %7964 = vmatpush2.bf16.msra.mxu0 %v7880
  %7965 = vmatprep.subr.bf16.mxu0 0
  %7966 = vmatpush2.bf16.msra.mxu0 %v7879
  %7967 = vmatprep.mubr.bf16.mxu0 %v7641
  %7968 = vmatmul.mubr.bf16.gmra.mxu0 %v7577
  %v7969 = vpop.f32.mrf.mxu0
  %v7970 = vadd.f32 %v7741, %v7969
  %v7971 = vpop.f32.mrf.mxu0
  %v7972 = vpop.f32.mrf.mxu0
  %v7973 = vadd.f32 %v7741, %v7972
  %v7974 = vpop.f32.mrf.mxu0
  %7975 = vmatprep.mubr.bf16.mxu0 %v7644
  %7976 = vmatmul.mubr.bf16.gmra.mxu0 %v7580
  %v7977 = vpop.f32.mrf.mxu0
  %v7978 = vadd.f32 %v7741, %v7977
  %v7979 = vpop.f32.mrf.mxu0
  %v7980 = vpop.f32.mrf.mxu0
  %v7981 = vadd.f32 %v7741, %v7980
  %v7982 = vpop.f32.mrf.mxu0
  %7983 = vmatprep.mubr.bf16.mxu0 %v7647
  %7984 = vmatmul.mubr.bf16.gmra.mxu0 %v7583
  %v7985 = vpop.f32.mrf.mxu0
  %v7986 = vadd.f32 %v7741, %v7985
  %v7987 = vpop.f32.mrf.mxu0
  %v7988 = vpop.f32.mrf.mxu0
  %v7989 = vadd.f32 %v7741, %v7988
  %v7990 = vpop.f32.mrf.mxu0
  %7991 = vmatprep.mubr.bf16.mxu0 %v7650
  %7992 = vmatmul.mubr.bf16.gmra.mxu0 %v7586
  %v7993 = vpop.f32.mrf.mxu0
  %v7994 = vadd.f32 %v7741, %v7993
  %v7995 = vpop.f32.mrf.mxu0
  %v7996 = vpop.f32.mrf.mxu0
  %v7997 = vadd.f32 %v7741, %v7996
  %v7998 = vpop.f32.mrf.mxu0
  %7999 = vmatprep.mubr.bf16.mxu0 %v7653
  %8000 = vmatmul.mubr.bf16.gmra.mxu0 %v7589
  %v8001 = vpop.f32.mrf.mxu0
  %v8002 = vadd.f32 %v7741, %v8001
  %v8003 = vpop.f32.mrf.mxu0
  %v8004 = vpop.f32.mrf.mxu0
  %v8005 = vadd.f32 %v7741, %v8004
  %v8006 = vpop.f32.mrf.mxu0
  %8007 = vmatprep.mubr.bf16.mxu0 %v7656
  %8008 = vmatmul.mubr.bf16.gmra.mxu0 %v7592
  %v8009 = vpop.f32.mrf.mxu0
  %v8010 = vadd.f32 %v7741, %v8009
  %v8011 = vpop.f32.mrf.mxu0
  %v8012 = vpop.f32.mrf.mxu0
  %v8013 = vadd.f32 %v7741, %v8012
  %v8014 = vpop.f32.mrf.mxu0
  %8015 = vmatprep.mubr.bf16.mxu0 %v7659
  %8016 = vmatmul.mubr.bf16.gmra.mxu0 %v7595
  %v8017 = vpop.f32.mrf.mxu0
  %v8018 = vadd.f32 %v7741, %v8017
  %v8019 = vpop.f32.mrf.mxu0
  %v8020 = vpop.f32.mrf.mxu0
  %v8021 = vadd.f32 %v7741, %v8020
  %v8022 = vpop.f32.mrf.mxu0
  %8023 = vmatprep.mubr.bf16.mxu0 %v7662
  %8024 = vmatmul.mubr.bf16.gmra.mxu0 %v7598
  %v8025 = vpop.f32.mrf.mxu0
  %v8026 = vadd.f32 %v7741, %v8025
  %v8027 = vpop.f32.mrf.mxu0
  %v8028 = vpop.f32.mrf.mxu0
  %v8029 = vadd.f32 %v7741, %v8028
  %v8030 = vpop.f32.mrf.mxu0
  %8031 = vdwg.mxu0
  %8032 = vmatprep.subr.bf16.mxu0 0
  %8033 = vmatpush1.bf16.msra.mxu0 %v7894
  %8034 = vmatprep.subr.bf16.mxu0 0
  %8035 = vmatpush1.bf16.msra.mxu0 %v7893
  %8036 = vmatprep.subr.bf16.mxu0 0
  %8037 = vmatpush1.bf16.msra.mxu0 %v7892
  %8038 = vmatprep.subr.bf16.mxu0 0
  %8039 = vmatpush1.bf16.msra.mxu0 %v7891
  %8040 = vmatprep.subr.bf16.mxu0 0
  %8041 = vmatpush1.bf16.msra.mxu0 %v7890
  %8042 = vmatprep.subr.bf16.mxu0 0
  %8043 = vmatpush1.bf16.msra.mxu0 %v7889
  %8044 = vmatprep.subr.bf16.mxu0 0
  %8045 = vmatpush1.bf16.msra.mxu0 %v7888
  %8046 = vmatprep.subr.bf16.mxu0 0
  %8047 = vmatpush1.bf16.msra.mxu0 %v7887
  %8048 = vmatprep.subr.bf16.mxu0 0
  %8049 = vmatpush2.bf16.msra.mxu0 %v7902
  %8050 = vmatprep.subr.bf16.mxu0 0
  %8051 = vmatpush2.bf16.msra.mxu0 %v7901
  %8052 = vmatprep.subr.bf16.mxu0 0
  %8053 = vmatpush2.bf16.msra.mxu0 %v7900
  %8054 = vmatprep.subr.bf16.mxu0 0
  %8055 = vmatpush2.bf16.msra.mxu0 %v7899
  %8056 = vmatprep.subr.bf16.mxu0 0
  %8057 = vmatpush2.bf16.msra.mxu0 %v7898
  %8058 = vmatprep.subr.bf16.mxu0 0
  %8059 = vmatpush2.bf16.msra.mxu0 %v7897
  %8060 = vmatprep.subr.bf16.mxu0 0
  %8061 = vmatpush2.bf16.msra.mxu0 %v7896
  %8062 = vmatprep.subr.bf16.mxu0 0
  %8063 = vmatpush2.bf16.msra.mxu0 %v7895
  %8064 = vmatprep.mubr.bf16.mxu0 %v7644
  %8065 = vmatmul.mubr.bf16.gmra.mxu0 %v7580
  %v8066 = vpop.f32.mrf.mxu0
  %v8067 = vadd.f32 %v7970, %v8066
  %v8068 = vpop.f32.mrf.mxu0
  %v8069 = vpop.f32.mrf.mxu0
  %v8070 = vadd.f32 %v7973, %v8069
  %v8071 = vpop.f32.mrf.mxu0
  %8072 = vmatprep.mubr.bf16.mxu0 %v7647
  %8073 = vmatmul.mubr.bf16.gmra.mxu0 %v7583
  %v8074 = vpop.f32.mrf.mxu0
  %v8075 = vadd.f32 %v7978, %v8074
  %v8076 = vpop.f32.mrf.mxu0
  %v8077 = vpop.f32.mrf.mxu0
  %v8078 = vadd.f32 %v7981, %v8077
  %v8079 = vpop.f32.mrf.mxu0
  %8080 = vmatprep.mubr.bf16.mxu0 %v7650
  %8081 = vmatmul.mubr.bf16.gmra.mxu0 %v7586
  %v8082 = vpop.f32.mrf.mxu0
  %v8083 = vadd.f32 %v7986, %v8082
  %v8084 = vpop.f32.mrf.mxu0
  %v8085 = vpop.f32.mrf.mxu0
  %v8086 = vadd.f32 %v7989, %v8085
  %v8087 = vpop.f32.mrf.mxu0
  %8088 = vmatprep.mubr.bf16.mxu0 %v7653
  %8089 = vmatmul.mubr.bf16.gmra.mxu0 %v7589
  %v8090 = vpop.f32.mrf.mxu0
  %v8091 = vadd.f32 %v7994, %v8090
  %v8092 = vpop.f32.mrf.mxu0
  %v8093 = vpop.f32.mrf.mxu0
  %v8094 = vadd.f32 %v7997, %v8093
  %v8095 = vpop.f32.mrf.mxu0
  %8096 = vmatprep.mubr.bf16.mxu0 %v7656
  %8097 = vmatmul.mubr.bf16.gmra.mxu0 %v7592
  %v8098 = vpop.f32.mrf.mxu0
  %v8099 = vadd.f32 %v8002, %v8098
  %v8100 = vpop.f32.mrf.mxu0
  %v8101 = vpop.f32.mrf.mxu0
  %v8102 = vadd.f32 %v8005, %v8101
  %v8103 = vpop.f32.mrf.mxu0
  %8104 = vmatprep.mubr.bf16.mxu0 %v7659
  %8105 = vmatmul.mubr.bf16.gmra.mxu0 %v7595
  %v8106 = vpop.f32.mrf.mxu0
  %v8107 = vadd.f32 %v8010, %v8106
  %v8108 = vpop.f32.mrf.mxu0
  %v8109 = vpop.f32.mrf.mxu0
  %v8110 = vadd.f32 %v8013, %v8109
  %v8111 = vpop.f32.mrf.mxu0
  %8112 = vmatprep.mubr.bf16.mxu0 %v7662
  %8113 = vmatmul.mubr.bf16.gmra.mxu0 %v7598
  %v8114 = vpop.f32.mrf.mxu0
  %v8115 = vadd.f32 %v8018, %v8114
  %v8116 = vpop.f32.mrf.mxu0
  %v8117 = vpop.f32.mrf.mxu0
  %v8118 = vadd.f32 %v8021, %v8117
  %v8119 = vpop.f32.mrf.mxu0
  %8120 = vmatprep.mubr.bf16.mxu0 %v7577
  %8121 = vmatmul.mubr.bf16.gmra.mxu0 %v7670
  %v8122 = vpop.f32.mrf.mxu0
  %v8123 = vadd.f32 %v8026, %v8122
  %v8124 = vpop.f32.mrf.mxu0
  %v8125 = vpop.f32.mrf.mxu0
  %v8126 = vadd.f32 %v8029, %v8125
  %v8127 = vpop.f32.mrf.mxu0
  %8128 = vdwg.mxu0
  %vm8129 = vcmp.ge.f32.partialorder %v8067, 0.0
  %vm8130 = vcmp.ge.f32.partialorder %v8070, 0.0
  %vm8131 = vcmp.ge.f32.partialorder %v8075, 0.0
  %vm8132 = vcmp.ge.f32.partialorder %v8078, 0.0
  %vm8133 = vcmp.ge.f32.partialorder %v8083, 0.0
  %vm8134 = vcmp.ge.f32.partialorder %v8086, 0.0
  %vm8135 = vcmp.ge.f32.partialorder %v8091, 0.0
  %vm8136 = vcmp.ge.f32.partialorder %v8094, 0.0
  %vm8137 = vcmp.ge.f32.partialorder %v8099, 0.0
  %vm8138 = vcmp.ge.f32.partialorder %v8102, 0.0
  %vm8139 = vcmp.ge.f32.partialorder %v8107, 0.0
  %vm8140 = vcmp.ge.f32.partialorder %v8110, 0.0
  %vm8141 = vcmp.ge.f32.partialorder %v8115, 0.0
  %vm8142 = vcmp.ge.f32.partialorder %v8118, 0.0
  %vm8143 = vcmp.ge.f32.partialorder %v8123, 0.0
  %vm8144 = vcmp.ge.f32.partialorder %v8126, 0.0
  %v8145 = vmul.f32 %v8067, 0.2
  %v8146 = vmul.f32 %v8070, 0.2
  %v8147 = vmul.f32 %v8075, 0.2
  %v8148 = vmul.f32 %v8078, 0.2
  %v8149 = vmul.f32 %v8083, 0.2
  %v8150 = vmul.f32 %v8086, 0.2
  %v8151 = vmul.f32 %v8091, 0.2
  %v8152 = vmul.f32 %v8094, 0.2
  %v8153 = vmul.f32 %v8099, 0.2
  %v8154 = vmul.f32 %v8102, 0.2
  %v8155 = vmul.f32 %v8107, 0.2
  %v8156 = vmul.f32 %v8110, 0.2
  %v8157 = vmul.f32 %v8115, 0.2
  %v8158 = vmul.f32 %v8118, 0.2
  %v8159 = vmul.f32 %v8123, 0.2
  %v8160 = vmul.f32 %v8126, 0.2
  %v8161 = vsel %vm8129, %v8067, %v8145
  %v8162 = vsel %vm8130, %v8070, %v8146
  %v8163 = vsel %vm8131, %v8075, %v8147
  %v8164 = vsel %vm8132, %v8078, %v8148
  %v8165 = vsel %vm8133, %v8083, %v8149
  %v8166 = vsel %vm8134, %v8086, %v8150
  %v8167 = vsel %vm8135, %v8091, %v8151
  %v8168 = vsel %vm8136, %v8094, %v8152
  %v8169 = vsel %vm8137, %v8099, %v8153
  %v8170 = vsel %vm8138, %v8102, %v8154
  %v8171 = vsel %vm8139, %v8107, %v8155
  %v8172 = vsel %vm8140, %v8110, %v8156
  %v8173 = vsel %vm8141, %v8115, %v8157
  %v8174 = vsel %vm8142, %v8118, %v8158
  %v8175 = vsel %vm8143, %v8123, %v8159
  %v8176 = vsel %vm8144, %v8126, %v8160
  %v8193 = vcombine.high %v8161, %v8161
  %v8195 = vunpack.c.l.s4 1983009808
  %v8196 = vunpack.c.0.s8 %v8195
  %v8197 = vlaneseq
  %v8198 = vshrl.u32 %v8197, 7
  %v8199 = vsub.s32 %v8196, %v8198
  %v8200 = vrot.slane %v8161, %v8199
  %v8202 = vunpack.c.l.s4 1983009808
  %v8203 = vunpack.c.0.s8 %v8202
  %v8204 = vlaneseq
  %v8205 = vshrl.u32 %v8204, 7
  %v8206 = vsub.s32 %v8203, %v8205
  %v8207 = vrot.slane %v8193, %v8206
  %v8208 = vcombine.high %v8200, %v8200
  %v8209 = vcombine.high %v8207, %v8207
  %v8210 = vcombine.high %v8162, %v8162
  %v8212 = vunpack.c.l.s4 1983009808
  %v8213 = vunpack.c.0.s8 %v8212
  %v8214 = vlaneseq
  %v8215 = vshrl.u32 %v8214, 7
  %v8216 = vsub.s32 %v8213, %v8215
  %v8217 = vrot.slane %v8162, %v8216
  %v8219 = vunpack.c.l.s4 1983009808
  %v8220 = vunpack.c.0.s8 %v8219
  %v8221 = vlaneseq
  %v8222 = vshrl.u32 %v8221, 7
  %v8223 = vsub.s32 %v8220, %v8222
  %v8224 = vrot.slane %v8210, %v8223
  %v8225 = vcombine.high %v8217, %v8217
  %v8226 = vcombine.high %v8224, %v8224
  %v8227 = vcombine.high %v8163, %v8163
  %v8229 = vunpack.c.l.s4 1983009808
  %v8230 = vunpack.c.0.s8 %v8229
  %v8231 = vlaneseq
  %v8232 = vshrl.u32 %v8231, 7
  %v8233 = vsub.s32 %v8230, %v8232
  %v8234 = vrot.slane %v8163, %v8233
  %v8236 = vunpack.c.l.s4 1983009808
  %v8237 = vunpack.c.0.s8 %v8236
  %v8238 = vlaneseq
  %v8239 = vshrl.u32 %v8238, 7
  %v8240 = vsub.s32 %v8237, %v8239
  %v8241 = vrot.slane %v8227, %v8240
  %v8242 = vcombine.high %v8234, %v8234
  %v8243 = vcombine.high %v8241, %v8241
  %v8244 = vcombine.high %v8164, %v8164
  %v8246 = vunpack.c.l.s4 1983009808
  %v8247 = vunpack.c.0.s8 %v8246
  %v8248 = vlaneseq
  %v8249 = vshrl.u32 %v8248, 7
  %v8250 = vsub.s32 %v8247, %v8249
  %v8251 = vrot.slane %v8164, %v8250
  %v8253 = vunpack.c.l.s4 1983009808
  %v8254 = vunpack.c.0.s8 %v8253
  %v8255 = vlaneseq
  %v8256 = vshrl.u32 %v8255, 7
  %v8257 = vsub.s32 %v8254, %v8256
  %v8258 = vrot.slane %v8244, %v8257
  %v8259 = vcombine.high %v8251, %v8251
  %v8260 = vcombine.high %v8258, %v8258
  %v8261 = vcombine.high %v8165, %v8165
  %v8263 = vunpack.c.l.s4 1983009808
  %v8264 = vunpack.c.0.s8 %v8263
  %v8265 = vlaneseq
  %v8266 = vshrl.u32 %v8265, 7
  %v8267 = vsub.s32 %v8264, %v8266
  %v8268 = vrot.slane %v8165, %v8267
  %v8270 = vunpack.c.l.s4 1983009808
  %v8271 = vunpack.c.0.s8 %v8270
  %v8272 = vlaneseq
  %v8273 = vshrl.u32 %v8272, 7
  %v8274 = vsub.s32 %v8271, %v8273
  %v8275 = vrot.slane %v8261, %v8274
  %v8276 = vcombine.high %v8268, %v8268
  %v8277 = vcombine.high %v8275, %v8275
  %v8278 = vcombine.high %v8166, %v8166
  %v8280 = vunpack.c.l.s4 1983009808
  %v8281 = vunpack.c.0.s8 %v8280
  %v8282 = vlaneseq
  %v8283 = vshrl.u32 %v8282, 7
  %v8284 = vsub.s32 %v8281, %v8283
  %v8285 = vrot.slane %v8166, %v8284
  %v8287 = vunpack.c.l.s4 1983009808
  %v8288 = vunpack.c.0.s8 %v8287
  %v8289 = vlaneseq
  %v8290 = vshrl.u32 %v8289, 7
  %v8291 = vsub.s32 %v8288, %v8290
  %v8292 = vrot.slane %v8278, %v8291
  %v8293 = vcombine.high %v8285, %v8285
  %v8294 = vcombine.high %v8292, %v8292
  %v8295 = vcombine.high %v8167, %v8167
  %v8297 = vunpack.c.l.s4 1983009808
  %v8298 = vunpack.c.0.s8 %v8297
  %v8299 = vlaneseq
  %v8300 = vshrl.u32 %v8299, 7
  %v8301 = vsub.s32 %v8298, %v8300
  %v8302 = vrot.slane %v8167, %v8301
  %v8304 = vunpack.c.l.s4 1983009808
  %v8305 = vunpack.c.0.s8 %v8304
  %v8306 = vlaneseq
  %v8307 = vshrl.u32 %v8306, 7
  %v8308 = vsub.s32 %v8305, %v8307
  %v8309 = vrot.slane %v8295, %v8308
  %v8310 = vcombine.high %v8302, %v8302
  %v8311 = vcombine.high %v8309, %v8309
  %v8312 = vcombine.high %v8168, %v8168
  %v8314 = vunpack.c.l.s4 1983009808
  %v8315 = vunpack.c.0.s8 %v8314
  %v8316 = vlaneseq
  %v8317 = vshrl.u32 %v8316, 7
  %v8318 = vsub.s32 %v8315, %v8317
  %v8319 = vrot.slane %v8168, %v8318
  %v8321 = vunpack.c.l.s4 1983009808
  %v8322 = vunpack.c.0.s8 %v8321
  %v8323 = vlaneseq
  %v8324 = vshrl.u32 %v8323, 7
  %v8325 = vsub.s32 %v8322, %v8324
  %v8326 = vrot.slane %v8312, %v8325
  %v8327 = vcombine.high %v8319, %v8319
  %v8328 = vcombine.high %v8326, %v8326
  %v8329 = vcombine.high %v8169, %v8169
  %v8331 = vunpack.c.l.s4 1983009808
  %v8332 = vunpack.c.0.s8 %v8331
  %v8333 = vlaneseq
  %v8334 = vshrl.u32 %v8333, 7
  %v8335 = vsub.s32 %v8332, %v8334
  %v8336 = vrot.slane %v8169, %v8335
  %v8338 = vunpack.c.l.s4 1983009808
  %v8339 = vunpack.c.0.s8 %v8338
  %v8340 = vlaneseq
  %v8341 = vshrl.u32 %v8340, 7
  %v8342 = vsub.s32 %v8339, %v8341
  %v8343 = vrot.slane %v8329, %v8342
  %v8344 = vcombine.high %v8336, %v8336
  %v8345 = vcombine.high %v8343, %v8343
  %v8346 = vcombine.high %v8170, %v8170
  %v8348 = vunpack.c.l.s4 1983009808
  %v8349 = vunpack.c.0.s8 %v8348
  %v8350 = vlaneseq
  %v8351 = vshrl.u32 %v8350, 7
  %v8352 = vsub.s32 %v8349, %v8351
  %v8353 = vrot.slane %v8170, %v8352
  %v8355 = vunpack.c.l.s4 1983009808
  %v8356 = vunpack.c.0.s8 %v8355
  %v8357 = vlaneseq
  %v8358 = vshrl.u32 %v8357, 7
  %v8359 = vsub.s32 %v8356, %v8358
  %v8360 = vrot.slane %v8346, %v8359
  %v8361 = vcombine.high %v8353, %v8353
  %v8362 = vcombine.high %v8360, %v8360
  %v8363 = vcombine.high %v8171, %v8171
  %v8365 = vunpack.c.l.s4 1983009808
  %v8366 = vunpack.c.0.s8 %v8365
  %v8367 = vlaneseq
  %v8368 = vshrl.u32 %v8367, 7
  %v8369 = vsub.s32 %v8366, %v8368
  %v8370 = vrot.slane %v8171, %v8369
  %v8372 = vunpack.c.l.s4 1983009808
  %v8373 = vunpack.c.0.s8 %v8372
  %v8374 = vlaneseq
  %v8375 = vshrl.u32 %v8374, 7
  %v8376 = vsub.s32 %v8373, %v8375
  %v8377 = vrot.slane %v8363, %v8376
  %v8378 = vcombine.high %v8370, %v8370
  %v8379 = vcombine.high %v8377, %v8377
  %v8380 = vcombine.high %v8172, %v8172
  %v8382 = vunpack.c.l.s4 1983009808
  %v8383 = vunpack.c.0.s8 %v8382
  %v8384 = vlaneseq
  %v8385 = vshrl.u32 %v8384, 7
  %v8386 = vsub.s32 %v8383, %v8385
  %v8387 = vrot.slane %v8172, %v8386
  %v8389 = vunpack.c.l.s4 1983009808
  %v8390 = vunpack.c.0.s8 %v8389
  %v8391 = vlaneseq
  %v8392 = vshrl.u32 %v8391, 7
  %v8393 = vsub.s32 %v8390, %v8392
  %v8394 = vrot.slane %v8380, %v8393
  %v8395 = vcombine.high %v8387, %v8387
  %v8396 = vcombine.high %v8394, %v8394
  %v8397 = vcombine.high %v8173, %v8173
  %v8399 = vunpack.c.l.s4 1983009808
  %v8400 = vunpack.c.0.s8 %v8399
  %v8401 = vlaneseq
  %v8402 = vshrl.u32 %v8401, 7
  %v8403 = vsub.s32 %v8400, %v8402
  %v8404 = vrot.slane %v8173, %v8403
  %v8406 = vunpack.c.l.s4 1983009808
  %v8407 = vunpack.c.0.s8 %v8406
  %v8408 = vlaneseq
  %v8409 = vshrl.u32 %v8408, 7
  %v8410 = vsub.s32 %v8407, %v8409
  %v8411 = vrot.slane %v8397, %v8410
  %v8412 = vcombine.high %v8404, %v8404
  %v8413 = vcombine.high %v8411, %v8411
  %v8414 = vcombine.high %v8174, %v8174
  %v8416 = vunpack.c.l.s4 1983009808
  %v8417 = vunpack.c.0.s8 %v8416
  %v8418 = vlaneseq
  %v8419 = vshrl.u32 %v8418, 7
  %v8420 = vsub.s32 %v8417, %v8419
  %v8421 = vrot.slane %v8174, %v8420
  %v8423 = vunpack.c.l.s4 1983009808
  %v8424 = vunpack.c.0.s8 %v8423
  %v8425 = vlaneseq
  %v8426 = vshrl.u32 %v8425, 7
  %v8427 = vsub.s32 %v8424, %v8426
  %v8428 = vrot.slane %v8414, %v8427
  %v8429 = vcombine.high %v8421, %v8421
  %v8430 = vcombine.high %v8428, %v8428
  %v8431 = vcombine.high %v8175, %v8175
  %v8433 = vunpack.c.l.s4 1983009808
  %v8434 = vunpack.c.0.s8 %v8433
  %v8435 = vlaneseq
  %v8436 = vshrl.u32 %v8435, 7
  %v8437 = vsub.s32 %v8434, %v8436
  %v8438 = vrot.slane %v8175, %v8437
  %v8440 = vunpack.c.l.s4 1983009808
  %v8441 = vunpack.c.0.s8 %v8440
  %v8442 = vlaneseq
  %v8443 = vshrl.u32 %v8442, 7
  %v8444 = vsub.s32 %v8441, %v8443
  %v8445 = vrot.slane %v8431, %v8444
  %v8446 = vcombine.high %v8438, %v8438
  %v8447 = vcombine.high %v8445, %v8445
  %v8448 = vcombine.high %v8176, %v8176
  %v8450 = vunpack.c.l.s4 1983009808
  %v8451 = vunpack.c.0.s8 %v8450
  %v8452 = vlaneseq
  %v8453 = vshrl.u32 %v8452, 7
  %v8454 = vsub.s32 %v8451, %v8453
  %v8455 = vrot.slane %v8176, %v8454
  %v8457 = vunpack.c.l.s4 1983009808
  %v8458 = vunpack.c.0.s8 %v8457
  %v8459 = vlaneseq
  %v8460 = vshrl.u32 %v8459, 7
  %v8461 = vsub.s32 %v8458, %v8460
  %v8462 = vrot.slane %v8448, %v8461
  %v8463 = vcombine.high %v8455, %v8455
  %v8464 = vcombine.high %v8462, %v8462
  %v8529 = vpack.c.bf16 %v8200, %v8200
  %v8530 = vpack.c.bf16 %v8208, %v8208
  %v8531 = vpack.c.bf16 %v8207, %v8207
  %v8532 = vpack.c.bf16 %v8209, %v8209
  %v8533 = vpack.c.bf16 %v8217, %v8217
  %v8534 = vpack.c.bf16 %v8225, %v8225
  %v8535 = vpack.c.bf16 %v8224, %v8224
  %v8536 = vpack.c.bf16 %v8226, %v8226
  %v8537 = vpack.c.bf16 %v8234, %v8234
  %v8538 = vpack.c.bf16 %v8242, %v8242
  %v8539 = vpack.c.bf16 %v8241, %v8241
  %v8540 = vpack.c.bf16 %v8243, %v8243
  %v8541 = vpack.c.bf16 %v8251, %v8251
  %v8542 = vpack.c.bf16 %v8259, %v8259
  %v8543 = vpack.c.bf16 %v8258, %v8258
  %v8544 = vpack.c.bf16 %v8260, %v8260
  %v8545 = vpack.c.bf16 %v8268, %v8268
  %v8546 = vpack.c.bf16 %v8276, %v8276
  %v8547 = vpack.c.bf16 %v8275, %v8275
  %v8548 = vpack.c.bf16 %v8277, %v8277
  %v8549 = vpack.c.bf16 %v8285, %v8285
  %v8550 = vpack.c.bf16 %v8293, %v8293
  %v8551 = vpack.c.bf16 %v8292, %v8292
  %v8552 = vpack.c.bf16 %v8294, %v8294
  %v8553 = vpack.c.bf16 %v8302, %v8302
  %v8554 = vpack.c.bf16 %v8310, %v8310
  %v8555 = vpack.c.bf16 %v8309, %v8309
  %v8556 = vpack.c.bf16 %v8311, %v8311
  %v8557 = vpack.c.bf16 %v8319, %v8319
  %v8558 = vpack.c.bf16 %v8327, %v8327
  %v8559 = vpack.c.bf16 %v8326, %v8326
  %v8560 = vpack.c.bf16 %v8328, %v8328
  %v8561 = vpack.c.bf16 %v8336, %v8336
  %v8562 = vpack.c.bf16 %v8344, %v8344
  %v8563 = vpack.c.bf16 %v8343, %v8343
  %v8564 = vpack.c.bf16 %v8345, %v8345
  %v8565 = vpack.c.bf16 %v8353, %v8353
  %v8566 = vpack.c.bf16 %v8361, %v8361
  %v8567 = vpack.c.bf16 %v8360, %v8360
  %v8568 = vpack.c.bf16 %v8362, %v8362
  %v8569 = vpack.c.bf16 %v8370, %v8370
  %v8570 = vpack.c.bf16 %v8378, %v8378
  %v8571 = vpack.c.bf16 %v8377, %v8377
  %v8572 = vpack.c.bf16 %v8379, %v8379
  %v8573 = vpack.c.bf16 %v8387, %v8387
  %v8574 = vpack.c.bf16 %v8395, %v8395
  %v8575 = vpack.c.bf16 %v8394, %v8394
  %v8576 = vpack.c.bf16 %v8396, %v8396
  %v8577 = vpack.c.bf16 %v8404, %v8404
  %v8578 = vpack.c.bf16 %v8412, %v8412
  %v8579 = vpack.c.bf16 %v8411, %v8411
  %v8580 = vpack.c.bf16 %v8413, %v8413
  %v8581 = vpack.c.bf16 %v8421, %v8421
  %v8582 = vpack.c.bf16 %v8429, %v8429
  %v8583 = vpack.c.bf16 %v8428, %v8428
  %v8584 = vpack.c.bf16 %v8430, %v8430
  %v8585 = vpack.c.bf16 %v8438, %v8438
  %v8586 = vpack.c.bf16 %v8446, %v8446
  %v8587 = vpack.c.bf16 %v8445, %v8445
  %v8588 = vpack.c.bf16 %v8447, %v8447
  %v8589 = vpack.c.bf16 %v8455, %v8455
  %v8590 = vpack.c.bf16 %v8463, %v8463
  %v8591 = vpack.c.bf16 %v8462, %v8462
  %v8592 = vpack.c.bf16 %v8464, %v8464
  %v8602 = vcombine.low 0, %v8538
  %v8603 = vcombine.low %v8540, %v8542
  %v8605 = vunpack.c.l.s4 1966171168
  %v8606 = vunpack.c.0.s8 %v8605
  %v8607 = vlaneseq
  %v8608 = vshrl.u32 %v8607, 7
  %v8609 = vsub.s32 %v8606, %v8608
  %v8610 = vrot.slane %v8602, %v8609
  %v8612 = vunpack.c.l.s4 1966171168
  %v8613 = vunpack.c.0.s8 %v8612
  %v8614 = vlaneseq
  %v8615 = vshrl.u32 %v8614, 7
  %v8616 = vsub.s32 %v8613, %v8615
  %v8617 = vrot.slane %v8603, %v8616
  %v8618 = vcombine.low %v8610, %v8617
  %v8620 = vunpack.c.l.s4 1966171168
  %v8621 = vunpack.c.0.s8 %v8620
  %v8622 = vlaneseq
  %v8623 = vshrl.u32 %v8622, 7
  %v8624 = vsub.s32 %v8621, %v8623
  %v8625 = vrot.slane %v8618, %v8624
  %v8626 = vcombine.low %v4086, %v8625
  %v8627 = vcombine.low 0, %v8554
  %v8628 = vcombine.low %v8556, %v8558
  %v8629 = vcombine.low 0, %v8570
  %v8630 = vcombine.low %v8572, %v8574
  %v8632 = vunpack.c.l.s4 1966171168
  %v8633 = vunpack.c.0.s8 %v8632
  %v8634 = vlaneseq
  %v8635 = vshrl.u32 %v8634, 7
  %v8636 = vsub.s32 %v8633, %v8635
  %v8637 = vrot.slane %v8627, %v8636
  %v8639 = vunpack.c.l.s4 1966171168
  %v8640 = vunpack.c.0.s8 %v8639
  %v8641 = vlaneseq
  %v8642 = vshrl.u32 %v8641, 7
  %v8643 = vsub.s32 %v8640, %v8642
  %v8644 = vrot.slane %v8628, %v8643
  %v8646 = vunpack.c.l.s4 1966171168
  %v8647 = vunpack.c.0.s8 %v8646
  %v8648 = vlaneseq
  %v8649 = vshrl.u32 %v8648, 7
  %v8650 = vsub.s32 %v8647, %v8649
  %v8651 = vrot.slane %v8629, %v8650
  %v8653 = vunpack.c.l.s4 1966171168
  %v8654 = vunpack.c.0.s8 %v8653
  %v8655 = vlaneseq
  %v8656 = vshrl.u32 %v8655, 7
  %v8657 = vsub.s32 %v8654, %v8656
  %v8658 = vrot.slane %v8630, %v8657
  %v8659 = vcombine.low %v8637, %v8644
  %v8660 = vcombine.low %v8651, %v8658
  %v8662 = vunpack.c.l.s4 1966171168
  %v8663 = vunpack.c.0.s8 %v8662
  %v8664 = vlaneseq
  %v8665 = vshrl.u32 %v8664, 7
  %v8666 = vsub.s32 %v8663, %v8665
  %v8667 = vrot.slane %v8659, %v8666
  %v8669 = vunpack.c.l.s4 1966171168
  %v8670 = vunpack.c.0.s8 %v8669
  %v8671 = vlaneseq
  %v8672 = vshrl.u32 %v8671, 7
  %v8673 = vsub.s32 %v8670, %v8672
  %v8674 = vrot.slane %v8660, %v8673
  %v8675 = vcombine.low %v8667, %v8674
  %v8688 = vcombine.low %v8537, %v8539
  %v8689 = vcombine.low %v8541, %v8543
  %v8691 = vunpack.c.l.s4 1966171168
  %v8692 = vunpack.c.0.s8 %v8691
  %v8693 = vlaneseq
  %v8694 = vshrl.u32 %v8693, 7
  %v8695 = vsub.s32 %v8692, %v8694
  %v8696 = vrot.slane %v8688, %v8695
  %v8698 = vunpack.c.l.s4 1966171168
  %v8699 = vunpack.c.0.s8 %v8698
  %v8700 = vlaneseq
  %v8701 = vshrl.u32 %v8700, 7
  %v8702 = vsub.s32 %v8699, %v8701
  %v8703 = vrot.slane %v8689, %v8702
  %v8704 = vcombine.low %v8696, %v8703
  %v8706 = vunpack.c.l.s4 1966171168
  %v8707 = vunpack.c.0.s8 %v8706
  %v8708 = vlaneseq
  %v8709 = vshrl.u32 %v8708, 7
  %v8710 = vsub.s32 %v8707, %v8709
  %v8711 = vrot.slane %v8704, %v8710
  %v8712 = vcombine.low %v4086, %v8711
  %v8713 = vcombine.low %v8553, %v8555
  %v8714 = vcombine.low %v8557, %v8559
  %v8715 = vcombine.low %v8569, %v8571
  %v8716 = vcombine.low %v8573, %v8575
  %v8718 = vunpack.c.l.s4 1966171168
  %v8719 = vunpack.c.0.s8 %v8718
  %v8720 = vlaneseq
  %v8721 = vshrl.u32 %v8720, 7
  %v8722 = vsub.s32 %v8719, %v8721
  %v8723 = vrot.slane %v8713, %v8722
  %v8725 = vunpack.c.l.s4 1966171168
  %v8726 = vunpack.c.0.s8 %v8725
  %v8727 = vlaneseq
  %v8728 = vshrl.u32 %v8727, 7
  %v8729 = vsub.s32 %v8726, %v8728
  %v8730 = vrot.slane %v8714, %v8729
  %v8732 = vunpack.c.l.s4 1966171168
  %v8733 = vunpack.c.0.s8 %v8732
  %v8734 = vlaneseq
  %v8735 = vshrl.u32 %v8734, 7
  %v8736 = vsub.s32 %v8733, %v8735
  %v8737 = vrot.slane %v8715, %v8736
  %v8739 = vunpack.c.l.s4 1966171168
  %v8740 = vunpack.c.0.s8 %v8739
  %v8741 = vlaneseq
  %v8742 = vshrl.u32 %v8741, 7
  %v8743 = vsub.s32 %v8740, %v8742
  %v8744 = vrot.slane %v8716, %v8743
  %v8745 = vcombine.low %v8723, %v8730
  %v8746 = vcombine.low %v8737, %v8744
  %v8748 = vunpack.c.l.s4 1966171168
  %v8749 = vunpack.c.0.s8 %v8748
  %v8750 = vlaneseq
  %v8751 = vshrl.u32 %v8750, 7
  %v8752 = vsub.s32 %v8749, %v8751
  %v8753 = vrot.slane %v8745, %v8752
  %v8755 = vunpack.c.l.s4 1966171168
  %v8756 = vunpack.c.0.s8 %v8755
  %v8757 = vlaneseq
  %v8758 = vshrl.u32 %v8757, 7
  %v8759 = vsub.s32 %v8756, %v8758
  %v8760 = vrot.slane %v8746, %v8759
  %v8761 = vcombine.low %v8753, %v8760
  %8762 = vrot.lane.b32.xlu0 %v8712, 64
  %v8763 = vpop.permute.xlu0 %8762
  %8764 = vrot.lane.b32.xlu0 %v8761, 64
  %v8765 = vpop.permute.xlu0 %8764
  %v8769 = vcombine.low %v8538, %v8540
  %v8770 = vcombine.low %v8542, %v8544
  %v8772 = vunpack.c.l.s4 1966171168
  %v8773 = vunpack.c.0.s8 %v8772
  %v8774 = vlaneseq
  %v8775 = vshrl.u32 %v8774, 7
  %v8776 = vsub.s32 %v8773, %v8775
  %v8777 = vrot.slane %v8769, %v8776
  %v8779 = vunpack.c.l.s4 1966171168
  %v8780 = vunpack.c.0.s8 %v8779
  %v8781 = vlaneseq
  %v8782 = vshrl.u32 %v8781, 7
  %v8783 = vsub.s32 %v8780, %v8782
  %v8784 = vrot.slane %v8770, %v8783
  %v8785 = vcombine.low %v8777, %v8784
  %v8787 = vunpack.c.l.s4 1966171168
  %v8788 = vunpack.c.0.s8 %v8787
  %v8789 = vlaneseq
  %v8790 = vshrl.u32 %v8789, 7
  %v8791 = vsub.s32 %v8788, %v8790
  %v8792 = vrot.slane %v8785, %v8791
  %v8793 = vcombine.low %v4086, %v8792
  %v8794 = vcombine.low %v8554, %v8556
  %v8795 = vcombine.low %v8558, %v8560
  %v8796 = vcombine.low %v8570, %v8572
  %v8797 = vcombine.low %v8574, %v8576
  %v8799 = vunpack.c.l.s4 1966171168
  %v8800 = vunpack.c.0.s8 %v8799
  %v8801 = vlaneseq
  %v8802 = vshrl.u32 %v8801, 7
  %v8803 = vsub.s32 %v8800, %v8802
  %v8804 = vrot.slane %v8794, %v8803
  %v8806 = vunpack.c.l.s4 1966171168
  %v8807 = vunpack.c.0.s8 %v8806
  %v8808 = vlaneseq
  %v8809 = vshrl.u32 %v8808, 7
  %v8810 = vsub.s32 %v8807, %v8809
  %v8811 = vrot.slane %v8795, %v8810
  %v8813 = vunpack.c.l.s4 1966171168
  %v8814 = vunpack.c.0.s8 %v8813
  %v8815 = vlaneseq
  %v8816 = vshrl.u32 %v8815, 7
  %v8817 = vsub.s32 %v8814, %v8816
  %v8818 = vrot.slane %v8796, %v8817
  %v8820 = vunpack.c.l.s4 1966171168
  %v8821 = vunpack.c.0.s8 %v8820
  %v8822 = vlaneseq
  %v8823 = vshrl.u32 %v8822, 7
  %v8824 = vsub.s32 %v8821, %v8823
  %v8825 = vrot.slane %v8797, %v8824
  %v8826 = vcombine.low %v8804, %v8811
  %v8827 = vcombine.low %v8818, %v8825
  %v8829 = vunpack.c.l.s4 1966171168
  %v8830 = vunpack.c.0.s8 %v8829
  %v8831 = vlaneseq
  %v8832 = vshrl.u32 %v8831, 7
  %v8833 = vsub.s32 %v8830, %v8832
  %v8834 = vrot.slane %v8826, %v8833
  %v8836 = vunpack.c.l.s4 1966171168
  %v8837 = vunpack.c.0.s8 %v8836
  %v8838 = vlaneseq
  %v8839 = vshrl.u32 %v8838, 7
  %v8840 = vsub.s32 %v8837, %v8839
  %v8841 = vrot.slane %v8827, %v8840
  %v8842 = vcombine.low %v8834, %v8841
  %v8843 = vcombine.low %v8539, %v8541
  %v8844 = vcombine.low %v8543, 0
  %v8846 = vunpack.c.l.s4 1966171168
  %v8847 = vunpack.c.0.s8 %v8846
  %v8848 = vlaneseq
  %v8849 = vshrl.u32 %v8848, 7
  %v8850 = vsub.s32 %v8847, %v8849
  %v8851 = vrot.slane %v8843, %v8850
  %v8853 = vunpack.c.l.s4 1966171168
  %v8854 = vunpack.c.0.s8 %v8853
  %v8855 = vlaneseq
  %v8856 = vshrl.u32 %v8855, 7
  %v8857 = vsub.s32 %v8854, %v8856
  %v8858 = vrot.slane %v8844, %v8857
  %v8859 = vcombine.low %v8851, %v8858
  %v8861 = vunpack.c.l.s4 1966171168
  %v8862 = vunpack.c.0.s8 %v8861
  %v8863 = vlaneseq
  %v8864 = vshrl.u32 %v8863, 7
  %v8865 = vsub.s32 %v8862, %v8864
  %v8866 = vrot.slane %v8859, %v8865
  %v8867 = vcombine.low %v4086, %v8866
  %v8868 = vcombine.low %v8555, %v8557
  %v8869 = vcombine.low %v8559, 0
  %v8870 = vcombine.low %v8571, %v8573
  %v8871 = vcombine.low %v8575, 0
  %v8873 = vunpack.c.l.s4 1966171168
  %v8874 = vunpack.c.0.s8 %v8873
  %v8875 = vlaneseq
  %v8876 = vshrl.u32 %v8875, 7
  %v8877 = vsub.s32 %v8874, %v8876
  %v8878 = vrot.slane %v8868, %v8877
  %v8880 = vunpack.c.l.s4 1966171168
  %v8881 = vunpack.c.0.s8 %v8880
  %v8882 = vlaneseq
  %v8883 = vshrl.u32 %v8882, 7
  %v8884 = vsub.s32 %v8881, %v8883
  %v8885 = vrot.slane %v8869, %v8884
  %v8887 = vunpack.c.l.s4 1966171168
  %v8888 = vunpack.c.0.s8 %v8887
  %v8889 = vlaneseq
  %v8890 = vshrl.u32 %v8889, 7
  %v8891 = vsub.s32 %v8888, %v8890
  %v8892 = vrot.slane %v8870, %v8891
  %v8894 = vunpack.c.l.s4 1966171168
  %v8895 = vunpack.c.0.s8 %v8894
  %v8896 = vlaneseq
  %v8897 = vshrl.u32 %v8896, 7
  %v8898 = vsub.s32 %v8895, %v8897
  %v8899 = vrot.slane %v8871, %v8898
  %v8900 = vcombine.low %v8878, %v8885
  %v8901 = vcombine.low %v8892, %v8899
  %v8903 = vunpack.c.l.s4 1966171168
  %v8904 = vunpack.c.0.s8 %v8903
  %v8905 = vlaneseq
  %v8906 = vshrl.u32 %v8905, 7
  %v8907 = vsub.s32 %v8904, %v8906
  %v8908 = vrot.slane %v8900, %v8907
  %v8910 = vunpack.c.l.s4 1966171168
  %v8911 = vunpack.c.0.s8 %v8910
  %v8912 = vlaneseq
  %v8913 = vshrl.u32 %v8912, 7
  %v8914 = vsub.s32 %v8911, %v8913
  %v8915 = vrot.slane %v8901, %v8914
  %v8916 = vcombine.low %v8908, %v8915
  %8917 = vrot.lane.b32.xlu0 %v8867, 64
  %v8918 = vpop.permute.xlu0 %8917
  %8919 = vrot.lane.b32.xlu0 %v8916, 64
  %v8920 = vpop.permute.xlu0 %8919
  %v8933 = vcombine.low 0, %v8530
  %v8934 = vcombine.low %v8532, %v8534
  %v8935 = vcombine.low 0, %v8546
  %v8936 = vcombine.low %v8548, %v8550
  %v8938 = vunpack.c.l.s4 1966171168
  %v8939 = vunpack.c.0.s8 %v8938
  %v8940 = vlaneseq
  %v8941 = vshrl.u32 %v8940, 7
  %v8942 = vsub.s32 %v8939, %v8941
  %v8943 = vrot.slane %v8933, %v8942
  %v8945 = vunpack.c.l.s4 1966171168
  %v8946 = vunpack.c.0.s8 %v8945
  %v8947 = vlaneseq
  %v8948 = vshrl.u32 %v8947, 7
  %v8949 = vsub.s32 %v8946, %v8948
  %v8950 = vrot.slane %v8934, %v8949
  %v8952 = vunpack.c.l.s4 1966171168
  %v8953 = vunpack.c.0.s8 %v8952
  %v8954 = vlaneseq
  %v8955 = vshrl.u32 %v8954, 7
  %v8956 = vsub.s32 %v8953, %v8955
  %v8957 = vrot.slane %v8935, %v8956
  %v8959 = vunpack.c.l.s4 1966171168
  %v8960 = vunpack.c.0.s8 %v8959
  %v8961 = vlaneseq
  %v8962 = vshrl.u32 %v8961, 7
  %v8963 = vsub.s32 %v8960, %v8962
  %v8964 = vrot.slane %v8936, %v8963
  %v8965 = vcombine.low %v8943, %v8950
  %v8966 = vcombine.low %v8957, %v8964
  %v8968 = vunpack.c.l.s4 1966171168
  %v8969 = vunpack.c.0.s8 %v8968
  %v8970 = vlaneseq
  %v8971 = vshrl.u32 %v8970, 7
  %v8972 = vsub.s32 %v8969, %v8971
  %v8973 = vrot.slane %v8965, %v8972
  %v8975 = vunpack.c.l.s4 1966171168
  %v8976 = vunpack.c.0.s8 %v8975
  %v8977 = vlaneseq
  %v8978 = vshrl.u32 %v8977, 7
  %v8979 = vsub.s32 %v8976, %v8978
  %v8980 = vrot.slane %v8966, %v8979
  %v8981 = vcombine.low %v8973, %v8980
  %v8982 = vcombine.low 0, %v8562
  %v8983 = vcombine.low %v8564, %v8566
  %v8984 = vcombine.low 0, %v8578
  %v8985 = vcombine.low %v8580, %v8582
  %v8987 = vunpack.c.l.s4 1966171168
  %v8988 = vunpack.c.0.s8 %v8987
  %v8989 = vlaneseq
  %v8990 = vshrl.u32 %v8989, 7
  %v8991 = vsub.s32 %v8988, %v8990
  %v8992 = vrot.slane %v8982, %v8991
  %v8994 = vunpack.c.l.s4 1966171168
  %v8995 = vunpack.c.0.s8 %v8994
  %v8996 = vlaneseq
  %v8997 = vshrl.u32 %v8996, 7
  %v8998 = vsub.s32 %v8995, %v8997
  %v8999 = vrot.slane %v8983, %v8998
  %v9001 = vunpack.c.l.s4 1966171168
  %v9002 = vunpack.c.0.s8 %v9001
  %v9003 = vlaneseq
  %v9004 = vshrl.u32 %v9003, 7
  %v9005 = vsub.s32 %v9002, %v9004
  %v9006 = vrot.slane %v8984, %v9005
  %v9008 = vunpack.c.l.s4 1966171168
  %v9009 = vunpack.c.0.s8 %v9008
  %v9010 = vlaneseq
  %v9011 = vshrl.u32 %v9010, 7
  %v9012 = vsub.s32 %v9009, %v9011
  %v9013 = vrot.slane %v8985, %v9012
  %v9014 = vcombine.low %v8992, %v8999
  %v9015 = vcombine.low %v9006, %v9013
  %v9017 = vunpack.c.l.s4 1966171168
  %v9018 = vunpack.c.0.s8 %v9017
  %v9019 = vlaneseq
  %v9020 = vshrl.u32 %v9019, 7
  %v9021 = vsub.s32 %v9018, %v9020
  %v9022 = vrot.slane %v9014, %v9021
  %v9024 = vunpack.c.l.s4 1966171168
  %v9025 = vunpack.c.0.s8 %v9024
  %v9026 = vlaneseq
  %v9027 = vshrl.u32 %v9026, 7
  %v9028 = vsub.s32 %v9025, %v9027
  %v9029 = vrot.slane %v9015, %v9028
  %v9030 = vcombine.low %v9022, %v9029
  %v9047 = vcombine.low %v8529, %v8531
  %v9048 = vcombine.low %v8533, %v8535
  %v9049 = vcombine.low %v8545, %v8547
  %v9050 = vcombine.low %v8549, %v8551
  %v9052 = vunpack.c.l.s4 1966171168
  %v9053 = vunpack.c.0.s8 %v9052
  %v9054 = vlaneseq
  %v9055 = vshrl.u32 %v9054, 7
  %v9056 = vsub.s32 %v9053, %v9055
  %v9057 = vrot.slane %v9047, %v9056
  %v9059 = vunpack.c.l.s4 1966171168
  %v9060 = vunpack.c.0.s8 %v9059
  %v9061 = vlaneseq
  %v9062 = vshrl.u32 %v9061, 7
  %v9063 = vsub.s32 %v9060, %v9062
  %v9064 = vrot.slane %v9048, %v9063
  %v9066 = vunpack.c.l.s4 1966171168
  %v9067 = vunpack.c.0.s8 %v9066
  %v9068 = vlaneseq
  %v9069 = vshrl.u32 %v9068, 7
  %v9070 = vsub.s32 %v9067, %v9069
  %v9071 = vrot.slane %v9049, %v9070
  %v9073 = vunpack.c.l.s4 1966171168
  %v9074 = vunpack.c.0.s8 %v9073
  %v9075 = vlaneseq
  %v9076 = vshrl.u32 %v9075, 7
  %v9077 = vsub.s32 %v9074, %v9076
  %v9078 = vrot.slane %v9050, %v9077
  %v9079 = vcombine.low %v9057, %v9064
  %v9080 = vcombine.low %v9071, %v9078
  %v9082 = vunpack.c.l.s4 1966171168
  %v9083 = vunpack.c.0.s8 %v9082
  %v9084 = vlaneseq
  %v9085 = vshrl.u32 %v9084, 7
  %v9086 = vsub.s32 %v9083, %v9085
  %v9087 = vrot.slane %v9079, %v9086
  %v9089 = vunpack.c.l.s4 1966171168
  %v9090 = vunpack.c.0.s8 %v9089
  %v9091 = vlaneseq
  %v9092 = vshrl.u32 %v9091, 7
  %v9093 = vsub.s32 %v9090, %v9092
  %v9094 = vrot.slane %v9080, %v9093
  %v9095 = vcombine.low %v9087, %v9094
  %v9096 = vcombine.low %v8561, %v8563
  %v9097 = vcombine.low %v8565, %v8567
  %v9098 = vcombine.low %v8577, %v8579
  %v9099 = vcombine.low %v8581, %v8583
  %v9101 = vunpack.c.l.s4 1966171168
  %v9102 = vunpack.c.0.s8 %v9101
  %v9103 = vlaneseq
  %v9104 = vshrl.u32 %v9103, 7
  %v9105 = vsub.s32 %v9102, %v9104
  %v9106 = vrot.slane %v9096, %v9105
  %v9108 = vunpack.c.l.s4 1966171168
  %v9109 = vunpack.c.0.s8 %v9108
  %v9110 = vlaneseq
  %v9111 = vshrl.u32 %v9110, 7
  %v9112 = vsub.s32 %v9109, %v9111
  %v9113 = vrot.slane %v9097, %v9112
  %v9115 = vunpack.c.l.s4 1966171168
  %v9116 = vunpack.c.0.s8 %v9115
  %v9117 = vlaneseq
  %v9118 = vshrl.u32 %v9117, 7
  %v9119 = vsub.s32 %v9116, %v9118
  %v9120 = vrot.slane %v9098, %v9119
  %v9122 = vunpack.c.l.s4 1966171168
  %v9123 = vunpack.c.0.s8 %v9122
  %v9124 = vlaneseq
  %v9125 = vshrl.u32 %v9124, 7
  %v9126 = vsub.s32 %v9123, %v9125
  %v9127 = vrot.slane %v9099, %v9126
  %v9128 = vcombine.low %v9106, %v9113
  %v9129 = vcombine.low %v9120, %v9127
  %v9131 = vunpack.c.l.s4 1966171168
  %v9132 = vunpack.c.0.s8 %v9131
  %v9133 = vlaneseq
  %v9134 = vshrl.u32 %v9133, 7
  %v9135 = vsub.s32 %v9132, %v9134
  %v9136 = vrot.slane %v9128, %v9135
  %v9138 = vunpack.c.l.s4 1966171168
  %v9139 = vunpack.c.0.s8 %v9138
  %v9140 = vlaneseq
  %v9141 = vshrl.u32 %v9140, 7
  %v9142 = vsub.s32 %v9139, %v9141
  %v9143 = vrot.slane %v9129, %v9142
  %v9144 = vcombine.low %v9136, %v9143
  %9145 = vrot.lane.b32.xlu0 %v9095, 64
  %v9146 = vpop.permute.xlu0 %9145
  %9147 = vrot.lane.b32.xlu0 %v9144, 64
  %v9148 = vpop.permute.xlu0 %9147
  %v9153 = vcombine.low %v8530, %v8532
  %v9154 = vcombine.low %v8534, %v8536
  %v9155 = vcombine.low %v8546, %v8548
  %v9156 = vcombine.low %v8550, %v8552
  %v9158 = vunpack.c.l.s4 1966171168
  %v9159 = vunpack.c.0.s8 %v9158
  %v9160 = vlaneseq
  %v9161 = vshrl.u32 %v9160, 7
  %v9162 = vsub.s32 %v9159, %v9161
  %v9163 = vrot.slane %v9153, %v9162
  %v9165 = vunpack.c.l.s4 1966171168
  %v9166 = vunpack.c.0.s8 %v9165
  %v9167 = vlaneseq
  %v9168 = vshrl.u32 %v9167, 7
  %v9169 = vsub.s32 %v9166, %v9168
  %v9170 = vrot.slane %v9154, %v9169
  %v9172 = vunpack.c.l.s4 1966171168
  %v9173 = vunpack.c.0.s8 %v9172
  %v9174 = vlaneseq
  %v9175 = vshrl.u32 %v9174, 7
  %v9176 = vsub.s32 %v9173, %v9175
  %v9177 = vrot.slane %v9155, %v9176
  %v9179 = vunpack.c.l.s4 1966171168
  %v9180 = vunpack.c.0.s8 %v9179
  %v9181 = vlaneseq
  %v9182 = vshrl.u32 %v9181, 7
  %v9183 = vsub.s32 %v9180, %v9182
  %v9184 = vrot.slane %v9156, %v9183
  %v9185 = vcombine.low %v9163, %v9170
  %v9186 = vcombine.low %v9177, %v9184
  %v9188 = vunpack.c.l.s4 1966171168
  %v9189 = vunpack.c.0.s8 %v9188
  %v9190 = vlaneseq
  %v9191 = vshrl.u32 %v9190, 7
  %v9192 = vsub.s32 %v9189, %v9191
  %v9193 = vrot.slane %v9185, %v9192
  %v9195 = vunpack.c.l.s4 1966171168
  %v9196 = vunpack.c.0.s8 %v9195
  %v9197 = vlaneseq
  %v9198 = vshrl.u32 %v9197, 7
  %v9199 = vsub.s32 %v9196, %v9198
  %v9200 = vrot.slane %v9186, %v9199
  %v9201 = vcombine.low %v9193, %v9200
  %v9202 = vcombine.low %v8562, %v8564
  %v9203 = vcombine.low %v8566, %v8568
  %v9204 = vcombine.low %v8578, %v8580
  %v9205 = vcombine.low %v8582, %v8584
  %v9207 = vunpack.c.l.s4 1966171168
  %v9208 = vunpack.c.0.s8 %v9207
  %v9209 = vlaneseq
  %v9210 = vshrl.u32 %v9209, 7
  %v9211 = vsub.s32 %v9208, %v9210
  %v9212 = vrot.slane %v9202, %v9211
  %v9214 = vunpack.c.l.s4 1966171168
  %v9215 = vunpack.c.0.s8 %v9214
  %v9216 = vlaneseq
  %v9217 = vshrl.u32 %v9216, 7
  %v9218 = vsub.s32 %v9215, %v9217
  %v9219 = vrot.slane %v9203, %v9218
  %v9221 = vunpack.c.l.s4 1966171168
  %v9222 = vunpack.c.0.s8 %v9221
  %v9223 = vlaneseq
  %v9224 = vshrl.u32 %v9223, 7
  %v9225 = vsub.s32 %v9222, %v9224
  %v9226 = vrot.slane %v9204, %v9225
  %v9228 = vunpack.c.l.s4 1966171168
  %v9229 = vunpack.c.0.s8 %v9228
  %v9230 = vlaneseq
  %v9231 = vshrl.u32 %v9230, 7
  %v9232 = vsub.s32 %v9229, %v9231
  %v9233 = vrot.slane %v9205, %v9232
  %v9234 = vcombine.low %v9212, %v9219
  %v9235 = vcombine.low %v9226, %v9233
  %v9237 = vunpack.c.l.s4 1966171168
  %v9238 = vunpack.c.0.s8 %v9237
  %v9239 = vlaneseq
  %v9240 = vshrl.u32 %v9239, 7
  %v9241 = vsub.s32 %v9238, %v9240
  %v9242 = vrot.slane %v9234, %v9241
  %v9244 = vunpack.c.l.s4 1966171168
  %v9245 = vunpack.c.0.s8 %v9244
  %v9246 = vlaneseq
  %v9247 = vshrl.u32 %v9246, 7
  %v9248 = vsub.s32 %v9245, %v9247
  %v9249 = vrot.slane %v9235, %v9248
  %v9250 = vcombine.low %v9242, %v9249
  %v9251 = vcombine.low %v8531, %v8533
  %v9252 = vcombine.low %v8535, 0
  %v9253 = vcombine.low %v8547, %v8549
  %v9254 = vcombine.low %v8551, 0
  %v9256 = vunpack.c.l.s4 1966171168
  %v9257 = vunpack.c.0.s8 %v9256
  %v9258 = vlaneseq
  %v9259 = vshrl.u32 %v9258, 7
  %v9260 = vsub.s32 %v9257, %v9259
  %v9261 = vrot.slane %v9251, %v9260
  %v9263 = vunpack.c.l.s4 1966171168
  %v9264 = vunpack.c.0.s8 %v9263
  %v9265 = vlaneseq
  %v9266 = vshrl.u32 %v9265, 7
  %v9267 = vsub.s32 %v9264, %v9266
  %v9268 = vrot.slane %v9252, %v9267
  %v9270 = vunpack.c.l.s4 1966171168
  %v9271 = vunpack.c.0.s8 %v9270
  %v9272 = vlaneseq
  %v9273 = vshrl.u32 %v9272, 7
  %v9274 = vsub.s32 %v9271, %v9273
  %v9275 = vrot.slane %v9253, %v9274
  %v9277 = vunpack.c.l.s4 1966171168
  %v9278 = vunpack.c.0.s8 %v9277
  %v9279 = vlaneseq
  %v9280 = vshrl.u32 %v9279, 7
  %v9281 = vsub.s32 %v9278, %v9280
  %v9282 = vrot.slane %v9254, %v9281
  %v9283 = vcombine.low %v9261, %v9268
  %v9284 = vcombine.low %v9275, %v9282
  %v9286 = vunpack.c.l.s4 1966171168
  %v9287 = vunpack.c.0.s8 %v9286
  %v9288 = vlaneseq
  %v9289 = vshrl.u32 %v9288, 7
  %v9290 = vsub.s32 %v9287, %v9289
  %v9291 = vrot.slane %v9283, %v9290
  %v9293 = vunpack.c.l.s4 1966171168
  %v9294 = vunpack.c.0.s8 %v9293
  %v9295 = vlaneseq
  %v9296 = vshrl.u32 %v9295, 7
  %v9297 = vsub.s32 %v9294, %v9296
  %v9298 = vrot.slane %v9284, %v9297
  %v9299 = vcombine.low %v9291, %v9298
  %v9300 = vcombine.low %v8563, %v8565
  %v9301 = vcombine.low %v8567, 0
  %v9302 = vcombine.low %v8579, %v8581
  %v9303 = vcombine.low %v8583, 0
  %v9305 = vunpack.c.l.s4 1966171168
  %v9306 = vunpack.c.0.s8 %v9305
  %v9307 = vlaneseq
  %v9308 = vshrl.u32 %v9307, 7
  %v9309 = vsub.s32 %v9306, %v9308
  %v9310 = vrot.slane %v9300, %v9309
  %v9312 = vunpack.c.l.s4 1966171168
  %v9313 = vunpack.c.0.s8 %v9312
  %v9314 = vlaneseq
  %v9315 = vshrl.u32 %v9314, 7
  %v9316 = vsub.s32 %v9313, %v9315
  %v9317 = vrot.slane %v9301, %v9316
  %v9319 = vunpack.c.l.s4 1966171168
  %v9320 = vunpack.c.0.s8 %v9319
  %v9321 = vlaneseq
  %v9322 = vshrl.u32 %v9321, 7
  %v9323 = vsub.s32 %v9320, %v9322
  %v9324 = vrot.slane %v9302, %v9323
  %v9326 = vunpack.c.l.s4 1966171168
  %v9327 = vunpack.c.0.s8 %v9326
  %v9328 = vlaneseq
  %v9329 = vshrl.u32 %v9328, 7
  %v9330 = vsub.s32 %v9327, %v9329
  %v9331 = vrot.slane %v9303, %v9330
  %v9332 = vcombine.low %v9310, %v9317
  %v9333 = vcombine.low %v9324, %v9331
  %v9335 = vunpack.c.l.s4 1966171168
  %v9336 = vunpack.c.0.s8 %v9335
  %v9337 = vlaneseq
  %v9338 = vshrl.u32 %v9337, 7
  %v9339 = vsub.s32 %v9336, %v9338
  %v9340 = vrot.slane %v9332, %v9339
  %v9342 = vunpack.c.l.s4 1966171168
  %v9343 = vunpack.c.0.s8 %v9342
  %v9344 = vlaneseq
  %v9345 = vshrl.u32 %v9344, 7
  %v9346 = vsub.s32 %v9343, %v9345
  %v9347 = vrot.slane %v9333, %v9346
  %v9348 = vcombine.low %v9340, %v9347
  %9349 = vrot.lane.b32.xlu0 %v9299, 64
  %v9350 = vpop.permute.xlu0 %9349
  %9351 = vrot.lane.b32.xlu0 %v9348, 64
  %v9352 = vpop.permute.xlu0 %9351
  %v9356 = vcombine.low %v8625, %v8667
  %v9357 = vcombine.low 0, %v8586
  %v9358 = vcombine.low %v8588, %v8590
  %v9360 = vunpack.c.l.s4 1966171168
  %v9361 = vunpack.c.0.s8 %v9360
  %v9362 = vlaneseq
  %v9363 = vshrl.u32 %v9362, 7
  %v9364 = vsub.s32 %v9361, %v9363
  %v9365 = vrot.slane %v9357, %v9364
  %v9367 = vunpack.c.l.s4 1966171168
  %v9368 = vunpack.c.0.s8 %v9367
  %v9369 = vlaneseq
  %v9370 = vshrl.u32 %v9369, 7
  %v9371 = vsub.s32 %v9368, %v9370
  %v9372 = vrot.slane %v9358, %v9371
  %v9373 = vcombine.low %v9365, %v9372
  %v9375 = vunpack.c.l.s4 1966171168
  %v9376 = vunpack.c.0.s8 %v9375
  %v9377 = vlaneseq
  %v9378 = vshrl.u32 %v9377, 7
  %v9379 = vsub.s32 %v9376, %v9378
  %v9380 = vrot.slane %v9373, %v9379
  %v9381 = vcombine.low %v8674, %v9380
  %v9386 = vcombine.low %v8711, %v8753
  %v9387 = vcombine.low %v8585, %v8587
  %v9388 = vcombine.low %v8589, %v8591
  %v9390 = vunpack.c.l.s4 1966171168
  %v9391 = vunpack.c.0.s8 %v9390
  %v9392 = vlaneseq
  %v9393 = vshrl.u32 %v9392, 7
  %v9394 = vsub.s32 %v9391, %v9393
  %v9395 = vrot.slane %v9387, %v9394
  %v9397 = vunpack.c.l.s4 1966171168
  %v9398 = vunpack.c.0.s8 %v9397
  %v9399 = vlaneseq
  %v9400 = vshrl.u32 %v9399, 7
  %v9401 = vsub.s32 %v9398, %v9400
  %v9402 = vrot.slane %v9388, %v9401
  %v9403 = vcombine.low %v9395, %v9402
  %v9405 = vunpack.c.l.s4 1966171168
  %v9406 = vunpack.c.0.s8 %v9405
  %v9407 = vlaneseq
  %v9408 = vshrl.u32 %v9407, 7
  %v9409 = vsub.s32 %v9406, %v9408
  %v9410 = vrot.slane %v9403, %v9409
  %v9411 = vcombine.low %v8760, %v9410
  %9412 = vrot.lane.b32.xlu0 %v9386, 64
  %v9413 = vpop.permute.xlu0 %9412
  %9414 = vrot.lane.b32.xlu0 %v9411, 64
  %v9415 = vpop.permute.xlu0 %9414
  %v9417 = vcombine.low %v8792, %v8834
  %v9418 = vcombine.low %v8586, %v8588
  %v9419 = vcombine.low %v8590, %v8592
  %v9421 = vunpack.c.l.s4 1966171168
  %v9422 = vunpack.c.0.s8 %v9421
  %v9423 = vlaneseq
  %v9424 = vshrl.u32 %v9423, 7
  %v9425 = vsub.s32 %v9422, %v9424
  %v9426 = vrot.slane %v9418, %v9425
  %v9428 = vunpack.c.l.s4 1966171168
  %v9429 = vunpack.c.0.s8 %v9428
  %v9430 = vlaneseq
  %v9431 = vshrl.u32 %v9430, 7
  %v9432 = vsub.s32 %v9429, %v9431
  %v9433 = vrot.slane %v9419, %v9432
  %v9434 = vcombine.low %v9426, %v9433
  %v9436 = vunpack.c.l.s4 1966171168
  %v9437 = vunpack.c.0.s8 %v9436
  %v9438 = vlaneseq
  %v9439 = vshrl.u32 %v9438, 7
  %v9440 = vsub.s32 %v9437, %v9439
  %v9441 = vrot.slane %v9434, %v9440
  %v9442 = vcombine.low %v8841, %v9441
  %v9443 = vcombine.low %v8866, %v8908
  %v9444 = vcombine.low %v8587, %v8589
  %v9445 = vcombine.low %v8591, 0
  %v9447 = vunpack.c.l.s4 1966171168
  %v9448 = vunpack.c.0.s8 %v9447
  %v9449 = vlaneseq
  %v9450 = vshrl.u32 %v9449, 7
  %v9451 = vsub.s32 %v9448, %v9450
  %v9452 = vrot.slane %v9444, %v9451
  %v9454 = vunpack.c.l.s4 1966171168
  %v9455 = vunpack.c.0.s8 %v9454
  %v9456 = vlaneseq
  %v9457 = vshrl.u32 %v9456, 7
  %v9458 = vsub.s32 %v9455, %v9457
  %v9459 = vrot.slane %v9445, %v9458
  %v9460 = vcombine.low %v9452, %v9459
  %v9462 = vunpack.c.l.s4 1966171168
  %v9463 = vunpack.c.0.s8 %v9462
  %v9464 = vlaneseq
  %v9465 = vshrl.u32 %v9464, 7
  %v9466 = vsub.s32 %v9463, %v9465
  %v9467 = vrot.slane %v9460, %v9466
  %v9468 = vcombine.low %v8915, %v9467
  %9469 = vrot.lane.b32.xlu0 %v9443, 64
  %v9470 = vpop.permute.xlu0 %9469
  %9471 = vrot.lane.b32.xlu0 %v9468, 64
  %v9472 = vpop.permute.xlu0 %9471
  %v9473 = vcombine.low %v8980, %v9022
  %v9474 = vcombine.low %v9029, %v4086
  %v9475 = vcombine.low %v9094, %v9136
  %v9476 = vcombine.low %v9143, %v4086
  %9477 = vrot.lane.b32.xlu0 %v9475, 64
  %v9478 = vpop.permute.xlu0 %9477
  %9479 = vrot.lane.b32.xlu0 %v9476, 64
  %v9480 = vpop.permute.xlu0 %9479
  %v9481 = vcombine.low %v9200, %v9242
  %v9482 = vcombine.low %v9249, %v4086
  %v9483 = vcombine.low %v9298, %v9340
  %v9484 = vcombine.low %v9347, %v4086
  %9485 = vrot.lane.b32.xlu0 %v9483, 64
  %v9486 = vpop.permute.xlu0 %9485
  %9487 = vrot.lane.b32.xlu0 %v9484, 64
  %v9488 = vpop.permute.xlu0 %9487
  %v9491 = vsel %vm7558, %v8626, %v8763
  %v9495 = vsel %vm7558, %v8675, %v8765
  %v9499 = vsel %vm7558, %v8793, %v8918
  %v9503 = vsel %vm7558, %v8842, %v8920
  %v9507 = vsel %vm7558, %v8981, %v9146
  %v9511 = vsel %vm7558, %v9030, %v9148
  %v9515 = vsel %vm7558, %v9201, %v9350
  %v9519 = vsel %vm7558, %v9250, %v9352
  %v9523 = vsel %vm7558, %v9356, %v9413
  %v9527 = vsel %vm7558, %v9381, %v9415
  %v9531 = vsel %vm7558, %v9417, %v9470
  %v9535 = vsel %vm7558, %v9442, %v9472
  %v9539 = vsel %vm7558, %v9473, %v9478
  %v9543 = vsel %vm7558, %v9474, %v9480
  %v9547 = vsel %vm7558, %v9481, %v9486
  %v9551 = vsel %vm7558, %v9482, %v9488
  %v9553 = vld [vmem:[%s6] sm:$0xf]
  %v9554 = vld [vmem:[%s6 + $0x4] sm:$0xf]
  %v9555 = vld [vmem:[%s6 + $0x8] sm:$0xf]
  %v9556 = vld [vmem:[%s6 + $0xc] sm:$0xf]
  %v9557 = vld [vmem:[%s6 + $0x10] sm:$0xf]
  %v9558 = vld [vmem:[%s6 + $0x14] sm:$0xf]
  %v9559 = vld [vmem:[%s6 + $0x18] sm:$0xf]
  %v9560 = vld [vmem:[%s6 + $0x1c] sm:$0xf]
  %v9561 = vld [vmem:[%s6 + $0x20] sm:$0xf]
  %v9562 = vld [vmem:[%s6 + $0x24] sm:$0xf]
  %v9563 = vld [vmem:[%s6 + $0x28] sm:$0xf]
  %v9564 = vld [vmem:[%s6 + $0x2c] sm:$0xf]
  %v9565 = vld [vmem:[%s6 + $0x30] sm:$0xf]
  %v9566 = vld [vmem:[%s6 + $0x34] sm:$0xf]
  %v9567 = vld [vmem:[%s6 + $0x38] sm:$0xf]
  %v9568 = vld [vmem:[%s6 + $0x3c] sm:$0xf]
  %v9569 = vld [vmem:[%s6 + $0x40] sm:$0xf]
  %v9570 = vld [vmem:[%s6 + $0x44] sm:$0xf]
  %v9571 = vld [vmem:[%s6 + $0x48] sm:$0xf]
  %v9572 = vld [vmem:[%s6 + $0x4c] sm:$0xf]
  %v9573 = vld [vmem:[%s6 + $0x50] sm:$0xf]
  %v9574 = vld [vmem:[%s6 + $0x54] sm:$0xf]
  %v9575 = vld [vmem:[%s6 + $0x58] sm:$0xf]
  %v9576 = vld [vmem:[%s6 + $0x5c] sm:$0xf]
  %v9577 = vld [vmem:[%s6 + $0x60] sm:$0xf]
  %v9578 = vld [vmem:[%s6 + $0x64] sm:$0xf]
  %v9579 = vld [vmem:[%s6 + $0x68] sm:$0xf]
  %v9580 = vld [vmem:[%s6 + $0x6c] sm:$0xf]
  %v9581 = vld [vmem:[%s6 + $0x70] sm:$0xf]
  %v9582 = vld [vmem:[%s6 + $0x74] sm:$0xf]
  %v9583 = vld [vmem:[%s6 + $0x78] sm:$0xf]
  %v9584 = vld [vmem:[%s6 + $0x7c] sm:$0xf]
  %v9585 = vld [vmem:[%s6 + $0x80] sm:$0xf]
  %v9586 = vld [vmem:[%s6 + $0x84] sm:$0xf]
  %v9587 = vld [vmem:[%s6 + $0x88] sm:$0xf]
  %v9588 = vld [vmem:[%s6 + $0x8c] sm:$0xf]
  %v9589 = vld [vmem:[%s6 + $0x90] sm:$0xf]
  %v9590 = vld [vmem:[%s6 + $0x94] sm:$0xf]
  %v9591 = vld [vmem:[%s6 + $0x98] sm:$0xf]
  %v9592 = vld [vmem:[%s6 + $0x9c] sm:$0xf]
  %v9593 = vld [vmem:[%s6 + $0xa0] sm:$0xf]
  %v9594 = vld [vmem:[%s6 + $0xa4] sm:$0xf]
  %v9595 = vld [vmem:[%s6 + $0xa8] sm:$0xf]
  %v9596 = vld [vmem:[%s6 + $0xac] sm:$0xf]
  %v9597 = vld [vmem:[%s6 + $0xb0] sm:$0xf]
  %v9598 = vld [vmem:[%s6 + $0xb4] sm:$0xf]
  %v9599 = vld [vmem:[%s6 + $0xb8] sm:$0xf]
  %v9600 = vld [vmem:[%s6 + $0xbc] sm:$0xf]
  %v9601 = vld [vmem:[%s6 + $0xc0] sm:$0xf]
  %v9602 = vld [vmem:[%s6 + $0xc4] sm:$0xf]
  %v9603 = vld [vmem:[%s6 + $0xc8] sm:$0xf]
  %v9604 = vld [vmem:[%s6 + $0xcc] sm:$0xf]
  %v9605 = vld [vmem:[%s6 + $0xd0] sm:$0xf]
  %v9606 = vld [vmem:[%s6 + $0xd4] sm:$0xf]
  %v9607 = vld [vmem:[%s6 + $0xd8] sm:$0xf]
  %v9608 = vld [vmem:[%s6 + $0xdc] sm:$0xf]
  %v9609 = vld [vmem:[%s6 + $0xe0] sm:$0xf]
  %v9610 = vld [vmem:[%s6 + $0xe4] sm:$0xf]
  %v9611 = vld [vmem:[%s6 + $0xe8] sm:$0xf]
  %v9612 = vld [vmem:[%s6 + $0xec] sm:$0xf]
  %v9613 = vld [vmem:[%s6 + $0xf0] sm:$0xf]
  %v9614 = vld [vmem:[%s6 + $0xf4] sm:$0xf]
  %v9615 = vld [vmem:[%s6 + $0xf8] sm:$0xf]
  %v9616 = vld [vmem:[%s6 + $0xfc] sm:$0xf]
  %v9617 = vld [vmem:[%s6 + $0x100] sm:$0xf]
  %v9618 = vld [vmem:[%s6 + $0x104] sm:$0xf]
  %v9619 = vld [vmem:[%s6 + $0x108] sm:$0xf]
  %v9620 = vld [vmem:[%s6 + $0x10c] sm:$0xf]
  %v9621 = vld [vmem:[%s6 + $0x110] sm:$0xf]
  %v9622 = vld [vmem:[%s6 + $0x114] sm:$0xf]
  %v9623 = vld [vmem:[%s6 + $0x118] sm:$0xf]
  %v9624 = vld [vmem:[%s6 + $0x11c] sm:$0xf]
  %v9625 = vld [vmem:[%s6 + $0x120] sm:$0xf]
  %v9626 = vld [vmem:[%s6 + $0x124] sm:$0xf]
  %v9627 = vld [vmem:[%s6 + $0x128] sm:$0xf]
  %v9628 = vld [vmem:[%s6 + $0x12c] sm:$0xf]
  %v9629 = vld [vmem:[%s6 + $0x130] sm:$0xf]
  %v9630 = vld [vmem:[%s6 + $0x134] sm:$0xf]
  %v9631 = vld [vmem:[%s6 + $0x138] sm:$0xf]
  %v9632 = vld [vmem:[%s6 + $0x13c] sm:$0xf]
  %v9633 = vld [vmem:[%s6 + $0x140] sm:$0xf]
  %v9634 = vld [vmem:[%s6 + $0x144] sm:$0xf]
  %v9635 = vld [vmem:[%s6 + $0x148] sm:$0xf]
  %v9636 = vld [vmem:[%s6 + $0x14c] sm:$0xf]
  %v9637 = vld [vmem:[%s6 + $0x150] sm:$0xf]
  %v9638 = vld [vmem:[%s6 + $0x154] sm:$0xf]
  %v9639 = vld [vmem:[%s6 + $0x158] sm:$0xf]
  %v9640 = vld [vmem:[%s6 + $0x15c] sm:$0xf]
  %v9641 = vld [vmem:[%s6 + $0x160] sm:$0xf]
  %v9642 = vld [vmem:[%s6 + $0x164] sm:$0xf]
  %v9643 = vld [vmem:[%s6 + $0x168] sm:$0xf]
  %v9644 = vld [vmem:[%s6 + $0x16c] sm:$0xf]
  %v9645 = vld [vmem:[%s6 + $0x170] sm:$0xf]
  %v9646 = vld [vmem:[%s6 + $0x174] sm:$0xf]
  %v9647 = vld [vmem:[%s6 + $0x178] sm:$0xf]
  %v9648 = vld [vmem:[%s6 + $0x17c] sm:$0xf]
  %v9649 = vld [vmem:[%s6 + $0x180] sm:$0xf]
  %v9650 = vld [vmem:[%s6 + $0x184] sm:$0xf]
  %v9651 = vld [vmem:[%s6 + $0x188] sm:$0xf]
  %v9652 = vld [vmem:[%s6 + $0x18c] sm:$0xf]
  %v9653 = vld [vmem:[%s6 + $0x190] sm:$0xf]
  %v9654 = vld [vmem:[%s6 + $0x194] sm:$0xf]
  %v9655 = vld [vmem:[%s6 + $0x198] sm:$0xf]
  %v9656 = vld [vmem:[%s6 + $0x19c] sm:$0xf]
  %v9657 = vld [vmem:[%s6 + $0x1a0] sm:$0xf]
  %v9658 = vld [vmem:[%s6 + $0x1a4] sm:$0xf]
  %v9659 = vld [vmem:[%s6 + $0x1a8] sm:$0xf]
  %v9660 = vld [vmem:[%s6 + $0x1ac] sm:$0xf]
  %v9661 = vld [vmem:[%s6 + $0x1b0] sm:$0xf]
  %v9662 = vld [vmem:[%s6 + $0x1b4] sm:$0xf]
  %v9663 = vld [vmem:[%s6 + $0x1b8] sm:$0xf]
  %v9664 = vld [vmem:[%s6 + $0x1bc] sm:$0xf]
  %v9665 = vld [vmem:[%s6 + $0x1c0] sm:$0xf]
  %v9666 = vld [vmem:[%s6 + $0x1c4] sm:$0xf]
  %v9667 = vld [vmem:[%s6 + $0x1c8] sm:$0xf]
  %v9668 = vld [vmem:[%s6 + $0x1cc] sm:$0xf]
  %v9669 = vld [vmem:[%s6 + $0x1d0] sm:$0xf]
  %v9670 = vld [vmem:[%s6 + $0x1d4] sm:$0xf]
  %v9671 = vld [vmem:[%s6 + $0x1d8] sm:$0xf]
  %v9672 = vld [vmem:[%s6 + $0x1dc] sm:$0xf]
  %v9673 = vld [vmem:[%s6 + $0x1e0] sm:$0xf]
  %v9674 = vld [vmem:[%s6 + $0x1e4] sm:$0xf]
  %v9675 = vld [vmem:[%s6 + $0x1e8] sm:$0xf]
  %v9676 = vld [vmem:[%s6 + $0x1ec] sm:$0xf]
  %v9677 = vld [vmem:[%s6 + $0x1f0] sm:$0xf]
  %v9678 = vld [vmem:[%s6 + $0x1f4] sm:$0xf]
  %v9679 = vld [vmem:[%s6 + $0x1f8] sm:$0xf]
  %v9680 = vld [vmem:[%s6 + $0x1fc] sm:$0xf]
  %v9681 = vld [vmem:[%s7] sm:$0x1]
  %v9683 = vlaneseq
  %v9684 = vshrl.u32 %v9683, 7
  %v9685 = vsub.s32 0, %v9684
  %v9686 = vrot.slane %v9681, %v9685
  %v9816 = vunpack.c.l.b16 %v9553
  %v9817 = vunpack.c.l.b16 %v9554
  %v9818 = vunpack.c.l.b16 %v9555
  %v9819 = vunpack.c.l.b16 %v9556
  %v9820 = vunpack.c.l.b16 %v9557
  %v9821 = vunpack.c.l.b16 %v9558
  %v9822 = vunpack.c.l.b16 %v9559
  %v9823 = vunpack.c.l.b16 %v9560
  %v9824 = vunpack.c.l.b16 %v9561
  %v9825 = vunpack.c.l.b16 %v9562
  %v9826 = vunpack.c.l.b16 %v9563
  %v9827 = vunpack.c.l.b16 %v9564
  %v9828 = vunpack.c.l.b16 %v9565
  %v9829 = vunpack.c.l.b16 %v9566
  %v9830 = vunpack.c.l.b16 %v9567
  %v9831 = vunpack.c.l.b16 %v9568
  %v9832 = vunpack.c.l.b16 %v9569
  %v9833 = vunpack.c.l.b16 %v9570
  %v9834 = vunpack.c.l.b16 %v9571
  %v9835 = vunpack.c.l.b16 %v9572
  %v9836 = vunpack.c.l.b16 %v9573
  %v9837 = vunpack.c.l.b16 %v9574
  %v9838 = vunpack.c.l.b16 %v9575
  %v9839 = vunpack.c.l.b16 %v9576
  %v9840 = vunpack.c.l.b16 %v9577
  %v9841 = vunpack.c.l.b16 %v9578
  %v9842 = vunpack.c.l.b16 %v9579
  %v9843 = vunpack.c.l.b16 %v9580
  %v9844 = vunpack.c.l.b16 %v9581
  %v9845 = vunpack.c.l.b16 %v9582
  %v9846 = vunpack.c.l.b16 %v9583
  %v9847 = vunpack.c.l.b16 %v9584
  %v9848 = vunpack.c.l.b16 %v9585
  %v9849 = vunpack.c.l.b16 %v9586
  %v9850 = vunpack.c.l.b16 %v9587
  %v9851 = vunpack.c.l.b16 %v9588
  %v9852 = vunpack.c.l.b16 %v9589
  %v9853 = vunpack.c.l.b16 %v9590
  %v9854 = vunpack.c.l.b16 %v9591
  %v9855 = vunpack.c.l.b16 %v9592
  %v9856 = vunpack.c.l.b16 %v9593
  %v9857 = vunpack.c.l.b16 %v9594
  %v9858 = vunpack.c.l.b16 %v9595
  %v9859 = vunpack.c.l.b16 %v9596
  %v9860 = vunpack.c.l.b16 %v9597
  %v9861 = vunpack.c.l.b16 %v9598
  %v9862 = vunpack.c.l.b16 %v9599
  %v9863 = vunpack.c.l.b16 %v9600
  %v9864 = vunpack.c.l.b16 %v9601
  %v9865 = vunpack.c.l.b16 %v9602
  %v9866 = vunpack.c.l.b16 %v9603
  %v9867 = vunpack.c.l.b16 %v9604
  %v9868 = vunpack.c.l.b16 %v9605
  %v9869 = vunpack.c.l.b16 %v9606
  %v9870 = vunpack.c.l.b16 %v9607
  %v9871 = vunpack.c.l.b16 %v9608
  %v9872 = vunpack.c.l.b16 %v9609
  %v9873 = vunpack.c.l.b16 %v9610
  %v9874 = vunpack.c.l.b16 %v9611
  %v9875 = vunpack.c.l.b16 %v9612
  %v9876 = vunpack.c.l.b16 %v9613
  %v9877 = vunpack.c.l.b16 %v9614
  %v9878 = vunpack.c.l.b16 %v9615
  %v9879 = vunpack.c.l.b16 %v9616
  %v9880 = vunpack.c.l.b16 %v9617
  %v9881 = vunpack.c.l.b16 %v9618
  %v9882 = vunpack.c.l.b16 %v9619
  %v9883 = vunpack.c.l.b16 %v9620
  %v9884 = vunpack.c.l.b16 %v9621
  %v9885 = vunpack.c.l.b16 %v9622
  %v9886 = vunpack.c.l.b16 %v9623
  %v9887 = vunpack.c.l.b16 %v9624
  %v9888 = vunpack.c.l.b16 %v9625
  %v9889 = vunpack.c.l.b16 %v9626
  %v9890 = vunpack.c.l.b16 %v9627
  %v9891 = vunpack.c.l.b16 %v9628
  %v9892 = vunpack.c.l.b16 %v9629
  %v9893 = vunpack.c.l.b16 %v9630
  %v9894 = vunpack.c.l.b16 %v9631
  %v9895 = vunpack.c.l.b16 %v9632
  %v9896 = vunpack.c.l.b16 %v9633
  %v9897 = vunpack.c.l.b16 %v9634
  %v9898 = vunpack.c.l.b16 %v9635
  %v9899 = vunpack.c.l.b16 %v9636
  %v9900 = vunpack.c.l.b16 %v9637
  %v9901 = vunpack.c.l.b16 %v9638
  %v9902 = vunpack.c.l.b16 %v9639
  %v9903 = vunpack.c.l.b16 %v9640
  %v9904 = vunpack.c.l.b16 %v9641
  %v9905 = vunpack.c.l.b16 %v9642
  %v9906 = vunpack.c.l.b16 %v9643
  %v9907 = vunpack.c.l.b16 %v9644
  %v9908 = vunpack.c.l.b16 %v9645
  %v9909 = vunpack.c.l.b16 %v9646
  %v9910 = vunpack.c.l.b16 %v9647
  %v9911 = vunpack.c.l.b16 %v9648
  %v9912 = vunpack.c.l.b16 %v9649
  %v9913 = vunpack.c.l.b16 %v9650
  %v9914 = vunpack.c.l.b16 %v9651
  %v9915 = vunpack.c.l.b16 %v9652
  %v9916 = vunpack.c.l.b16 %v9653
  %v9917 = vunpack.c.l.b16 %v9654
  %v9918 = vunpack.c.l.b16 %v9655
  %v9919 = vunpack.c.l.b16 %v9656
  %v9920 = vunpack.c.l.b16 %v9657
  %v9921 = vunpack.c.l.b16 %v9658
  %v9922 = vunpack.c.l.b16 %v9659
  %v9923 = vunpack.c.l.b16 %v9660
  %v9924 = vunpack.c.l.b16 %v9661
  %v9925 = vunpack.c.l.b16 %v9662
  %v9926 = vunpack.c.l.b16 %v9663
  %v9927 = vunpack.c.l.b16 %v9664
  %v9928 = vunpack.c.l.b16 %v9665
  %v9929 = vunpack.c.l.b16 %v9666
  %v9930 = vunpack.c.l.b16 %v9667
  %v9931 = vunpack.c.l.b16 %v9668
  %v9932 = vunpack.c.l.b16 %v9669
  %v9933 = vunpack.c.l.b16 %v9670
  %v9934 = vunpack.c.l.b16 %v9671
  %v9935 = vunpack.c.l.b16 %v9672
  %v9936 = vunpack.c.l.b16 %v9673
  %v9937 = vunpack.c.l.b16 %v9674
  %v9938 = vunpack.c.l.b16 %v9675
  %v9939 = vunpack.c.l.b16 %v9676
  %v9940 = vunpack.c.l.b16 %v9677
  %v9941 = vunpack.c.l.b16 %v9678
  %v9942 = vunpack.c.l.b16 %v9679
  %v9943 = vunpack.c.l.b16 %v9680
  %v9944 = vpack.c.b16 %v9817, %v9816
  %v9945 = vpack.c.b16 %v9819, %v9818
  %v9946 = vpack.c.b16 %v9821, %v9820
  %v9947 = vpack.c.b16 %v9823, %v9822
  %v9948 = vpack.c.b16 %v9825, %v9824
  %v9949 = vpack.c.b16 %v9827, %v9826
  %v9950 = vpack.c.b16 %v9829, %v9828
  %v9951 = vpack.c.b16 %v9831, %v9830
  %v9952 = vpack.c.b16 %v9833, %v9832
  %v9953 = vpack.c.b16 %v9835, %v9834
  %v9954 = vpack.c.b16 %v9837, %v9836
  %v9955 = vpack.c.b16 %v9839, %v9838
  %v9956 = vpack.c.b16 %v9841, %v9840
  %v9957 = vpack.c.b16 %v9843, %v9842
  %v9958 = vpack.c.b16 %v9845, %v9844
  %v9959 = vpack.c.b16 %v9847, %v9846
  %v9960 = vpack.c.b16 %v9849, %v9848
  %v9961 = vpack.c.b16 %v9851, %v9850
  %v9962 = vpack.c.b16 %v9853, %v9852
  %v9963 = vpack.c.b16 %v9855, %v9854
  %v9964 = vpack.c.b16 %v9857, %v9856
  %v9965 = vpack.c.b16 %v9859, %v9858
  %v9966 = vpack.c.b16 %v9861, %v9860
  %v9967 = vpack.c.b16 %v9863, %v9862
  %v9968 = vpack.c.b16 %v9865, %v9864
  %v9969 = vpack.c.b16 %v9867, %v9866
  %v9970 = vpack.c.b16 %v9869, %v9868
  %v9971 = vpack.c.b16 %v9871, %v9870
  %v9972 = vpack.c.b16 %v9873, %v9872
  %v9973 = vpack.c.b16 %v9875, %v9874
  %v9974 = vpack.c.b16 %v9877, %v9876
  %v9975 = vpack.c.b16 %v9879, %v9878
  %v9976 = vpack.c.b16 %v9881, %v9880
  %v9977 = vpack.c.b16 %v9883, %v9882
  %v9978 = vpack.c.b16 %v9885, %v9884
  %v9979 = vpack.c.b16 %v9887, %v9886
  %v9980 = vpack.c.b16 %v9889, %v9888
  %v9981 = vpack.c.b16 %v9891, %v9890
  %v9982 = vpack.c.b16 %v9893, %v9892
  %v9983 = vpack.c.b16 %v9895, %v9894
  %v9984 = vpack.c.b16 %v9897, %v9896
  %v9985 = vpack.c.b16 %v9899, %v9898
  %v9986 = vpack.c.b16 %v9901, %v9900
  %v9987 = vpack.c.b16 %v9903, %v9902
  %v9988 = vpack.c.b16 %v9905, %v9904
  %v9989 = vpack.c.b16 %v9907, %v9906
  %v9990 = vpack.c.b16 %v9909, %v9908
  %v9991 = vpack.c.b16 %v9911, %v9910
  %v9992 = vpack.c.b16 %v9913, %v9912
  %v9993 = vpack.c.b16 %v9915, %v9914
  %v9994 = vpack.c.b16 %v9917, %v9916
  %v9995 = vpack.c.b16 %v9919, %v9918
  %v9996 = vpack.c.b16 %v9921, %v9920
  %v9997 = vpack.c.b16 %v9923, %v9922
  %v9998 = vpack.c.b16 %v9925, %v9924
  %v9999 = vpack.c.b16 %v9927, %v9926
  %v10000 = vpack.c.b16 %v9929, %v9928
  %v10001 = vpack.c.b16 %v9931, %v9930
  %v10002 = vpack.c.b16 %v9933, %v9932
  %v10003 = vpack.c.b16 %v9935, %v9934
  %v10004 = vpack.c.b16 %v9937, %v9936
  %v10005 = vpack.c.b16 %v9939, %v9938
  %v10006 = vpack.c.b16 %v9941, %v9940
  %v10007 = vpack.c.b16 %v9943, %v9942
  %10072 = vmatprep.subr.bf16.mxu0 0
  %10073 = vmatpush1.bf16.msra.mxu0 %v9951
  %10074 = vmatprep.subr.bf16.mxu0 0
  %10075 = vmatpush1.bf16.msra.mxu0 %v9950
  %10076 = vmatprep.subr.bf16.mxu0 0
  %10077 = vmatpush1.bf16.msra.mxu0 %v9949
  %10078 = vmatprep.subr.bf16.mxu0 0
  %10079 = vmatpush1.bf16.msra.mxu0 %v9948
  %10080 = vmatprep.subr.bf16.mxu0 0
  %10081 = vmatpush1.bf16.msra.mxu0 %v9947
  %10082 = vmatprep.subr.bf16.mxu0 0
  %10083 = vmatpush1.bf16.msra.mxu0 %v9946
  %10084 = vmatprep.subr.bf16.mxu0 0
  %10085 = vmatpush1.bf16.msra.mxu0 %v9945
  %10086 = vmatprep.subr.bf16.mxu0 0
  %10087 = vmatpush1.bf16.msra.mxu0 %v9944
  %10088 = vmatprep.subr.bf16.mxu0 0
  %10089 = vmatpush2.bf16.msra.mxu0 %v9959
  %10090 = vmatprep.subr.bf16.mxu0 0
  %10091 = vmatpush2.bf16.msra.mxu0 %v9958
  %10092 = vmatprep.subr.bf16.mxu0 0
  %10093 = vmatpush2.bf16.msra.mxu0 %v9957
  %10094 = vmatprep.subr.bf16.mxu0 0
  %10095 = vmatpush2.bf16.msra.mxu0 %v9956
  %10096 = vmatprep.subr.bf16.mxu0 0
  %10097 = vmatpush2.bf16.msra.mxu0 %v9955
  %10098 = vmatprep.subr.bf16.mxu0 0
  %10099 = vmatpush2.bf16.msra.mxu0 %v9954
  %10100 = vmatprep.subr.bf16.mxu0 0
  %10101 = vmatpush2.bf16.msra.mxu0 %v9953
  %10102 = vmatprep.subr.bf16.mxu0 0
  %10103 = vmatpush2.bf16.msra.mxu0 %v9952
  %10104 = vmatprep.mubr.bf16.mxu0 %v9499
  %10105 = vmatmul.mubr.bf16.gmra.mxu0 %v9491
  %v10106 = vpop.f32.mrf.mxu0
  %v10107 = vadd.f32 %v9686, %v10106
  %v10108 = vpop.f32.mrf.mxu0
  %v10109 = vpop.f32.mrf.mxu0
  %v10110 = vadd.f32 %v9686, %v10109
  %v10111 = vpop.f32.mrf.mxu0
  %10112 = vmatprep.mubr.bf16.mxu0 %v9503
  %10113 = vmatmul.mubr.bf16.gmra.mxu0 %v9495
  %v10114 = vpop.f32.mrf.mxu0
  %v10115 = vadd.f32 %v9686, %v10114
  %v10116 = vpop.f32.mrf.mxu0
  %v10117 = vpop.f32.mrf.mxu0
  %v10118 = vadd.f32 %v9686, %v10117
  %v10119 = vpop.f32.mrf.mxu0
  %10120 = vdwg.mxu0
  %10121 = vmatprep.subr.bf16.mxu0 0
  %10122 = vmatpush1.bf16.msra.mxu0 %v9967
  %10123 = vmatprep.subr.bf16.mxu0 0
  %10124 = vmatpush1.bf16.msra.mxu0 %v9966
  %10125 = vmatprep.subr.bf16.mxu0 0
  %10126 = vmatpush1.bf16.msra.mxu0 %v9965
  %10127 = vmatprep.subr.bf16.mxu0 0
  %10128 = vmatpush1.bf16.msra.mxu0 %v9964
  %10129 = vmatprep.subr.bf16.mxu0 0
  %10130 = vmatpush1.bf16.msra.mxu0 %v9963
  %10131 = vmatprep.subr.bf16.mxu0 0
  %10132 = vmatpush1.bf16.msra.mxu0 %v9962
  %10133 = vmatprep.subr.bf16.mxu0 0
  %10134 = vmatpush1.bf16.msra.mxu0 %v9961
  %10135 = vmatprep.subr.bf16.mxu0 0
  %10136 = vmatpush1.bf16.msra.mxu0 %v9960
  %10137 = vmatprep.subr.bf16.mxu0 0
  %10138 = vmatpush2.bf16.msra.mxu0 %v9975
  %10139 = vmatprep.subr.bf16.mxu0 0
  %10140 = vmatpush2.bf16.msra.mxu0 %v9974
  %10141 = vmatprep.subr.bf16.mxu0 0
  %10142 = vmatpush2.bf16.msra.mxu0 %v9973
  %10143 = vmatprep.subr.bf16.mxu0 0
  %10144 = vmatpush2.bf16.msra.mxu0 %v9972
  %10145 = vmatprep.subr.bf16.mxu0 0
  %10146 = vmatpush2.bf16.msra.mxu0 %v9971
  %10147 = vmatprep.subr.bf16.mxu0 0
  %10148 = vmatpush2.bf16.msra.mxu0 %v9970
  %10149 = vmatprep.subr.bf16.mxu0 0
  %10150 = vmatpush2.bf16.msra.mxu0 %v9969
  %10151 = vmatprep.subr.bf16.mxu0 0
  %10152 = vmatpush2.bf16.msra.mxu0 %v9968
  %10153 = vmatprep.mubr.bf16.mxu0 %v9515
  %10154 = vmatmul.mubr.bf16.gmra.mxu0 %v9507
  %v10155 = vpop.f32.mrf.mxu0
  %v10156 = vadd.f32 %v10107, %v10155
  %v10157 = vpop.f32.mrf.mxu0
  %v10158 = vpop.f32.mrf.mxu0
  %v10159 = vadd.f32 %v10110, %v10158
  %v10160 = vpop.f32.mrf.mxu0
  %10161 = vmatprep.mubr.bf16.mxu0 %v9519
  %10162 = vmatmul.mubr.bf16.gmra.mxu0 %v9511
  %v10163 = vpop.f32.mrf.mxu0
  %v10164 = vadd.f32 %v10115, %v10163
  %v10165 = vpop.f32.mrf.mxu0
  %v10166 = vpop.f32.mrf.mxu0
  %v10167 = vadd.f32 %v10118, %v10166
  %v10168 = vpop.f32.mrf.mxu0
  %10169 = vdwg.mxu0
  %10170 = vmatprep.subr.bf16.mxu0 0
  %10171 = vmatpush1.bf16.msra.mxu0 %v9983
  %10172 = vmatprep.subr.bf16.mxu0 0
  %10173 = vmatpush1.bf16.msra.mxu0 %v9982
  %10174 = vmatprep.subr.bf16.mxu0 0
  %10175 = vmatpush1.bf16.msra.mxu0 %v9981
  %10176 = vmatprep.subr.bf16.mxu0 0
  %10177 = vmatpush1.bf16.msra.mxu0 %v9980
  %10178 = vmatprep.subr.bf16.mxu0 0
  %10179 = vmatpush1.bf16.msra.mxu0 %v9979
  %10180 = vmatprep.subr.bf16.mxu0 0
  %10181 = vmatpush1.bf16.msra.mxu0 %v9978
  %10182 = vmatprep.subr.bf16.mxu0 0
  %10183 = vmatpush1.bf16.msra.mxu0 %v9977
  %10184 = vmatprep.subr.bf16.mxu0 0
  %10185 = vmatpush1.bf16.msra.mxu0 %v9976
  %10186 = vmatprep.subr.bf16.mxu0 0
  %10187 = vmatpush2.bf16.msra.mxu0 %v9991
  %10188 = vmatprep.subr.bf16.mxu0 0
  %10189 = vmatpush2.bf16.msra.mxu0 %v9990
  %10190 = vmatprep.subr.bf16.mxu0 0
  %10191 = vmatpush2.bf16.msra.mxu0 %v9989
  %10192 = vmatprep.subr.bf16.mxu0 0
  %10193 = vmatpush2.bf16.msra.mxu0 %v9988
  %10194 = vmatprep.subr.bf16.mxu0 0
  %10195 = vmatpush2.bf16.msra.mxu0 %v9987
  %10196 = vmatprep.subr.bf16.mxu0 0
  %10197 = vmatpush2.bf16.msra.mxu0 %v9986
  %10198 = vmatprep.subr.bf16.mxu0 0
  %10199 = vmatpush2.bf16.msra.mxu0 %v9985
  %10200 = vmatprep.subr.bf16.mxu0 0
  %10201 = vmatpush2.bf16.msra.mxu0 %v9984
  %10202 = vmatprep.mubr.bf16.mxu0 %v9531
  %10203 = vmatmul.mubr.bf16.gmra.mxu0 %v9523
  %v10204 = vpop.f32.mrf.mxu0
  %v10205 = vadd.f32 %v10156, %v10204
  %v10206 = vpop.f32.mrf.mxu0
  %v10207 = vpop.f32.mrf.mxu0
  %v10208 = vadd.f32 %v10159, %v10207
  %v10209 = vpop.f32.mrf.mxu0
  %10210 = vmatprep.mubr.bf16.mxu0 %v9535
  %10211 = vmatmul.mubr.bf16.gmra.mxu0 %v9527
  %v10212 = vpop.f32.mrf.mxu0
  %v10213 = vadd.f32 %v10164, %v10212
  %v10214 = vpop.f32.mrf.mxu0
  %v10215 = vpop.f32.mrf.mxu0
  %v10216 = vadd.f32 %v10167, %v10215
  %v10217 = vpop.f32.mrf.mxu0
  %10218 = vdwg.mxu0
  %10219 = vmatprep.subr.bf16.mxu0 0
  %10220 = vmatpush1.bf16.msra.mxu0 %v9999
  %10221 = vmatprep.subr.bf16.mxu0 0
  %10222 = vmatpush1.bf16.msra.mxu0 %v9998
  %10223 = vmatprep.subr.bf16.mxu0 0
  %10224 = vmatpush1.bf16.msra.mxu0 %v9997
  %10225 = vmatprep.subr.bf16.mxu0 0
  %10226 = vmatpush1.bf16.msra.mxu0 %v9996
  %10227 = vmatprep.subr.bf16.mxu0 0
  %10228 = vmatpush1.bf16.msra.mxu0 %v9995
  %10229 = vmatprep.subr.bf16.mxu0 0
  %10230 = vmatpush1.bf16.msra.mxu0 %v9994
  %10231 = vmatprep.subr.bf16.mxu0 0
  %10232 = vmatpush1.bf16.msra.mxu0 %v9993
  %10233 = vmatprep.subr.bf16.mxu0 0
  %10234 = vmatpush1.bf16.msra.mxu0 %v9992
  %10235 = vmatprep.subr.bf16.mxu0 0
  %10236 = vmatpush2.bf16.msra.mxu0 %v10007
  %10237 = vmatprep.subr.bf16.mxu0 0
  %10238 = vmatpush2.bf16.msra.mxu0 %v10006
  %10239 = vmatprep.subr.bf16.mxu0 0
  %10240 = vmatpush2.bf16.msra.mxu0 %v10005
  %10241 = vmatprep.subr.bf16.mxu0 0
  %10242 = vmatpush2.bf16.msra.mxu0 %v10004
  %10243 = vmatprep.subr.bf16.mxu0 0
  %10244 = vmatpush2.bf16.msra.mxu0 %v10003
  %10245 = vmatprep.subr.bf16.mxu0 0
  %10246 = vmatpush2.bf16.msra.mxu0 %v10002
  %10247 = vmatprep.subr.bf16.mxu0 0
  %10248 = vmatpush2.bf16.msra.mxu0 %v10001
  %10249 = vmatprep.subr.bf16.mxu0 0
  %10250 = vmatpush2.bf16.msra.mxu0 %v10000
  %10251 = vmatprep.mubr.bf16.mxu0 %v9547
  %10252 = vmatmul.mubr.bf16.gmra.mxu0 %v9539
  %v10253 = vpop.f32.mrf.mxu0
  %v10254 = vadd.f32 %v10205, %v10253
  %v10255 = vpop.f32.mrf.mxu0
  %v10256 = vpop.f32.mrf.mxu0
  %v10257 = vadd.f32 %v10208, %v10256
  %v10258 = vpop.f32.mrf.mxu0
  %10259 = vmatprep.mubr.bf16.mxu0 %v9551
  %10260 = vmatmul.mubr.bf16.gmra.mxu0 %v9543
  %v10261 = vpop.f32.mrf.mxu0
  %v10262 = vadd.f32 %v10213, %v10261
  %v10263 = vpop.f32.mrf.mxu0
  %v10264 = vpop.f32.mrf.mxu0
  %v10265 = vadd.f32 %v10216, %v10264
  %v10266 = vpop.f32.mrf.mxu0
  %10267 = vdwg.mxu0
  %vm10268 = vcmp.ge.f32.partialorder %v10254, 0.0
  %vm10269 = vcmp.ge.f32.partialorder %v10257, 0.0
  %vm10270 = vcmp.ge.f32.partialorder %v10262, 0.0
  %vm10271 = vcmp.ge.f32.partialorder %v10265, 0.0
  %v10272 = vmul.f32 %v10254, 0.2
  %v10273 = vmul.f32 %v10257, 0.2
  %v10274 = vmul.f32 %v10262, 0.2
  %v10275 = vmul.f32 %v10265, 0.2
  %v10276 = vsel %vm10268, %v10254, %v10272
  %v10277 = vsel %vm10269, %v10257, %v10273
  %v10278 = vsel %vm10270, %v10262, %v10274
  %v10279 = vsel %vm10271, %v10265, %v10275
  %v10284 = vcombine.high %v10276, %v10276
  %v10286 = vunpack.c.l.s4 1983009808
  %v10287 = vunpack.c.0.s8 %v10286
  %v10288 = vlaneseq
  %v10289 = vshrl.u32 %v10288, 7
  %v10290 = vsub.s32 %v10287, %v10289
  %v10291 = vrot.slane %v10276, %v10290
  %v10293 = vunpack.c.l.s4 1983009808
  %v10294 = vunpack.c.0.s8 %v10293
  %v10295 = vlaneseq
  %v10296 = vshrl.u32 %v10295, 7
  %v10297 = vsub.s32 %v10294, %v10296
  %v10298 = vrot.slane %v10284, %v10297
  %v10299 = vcombine.high %v10291, %v10291
  %v10300 = vcombine.high %v10298, %v10298
  %v10301 = vcombine.high %v10277, %v10277
  %v10303 = vunpack.c.l.s4 1983009808
  %v10304 = vunpack.c.0.s8 %v10303
  %v10305 = vlaneseq
  %v10306 = vshrl.u32 %v10305, 7
  %v10307 = vsub.s32 %v10304, %v10306
  %v10308 = vrot.slane %v10277, %v10307
  %v10310 = vunpack.c.l.s4 1983009808
  %v10311 = vunpack.c.0.s8 %v10310
  %v10312 = vlaneseq
  %v10313 = vshrl.u32 %v10312, 7
  %v10314 = vsub.s32 %v10311, %v10313
  %v10315 = vrot.slane %v10301, %v10314
  %v10316 = vcombine.high %v10308, %v10308
  %v10317 = vcombine.high %v10315, %v10315
  %v10318 = vcombine.high %v10278, %v10278
  %v10320 = vunpack.c.l.s4 1983009808
  %v10321 = vunpack.c.0.s8 %v10320
  %v10322 = vlaneseq
  %v10323 = vshrl.u32 %v10322, 7
  %v10324 = vsub.s32 %v10321, %v10323
  %v10325 = vrot.slane %v10278, %v10324
  %v10327 = vunpack.c.l.s4 1983009808
  %v10328 = vunpack.c.0.s8 %v10327
  %v10329 = vlaneseq
  %v10330 = vshrl.u32 %v10329, 7
  %v10331 = vsub.s32 %v10328, %v10330
  %v10332 = vrot.slane %v10318, %v10331
  %v10333 = vcombine.high %v10325, %v10325
  %v10334 = vcombine.high %v10332, %v10332
  %v10335 = vcombine.high %v10279, %v10279
  %v10337 = vunpack.c.l.s4 1983009808
  %v10338 = vunpack.c.0.s8 %v10337
  %v10339 = vlaneseq
  %v10340 = vshrl.u32 %v10339, 7
  %v10341 = vsub.s32 %v10338, %v10340
  %v10342 = vrot.slane %v10279, %v10341
  %v10344 = vunpack.c.l.s4 1983009808
  %v10345 = vunpack.c.0.s8 %v10344
  %v10346 = vlaneseq
  %v10347 = vshrl.u32 %v10346, 7
  %v10348 = vsub.s32 %v10345, %v10347
  %v10349 = vrot.slane %v10335, %v10348
  %v10350 = vcombine.high %v10342, %v10342
  %v10351 = vcombine.high %v10349, %v10349
  %v10368 = vpack.c.bf16 %v10291, %v10291
  %v10369 = vpack.c.bf16 %v10299, %v10299
  %v10370 = vpack.c.bf16 %v10298, %v10298
  %v10371 = vpack.c.bf16 %v10300, %v10300
  %v10372 = vpack.c.bf16 %v10308, %v10308
  %v10373 = vpack.c.bf16 %v10316, %v10316
  %v10374 = vpack.c.bf16 %v10315, %v10315
  %v10375 = vpack.c.bf16 %v10317, %v10317
  %v10376 = vpack.c.bf16 %v10325, %v10325
  %v10377 = vpack.c.bf16 %v10333, %v10333
  %v10378 = vpack.c.bf16 %v10332, %v10332
  %v10379 = vpack.c.bf16 %v10334, %v10334
  %v10380 = vpack.c.bf16 %v10342, %v10342
  %v10381 = vpack.c.bf16 %v10350, %v10350
  %v10382 = vpack.c.bf16 %v10349, %v10349
  %v10383 = vpack.c.bf16 %v10351, %v10351
  %v10385 = vcombine.low 0, %v10373
  %v10387 = vunpack.c.l.s4 1966171168
  %v10388 = vunpack.c.0.s8 %v10387
  %v10389 = vlaneseq
  %v10390 = vshrl.u32 %v10389, 7
  %v10391 = vsub.s32 %v10388, %v10390
  %v10392 = vrot.slane %v10385, %v10391
  %v10393 = vcombine.low %v4078, %v10392
  %v10395 = vunpack.c.l.s4 1966171168
  %v10396 = vunpack.c.0.s8 %v10395
  %v10397 = vlaneseq
  %v10398 = vshrl.u32 %v10397, 7
  %v10399 = vsub.s32 %v10396, %v10398
  %v10400 = vrot.slane %v10393, %v10399
  %v10404 = vcombine.low %v10372, %v10374
  %v10406 = vunpack.c.l.s4 1966171168
  %v10407 = vunpack.c.0.s8 %v10406
  %v10408 = vlaneseq
  %v10409 = vshrl.u32 %v10408, 7
  %v10410 = vsub.s32 %v10407, %v10409
  %v10411 = vrot.slane %v10404, %v10410
  %v10412 = vcombine.low %v4078, %v10411
  %v10414 = vunpack.c.l.s4 1966171168
  %v10415 = vunpack.c.0.s8 %v10414
  %v10416 = vlaneseq
  %v10417 = vshrl.u32 %v10416, 7
  %v10418 = vsub.s32 %v10415, %v10417
  %v10419 = vrot.slane %v10412, %v10418
  %v10422 = vcombine.low %v10373, %v10375
  %v10424 = vunpack.c.l.s4 1966171168
  %v10425 = vunpack.c.0.s8 %v10424
  %v10426 = vlaneseq
  %v10427 = vshrl.u32 %v10426, 7
  %v10428 = vsub.s32 %v10425, %v10427
  %v10429 = vrot.slane %v10422, %v10428
  %v10430 = vcombine.low %v4078, %v10429
  %v10432 = vunpack.c.l.s4 1966171168
  %v10433 = vunpack.c.0.s8 %v10432
  %v10434 = vlaneseq
  %v10435 = vshrl.u32 %v10434, 7
  %v10436 = vsub.s32 %v10433, %v10435
  %v10437 = vrot.slane %v10430, %v10436
  %v10439 = vcombine.low %v10374, 0
  %v10441 = vunpack.c.l.s4 1966171168
  %v10442 = vunpack.c.0.s8 %v10441
  %v10443 = vlaneseq
  %v10444 = vshrl.u32 %v10443, 7
  %v10445 = vsub.s32 %v10442, %v10444
  %v10446 = vrot.slane %v10439, %v10445
  %v10447 = vcombine.low %v4078, %v10446
  %v10449 = vunpack.c.l.s4 1966171168
  %v10450 = vunpack.c.0.s8 %v10449
  %v10451 = vlaneseq
  %v10452 = vshrl.u32 %v10451, 7
  %v10453 = vsub.s32 %v10450, %v10452
  %v10454 = vrot.slane %v10447, %v10453
  %v10458 = vcombine.low 0, %v10369
  %v10459 = vcombine.low 0, %v10377
  %v10461 = vunpack.c.l.s4 1966171168
  %v10462 = vunpack.c.0.s8 %v10461
  %v10463 = vlaneseq
  %v10464 = vshrl.u32 %v10463, 7
  %v10465 = vsub.s32 %v10462, %v10464
  %v10466 = vrot.slane %v10458, %v10465
  %v10468 = vunpack.c.l.s4 1966171168
  %v10469 = vunpack.c.0.s8 %v10468
  %v10470 = vlaneseq
  %v10471 = vshrl.u32 %v10470, 7
  %v10472 = vsub.s32 %v10469, %v10471
  %v10473 = vrot.slane %v10459, %v10472
  %v10474 = vcombine.low %v10466, %v10473
  %v10476 = vunpack.c.l.s4 1966171168
  %v10477 = vunpack.c.0.s8 %v10476
  %v10478 = vlaneseq
  %v10479 = vshrl.u32 %v10478, 7
  %v10480 = vsub.s32 %v10477, %v10479
  %v10481 = vrot.slane %v10474, %v10480
  %v10487 = vcombine.low %v10368, %v10370
  %v10488 = vcombine.low %v10376, %v10378
  %v10490 = vunpack.c.l.s4 1966171168
  %v10491 = vunpack.c.0.s8 %v10490
  %v10492 = vlaneseq
  %v10493 = vshrl.u32 %v10492, 7
  %v10494 = vsub.s32 %v10491, %v10493
  %v10495 = vrot.slane %v10487, %v10494
  %v10497 = vunpack.c.l.s4 1966171168
  %v10498 = vunpack.c.0.s8 %v10497
  %v10499 = vlaneseq
  %v10500 = vshrl.u32 %v10499, 7
  %v10501 = vsub.s32 %v10498, %v10500
  %v10502 = vrot.slane %v10488, %v10501
  %v10503 = vcombine.low %v10495, %v10502
  %v10505 = vunpack.c.l.s4 1966171168
  %v10506 = vunpack.c.0.s8 %v10505
  %v10507 = vlaneseq
  %v10508 = vshrl.u32 %v10507, 7
  %v10509 = vsub.s32 %v10506, %v10508
  %v10510 = vrot.slane %v10503, %v10509
  %v10514 = vcombine.low %v10369, %v10371
  %v10515 = vcombine.low %v10377, %v10379
  %v10517 = vunpack.c.l.s4 1966171168
  %v10518 = vunpack.c.0.s8 %v10517
  %v10519 = vlaneseq
  %v10520 = vshrl.u32 %v10519, 7
  %v10521 = vsub.s32 %v10518, %v10520
  %v10522 = vrot.slane %v10514, %v10521
  %v10524 = vunpack.c.l.s4 1966171168
  %v10525 = vunpack.c.0.s8 %v10524
  %v10526 = vlaneseq
  %v10527 = vshrl.u32 %v10526, 7
  %v10528 = vsub.s32 %v10525, %v10527
  %v10529 = vrot.slane %v10515, %v10528
  %v10530 = vcombine.low %v10522, %v10529
  %v10532 = vunpack.c.l.s4 1966171168
  %v10533 = vunpack.c.0.s8 %v10532
  %v10534 = vlaneseq
  %v10535 = vshrl.u32 %v10534, 7
  %v10536 = vsub.s32 %v10533, %v10535
  %v10537 = vrot.slane %v10530, %v10536
  %v10539 = vcombine.low %v10370, 0
  %v10540 = vcombine.low %v10378, 0
  %v10542 = vunpack.c.l.s4 1966171168
  %v10543 = vunpack.c.0.s8 %v10542
  %v10544 = vlaneseq
  %v10545 = vshrl.u32 %v10544, 7
  %v10546 = vsub.s32 %v10543, %v10545
  %v10547 = vrot.slane %v10539, %v10546
  %v10549 = vunpack.c.l.s4 1966171168
  %v10550 = vunpack.c.0.s8 %v10549
  %v10551 = vlaneseq
  %v10552 = vshrl.u32 %v10551, 7
  %v10553 = vsub.s32 %v10550, %v10552
  %v10554 = vrot.slane %v10540, %v10553
  %v10555 = vcombine.low %v10547, %v10554
  %v10557 = vunpack.c.l.s4 1966171168
  %v10558 = vunpack.c.0.s8 %v10557
  %v10559 = vlaneseq
  %v10560 = vshrl.u32 %v10559, 7
  %v10561 = vsub.s32 %v10558, %v10560
  %v10562 = vrot.slane %v10555, %v10561
  %v10565 = vcombine.low 0, %v10381
  %v10567 = vunpack.c.l.s4 1966171168
  %v10568 = vunpack.c.0.s8 %v10567
  %v10569 = vlaneseq
  %v10570 = vshrl.u32 %v10569, 7
  %v10571 = vsub.s32 %v10568, %v10570
  %v10572 = vrot.slane %v10565, %v10571
  %v10573 = vcombine.low %v10392, %v10572
  %v10575 = vunpack.c.l.s4 1966171168
  %v10576 = vunpack.c.0.s8 %v10575
  %v10577 = vlaneseq
  %v10578 = vshrl.u32 %v10577, 7
  %v10579 = vsub.s32 %v10576, %v10578
  %v10580 = vrot.slane %v10573, %v10579
  %v10584 = vcombine.low %v10380, %v10382
  %v10586 = vunpack.c.l.s4 1966171168
  %v10587 = vunpack.c.0.s8 %v10586
  %v10588 = vlaneseq
  %v10589 = vshrl.u32 %v10588, 7
  %v10590 = vsub.s32 %v10587, %v10589
  %v10591 = vrot.slane %v10584, %v10590
  %v10592 = vcombine.low %v10411, %v10591
  %v10594 = vunpack.c.l.s4 1966171168
  %v10595 = vunpack.c.0.s8 %v10594
  %v10596 = vlaneseq
  %v10597 = vshrl.u32 %v10596, 7
  %v10598 = vsub.s32 %v10595, %v10597
  %v10599 = vrot.slane %v10592, %v10598
  %v10602 = vcombine.low %v10381, %v10383
  %v10604 = vunpack.c.l.s4 1966171168
  %v10605 = vunpack.c.0.s8 %v10604
  %v10606 = vlaneseq
  %v10607 = vshrl.u32 %v10606, 7
  %v10608 = vsub.s32 %v10605, %v10607
  %v10609 = vrot.slane %v10602, %v10608
  %v10610 = vcombine.low %v10429, %v10609
  %v10612 = vunpack.c.l.s4 1966171168
  %v10613 = vunpack.c.0.s8 %v10612
  %v10614 = vlaneseq
  %v10615 = vshrl.u32 %v10614, 7
  %v10616 = vsub.s32 %v10613, %v10615
  %v10617 = vrot.slane %v10610, %v10616
  %v10619 = vcombine.low %v10382, 0
  %v10621 = vunpack.c.l.s4 1966171168
  %v10622 = vunpack.c.0.s8 %v10621
  %v10623 = vlaneseq
  %v10624 = vshrl.u32 %v10623, 7
  %v10625 = vsub.s32 %v10622, %v10624
  %v10626 = vrot.slane %v10619, %v10625
  %v10627 = vcombine.low %v10446, %v10626
  %v10629 = vunpack.c.l.s4 1966171168
  %v10630 = vunpack.c.0.s8 %v10629
  %v10631 = vlaneseq
  %v10632 = vshrl.u32 %v10631, 7
  %v10633 = vsub.s32 %v10630, %v10632
  %v10634 = vrot.slane %v10627, %v10633
  %v10636 = vcombine.low %v10473, %v4078
  %v10638 = vunpack.c.l.s4 1966171168
  %v10639 = vunpack.c.0.s8 %v10638
  %v10640 = vlaneseq
  %v10641 = vshrl.u32 %v10640, 7
  %v10642 = vsub.s32 %v10639, %v10641
  %v10643 = vrot.slane %v10636, %v10642
  %v10645 = vcombine.low %v10502, %v4078
  %v10647 = vunpack.c.l.s4 1966171168
  %v10648 = vunpack.c.0.s8 %v10647
  %v10649 = vlaneseq
  %v10650 = vshrl.u32 %v10649, 7
  %v10651 = vsub.s32 %v10648, %v10650
  %v10652 = vrot.slane %v10645, %v10651
  %v10654 = vcombine.low %v10529, %v4078
  %v10656 = vunpack.c.l.s4 1966171168
  %v10657 = vunpack.c.0.s8 %v10656
  %v10658 = vlaneseq
  %v10659 = vshrl.u32 %v10658, 7
  %v10660 = vsub.s32 %v10657, %v10659
  %v10661 = vrot.slane %v10654, %v10660
  %v10663 = vcombine.low %v10554, %v4078
  %v10665 = vunpack.c.l.s4 1966171168
  %v10666 = vunpack.c.0.s8 %v10665
  %v10667 = vlaneseq
  %v10668 = vshrl.u32 %v10667, 7
  %v10669 = vsub.s32 %v10666, %v10668
  %v10670 = vrot.slane %v10663, %v10669
  %v10672 = vld [vmem:[%s8] sm:$0xff]
  %v10673 = vld [vmem:[%s8 + $0x8] sm:$0xff]
  %v10674 = vld [vmem:[%s8 + $0x10] sm:$0xff]
  %v10675 = vld [vmem:[%s8 + $0x18] sm:$0xff]
  %v10676 = vld [vmem:[%s8 + $0x20] sm:$0xff]
  %v10677 = vld [vmem:[%s8 + $0x28] sm:$0xff]
  %v10678 = vld [vmem:[%s8 + $0x30] sm:$0xff]
  %v10679 = vld [vmem:[%s8 + $0x38] sm:$0xff]
  %v10680 = vld [vmem:[%s8 + $0x40] sm:$0xff]
  %v10681 = vld [vmem:[%s8 + $0x48] sm:$0xff]
  %v10682 = vld [vmem:[%s8 + $0x50] sm:$0xff]
  %v10683 = vld [vmem:[%s8 + $0x58] sm:$0xff]
  %v10684 = vld [vmem:[%s8 + $0x60] sm:$0xff]
  %v10685 = vld [vmem:[%s8 + $0x68] sm:$0xff]
  %v10686 = vld [vmem:[%s8 + $0x70] sm:$0xff]
  %v10687 = vld [vmem:[%s8 + $0x78] sm:$0xff]
  %v10688 = vld [vmem:[%s8 + $0x80] sm:$0xff]
  %v10689 = vld [vmem:[%s8 + $0x88] sm:$0xff]
  %v10690 = vld [vmem:[%s8 + $0x90] sm:$0xff]
  %v10691 = vld [vmem:[%s8 + $0x98] sm:$0xff]
  %v10692 = vld [vmem:[%s8 + $0xa0] sm:$0xff]
  %v10693 = vld [vmem:[%s8 + $0xa8] sm:$0xff]
  %v10694 = vld [vmem:[%s8 + $0xb0] sm:$0xff]
  %v10695 = vld [vmem:[%s8 + $0xb8] sm:$0xff]
  %v10696 = vld [vmem:[%s8 + $0xc0] sm:$0xff]
  %v10697 = vld [vmem:[%s8 + $0xc8] sm:$0xff]
  %v10698 = vld [vmem:[%s8 + $0xd0] sm:$0xff]
  %v10699 = vld [vmem:[%s8 + $0xd8] sm:$0xff]
  %v10700 = vld [vmem:[%s8 + $0xe0] sm:$0xff]
  %v10701 = vld [vmem:[%s8 + $0xe8] sm:$0xff]
  %v10702 = vld [vmem:[%s8 + $0xf0] sm:$0xff]
  %v10703 = vld [vmem:[%s8 + $0xf8] sm:$0xff]
  %v10704 = vld [vmem:[%s8 + $0x100] sm:$0xff]
  %v10705 = vld [vmem:[%s8 + $0x108] sm:$0xff]
  %v10706 = vld [vmem:[%s8 + $0x110] sm:$0xff]
  %v10707 = vld [vmem:[%s8 + $0x118] sm:$0xff]
  %v10708 = vld [vmem:[%s8 + $0x120] sm:$0xff]
  %v10709 = vld [vmem:[%s8 + $0x128] sm:$0xff]
  %v10710 = vld [vmem:[%s8 + $0x130] sm:$0xff]
  %v10711 = vld [vmem:[%s8 + $0x138] sm:$0xff]
  %v10712 = vld [vmem:[%s8 + $0x140] sm:$0xff]
  %v10713 = vld [vmem:[%s8 + $0x148] sm:$0xff]
  %v10714 = vld [vmem:[%s8 + $0x150] sm:$0xff]
  %v10715 = vld [vmem:[%s8 + $0x158] sm:$0xff]
  %v10716 = vld [vmem:[%s8 + $0x160] sm:$0xff]
  %v10717 = vld [vmem:[%s8 + $0x168] sm:$0xff]
  %v10718 = vld [vmem:[%s8 + $0x170] sm:$0xff]
  %v10719 = vld [vmem:[%s8 + $0x178] sm:$0xff]
  %v10720 = vld [vmem:[%s8 + $0x180] sm:$0xff]
  %v10721 = vld [vmem:[%s8 + $0x188] sm:$0xff]
  %v10722 = vld [vmem:[%s8 + $0x190] sm:$0xff]
  %v10723 = vld [vmem:[%s8 + $0x198] sm:$0xff]
  %v10724 = vld [vmem:[%s8 + $0x1a0] sm:$0xff]
  %v10725 = vld [vmem:[%s8 + $0x1a8] sm:$0xff]
  %v10726 = vld [vmem:[%s8 + $0x1b0] sm:$0xff]
  %v10727 = vld [vmem:[%s8 + $0x1b8] sm:$0xff]
  %v10728 = vld [vmem:[%s8 + $0x1c0] sm:$0xff]
  %v10729 = vld [vmem:[%s8 + $0x1c8] sm:$0xff]
  %v10730 = vld [vmem:[%s8 + $0x1d0] sm:$0xff]
  %v10731 = vld [vmem:[%s8 + $0x1d8] sm:$0xff]
  %v10732 = vld [vmem:[%s8 + $0x1e0] sm:$0xff]
  %v10733 = vld [vmem:[%s8 + $0x1e8] sm:$0xff]
  %v10734 = vld [vmem:[%s8 + $0x1f0] sm:$0xff]
  %v10735 = vld [vmem:[%s8 + $0x1f8] sm:$0xff]
  %v10736 = vld [vmem:[%s8 + $0x200] sm:$0xff]
  %v10737 = vld [vmem:[%s8 + $0x208] sm:$0xff]
  %v10738 = vld [vmem:[%s8 + $0x210] sm:$0xff]
  %v10739 = vld [vmem:[%s8 + $0x218] sm:$0xff]
  %v10740 = vld [vmem:[%s8 + $0x220] sm:$0xff]
  %v10741 = vld [vmem:[%s8 + $0x228] sm:$0xff]
  %v10742 = vld [vmem:[%s8 + $0x230] sm:$0xff]
  %v10743 = vld [vmem:[%s8 + $0x238] sm:$0xff]
  %v10744 = vld [vmem:[%s8 + $0x240] sm:$0xff]
  %v10745 = vld [vmem:[%s8 + $0x248] sm:$0xff]
  %v10746 = vld [vmem:[%s8 + $0x250] sm:$0xff]
  %v10747 = vld [vmem:[%s8 + $0x258] sm:$0xff]
  %v10748 = vld [vmem:[%s8 + $0x260] sm:$0xff]
  %v10749 = vld [vmem:[%s8 + $0x268] sm:$0xff]
  %v10750 = vld [vmem:[%s8 + $0x270] sm:$0xff]
  %v10751 = vld [vmem:[%s8 + $0x278] sm:$0xff]
  %v10752 = vld [vmem:[%s8 + $0x280] sm:$0xff]
  %v10753 = vld [vmem:[%s8 + $0x288] sm:$0xff]
  %v10754 = vld [vmem:[%s8 + $0x290] sm:$0xff]
  %v10755 = vld [vmem:[%s8 + $0x298] sm:$0xff]
  %v10756 = vld [vmem:[%s8 + $0x2a0] sm:$0xff]
  %v10757 = vld [vmem:[%s8 + $0x2a8] sm:$0xff]
  %v10758 = vld [vmem:[%s8 + $0x2b0] sm:$0xff]
  %v10759 = vld [vmem:[%s8 + $0x2b8] sm:$0xff]
  %v10760 = vld [vmem:[%s8 + $0x2c0] sm:$0xff]
  %v10761 = vld [vmem:[%s8 + $0x2c8] sm:$0xff]
  %v10762 = vld [vmem:[%s8 + $0x2d0] sm:$0xff]
  %v10763 = vld [vmem:[%s8 + $0x2d8] sm:$0xff]
  %v10764 = vld [vmem:[%s8 + $0x2e0] sm:$0xff]
  %v10765 = vld [vmem:[%s8 + $0x2e8] sm:$0xff]
  %v10766 = vld [vmem:[%s8 + $0x2f0] sm:$0xff]
  %v10767 = vld [vmem:[%s8 + $0x2f8] sm:$0xff]
  %v10768 = vld [vmem:[%s8 + $0x300] sm:$0xff]
  %v10769 = vld [vmem:[%s8 + $0x308] sm:$0xff]
  %v10770 = vld [vmem:[%s8 + $0x310] sm:$0xff]
  %v10771 = vld [vmem:[%s8 + $0x318] sm:$0xff]
  %v10772 = vld [vmem:[%s8 + $0x320] sm:$0xff]
  %v10773 = vld [vmem:[%s8 + $0x328] sm:$0xff]
  %v10774 = vld [vmem:[%s8 + $0x330] sm:$0xff]
  %v10775 = vld [vmem:[%s8 + $0x338] sm:$0xff]
  %v10776 = vld [vmem:[%s8 + $0x340] sm:$0xff]
  %v10777 = vld [vmem:[%s8 + $0x348] sm:$0xff]
  %v10778 = vld [vmem:[%s8 + $0x350] sm:$0xff]
  %v10779 = vld [vmem:[%s8 + $0x358] sm:$0xff]
  %v10780 = vld [vmem:[%s8 + $0x360] sm:$0xff]
  %v10781 = vld [vmem:[%s8 + $0x368] sm:$0xff]
  %v10782 = vld [vmem:[%s8 + $0x370] sm:$0xff]
  %v10783 = vld [vmem:[%s8 + $0x378] sm:$0xff]
  %v10784 = vld [vmem:[%s8 + $0x380] sm:$0xff]
  %v10785 = vld [vmem:[%s8 + $0x388] sm:$0xff]
  %v10786 = vld [vmem:[%s8 + $0x390] sm:$0xff]
  %v10787 = vld [vmem:[%s8 + $0x398] sm:$0xff]
  %v10788 = vld [vmem:[%s8 + $0x3a0] sm:$0xff]
  %v10789 = vld [vmem:[%s8 + $0x3a8] sm:$0xff]
  %v10790 = vld [vmem:[%s8 + $0x3b0] sm:$0xff]
  %v10791 = vld [vmem:[%s8 + $0x3b8] sm:$0xff]
  %v10792 = vld [vmem:[%s8 + $0x3c0] sm:$0xff]
  %v10793 = vld [vmem:[%s8 + $0x3c8] sm:$0xff]
  %v10794 = vld [vmem:[%s8 + $0x3d0] sm:$0xff]
  %v10795 = vld [vmem:[%s8 + $0x3d8] sm:$0xff]
  %v10796 = vld [vmem:[%s8 + $0x3e0] sm:$0xff]
  %v10797 = vld [vmem:[%s8 + $0x3e8] sm:$0xff]
  %v10798 = vld [vmem:[%s8 + $0x3f0] sm:$0xff]
  %v10799 = vld [vmem:[%s8 + $0x3f8] sm:$0xff]
  %v10800 = vld [vmem:[%s8 + $0x400] sm:$0xff]
  %v10801 = vld [vmem:[%s8 + $0x408] sm:$0xff]
  %v10802 = vld [vmem:[%s8 + $0x410] sm:$0xff]
  %v10803 = vld [vmem:[%s8 + $0x418] sm:$0xff]
  %v10804 = vld [vmem:[%s8 + $0x420] sm:$0xff]
  %v10805 = vld [vmem:[%s8 + $0x428] sm:$0xff]
  %v10806 = vld [vmem:[%s8 + $0x430] sm:$0xff]
  %v10807 = vld [vmem:[%s8 + $0x438] sm:$0xff]
  %v10808 = vld [vmem:[%s8 + $0x440] sm:$0xff]
  %v10809 = vld [vmem:[%s8 + $0x448] sm:$0xff]
  %v10810 = vld [vmem:[%s8 + $0x450] sm:$0xff]
  %v10811 = vld [vmem:[%s8 + $0x458] sm:$0xff]
  %v10812 = vld [vmem:[%s8 + $0x460] sm:$0xff]
  %v10813 = vld [vmem:[%s8 + $0x468] sm:$0xff]
  %v10814 = vld [vmem:[%s8 + $0x470] sm:$0xff]
  %v10815 = vld [vmem:[%s8 + $0x478] sm:$0xff]
  %v10816 = vld [vmem:[%s8 + $0x480] sm:$0xff]
  %v10817 = vld [vmem:[%s8 + $0x488] sm:$0xff]
  %v10818 = vld [vmem:[%s8 + $0x490] sm:$0xff]
  %v10819 = vld [vmem:[%s8 + $0x498] sm:$0xff]
  %v10820 = vld [vmem:[%s8 + $0x4a0] sm:$0xff]
  %v10821 = vld [vmem:[%s8 + $0x4a8] sm:$0xff]
  %v10822 = vld [vmem:[%s8 + $0x4b0] sm:$0xff]
  %v10823 = vld [vmem:[%s8 + $0x4b8] sm:$0xff]
  %v10824 = vld [vmem:[%s8 + $0x4c0] sm:$0xff]
  %v10825 = vld [vmem:[%s8 + $0x4c8] sm:$0xff]
  %v10826 = vld [vmem:[%s8 + $0x4d0] sm:$0xff]
  %v10827 = vld [vmem:[%s8 + $0x4d8] sm:$0xff]
  %v10828 = vld [vmem:[%s8 + $0x4e0] sm:$0xff]
  %v10829 = vld [vmem:[%s8 + $0x4e8] sm:$0xff]
  %v10830 = vld [vmem:[%s8 + $0x4f0] sm:$0xff]
  %v10831 = vld [vmem:[%s8 + $0x4f8] sm:$0xff]
  %v10832 = vld [vmem:[%s8 + $0x500] sm:$0xff]
  %v10833 = vld [vmem:[%s8 + $0x508] sm:$0xff]
  %v10834 = vld [vmem:[%s8 + $0x510] sm:$0xff]
  %v10835 = vld [vmem:[%s8 + $0x518] sm:$0xff]
  %v10836 = vld [vmem:[%s8 + $0x520] sm:$0xff]
  %v10837 = vld [vmem:[%s8 + $0x528] sm:$0xff]
  %v10838 = vld [vmem:[%s8 + $0x530] sm:$0xff]
  %v10839 = vld [vmem:[%s8 + $0x538] sm:$0xff]
  %v10840 = vld [vmem:[%s8 + $0x540] sm:$0xff]
  %v10841 = vld [vmem:[%s8 + $0x548] sm:$0xff]
  %v10842 = vld [vmem:[%s8 + $0x550] sm:$0xff]
  %v10843 = vld [vmem:[%s8 + $0x558] sm:$0xff]
  %v10844 = vld [vmem:[%s8 + $0x560] sm:$0xff]
  %v10845 = vld [vmem:[%s8 + $0x568] sm:$0xff]
  %v10846 = vld [vmem:[%s8 + $0x570] sm:$0xff]
  %v10847 = vld [vmem:[%s8 + $0x578] sm:$0xff]
  %v10848 = vld [vmem:[%s8 + $0x580] sm:$0xff]
  %v10849 = vld [vmem:[%s8 + $0x588] sm:$0xff]
  %v10850 = vld [vmem:[%s8 + $0x590] sm:$0xff]
  %v10851 = vld [vmem:[%s8 + $0x598] sm:$0xff]
  %v10852 = vld [vmem:[%s8 + $0x5a0] sm:$0xff]
  %v10853 = vld [vmem:[%s8 + $0x5a8] sm:$0xff]
  %v10854 = vld [vmem:[%s8 + $0x5b0] sm:$0xff]
  %v10855 = vld [vmem:[%s8 + $0x5b8] sm:$0xff]
  %v10856 = vld [vmem:[%s8 + $0x5c0] sm:$0xff]
  %v10857 = vld [vmem:[%s8 + $0x5c8] sm:$0xff]
  %v10858 = vld [vmem:[%s8 + $0x5d0] sm:$0xff]
  %v10859 = vld [vmem:[%s8 + $0x5d8] sm:$0xff]
  %v10860 = vld [vmem:[%s8 + $0x5e0] sm:$0xff]
  %v10861 = vld [vmem:[%s8 + $0x5e8] sm:$0xff]
  %v10862 = vld [vmem:[%s8 + $0x5f0] sm:$0xff]
  %v10863 = vld [vmem:[%s8 + $0x5f8] sm:$0xff]
  %v10864 = vld [vmem:[%s8 + $0x600] sm:$0xff]
  %v10865 = vld [vmem:[%s8 + $0x608] sm:$0xff]
  %v10866 = vld [vmem:[%s8 + $0x610] sm:$0xff]
  %v10867 = vld [vmem:[%s8 + $0x618] sm:$0xff]
  %v10868 = vld [vmem:[%s8 + $0x620] sm:$0xff]
  %v10869 = vld [vmem:[%s8 + $0x628] sm:$0xff]
  %v10870 = vld [vmem:[%s8 + $0x630] sm:$0xff]
  %v10871 = vld [vmem:[%s8 + $0x638] sm:$0xff]
  %v10872 = vld [vmem:[%s8 + $0x640] sm:$0xff]
  %v10873 = vld [vmem:[%s8 + $0x648] sm:$0xff]
  %v10874 = vld [vmem:[%s8 + $0x650] sm:$0xff]
  %v10875 = vld [vmem:[%s8 + $0x658] sm:$0xff]
  %v10876 = vld [vmem:[%s8 + $0x660] sm:$0xff]
  %v10877 = vld [vmem:[%s8 + $0x668] sm:$0xff]
  %v10878 = vld [vmem:[%s8 + $0x670] sm:$0xff]
  %v10879 = vld [vmem:[%s8 + $0x678] sm:$0xff]
  %v10880 = vld [vmem:[%s8 + $0x680] sm:$0xff]
  %v10881 = vld [vmem:[%s8 + $0x688] sm:$0xff]
  %v10882 = vld [vmem:[%s8 + $0x690] sm:$0xff]
  %v10883 = vld [vmem:[%s8 + $0x698] sm:$0xff]
  %v10884 = vld [vmem:[%s8 + $0x6a0] sm:$0xff]
  %v10885 = vld [vmem:[%s8 + $0x6a8] sm:$0xff]
  %v10886 = vld [vmem:[%s8 + $0x6b0] sm:$0xff]
  %v10887 = vld [vmem:[%s8 + $0x6b8] sm:$0xff]
  %v10888 = vld [vmem:[%s8 + $0x6c0] sm:$0xff]
  %v10889 = vld [vmem:[%s8 + $0x6c8] sm:$0xff]
  %v10890 = vld [vmem:[%s8 + $0x6d0] sm:$0xff]
  %v10891 = vld [vmem:[%s8 + $0x6d8] sm:$0xff]
  %v10892 = vld [vmem:[%s8 + $0x6e0] sm:$0xff]
  %v10893 = vld [vmem:[%s8 + $0x6e8] sm:$0xff]
  %v10894 = vld [vmem:[%s8 + $0x6f0] sm:$0xff]
  %v10895 = vld [vmem:[%s8 + $0x6f8] sm:$0xff]
  %v10896 = vld [vmem:[%s8 + $0x700] sm:$0xff]
  %v10897 = vld [vmem:[%s8 + $0x708] sm:$0xff]
  %v10898 = vld [vmem:[%s8 + $0x710] sm:$0xff]
  %v10899 = vld [vmem:[%s8 + $0x718] sm:$0xff]
  %v10900 = vld [vmem:[%s8 + $0x720] sm:$0xff]
  %v10901 = vld [vmem:[%s8 + $0x728] sm:$0xff]
  %v10902 = vld [vmem:[%s8 + $0x730] sm:$0xff]
  %v10903 = vld [vmem:[%s8 + $0x738] sm:$0xff]
  %v10904 = vld [vmem:[%s8 + $0x740] sm:$0xff]
  %v10905 = vld [vmem:[%s8 + $0x748] sm:$0xff]
  %v10906 = vld [vmem:[%s8 + $0x750] sm:$0xff]
  %v10907 = vld [vmem:[%s8 + $0x758] sm:$0xff]
  %v10908 = vld [vmem:[%s8 + $0x760] sm:$0xff]
  %v10909 = vld [vmem:[%s8 + $0x768] sm:$0xff]
  %v10910 = vld [vmem:[%s8 + $0x770] sm:$0xff]
  %v10911 = vld [vmem:[%s8 + $0x778] sm:$0xff]
  %v10912 = vld [vmem:[%s8 + $0x780] sm:$0xff]
  %v10913 = vld [vmem:[%s8 + $0x788] sm:$0xff]
  %v10914 = vld [vmem:[%s8 + $0x790] sm:$0xff]
  %v10915 = vld [vmem:[%s8 + $0x798] sm:$0xff]
  %v10916 = vld [vmem:[%s8 + $0x7a0] sm:$0xff]
  %v10917 = vld [vmem:[%s8 + $0x7a8] sm:$0xff]
  %v10918 = vld [vmem:[%s8 + $0x7b0] sm:$0xff]
  %v10919 = vld [vmem:[%s8 + $0x7b8] sm:$0xff]
  %v10920 = vld [vmem:[%s8 + $0x7c0] sm:$0xff]
  %v10921 = vld [vmem:[%s8 + $0x7c8] sm:$0xff]
  %v10922 = vld [vmem:[%s8 + $0x7d0] sm:$0xff]
  %v10923 = vld [vmem:[%s8 + $0x7d8] sm:$0xff]
  %v10924 = vld [vmem:[%s8 + $0x7e0] sm:$0xff]
  %v10925 = vld [vmem:[%s8 + $0x7e8] sm:$0xff]
  %v10926 = vld [vmem:[%s8 + $0x7f0] sm:$0xff]
  %v10927 = vld [vmem:[%s8 + $0x7f8] sm:$0xff]
  %v10928 = vld [vmem:[%s9] sm:$0x3]
  %v10930 = vlaneseq
  %v10931 = vshrl.u32 %v10930, 7
  %v10932 = vsub.s32 0, %v10931
  %v10933 = vrot.slane %v10928, %v10932
  %v10934 = vlaneseq
  %v10935 = vshrl.u32 %v10934, 7
  %v10936 = vsub.s32 1, %v10935
  %v10937 = vrot.slane %v10928, %v10936
  %v11196 = vunpack.c.l.b16 %v10672
  %v11197 = vunpack.c.h.b16 %v10672
  %v11198 = vunpack.c.l.b16 %v10673
  %v11199 = vunpack.c.h.b16 %v10673
  %v11200 = vunpack.c.l.b16 %v10674
  %v11201 = vunpack.c.h.b16 %v10674
  %v11202 = vunpack.c.l.b16 %v10675
  %v11203 = vunpack.c.h.b16 %v10675
  %v11204 = vunpack.c.l.b16 %v10676
  %v11205 = vunpack.c.h.b16 %v10676
  %v11206 = vunpack.c.l.b16 %v10677
  %v11207 = vunpack.c.h.b16 %v10677
  %v11208 = vunpack.c.l.b16 %v10678
  %v11209 = vunpack.c.h.b16 %v10678
  %v11210 = vunpack.c.l.b16 %v10679
  %v11211 = vunpack.c.h.b16 %v10679
  %v11212 = vunpack.c.l.b16 %v10680
  %v11213 = vunpack.c.h.b16 %v10680
  %v11214 = vunpack.c.l.b16 %v10681
  %v11215 = vunpack.c.h.b16 %v10681
  %v11216 = vunpack.c.l.b16 %v10682
  %v11217 = vunpack.c.h.b16 %v10682
  %v11218 = vunpack.c.l.b16 %v10683
  %v11219 = vunpack.c.h.b16 %v10683
  %v11220 = vunpack.c.l.b16 %v10684
  %v11221 = vunpack.c.h.b16 %v10684
  %v11222 = vunpack.c.l.b16 %v10685
  %v11223 = vunpack.c.h.b16 %v10685
  %v11224 = vunpack.c.l.b16 %v10686
  %v11225 = vunpack.c.h.b16 %v10686
  %v11226 = vunpack.c.l.b16 %v10687
  %v11227 = vunpack.c.h.b16 %v10687
  %v11228 = vunpack.c.l.b16 %v10688
  %v11229 = vunpack.c.h.b16 %v10688
  %v11230 = vunpack.c.l.b16 %v10689
  %v11231 = vunpack.c.h.b16 %v10689
  %v11232 = vunpack.c.l.b16 %v10690
  %v11233 = vunpack.c.h.b16 %v10690
  %v11234 = vunpack.c.l.b16 %v10691
  %v11235 = vunpack.c.h.b16 %v10691
  %v11236 = vunpack.c.l.b16 %v10692
  %v11237 = vunpack.c.h.b16 %v10692
  %v11238 = vunpack.c.l.b16 %v10693
  %v11239 = vunpack.c.h.b16 %v10693
  %v11240 = vunpack.c.l.b16 %v10694
  %v11241 = vunpack.c.h.b16 %v10694
  %v11242 = vunpack.c.l.b16 %v10695
  %v11243 = vunpack.c.h.b16 %v10695
  %v11244 = vunpack.c.l.b16 %v10696
  %v11245 = vunpack.c.h.b16 %v10696
  %v11246 = vunpack.c.l.b16 %v10697
  %v11247 = vunpack.c.h.b16 %v10697
  %v11248 = vunpack.c.l.b16 %v10698
  %v11249 = vunpack.c.h.b16 %v10698
  %v11250 = vunpack.c.l.b16 %v10699
  %v11251 = vunpack.c.h.b16 %v10699
  %v11252 = vunpack.c.l.b16 %v10700
  %v11253 = vunpack.c.h.b16 %v10700
  %v11254 = vunpack.c.l.b16 %v10701
  %v11255 = vunpack.c.h.b16 %v10701
  %v11256 = vunpack.c.l.b16 %v10702
  %v11257 = vunpack.c.h.b16 %v10702
  %v11258 = vunpack.c.l.b16 %v10703
  %v11259 = vunpack.c.h.b16 %v10703
  %v11260 = vunpack.c.l.b16 %v10704
  %v11261 = vunpack.c.h.b16 %v10704
  %v11262 = vunpack.c.l.b16 %v10705
  %v11263 = vunpack.c.h.b16 %v10705
  %v11264 = vunpack.c.l.b16 %v10706
  %v11265 = vunpack.c.h.b16 %v10706
  %v11266 = vunpack.c.l.b16 %v10707
  %v11267 = vunpack.c.h.b16 %v10707
  %v11268 = vunpack.c.l.b16 %v10708
  %v11269 = vunpack.c.h.b16 %v10708
  %v11270 = vunpack.c.l.b16 %v10709
  %v11271 = vunpack.c.h.b16 %v10709
  %v11272 = vunpack.c.l.b16 %v10710
  %v11273 = vunpack.c.h.b16 %v10710
  %v11274 = vunpack.c.l.b16 %v10711
  %v11275 = vunpack.c.h.b16 %v10711
  %v11276 = vunpack.c.l.b16 %v10712
  %v11277 = vunpack.c.h.b16 %v10712
  %v11278 = vunpack.c.l.b16 %v10713
  %v11279 = vunpack.c.h.b16 %v10713
  %v11280 = vunpack.c.l.b16 %v10714
  %v11281 = vunpack.c.h.b16 %v10714
  %v11282 = vunpack.c.l.b16 %v10715
  %v11283 = vunpack.c.h.b16 %v10715
  %v11284 = vunpack.c.l.b16 %v10716
  %v11285 = vunpack.c.h.b16 %v10716
  %v11286 = vunpack.c.l.b16 %v10717
  %v11287 = vunpack.c.h.b16 %v10717
  %v11288 = vunpack.c.l.b16 %v10718
  %v11289 = vunpack.c.h.b16 %v10718
  %v11290 = vunpack.c.l.b16 %v10719
  %v11291 = vunpack.c.h.b16 %v10719
  %v11292 = vunpack.c.l.b16 %v10720
  %v11293 = vunpack.c.h.b16 %v10720
  %v11294 = vunpack.c.l.b16 %v10721
  %v11295 = vunpack.c.h.b16 %v10721
  %v11296 = vunpack.c.l.b16 %v10722
  %v11297 = vunpack.c.h.b16 %v10722
  %v11298 = vunpack.c.l.b16 %v10723
  %v11299 = vunpack.c.h.b16 %v10723
  %v11300 = vunpack.c.l.b16 %v10724
  %v11301 = vunpack.c.h.b16 %v10724
  %v11302 = vunpack.c.l.b16 %v10725
  %v11303 = vunpack.c.h.b16 %v10725
  %v11304 = vunpack.c.l.b16 %v10726
  %v11305 = vunpack.c.h.b16 %v10726
  %v11306 = vunpack.c.l.b16 %v10727
  %v11307 = vunpack.c.h.b16 %v10727
  %v11308 = vunpack.c.l.b16 %v10728
  %v11309 = vunpack.c.h.b16 %v10728
  %v11310 = vunpack.c.l.b16 %v10729
  %v11311 = vunpack.c.h.b16 %v10729
  %v11312 = vunpack.c.l.b16 %v10730
  %v11313 = vunpack.c.h.b16 %v10730
  %v11314 = vunpack.c.l.b16 %v10731
  %v11315 = vunpack.c.h.b16 %v10731
  %v11316 = vunpack.c.l.b16 %v10732
  %v11317 = vunpack.c.h.b16 %v10732
  %v11318 = vunpack.c.l.b16 %v10733
  %v11319 = vunpack.c.h.b16 %v10733
  %v11320 = vunpack.c.l.b16 %v10734
  %v11321 = vunpack.c.h.b16 %v10734
  %v11322 = vunpack.c.l.b16 %v10735
  %v11323 = vunpack.c.h.b16 %v10735
  %v11324 = vunpack.c.l.b16 %v10736
  %v11325 = vunpack.c.h.b16 %v10736
  %v11326 = vunpack.c.l.b16 %v10737
  %v11327 = vunpack.c.h.b16 %v10737
  %v11328 = vunpack.c.l.b16 %v10738
  %v11329 = vunpack.c.h.b16 %v10738
  %v11330 = vunpack.c.l.b16 %v10739
  %v11331 = vunpack.c.h.b16 %v10739
  %v11332 = vunpack.c.l.b16 %v10740
  %v11333 = vunpack.c.h.b16 %v10740
  %v11334 = vunpack.c.l.b16 %v10741
  %v11335 = vunpack.c.h.b16 %v10741
  %v11336 = vunpack.c.l.b16 %v10742
  %v11337 = vunpack.c.h.b16 %v10742
  %v11338 = vunpack.c.l.b16 %v10743
  %v11339 = vunpack.c.h.b16 %v10743
  %v11340 = vunpack.c.l.b16 %v10744
  %v11341 = vunpack.c.h.b16 %v10744
  %v11342 = vunpack.c.l.b16 %v10745
  %v11343 = vunpack.c.h.b16 %v10745
  %v11344 = vunpack.c.l.b16 %v10746
  %v11345 = vunpack.c.h.b16 %v10746
  %v11346 = vunpack.c.l.b16 %v10747
  %v11347 = vunpack.c.h.b16 %v10747
  %v11348 = vunpack.c.l.b16 %v10748
  %v11349 = vunpack.c.h.b16 %v10748
  %v11350 = vunpack.c.l.b16 %v10749
  %v11351 = vunpack.c.h.b16 %v10749
  %v11352 = vunpack.c.l.b16 %v10750
  %v11353 = vunpack.c.h.b16 %v10750
  %v11354 = vunpack.c.l.b16 %v10751
  %v11355 = vunpack.c.h.b16 %v10751
  %v11356 = vunpack.c.l.b16 %v10752
  %v11357 = vunpack.c.h.b16 %v10752
  %v11358 = vunpack.c.l.b16 %v10753
  %v11359 = vunpack.c.h.b16 %v10753
  %v11360 = vunpack.c.l.b16 %v10754
  %v11361 = vunpack.c.h.b16 %v10754
  %v11362 = vunpack.c.l.b16 %v10755
  %v11363 = vunpack.c.h.b16 %v10755
  %v11364 = vunpack.c.l.b16 %v10756
  %v11365 = vunpack.c.h.b16 %v10756
  %v11366 = vunpack.c.l.b16 %v10757
  %v11367 = vunpack.c.h.b16 %v10757
  %v11368 = vunpack.c.l.b16 %v10758
  %v11369 = vunpack.c.h.b16 %v10758
  %v11370 = vunpack.c.l.b16 %v10759
  %v11371 = vunpack.c.h.b16 %v10759
  %v11372 = vunpack.c.l.b16 %v10760
  %v11373 = vunpack.c.h.b16 %v10760
  %v11374 = vunpack.c.l.b16 %v10761
  %v11375 = vunpack.c.h.b16 %v10761
  %v11376 = vunpack.c.l.b16 %v10762
  %v11377 = vunpack.c.h.b16 %v10762
  %v11378 = vunpack.c.l.b16 %v10763
  %v11379 = vunpack.c.h.b16 %v10763
  %v11380 = vunpack.c.l.b16 %v10764
  %v11381 = vunpack.c.h.b16 %v10764
  %v11382 = vunpack.c.l.b16 %v10765
  %v11383 = vunpack.c.h.b16 %v10765
  %v11384 = vunpack.c.l.b16 %v10766
  %v11385 = vunpack.c.h.b16 %v10766
  %v11386 = vunpack.c.l.b16 %v10767
  %v11387 = vunpack.c.h.b16 %v10767
  %v11388 = vunpack.c.l.b16 %v10768
  %v11389 = vunpack.c.h.b16 %v10768
  %v11390 = vunpack.c.l.b16 %v10769
  %v11391 = vunpack.c.h.b16 %v10769
  %v11392 = vunpack.c.l.b16 %v10770
  %v11393 = vunpack.c.h.b16 %v10770
  %v11394 = vunpack.c.l.b16 %v10771
  %v11395 = vunpack.c.h.b16 %v10771
  %v11396 = vunpack.c.l.b16 %v10772
  %v11397 = vunpack.c.h.b16 %v10772
  %v11398 = vunpack.c.l.b16 %v10773
  %v11399 = vunpack.c.h.b16 %v10773
  %v11400 = vunpack.c.l.b16 %v10774
  %v11401 = vunpack.c.h.b16 %v10774
  %v11402 = vunpack.c.l.b16 %v10775
  %v11403 = vunpack.c.h.b16 %v10775
  %v11404 = vunpack.c.l.b16 %v10776
  %v11405 = vunpack.c.h.b16 %v10776
  %v11406 = vunpack.c.l.b16 %v10777
  %v11407 = vunpack.c.h.b16 %v10777
  %v11408 = vunpack.c.l.b16 %v10778
  %v11409 = vunpack.c.h.b16 %v10778
  %v11410 = vunpack.c.l.b16 %v10779
  %v11411 = vunpack.c.h.b16 %v10779
  %v11412 = vunpack.c.l.b16 %v10780
  %v11413 = vunpack.c.h.b16 %v10780
  %v11414 = vunpack.c.l.b16 %v10781
  %v11415 = vunpack.c.h.b16 %v10781
  %v11416 = vunpack.c.l.b16 %v10782
  %v11417 = vunpack.c.h.b16 %v10782
  %v11418 = vunpack.c.l.b16 %v10783
  %v11419 = vunpack.c.h.b16 %v10783
  %v11420 = vunpack.c.l.b16 %v10784
  %v11421 = vunpack.c.h.b16 %v10784
  %v11422 = vunpack.c.l.b16 %v10785
  %v11423 = vunpack.c.h.b16 %v10785
  %v11424 = vunpack.c.l.b16 %v10786
  %v11425 = vunpack.c.h.b16 %v10786
  %v11426 = vunpack.c.l.b16 %v10787
  %v11427 = vunpack.c.h.b16 %v10787
  %v11428 = vunpack.c.l.b16 %v10788
  %v11429 = vunpack.c.h.b16 %v10788
  %v11430 = vunpack.c.l.b16 %v10789
  %v11431 = vunpack.c.h.b16 %v10789
  %v11432 = vunpack.c.l.b16 %v10790
  %v11433 = vunpack.c.h.b16 %v10790
  %v11434 = vunpack.c.l.b16 %v10791
  %v11435 = vunpack.c.h.b16 %v10791
  %v11436 = vunpack.c.l.b16 %v10792
  %v11437 = vunpack.c.h.b16 %v10792
  %v11438 = vunpack.c.l.b16 %v10793
  %v11439 = vunpack.c.h.b16 %v10793
  %v11440 = vunpack.c.l.b16 %v10794
  %v11441 = vunpack.c.h.b16 %v10794
  %v11442 = vunpack.c.l.b16 %v10795
  %v11443 = vunpack.c.h.b16 %v10795
  %v11444 = vunpack.c.l.b16 %v10796
  %v11445 = vunpack.c.h.b16 %v10796
  %v11446 = vunpack.c.l.b16 %v10797
  %v11447 = vunpack.c.h.b16 %v10797
  %v11448 = vunpack.c.l.b16 %v10798
  %v11449 = vunpack.c.h.b16 %v10798
  %v11450 = vunpack.c.l.b16 %v10799
  %v11451 = vunpack.c.h.b16 %v10799
  %v11452 = vunpack.c.l.b16 %v10800
  %v11453 = vunpack.c.h.b16 %v10800
  %v11454 = vunpack.c.l.b16 %v10801
  %v11455 = vunpack.c.h.b16 %v10801
  %v11456 = vunpack.c.l.b16 %v10802
  %v11457 = vunpack.c.h.b16 %v10802
  %v11458 = vunpack.c.l.b16 %v10803
  %v11459 = vunpack.c.h.b16 %v10803
  %v11460 = vunpack.c.l.b16 %v10804
  %v11461 = vunpack.c.h.b16 %v10804
  %v11462 = vunpack.c.l.b16 %v10805
  %v11463 = vunpack.c.h.b16 %v10805
  %v11464 = vunpack.c.l.b16 %v10806
  %v11465 = vunpack.c.h.b16 %v10806
  %v11466 = vunpack.c.l.b16 %v10807
  %v11467 = vunpack.c.h.b16 %v10807
  %v11468 = vunpack.c.l.b16 %v10808
  %v11469 = vunpack.c.h.b16 %v10808
  %v11470 = vunpack.c.l.b16 %v10809
  %v11471 = vunpack.c.h.b16 %v10809
  %v11472 = vunpack.c.l.b16 %v10810
  %v11473 = vunpack.c.h.b16 %v10810
  %v11474 = vunpack.c.l.b16 %v10811
  %v11475 = vunpack.c.h.b16 %v10811
  %v11476 = vunpack.c.l.b16 %v10812
  %v11477 = vunpack.c.h.b16 %v10812
  %v11478 = vunpack.c.l.b16 %v10813
  %v11479 = vunpack.c.h.b16 %v10813
  %v11480 = vunpack.c.l.b16 %v10814
  %v11481 = vunpack.c.h.b16 %v10814
  %v11482 = vunpack.c.l.b16 %v10815
  %v11483 = vunpack.c.h.b16 %v10815
  %v11484 = vunpack.c.l.b16 %v10816
  %v11485 = vunpack.c.h.b16 %v10816
  %v11486 = vunpack.c.l.b16 %v10817
  %v11487 = vunpack.c.h.b16 %v10817
  %v11488 = vunpack.c.l.b16 %v10818
  %v11489 = vunpack.c.h.b16 %v10818
  %v11490 = vunpack.c.l.b16 %v10819
  %v11491 = vunpack.c.h.b16 %v10819
  %v11492 = vunpack.c.l.b16 %v10820
  %v11493 = vunpack.c.h.b16 %v10820
  %v11494 = vunpack.c.l.b16 %v10821
  %v11495 = vunpack.c.h.b16 %v10821
  %v11496 = vunpack.c.l.b16 %v10822
  %v11497 = vunpack.c.h.b16 %v10822
  %v11498 = vunpack.c.l.b16 %v10823
  %v11499 = vunpack.c.h.b16 %v10823
  %v11500 = vunpack.c.l.b16 %v10824
  %v11501 = vunpack.c.h.b16 %v10824
  %v11502 = vunpack.c.l.b16 %v10825
  %v11503 = vunpack.c.h.b16 %v10825
  %v11504 = vunpack.c.l.b16 %v10826
  %v11505 = vunpack.c.h.b16 %v10826
  %v11506 = vunpack.c.l.b16 %v10827
  %v11507 = vunpack.c.h.b16 %v10827
  %v11508 = vunpack.c.l.b16 %v10828
  %v11509 = vunpack.c.h.b16 %v10828
  %v11510 = vunpack.c.l.b16 %v10829
  %v11511 = vunpack.c.h.b16 %v10829
  %v11512 = vunpack.c.l.b16 %v10830
  %v11513 = vunpack.c.h.b16 %v10830
  %v11514 = vunpack.c.l.b16 %v10831
  %v11515 = vunpack.c.h.b16 %v10831
  %v11516 = vunpack.c.l.b16 %v10832
  %v11517 = vunpack.c.h.b16 %v10832
  %v11518 = vunpack.c.l.b16 %v10833
  %v11519 = vunpack.c.h.b16 %v10833
  %v11520 = vunpack.c.l.b16 %v10834
  %v11521 = vunpack.c.h.b16 %v10834
  %v11522 = vunpack.c.l.b16 %v10835
  %v11523 = vunpack.c.h.b16 %v10835
  %v11524 = vunpack.c.l.b16 %v10836
  %v11525 = vunpack.c.h.b16 %v10836
  %v11526 = vunpack.c.l.b16 %v10837
  %v11527 = vunpack.c.h.b16 %v10837
  %v11528 = vunpack.c.l.b16 %v10838
  %v11529 = vunpack.c.h.b16 %v10838
  %v11530 = vunpack.c.l.b16 %v10839
  %v11531 = vunpack.c.h.b16 %v10839
  %v11532 = vunpack.c.l.b16 %v10840
  %v11533 = vunpack.c.h.b16 %v10840
  %v11534 = vunpack.c.l.b16 %v10841
  %v11535 = vunpack.c.h.b16 %v10841
  %v11536 = vunpack.c.l.b16 %v10842
  %v11537 = vunpack.c.h.b16 %v10842
  %v11538 = vunpack.c.l.b16 %v10843
  %v11539 = vunpack.c.h.b16 %v10843
  %v11540 = vunpack.c.l.b16 %v10844
  %v11541 = vunpack.c.h.b16 %v10844
  %v11542 = vunpack.c.l.b16 %v10845
  %v11543 = vunpack.c.h.b16 %v10845
  %v11544 = vunpack.c.l.b16 %v10846
  %v11545 = vunpack.c.h.b16 %v10846
  %v11546 = vunpack.c.l.b16 %v10847
  %v11547 = vunpack.c.h.b16 %v10847
  %v11548 = vunpack.c.l.b16 %v10848
  %v11549 = vunpack.c.h.b16 %v10848
  %v11550 = vunpack.c.l.b16 %v10849
  %v11551 = vunpack.c.h.b16 %v10849
  %v11552 = vunpack.c.l.b16 %v10850
  %v11553 = vunpack.c.h.b16 %v10850
  %v11554 = vunpack.c.l.b16 %v10851
  %v11555 = vunpack.c.h.b16 %v10851
  %v11556 = vunpack.c.l.b16 %v10852
  %v11557 = vunpack.c.h.b16 %v10852
  %v11558 = vunpack.c.l.b16 %v10853
  %v11559 = vunpack.c.h.b16 %v10853
  %v11560 = vunpack.c.l.b16 %v10854
  %v11561 = vunpack.c.h.b16 %v10854
  %v11562 = vunpack.c.l.b16 %v10855
  %v11563 = vunpack.c.h.b16 %v10855
  %v11564 = vunpack.c.l.b16 %v10856
  %v11565 = vunpack.c.h.b16 %v10856
  %v11566 = vunpack.c.l.b16 %v10857
  %v11567 = vunpack.c.h.b16 %v10857
  %v11568 = vunpack.c.l.b16 %v10858
  %v11569 = vunpack.c.h.b16 %v10858
  %v11570 = vunpack.c.l.b16 %v10859
  %v11571 = vunpack.c.h.b16 %v10859
  %v11572 = vunpack.c.l.b16 %v10860
  %v11573 = vunpack.c.h.b16 %v10860
  %v11574 = vunpack.c.l.b16 %v10861
  %v11575 = vunpack.c.h.b16 %v10861
  %v11576 = vunpack.c.l.b16 %v10862
  %v11577 = vunpack.c.h.b16 %v10862
  %v11578 = vunpack.c.l.b16 %v10863
  %v11579 = vunpack.c.h.b16 %v10863
  %v11580 = vunpack.c.l.b16 %v10864
  %v11581 = vunpack.c.h.b16 %v10864
  %v11582 = vunpack.c.l.b16 %v10865
  %v11583 = vunpack.c.h.b16 %v10865
  %v11584 = vunpack.c.l.b16 %v10866
  %v11585 = vunpack.c.h.b16 %v10866
  %v11586 = vunpack.c.l.b16 %v10867
  %v11587 = vunpack.c.h.b16 %v10867
  %v11588 = vunpack.c.l.b16 %v10868
  %v11589 = vunpack.c.h.b16 %v10868
  %v11590 = vunpack.c.l.b16 %v10869
  %v11591 = vunpack.c.h.b16 %v10869
  %v11592 = vunpack.c.l.b16 %v10870
  %v11593 = vunpack.c.h.b16 %v10870
  %v11594 = vunpack.c.l.b16 %v10871
  %v11595 = vunpack.c.h.b16 %v10871
  %v11596 = vunpack.c.l.b16 %v10872
  %v11597 = vunpack.c.h.b16 %v10872
  %v11598 = vunpack.c.l.b16 %v10873
  %v11599 = vunpack.c.h.b16 %v10873
  %v11600 = vunpack.c.l.b16 %v10874
  %v11601 = vunpack.c.h.b16 %v10874
  %v11602 = vunpack.c.l.b16 %v10875
  %v11603 = vunpack.c.h.b16 %v10875
  %v11604 = vunpack.c.l.b16 %v10876
  %v11605 = vunpack.c.h.b16 %v10876
  %v11606 = vunpack.c.l.b16 %v10877
  %v11607 = vunpack.c.h.b16 %v10877
  %v11608 = vunpack.c.l.b16 %v10878
  %v11609 = vunpack.c.h.b16 %v10878
  %v11610 = vunpack.c.l.b16 %v10879
  %v11611 = vunpack.c.h.b16 %v10879
  %v11612 = vunpack.c.l.b16 %v10880
  %v11613 = vunpack.c.h.b16 %v10880
  %v11614 = vunpack.c.l.b16 %v10881
  %v11615 = vunpack.c.h.b16 %v10881
  %v11616 = vunpack.c.l.b16 %v10882
  %v11617 = vunpack.c.h.b16 %v10882
  %v11618 = vunpack.c.l.b16 %v10883
  %v11619 = vunpack.c.h.b16 %v10883
  %v11620 = vunpack.c.l.b16 %v10884
  %v11621 = vunpack.c.h.b16 %v10884
  %v11622 = vunpack.c.l.b16 %v10885
  %v11623 = vunpack.c.h.b16 %v10885
  %v11624 = vunpack.c.l.b16 %v10886
  %v11625 = vunpack.c.h.b16 %v10886
  %v11626 = vunpack.c.l.b16 %v10887
  %v11627 = vunpack.c.h.b16 %v10887
  %v11628 = vunpack.c.l.b16 %v10888
  %v11629 = vunpack.c.h.b16 %v10888
  %v11630 = vunpack.c.l.b16 %v10889
  %v11631 = vunpack.c.h.b16 %v10889
  %v11632 = vunpack.c.l.b16 %v10890
  %v11633 = vunpack.c.h.b16 %v10890
  %v11634 = vunpack.c.l.b16 %v10891
  %v11635 = vunpack.c.h.b16 %v10891
  %v11636 = vunpack.c.l.b16 %v10892
  %v11637 = vunpack.c.h.b16 %v10892
  %v11638 = vunpack.c.l.b16 %v10893
  %v11639 = vunpack.c.h.b16 %v10893
  %v11640 = vunpack.c.l.b16 %v10894
  %v11641 = vunpack.c.h.b16 %v10894
  %v11642 = vunpack.c.l.b16 %v10895
  %v11643 = vunpack.c.h.b16 %v10895
  %v11644 = vunpack.c.l.b16 %v10896
  %v11645 = vunpack.c.h.b16 %v10896
  %v11646 = vunpack.c.l.b16 %v10897
  %v11647 = vunpack.c.h.b16 %v10897
  %v11648 = vunpack.c.l.b16 %v10898
  %v11649 = vunpack.c.h.b16 %v10898
  %v11650 = vunpack.c.l.b16 %v10899
  %v11651 = vunpack.c.h.b16 %v10899
  %v11652 = vunpack.c.l.b16 %v10900
  %v11653 = vunpack.c.h.b16 %v10900
  %v11654 = vunpack.c.l.b16 %v10901
  %v11655 = vunpack.c.h.b16 %v10901
  %v11656 = vunpack.c.l.b16 %v10902
  %v11657 = vunpack.c.h.b16 %v10902
  %v11658 = vunpack.c.l.b16 %v10903
  %v11659 = vunpack.c.h.b16 %v10903
  %v11660 = vunpack.c.l.b16 %v10904
  %v11661 = vunpack.c.h.b16 %v10904
  %v11662 = vunpack.c.l.b16 %v10905
  %v11663 = vunpack.c.h.b16 %v10905
  %v11664 = vunpack.c.l.b16 %v10906
  %v11665 = vunpack.c.h.b16 %v10906
  %v11666 = vunpack.c.l.b16 %v10907
  %v11667 = vunpack.c.h.b16 %v10907
  %v11668 = vunpack.c.l.b16 %v10908
  %v11669 = vunpack.c.h.b16 %v10908
  %v11670 = vunpack.c.l.b16 %v10909
  %v11671 = vunpack.c.h.b16 %v10909
  %v11672 = vunpack.c.l.b16 %v10910
  %v11673 = vunpack.c.h.b16 %v10910
  %v11674 = vunpack.c.l.b16 %v10911
  %v11675 = vunpack.c.h.b16 %v10911
  %v11676 = vunpack.c.l.b16 %v10912
  %v11677 = vunpack.c.h.b16 %v10912
  %v11678 = vunpack.c.l.b16 %v10913
  %v11679 = vunpack.c.h.b16 %v10913
  %v11680 = vunpack.c.l.b16 %v10914
  %v11681 = vunpack.c.h.b16 %v10914
  %v11682 = vunpack.c.l.b16 %v10915
  %v11683 = vunpack.c.h.b16 %v10915
  %v11684 = vunpack.c.l.b16 %v10916
  %v11685 = vunpack.c.h.b16 %v10916
  %v11686 = vunpack.c.l.b16 %v10917
  %v11687 = vunpack.c.h.b16 %v10917
  %v11688 = vunpack.c.l.b16 %v10918
  %v11689 = vunpack.c.h.b16 %v10918
  %v11690 = vunpack.c.l.b16 %v10919
  %v11691 = vunpack.c.h.b16 %v10919
  %v11692 = vunpack.c.l.b16 %v10920
  %v11693 = vunpack.c.h.b16 %v10920
  %v11694 = vunpack.c.l.b16 %v10921
  %v11695 = vunpack.c.h.b16 %v10921
  %v11696 = vunpack.c.l.b16 %v10922
  %v11697 = vunpack.c.h.b16 %v10922
  %v11698 = vunpack.c.l.b16 %v10923
  %v11699 = vunpack.c.h.b16 %v10923
  %v11700 = vunpack.c.l.b16 %v10924
  %v11701 = vunpack.c.h.b16 %v10924
  %v11702 = vunpack.c.l.b16 %v10925
  %v11703 = vunpack.c.h.b16 %v10925
  %v11704 = vunpack.c.l.b16 %v10926
  %v11705 = vunpack.c.h.b16 %v10926
  %v11706 = vunpack.c.l.b16 %v10927
  %v11707 = vunpack.c.h.b16 %v10927
  %v11708 = vpack.c.b16 %v11198, %v11196
  %v11709 = vpack.c.b16 %v11199, %v11197
  %v11710 = vpack.c.b16 %v11202, %v11200
  %v11711 = vpack.c.b16 %v11203, %v11201
  %v11712 = vpack.c.b16 %v11206, %v11204
  %v11713 = vpack.c.b16 %v11207, %v11205
  %v11714 = vpack.c.b16 %v11210, %v11208
  %v11715 = vpack.c.b16 %v11211, %v11209
  %v11716 = vpack.c.b16 %v11214, %v11212
  %v11717 = vpack.c.b16 %v11215, %v11213
  %v11718 = vpack.c.b16 %v11218, %v11216
  %v11719 = vpack.c.b16 %v11219, %v11217
  %v11720 = vpack.c.b16 %v11222, %v11220
  %v11721 = vpack.c.b16 %v11223, %v11221
  %v11722 = vpack.c.b16 %v11226, %v11224
  %v11723 = vpack.c.b16 %v11227, %v11225
  %v11724 = vpack.c.b16 %v11230, %v11228
  %v11725 = vpack.c.b16 %v11231, %v11229
  %v11726 = vpack.c.b16 %v11234, %v11232
  %v11727 = vpack.c.b16 %v11235, %v11233
  %v11728 = vpack.c.b16 %v11238, %v11236
  %v11729 = vpack.c.b16 %v11239, %v11237
  %v11730 = vpack.c.b16 %v11242, %v11240
  %v11731 = vpack.c.b16 %v11243, %v11241
  %v11732 = vpack.c.b16 %v11246, %v11244
  %v11733 = vpack.c.b16 %v11247, %v11245
  %v11734 = vpack.c.b16 %v11250, %v11248
  %v11735 = vpack.c.b16 %v11251, %v11249
  %v11736 = vpack.c.b16 %v11254, %v11252
  %v11737 = vpack.c.b16 %v11255, %v11253
  %v11738 = vpack.c.b16 %v11258, %v11256
  %v11739 = vpack.c.b16 %v11259, %v11257
  %v11740 = vpack.c.b16 %v11262, %v11260
  %v11741 = vpack.c.b16 %v11263, %v11261
  %v11742 = vpack.c.b16 %v11266, %v11264
  %v11743 = vpack.c.b16 %v11267, %v11265
  %v11744 = vpack.c.b16 %v11270, %v11268
  %v11745 = vpack.c.b16 %v11271, %v11269
  %v11746 = vpack.c.b16 %v11274, %v11272
  %v11747 = vpack.c.b16 %v11275, %v11273
  %v11748 = vpack.c.b16 %v11278, %v11276
  %v11749 = vpack.c.b16 %v11279, %v11277
  %v11750 = vpack.c.b16 %v11282, %v11280
  %v11751 = vpack.c.b16 %v11283, %v11281
  %v11752 = vpack.c.b16 %v11286, %v11284
  %v11753 = vpack.c.b16 %v11287, %v11285
  %v11754 = vpack.c.b16 %v11290, %v11288
  %v11755 = vpack.c.b16 %v11291, %v11289
  %v11756 = vpack.c.b16 %v11294, %v11292
  %v11757 = vpack.c.b16 %v11295, %v11293
  %v11758 = vpack.c.b16 %v11298, %v11296
  %v11759 = vpack.c.b16 %v11299, %v11297
  %v11760 = vpack.c.b16 %v11302, %v11300
  %v11761 = vpack.c.b16 %v11303, %v11301
  %v11762 = vpack.c.b16 %v11306, %v11304
  %v11763 = vpack.c.b16 %v11307, %v11305
  %v11764 = vpack.c.b16 %v11310, %v11308
  %v11765 = vpack.c.b16 %v11311, %v11309
  %v11766 = vpack.c.b16 %v11314, %v11312
  %v11767 = vpack.c.b16 %v11315, %v11313
  %v11768 = vpack.c.b16 %v11318, %v11316
  %v11769 = vpack.c.b16 %v11319, %v11317
  %v11770 = vpack.c.b16 %v11322, %v11320
  %v11771 = vpack.c.b16 %v11323, %v11321
  %v11772 = vpack.c.b16 %v11326, %v11324
  %v11773 = vpack.c.b16 %v11327, %v11325
  %v11774 = vpack.c.b16 %v11330, %v11328
  %v11775 = vpack.c.b16 %v11331, %v11329
  %v11776 = vpack.c.b16 %v11334, %v11332
  %v11777 = vpack.c.b16 %v11335, %v11333
  %v11778 = vpack.c.b16 %v11338, %v11336
  %v11779 = vpack.c.b16 %v11339, %v11337
  %v11780 = vpack.c.b16 %v11342, %v11340
  %v11781 = vpack.c.b16 %v11343, %v11341
  %v11782 = vpack.c.b16 %v11346, %v11344
  %v11783 = vpack.c.b16 %v11347, %v11345
  %v11784 = vpack.c.b16 %v11350, %v11348
  %v11785 = vpack.c.b16 %v11351, %v11349
  %v11786 = vpack.c.b16 %v11354, %v11352
  %v11787 = vpack.c.b16 %v11355, %v11353
  %v11788 = vpack.c.b16 %v11358, %v11356
  %v11789 = vpack.c.b16 %v11359, %v11357
  %v11790 = vpack.c.b16 %v11362, %v11360
  %v11791 = vpack.c.b16 %v11363, %v11361
  %v11792 = vpack.c.b16 %v11366, %v11364
  %v11793 = vpack.c.b16 %v11367, %v11365
  %v11794 = vpack.c.b16 %v11370, %v11368
  %v11795 = vpack.c.b16 %v11371, %v11369
  %v11796 = vpack.c.b16 %v11374, %v11372
  %v11797 = vpack.c.b16 %v11375, %v11373
  %v11798 = vpack.c.b16 %v11378, %v11376
  %v11799 = vpack.c.b16 %v11379, %v11377
  %v11800 = vpack.c.b16 %v11382, %v11380
  %v11801 = vpack.c.b16 %v11383, %v11381
  %v11802 = vpack.c.b16 %v11386, %v11384
  %v11803 = vpack.c.b16 %v11387, %v11385
  %v11804 = vpack.c.b16 %v11390, %v11388
  %v11805 = vpack.c.b16 %v11391, %v11389
  %v11806 = vpack.c.b16 %v11394, %v11392
  %v11807 = vpack.c.b16 %v11395, %v11393
  %v11808 = vpack.c.b16 %v11398, %v11396
  %v11809 = vpack.c.b16 %v11399, %v11397
  %v11810 = vpack.c.b16 %v11402, %v11400
  %v11811 = vpack.c.b16 %v11403, %v11401
  %v11812 = vpack.c.b16 %v11406, %v11404
  %v11813 = vpack.c.b16 %v11407, %v11405
  %v11814 = vpack.c.b16 %v11410, %v11408
  %v11815 = vpack.c.b16 %v11411, %v11409
  %v11816 = vpack.c.b16 %v11414, %v11412
  %v11817 = vpack.c.b16 %v11415, %v11413
  %v11818 = vpack.c.b16 %v11418, %v11416
  %v11819 = vpack.c.b16 %v11419, %v11417
  %v11820 = vpack.c.b16 %v11422, %v11420
  %v11821 = vpack.c.b16 %v11423, %v11421
  %v11822 = vpack.c.b16 %v11426, %v11424
  %v11823 = vpack.c.b16 %v11427, %v11425
  %v11824 = vpack.c.b16 %v11430, %v11428
  %v11825 = vpack.c.b16 %v11431, %v11429
  %v11826 = vpack.c.b16 %v11434, %v11432
  %v11827 = vpack.c.b16 %v11435, %v11433
  %v11828 = vpack.c.b16 %v11438, %v11436
  %v11829 = vpack.c.b16 %v11439, %v11437
  %v11830 = vpack.c.b16 %v11442, %v11440
  %v11831 = vpack.c.b16 %v11443, %v11441
  %v11832 = vpack.c.b16 %v11446, %v11444
  %v11833 = vpack.c.b16 %v11447, %v11445
  %v11834 = vpack.c.b16 %v11450, %v11448
  %v11835 = vpack.c.b16 %v11451, %v11449
  %v11836 = vpack.c.b16 %v11454, %v11452
  %v11837 = vpack.c.b16 %v11455, %v11453
  %v11838 = vpack.c.b16 %v11458, %v11456
  %v11839 = vpack.c.b16 %v11459, %v11457
  %v11840 = vpack.c.b16 %v11462, %v11460
  %v11841 = vpack.c.b16 %v11463, %v11461
  %v11842 = vpack.c.b16 %v11466, %v11464
  %v11843 = vpack.c.b16 %v11467, %v11465
  %v11844 = vpack.c.b16 %v11470, %v11468
  %v11845 = vpack.c.b16 %v11471, %v11469
  %v11846 = vpack.c.b16 %v11474, %v11472
  %v11847 = vpack.c.b16 %v11475, %v11473
  %v11848 = vpack.c.b16 %v11478, %v11476
  %v11849 = vpack.c.b16 %v11479, %v11477
  %v11850 = vpack.c.b16 %v11482, %v11480
  %v11851 = vpack.c.b16 %v11483, %v11481
  %v11852 = vpack.c.b16 %v11486, %v11484
  %v11853 = vpack.c.b16 %v11487, %v11485
  %v11854 = vpack.c.b16 %v11490, %v11488
  %v11855 = vpack.c.b16 %v11491, %v11489
  %v11856 = vpack.c.b16 %v11494, %v11492
  %v11857 = vpack.c.b16 %v11495, %v11493
  %v11858 = vpack.c.b16 %v11498, %v11496
  %v11859 = vpack.c.b16 %v11499, %v11497
  %v11860 = vpack.c.b16 %v11502, %v11500
  %v11861 = vpack.c.b16 %v11503, %v11501
  %v11862 = vpack.c.b16 %v11506, %v11504
  %v11863 = vpack.c.b16 %v11507, %v11505
  %v11864 = vpack.c.b16 %v11510, %v11508
  %v11865 = vpack.c.b16 %v11511, %v11509
  %v11866 = vpack.c.b16 %v11514, %v11512
  %v11867 = vpack.c.b16 %v11515, %v11513
  %v11868 = vpack.c.b16 %v11518, %v11516
  %v11869 = vpack.c.b16 %v11519, %v11517
  %v11870 = vpack.c.b16 %v11522, %v11520
  %v11871 = vpack.c.b16 %v11523, %v11521
  %v11872 = vpack.c.b16 %v11526, %v11524
  %v11873 = vpack.c.b16 %v11527, %v11525
  %v11874 = vpack.c.b16 %v11530, %v11528
  %v11875 = vpack.c.b16 %v11531, %v11529
  %v11876 = vpack.c.b16 %v11534, %v11532
  %v11877 = vpack.c.b16 %v11535, %v11533
  %v11878 = vpack.c.b16 %v11538, %v11536
  %v11879 = vpack.c.b16 %v11539, %v11537
  %v11880 = vpack.c.b16 %v11542, %v11540
  %v11881 = vpack.c.b16 %v11543, %v11541
  %v11882 = vpack.c.b16 %v11546, %v11544
  %v11883 = vpack.c.b16 %v11547, %v11545
  %v11884 = vpack.c.b16 %v11550, %v11548
  %v11885 = vpack.c.b16 %v11551, %v11549
  %v11886 = vpack.c.b16 %v11554, %v11552
  %v11887 = vpack.c.b16 %v11555, %v11553
  %v11888 = vpack.c.b16 %v11558, %v11556
  %v11889 = vpack.c.b16 %v11559, %v11557
  %v11890 = vpack.c.b16 %v11562, %v11560
  %v11891 = vpack.c.b16 %v11563, %v11561
  %v11892 = vpack.c.b16 %v11566, %v11564
  %v11893 = vpack.c.b16 %v11567, %v11565
  %v11894 = vpack.c.b16 %v11570, %v11568
  %v11895 = vpack.c.b16 %v11571, %v11569
  %v11896 = vpack.c.b16 %v11574, %v11572
  %v11897 = vpack.c.b16 %v11575, %v11573
  %v11898 = vpack.c.b16 %v11578, %v11576
  %v11899 = vpack.c.b16 %v11579, %v11577
  %v11900 = vpack.c.b16 %v11582, %v11580
  %v11901 = vpack.c.b16 %v11583, %v11581
  %v11902 = vpack.c.b16 %v11586, %v11584
  %v11903 = vpack.c.b16 %v11587, %v11585
  %v11904 = vpack.c.b16 %v11590, %v11588
  %v11905 = vpack.c.b16 %v11591, %v11589
  %v11906 = vpack.c.b16 %v11594, %v11592
  %v11907 = vpack.c.b16 %v11595, %v11593
  %v11908 = vpack.c.b16 %v11598, %v11596
  %v11909 = vpack.c.b16 %v11599, %v11597
  %v11910 = vpack.c.b16 %v11602, %v11600
  %v11911 = vpack.c.b16 %v11603, %v11601
  %v11912 = vpack.c.b16 %v11606, %v11604
  %v11913 = vpack.c.b16 %v11607, %v11605
  %v11914 = vpack.c.b16 %v11610, %v11608
  %v11915 = vpack.c.b16 %v11611, %v11609
  %v11916 = vpack.c.b16 %v11614, %v11612
  %v11917 = vpack.c.b16 %v11615, %v11613
  %v11918 = vpack.c.b16 %v11618, %v11616
  %v11919 = vpack.c.b16 %v11619, %v11617
  %v11920 = vpack.c.b16 %v11622, %v11620
  %v11921 = vpack.c.b16 %v11623, %v11621
  %v11922 = vpack.c.b16 %v11626, %v11624
  %v11923 = vpack.c.b16 %v11627, %v11625
  %v11924 = vpack.c.b16 %v11630, %v11628
  %v11925 = vpack.c.b16 %v11631, %v11629
  %v11926 = vpack.c.b16 %v11634, %v11632
  %v11927 = vpack.c.b16 %v11635, %v11633
  %v11928 = vpack.c.b16 %v11638, %v11636
  %v11929 = vpack.c.b16 %v11639, %v11637
  %v11930 = vpack.c.b16 %v11642, %v11640
  %v11931 = vpack.c.b16 %v11643, %v11641
  %v11932 = vpack.c.b16 %v11646, %v11644
  %v11933 = vpack.c.b16 %v11647, %v11645
  %v11934 = vpack.c.b16 %v11650, %v11648
  %v11935 = vpack.c.b16 %v11651, %v11649
  %v11936 = vpack.c.b16 %v11654, %v11652
  %v11937 = vpack.c.b16 %v11655, %v11653
  %v11938 = vpack.c.b16 %v11658, %v11656
  %v11939 = vpack.c.b16 %v11659, %v11657
  %v11940 = vpack.c.b16 %v11662, %v11660
  %v11941 = vpack.c.b16 %v11663, %v11661
  %v11942 = vpack.c.b16 %v11666, %v11664
  %v11943 = vpack.c.b16 %v11667, %v11665
  %v11944 = vpack.c.b16 %v11670, %v11668
  %v11945 = vpack.c.b16 %v11671, %v11669
  %v11946 = vpack.c.b16 %v11674, %v11672
  %v11947 = vpack.c.b16 %v11675, %v11673
  %v11948 = vpack.c.b16 %v11678, %v11676
  %v11949 = vpack.c.b16 %v11679, %v11677
  %v11950 = vpack.c.b16 %v11682, %v11680
  %v11951 = vpack.c.b16 %v11683, %v11681
  %v11952 = vpack.c.b16 %v11686, %v11684
  %v11953 = vpack.c.b16 %v11687, %v11685
  %v11954 = vpack.c.b16 %v11690, %v11688
  %v11955 = vpack.c.b16 %v11691, %v11689
  %v11956 = vpack.c.b16 %v11694, %v11692
  %v11957 = vpack.c.b16 %v11695, %v11693
  %v11958 = vpack.c.b16 %v11698, %v11696
  %v11959 = vpack.c.b16 %v11699, %v11697
  %v11960 = vpack.c.b16 %v11702, %v11700
  %v11961 = vpack.c.b16 %v11703, %v11701
  %v11962 = vpack.c.b16 %v11706, %v11704
  %v11963 = vpack.c.b16 %v11707, %v11705
  %12220 = vmatprep.subr.bf16.mxu0 %v11723
  %12221 = vmatpush1.bf16.msra.mxu0 %v11722
  %12222 = vmatprep.subr.bf16.mxu0 %v11721
  %12223 = vmatpush1.bf16.msra.mxu0 %v11720
  %12224 = vmatprep.subr.bf16.mxu0 %v11719
  %12225 = vmatpush1.bf16.msra.mxu0 %v11718
  %12226 = vmatprep.subr.bf16.mxu0 %v11717
  %12227 = vmatpush1.bf16.msra.mxu0 %v11716
  %12228 = vmatprep.subr.bf16.mxu0 %v11715
  %12229 = vmatpush1.bf16.msra.mxu0 %v11714
  %12230 = vmatprep.subr.bf16.mxu0 %v11713
  %12231 = vmatpush1.bf16.msra.mxu0 %v11712
  %12232 = vmatprep.subr.bf16.mxu0 %v11711
  %12233 = vmatpush1.bf16.msra.mxu0 %v11710
  %12234 = vmatprep.subr.bf16.mxu0 %v11709
  %12235 = vmatpush1.bf16.msra.mxu0 %v11708
  %12236 = vmatprep.subr.bf16.mxu0 %v11739
  %12237 = vmatpush2.bf16.msra.mxu0 %v11738
  %12238 = vmatprep.subr.bf16.mxu0 %v11737
  %12239 = vmatpush2.bf16.msra.mxu0 %v11736
  %12240 = vmatprep.subr.bf16.mxu0 %v11735
  %12241 = vmatpush2.bf16.msra.mxu0 %v11734
  %12242 = vmatprep.subr.bf16.mxu0 %v11733
  %12243 = vmatpush2.bf16.msra.mxu0 %v11732
  %12244 = vmatprep.subr.bf16.mxu0 %v11731
  %12245 = vmatpush2.bf16.msra.mxu0 %v11730
  %12246 = vmatprep.subr.bf16.mxu0 %v11729
  %12247 = vmatpush2.bf16.msra.mxu0 %v11728
  %12248 = vmatprep.subr.bf16.mxu0 %v11727
  %12249 = vmatpush2.bf16.msra.mxu0 %v11726
  %12250 = vmatprep.subr.bf16.mxu0 %v11725
  %12251 = vmatpush2.bf16.msra.mxu0 %v11724
  %12252 = vmatprep.mubr.bf16.mxu0 %v10419
  %12253 = vmatmul.mubr.bf16.gmra.mxu0 %v10400
  %v12254 = vpop.f32.mrf.mxu0
  %v12255 = vadd.f32 %v10933, %v12254
  %v12256 = vpop.f32.mrf.mxu0
  %v12257 = vadd.f32 %v10937, %v12256
  %v12258 = vpop.f32.mrf.mxu0
  %v12259 = vpop.f32.mrf.mxu0
  %12260 = vdwg.mxu0
  %12261 = vmatprep.subr.bf16.mxu0 %v11755
  %12262 = vmatpush1.bf16.msra.mxu0 %v11754
  %12263 = vmatprep.subr.bf16.mxu0 %v11753
  %12264 = vmatpush1.bf16.msra.mxu0 %v11752
  %12265 = vmatprep.subr.bf16.mxu0 %v11751
  %12266 = vmatpush1.bf16.msra.mxu0 %v11750
  %12267 = vmatprep.subr.bf16.mxu0 %v11749
  %12268 = vmatpush1.bf16.msra.mxu0 %v11748
  %12269 = vmatprep.subr.bf16.mxu0 %v11747
  %12270 = vmatpush1.bf16.msra.mxu0 %v11746
  %12271 = vmatprep.subr.bf16.mxu0 %v11745
  %12272 = vmatpush1.bf16.msra.mxu0 %v11744
  %12273 = vmatprep.subr.bf16.mxu0 %v11743
  %12274 = vmatpush1.bf16.msra.mxu0 %v11742
  %12275 = vmatprep.subr.bf16.mxu0 %v11741
  %12276 = vmatpush1.bf16.msra.mxu0 %v11740
  %12277 = vmatprep.subr.bf16.mxu0 %v11771
  %12278 = vmatpush2.bf16.msra.mxu0 %v11770
  %12279 = vmatprep.subr.bf16.mxu0 %v11769
  %12280 = vmatpush2.bf16.msra.mxu0 %v11768
  %12281 = vmatprep.subr.bf16.mxu0 %v11767
  %12282 = vmatpush2.bf16.msra.mxu0 %v11766
  %12283 = vmatprep.subr.bf16.mxu0 %v11765
  %12284 = vmatpush2.bf16.msra.mxu0 %v11764
  %12285 = vmatprep.subr.bf16.mxu0 %v11763
  %12286 = vmatpush2.bf16.msra.mxu0 %v11762
  %12287 = vmatprep.subr.bf16.mxu0 %v11761
  %12288 = vmatpush2.bf16.msra.mxu0 %v11760
  %12289 = vmatprep.subr.bf16.mxu0 %v11759
  %12290 = vmatpush2.bf16.msra.mxu0 %v11758
  %12291 = vmatprep.subr.bf16.mxu0 %v11757
  %12292 = vmatpush2.bf16.msra.mxu0 %v11756
  %12293 = vmatprep.mubr.bf16.mxu0 %v10454
  %12294 = vmatmul.mubr.bf16.gmra.mxu0 %v10437
  %v12295 = vpop.f32.mrf.mxu0
  %v12296 = vadd.f32 %v12255, %v12295
  %v12297 = vpop.f32.mrf.mxu0
  %v12298 = vadd.f32 %v12257, %v12297
  %v12299 = vpop.f32.mrf.mxu0
  %v12300 = vpop.f32.mrf.mxu0
  %12301 = vdwg.mxu0
  %12302 = vmatprep.subr.bf16.mxu0 %v11787
  %12303 = vmatpush1.bf16.msra.mxu0 %v11786
  %12304 = vmatprep.subr.bf16.mxu0 %v11785
  %12305 = vmatpush1.bf16.msra.mxu0 %v11784
  %12306 = vmatprep.subr.bf16.mxu0 %v11783
  %12307 = vmatpush1.bf16.msra.mxu0 %v11782
  %12308 = vmatprep.subr.bf16.mxu0 %v11781
  %12309 = vmatpush1.bf16.msra.mxu0 %v11780
  %12310 = vmatprep.subr.bf16.mxu0 %v11779
  %12311 = vmatpush1.bf16.msra.mxu0 %v11778
  %12312 = vmatprep.subr.bf16.mxu0 %v11777
  %12313 = vmatpush1.bf16.msra.mxu0 %v11776
  %12314 = vmatprep.subr.bf16.mxu0 %v11775
  %12315 = vmatpush1.bf16.msra.mxu0 %v11774
  %12316 = vmatprep.subr.bf16.mxu0 %v11773
  %12317 = vmatpush1.bf16.msra.mxu0 %v11772
  %12318 = vmatprep.subr.bf16.mxu0 %v11803
  %12319 = vmatpush2.bf16.msra.mxu0 %v11802
  %12320 = vmatprep.subr.bf16.mxu0 %v11801
  %12321 = vmatpush2.bf16.msra.mxu0 %v11800
  %12322 = vmatprep.subr.bf16.mxu0 %v11799
  %12323 = vmatpush2.bf16.msra.mxu0 %v11798
  %12324 = vmatprep.subr.bf16.mxu0 %v11797
  %12325 = vmatpush2.bf16.msra.mxu0 %v11796
  %12326 = vmatprep.subr.bf16.mxu0 %v11795
  %12327 = vmatpush2.bf16.msra.mxu0 %v11794
  %12328 = vmatprep.subr.bf16.mxu0 %v11793
  %12329 = vmatpush2.bf16.msra.mxu0 %v11792
  %12330 = vmatprep.subr.bf16.mxu0 %v11791
  %12331 = vmatpush2.bf16.msra.mxu0 %v11790
  %12332 = vmatprep.subr.bf16.mxu0 %v11789
  %12333 = vmatpush2.bf16.msra.mxu0 %v11788
  %12334 = vmatprep.mubr.bf16.mxu0 %v10510
  %12335 = vmatmul.mubr.bf16.gmra.mxu0 %v10481
  %v12336 = vpop.f32.mrf.mxu0
  %v12337 = vadd.f32 %v12296, %v12336
  %v12338 = vpop.f32.mrf.mxu0
  %v12339 = vadd.f32 %v12298, %v12338
  %v12340 = vpop.f32.mrf.mxu0
  %v12341 = vpop.f32.mrf.mxu0
  %12342 = vdwg.mxu0
  %12343 = vmatprep.subr.bf16.mxu0 %v11819
  %12344 = vmatpush1.bf16.msra.mxu0 %v11818
  %12345 = vmatprep.subr.bf16.mxu0 %v11817
  %12346 = vmatpush1.bf16.msra.mxu0 %v11816
  %12347 = vmatprep.subr.bf16.mxu0 %v11815
  %12348 = vmatpush1.bf16.msra.mxu0 %v11814
  %12349 = vmatprep.subr.bf16.mxu0 %v11813
  %12350 = vmatpush1.bf16.msra.mxu0 %v11812
  %12351 = vmatprep.subr.bf16.mxu0 %v11811
  %12352 = vmatpush1.bf16.msra.mxu0 %v11810
  %12353 = vmatprep.subr.bf16.mxu0 %v11809
  %12354 = vmatpush1.bf16.msra.mxu0 %v11808
  %12355 = vmatprep.subr.bf16.mxu0 %v11807
  %12356 = vmatpush1.bf16.msra.mxu0 %v11806
  %12357 = vmatprep.subr.bf16.mxu0 %v11805
  %12358 = vmatpush1.bf16.msra.mxu0 %v11804
  %12359 = vmatprep.subr.bf16.mxu0 %v11835
  %12360 = vmatpush2.bf16.msra.mxu0 %v11834
  %12361 = vmatprep.subr.bf16.mxu0 %v11833
  %12362 = vmatpush2.bf16.msra.mxu0 %v11832
  %12363 = vmatprep.subr.bf16.mxu0 %v11831
  %12364 = vmatpush2.bf16.msra.mxu0 %v11830
  %12365 = vmatprep.subr.bf16.mxu0 %v11829
  %12366 = vmatpush2.bf16.msra.mxu0 %v11828
  %12367 = vmatprep.subr.bf16.mxu0 %v11827
  %12368 = vmatpush2.bf16.msra.mxu0 %v11826
  %12369 = vmatprep.subr.bf16.mxu0 %v11825
  %12370 = vmatpush2.bf16.msra.mxu0 %v11824
  %12371 = vmatprep.subr.bf16.mxu0 %v11823
  %12372 = vmatpush2.bf16.msra.mxu0 %v11822
  %12373 = vmatprep.subr.bf16.mxu0 %v11821
  %12374 = vmatpush2.bf16.msra.mxu0 %v11820
  %12375 = vmatprep.mubr.bf16.mxu0 %v10562
  %12376 = vmatmul.mubr.bf16.gmra.mxu0 %v10537
  %v12377 = vpop.f32.mrf.mxu0
  %v12378 = vadd.f32 %v12337, %v12377
  %v12379 = vpop.f32.mrf.mxu0
  %v12380 = vadd.f32 %v12339, %v12379
  %v12381 = vpop.f32.mrf.mxu0
  %v12382 = vpop.f32.mrf.mxu0
  %12383 = vdwg.mxu0
  %12384 = vmatprep.subr.bf16.mxu0 %v11851
  %12385 = vmatpush1.bf16.msra.mxu0 %v11850
  %12386 = vmatprep.subr.bf16.mxu0 %v11849
  %12387 = vmatpush1.bf16.msra.mxu0 %v11848
  %12388 = vmatprep.subr.bf16.mxu0 %v11847
  %12389 = vmatpush1.bf16.msra.mxu0 %v11846
  %12390 = vmatprep.subr.bf16.mxu0 %v11845
  %12391 = vmatpush1.bf16.msra.mxu0 %v11844
  %12392 = vmatprep.subr.bf16.mxu0 %v11843
  %12393 = vmatpush1.bf16.msra.mxu0 %v11842
  %12394 = vmatprep.subr.bf16.mxu0 %v11841
  %12395 = vmatpush1.bf16.msra.mxu0 %v11840
  %12396 = vmatprep.subr.bf16.mxu0 %v11839
  %12397 = vmatpush1.bf16.msra.mxu0 %v11838
  %12398 = vmatprep.subr.bf16.mxu0 %v11837
  %12399 = vmatpush1.bf16.msra.mxu0 %v11836
  %12400 = vmatprep.subr.bf16.mxu0 %v11867
  %12401 = vmatpush2.bf16.msra.mxu0 %v11866
  %12402 = vmatprep.subr.bf16.mxu0 %v11865
  %12403 = vmatpush2.bf16.msra.mxu0 %v11864
  %12404 = vmatprep.subr.bf16.mxu0 %v11863
  %12405 = vmatpush2.bf16.msra.mxu0 %v11862
  %12406 = vmatprep.subr.bf16.mxu0 %v11861
  %12407 = vmatpush2.bf16.msra.mxu0 %v11860
  %12408 = vmatprep.subr.bf16.mxu0 %v11859
  %12409 = vmatpush2.bf16.msra.mxu0 %v11858
  %12410 = vmatprep.subr.bf16.mxu0 %v11857
  %12411 = vmatpush2.bf16.msra.mxu0 %v11856
  %12412 = vmatprep.subr.bf16.mxu0 %v11855
  %12413 = vmatpush2.bf16.msra.mxu0 %v11854
  %12414 = vmatprep.subr.bf16.mxu0 %v11853
  %12415 = vmatpush2.bf16.msra.mxu0 %v11852
  %12416 = vmatprep.mubr.bf16.mxu0 %v10599
  %12417 = vmatmul.mubr.bf16.gmra.mxu0 %v10580
  %v12418 = vpop.f32.mrf.mxu0
  %v12419 = vadd.f32 %v12378, %v12418
  %v12420 = vpop.f32.mrf.mxu0
  %v12421 = vadd.f32 %v12380, %v12420
  %v12422 = vpop.f32.mrf.mxu0
  %v12423 = vpop.f32.mrf.mxu0
  %12424 = vdwg.mxu0
  %12425 = vmatprep.subr.bf16.mxu0 %v11883
  %12426 = vmatpush1.bf16.msra.mxu0 %v11882
  %12427 = vmatprep.subr.bf16.mxu0 %v11881
  %12428 = vmatpush1.bf16.msra.mxu0 %v11880
  %12429 = vmatprep.subr.bf16.mxu0 %v11879
  %12430 = vmatpush1.bf16.msra.mxu0 %v11878
  %12431 = vmatprep.subr.bf16.mxu0 %v11877
  %12432 = vmatpush1.bf16.msra.mxu0 %v11876
  %12433 = vmatprep.subr.bf16.mxu0 %v11875
  %12434 = vmatpush1.bf16.msra.mxu0 %v11874
  %12435 = vmatprep.subr.bf16.mxu0 %v11873
  %12436 = vmatpush1.bf16.msra.mxu0 %v11872
  %12437 = vmatprep.subr.bf16.mxu0 %v11871
  %12438 = vmatpush1.bf16.msra.mxu0 %v11870
  %12439 = vmatprep.subr.bf16.mxu0 %v11869
  %12440 = vmatpush1.bf16.msra.mxu0 %v11868
  %12441 = vmatprep.subr.bf16.mxu0 %v11899
  %12442 = vmatpush2.bf16.msra.mxu0 %v11898
  %12443 = vmatprep.subr.bf16.mxu0 %v11897
  %12444 = vmatpush2.bf16.msra.mxu0 %v11896
  %12445 = vmatprep.subr.bf16.mxu0 %v11895
  %12446 = vmatpush2.bf16.msra.mxu0 %v11894
  %12447 = vmatprep.subr.bf16.mxu0 %v11893
  %12448 = vmatpush2.bf16.msra.mxu0 %v11892
  %12449 = vmatprep.subr.bf16.mxu0 %v11891
  %12450 = vmatpush2.bf16.msra.mxu0 %v11890
  %12451 = vmatprep.subr.bf16.mxu0 %v11889
  %12452 = vmatpush2.bf16.msra.mxu0 %v11888
  %12453 = vmatprep.subr.bf16.mxu0 %v11887
  %12454 = vmatpush2.bf16.msra.mxu0 %v11886
  %12455 = vmatprep.subr.bf16.mxu0 %v11885
  %12456 = vmatpush2.bf16.msra.mxu0 %v11884
  %12457 = vmatprep.mubr.bf16.mxu0 %v10634
  %12458 = vmatmul.mubr.bf16.gmra.mxu0 %v10617
  %v12459 = vpop.f32.mrf.mxu0
  %v12460 = vadd.f32 %v12419, %v12459
  %v12461 = vpop.f32.mrf.mxu0
  %v12462 = vadd.f32 %v12421, %v12461
  %v12463 = vpop.f32.mrf.mxu0
  %v12464 = vpop.f32.mrf.mxu0
  %12465 = vdwg.mxu0
  %12466 = vmatprep.subr.bf16.mxu0 %v11915
  %12467 = vmatpush1.bf16.msra.mxu0 %v11914
  %12468 = vmatprep.subr.bf16.mxu0 %v11913
  %12469 = vmatpush1.bf16.msra.mxu0 %v11912
  %12470 = vmatprep.subr.bf16.mxu0 %v11911
  %12471 = vmatpush1.bf16.msra.mxu0 %v11910
  %12472 = vmatprep.subr.bf16.mxu0 %v11909
  %12473 = vmatpush1.bf16.msra.mxu0 %v11908
  %12474 = vmatprep.subr.bf16.mxu0 %v11907
  %12475 = vmatpush1.bf16.msra.mxu0 %v11906
  %12476 = vmatprep.subr.bf16.mxu0 %v11905
  %12477 = vmatpush1.bf16.msra.mxu0 %v11904
  %12478 = vmatprep.subr.bf16.mxu0 %v11903
  %12479 = vmatpush1.bf16.msra.mxu0 %v11902
  %12480 = vmatprep.subr.bf16.mxu0 %v11901
  %12481 = vmatpush1.bf16.msra.mxu0 %v11900
  %12482 = vmatprep.subr.bf16.mxu0 %v11931
  %12483 = vmatpush2.bf16.msra.mxu0 %v11930
  %12484 = vmatprep.subr.bf16.mxu0 %v11929
  %12485 = vmatpush2.bf16.msra.mxu0 %v11928
  %12486 = vmatprep.subr.bf16.mxu0 %v11927
  %12487 = vmatpush2.bf16.msra.mxu0 %v11926
  %12488 = vmatprep.subr.bf16.mxu0 %v11925
  %12489 = vmatpush2.bf16.msra.mxu0 %v11924
  %12490 = vmatprep.subr.bf16.mxu0 %v11923
  %12491 = vmatpush2.bf16.msra.mxu0 %v11922
  %12492 = vmatprep.subr.bf16.mxu0 %v11921
  %12493 = vmatpush2.bf16.msra.mxu0 %v11920
  %12494 = vmatprep.subr.bf16.mxu0 %v11919
  %12495 = vmatpush2.bf16.msra.mxu0 %v11918
  %12496 = vmatprep.subr.bf16.mxu0 %v11917
  %12497 = vmatpush2.bf16.msra.mxu0 %v11916
  %12498 = vmatprep.mubr.bf16.mxu0 %v10652
  %12499 = vmatmul.mubr.bf16.gmra.mxu0 %v10643
  %v12500 = vpop.f32.mrf.mxu0
  %v12501 = vadd.f32 %v12460, %v12500
  %v12502 = vpop.f32.mrf.mxu0
  %v12503 = vadd.f32 %v12462, %v12502
  %v12504 = vpop.f32.mrf.mxu0
  %v12505 = vpop.f32.mrf.mxu0
  %12506 = vdwg.mxu0
  %12507 = vmatprep.subr.bf16.mxu0 %v11947
  %12508 = vmatpush1.bf16.msra.mxu0 %v11946
  %12509 = vmatprep.subr.bf16.mxu0 %v11945
  %12510 = vmatpush1.bf16.msra.mxu0 %v11944
  %12511 = vmatprep.subr.bf16.mxu0 %v11943
  %12512 = vmatpush1.bf16.msra.mxu0 %v11942
  %12513 = vmatprep.subr.bf16.mxu0 %v11941
  %12514 = vmatpush1.bf16.msra.mxu0 %v11940
  %12515 = vmatprep.subr.bf16.mxu0 %v11939
  %12516 = vmatpush1.bf16.msra.mxu0 %v11938
  %12517 = vmatprep.subr.bf16.mxu0 %v11937
  %12518 = vmatpush1.bf16.msra.mxu0 %v11936
  %12519 = vmatprep.subr.bf16.mxu0 %v11935
  %12520 = vmatpush1.bf16.msra.mxu0 %v11934
  %12521 = vmatprep.subr.bf16.mxu0 %v11933
  %12522 = vmatpush1.bf16.msra.mxu0 %v11932
  %12523 = vmatprep.subr.bf16.mxu0 %v11963
  %12524 = vmatpush2.bf16.msra.mxu0 %v11962
  %12525 = vmatprep.subr.bf16.mxu0 %v11961
  %12526 = vmatpush2.bf16.msra.mxu0 %v11960
  %12527 = vmatprep.subr.bf16.mxu0 %v11959
  %12528 = vmatpush2.bf16.msra.mxu0 %v11958
  %12529 = vmatprep.subr.bf16.mxu0 %v11957
  %12530 = vmatpush2.bf16.msra.mxu0 %v11956
  %12531 = vmatprep.subr.bf16.mxu0 %v11955
  %12532 = vmatpush2.bf16.msra.mxu0 %v11954
  %12533 = vmatprep.subr.bf16.mxu0 %v11953
  %12534 = vmatpush2.bf16.msra.mxu0 %v11952
  %12535 = vmatprep.subr.bf16.mxu0 %v11951
  %12536 = vmatpush2.bf16.msra.mxu0 %v11950
  %12537 = vmatprep.subr.bf16.mxu0 %v11949
  %12538 = vmatpush2.bf16.msra.mxu0 %v11948
  %12539 = vmatprep.mubr.bf16.mxu0 %v10670
  %12540 = vmatmul.mubr.bf16.gmra.mxu0 %v10661
  %v12541 = vpop.f32.mrf.mxu0
  %v12542 = vadd.f32 %v12501, %v12541
  %v12543 = vpop.f32.mrf.mxu0
  %v12544 = vadd.f32 %v12503, %v12543
  %v12545 = vpop.f32.mrf.mxu0
  %v12546 = vpop.f32.mrf.mxu0
  %12547 = vdwg.mxu0
  %vm12548 = vcmp.ge.f32.partialorder %v12542, 0.0
  %vm12549 = vcmp.ge.f32.partialorder %v12544, 0.0
  %v12550 = vmul.f32 %v12542, 0.2
  %v12551 = vmul.f32 %v12544, 0.2
  %v12552 = vsel %vm12548, %v12542, %v12550
  %v12553 = vsel %vm12549, %v12544, %v12551
  %v12556 = vcombine.low %v12552, %v12553
  %v12557 = vcombine.high %v12552, %v12553
  %v12559 = vunpack.c.l.s4 1983009808
  %v12560 = vunpack.c.0.s8 %v12559
  %v12561 = vlaneseq
  %v12562 = vshrl.u32 %v12561, 7
  %v12563 = vsub.s32 %v12560, %v12562
  %v12564 = vrot.slane %v12556, %v12563
  %v12566 = vunpack.c.l.s4 1983009808
  %v12567 = vunpack.c.0.s8 %v12566
  %v12568 = vlaneseq
  %v12569 = vshrl.u32 %v12568, 7
  %v12570 = vsub.s32 %v12567, %v12569
  %v12571 = vrot.slane %v12557, %v12570
  %v12572 = vcombine.high %v12564, %v12564
  %v12573 = vcombine.high %v12571, %v12571
  %v12578 = vadd.f32 %v12564, 0.0
  %v12581 = vunpack.c.l.s4 1983009808
  %v12582 = vunpack.c.0.s8 %v12581
  %v12583 = vlaneseq
  %v12584 = vshrl.u32 %v12583, 7
  %v12585 = vsub.s32 %v12582, %v12584
  %v12586 = vrot.slane %v12578, %v12585
  %v12587 = vcombine.high %v12586, %v12586
  %v12590 = vpack.c.bf16 %v12586, %v12586
  %v12591 = vpack.c.bf16 %v12587, %v12587
  %v12592 = vadd.f32 %v12572, 0.0
  %v12595 = vunpack.c.l.s4 1983009808
  %v12596 = vunpack.c.0.s8 %v12595
  %v12597 = vlaneseq
  %v12598 = vshrl.u32 %v12597, 7
  %v12599 = vsub.s32 %v12596, %v12598
  %v12600 = vrot.slane %v12592, %v12599
  %v12601 = vcombine.high %v12600, %v12600
  %v12604 = vpack.c.bf16 %v12600, %v12600
  %v12605 = vpack.c.bf16 %v12601, %v12601
  %v12606 = vadd.f32 %v12571, 0.0
  %v12609 = vunpack.c.l.s4 1983009808
  %v12610 = vunpack.c.0.s8 %v12609
  %v12611 = vlaneseq
  %v12612 = vshrl.u32 %v12611, 7
  %v12613 = vsub.s32 %v12610, %v12612
  %v12614 = vrot.slane %v12606, %v12613
  %v12615 = vcombine.high %v12614, %v12614
  %v12618 = vpack.c.bf16 %v12614, %v12614
  %v12619 = vpack.c.bf16 %v12615, %v12615
  %v12620 = vadd.f32 %v12573, 0.0
  %v12623 = vunpack.c.l.s4 1983009808
  %v12624 = vunpack.c.0.s8 %v12623
  %v12625 = vlaneseq
  %v12626 = vshrl.u32 %v12625, 7
  %v12627 = vsub.s32 %v12624, %v12626
  %v12628 = vrot.slane %v12620, %v12627
  %v12629 = vcombine.high %v12628, %v12628
  %v12632 = vpack.c.bf16 %v12628, %v12628
  %v12633 = vpack.c.bf16 %v12629, %v12629
  %v12634 = vld [vmem:[%s1] sm:$0x3]
  %v12635 = vpack.c.bf16 %v12634, %v12634
  %v12636 = vld [vmem:[%s10] sm:$0xf]
  %v12637 = vld [vmem:[%s10 + $0x4] sm:$0xf]
  %v12638 = vld [vmem:[%s10 + $0x8] sm:$0xf]
  %v12639 = vld [vmem:[%s10 + $0xc] sm:$0xf]
  %v12640 = vld [vmem:[%s10 + $0x10] sm:$0xf]
  %v12641 = vld [vmem:[%s10 + $0x14] sm:$0xf]
  %v12642 = vld [vmem:[%s10 + $0x18] sm:$0xf]
  %v12643 = vld [vmem:[%s10 + $0x1c] sm:$0xf]
  %v12644 = vld [vmem:[%s10 + $0x20] sm:$0xf]
  %v12645 = vld [vmem:[%s10 + $0x24] sm:$0xf]
  %v12646 = vld [vmem:[%s10 + $0x28] sm:$0xf]
  %v12647 = vld [vmem:[%s10 + $0x2c] sm:$0xf]
  %v12648 = vld [vmem:[%s10 + $0x30] sm:$0xf]
  %v12649 = vld [vmem:[%s10 + $0x34] sm:$0xf]
  %v12650 = vld [vmem:[%s10 + $0x38] sm:$0xf]
  %v12651 = vld [vmem:[%s10 + $0x3c] sm:$0xf]
  %v12652 = vld [vmem:[%s10 + $0x40] sm:$0xf]
  %v12653 = vld [vmem:[%s10 + $0x44] sm:$0xf]
  %v12654 = vld [vmem:[%s10 + $0x48] sm:$0xf]
  %v12655 = vld [vmem:[%s10 + $0x4c] sm:$0xf]
  %v12656 = vld [vmem:[%s10 + $0x50] sm:$0xf]
  %v12657 = vld [vmem:[%s10 + $0x54] sm:$0xf]
  %v12658 = vld [vmem:[%s10 + $0x58] sm:$0xf]
  %v12659 = vld [vmem:[%s10 + $0x5c] sm:$0xf]
  %v12660 = vld [vmem:[%s10 + $0x60] sm:$0xf]
  %v12661 = vld [vmem:[%s10 + $0x64] sm:$0xf]
  %v12662 = vld [vmem:[%s10 + $0x68] sm:$0xf]
  %v12663 = vld [vmem:[%s10 + $0x6c] sm:$0xf]
  %v12664 = vld [vmem:[%s10 + $0x70] sm:$0xf]
  %v12665 = vld [vmem:[%s10 + $0x74] sm:$0xf]
  %v12666 = vld [vmem:[%s10 + $0x78] sm:$0xf]
  %v12667 = vld [vmem:[%s10 + $0x7c] sm:$0xf]
  %v12668 = vld [vmem:[%s10 + $0x80] sm:$0xf]
  %v12669 = vld [vmem:[%s10 + $0x84] sm:$0xf]
  %v12670 = vld [vmem:[%s10 + $0x88] sm:$0xf]
  %v12671 = vld [vmem:[%s10 + $0x8c] sm:$0xf]
  %v12672 = vld [vmem:[%s10 + $0x90] sm:$0xf]
  %v12673 = vld [vmem:[%s10 + $0x94] sm:$0xf]
  %v12674 = vld [vmem:[%s10 + $0x98] sm:$0xf]
  %v12675 = vld [vmem:[%s10 + $0x9c] sm:$0xf]
  %v12676 = vld [vmem:[%s10 + $0xa0] sm:$0xf]
  %v12677 = vld [vmem:[%s10 + $0xa4] sm:$0xf]
  %v12678 = vld [vmem:[%s10 + $0xa8] sm:$0xf]
  %v12679 = vld [vmem:[%s10 + $0xac] sm:$0xf]
  %v12680 = vld [vmem:[%s10 + $0xb0] sm:$0xf]
  %v12681 = vld [vmem:[%s10 + $0xb4] sm:$0xf]
  %v12682 = vld [vmem:[%s10 + $0xb8] sm:$0xf]
  %v12683 = vld [vmem:[%s10 + $0xbc] sm:$0xf]
  %v12684 = vld [vmem:[%s10 + $0xc0] sm:$0xf]
  %v12685 = vld [vmem:[%s10 + $0xc4] sm:$0xf]
  %v12686 = vld [vmem:[%s10 + $0xc8] sm:$0xf]
  %v12687 = vld [vmem:[%s10 + $0xcc] sm:$0xf]
  %v12688 = vld [vmem:[%s10 + $0xd0] sm:$0xf]
  %v12689 = vld [vmem:[%s10 + $0xd4] sm:$0xf]
  %v12690 = vld [vmem:[%s10 + $0xd8] sm:$0xf]
  %v12691 = vld [vmem:[%s10 + $0xdc] sm:$0xf]
  %v12692 = vld [vmem:[%s10 + $0xe0] sm:$0xf]
  %v12693 = vld [vmem:[%s10 + $0xe4] sm:$0xf]
  %v12694 = vld [vmem:[%s10 + $0xe8] sm:$0xf]
  %v12695 = vld [vmem:[%s10 + $0xec] sm:$0xf]
  %v12696 = vld [vmem:[%s10 + $0xf0] sm:$0xf]
  %v12697 = vld [vmem:[%s10 + $0xf4] sm:$0xf]
  %v12698 = vld [vmem:[%s10 + $0xf8] sm:$0xf]
  %v12699 = vld [vmem:[%s10 + $0xfc] sm:$0xf]
  %v12700 = vld [vmem:[%s10 + $0x100] sm:$0xf]
  %v12701 = vld [vmem:[%s10 + $0x104] sm:$0xf]
  %v12702 = vld [vmem:[%s10 + $0x108] sm:$0xf]
  %v12703 = vld [vmem:[%s10 + $0x10c] sm:$0xf]
  %v12704 = vld [vmem:[%s10 + $0x110] sm:$0xf]
  %v12705 = vld [vmem:[%s10 + $0x114] sm:$0xf]
  %v12706 = vld [vmem:[%s10 + $0x118] sm:$0xf]
  %v12707 = vld [vmem:[%s10 + $0x11c] sm:$0xf]
  %v12708 = vld [vmem:[%s10 + $0x120] sm:$0xf]
  %v12709 = vld [vmem:[%s10 + $0x124] sm:$0xf]
  %v12710 = vld [vmem:[%s10 + $0x128] sm:$0xf]
  %v12711 = vld [vmem:[%s10 + $0x12c] sm:$0xf]
  %v12712 = vld [vmem:[%s10 + $0x130] sm:$0xf]
  %v12713 = vld [vmem:[%s10 + $0x134] sm:$0xf]
  %v12714 = vld [vmem:[%s10 + $0x138] sm:$0xf]
  %v12715 = vld [vmem:[%s10 + $0x13c] sm:$0xf]
  %v12716 = vld [vmem:[%s10 + $0x140] sm:$0xf]
  %v12717 = vld [vmem:[%s10 + $0x144] sm:$0xf]
  %v12718 = vld [vmem:[%s10 + $0x148] sm:$0xf]
  %v12719 = vld [vmem:[%s10 + $0x14c] sm:$0xf]
  %v12720 = vld [vmem:[%s10 + $0x150] sm:$0xf]
  %v12721 = vld [vmem:[%s10 + $0x154] sm:$0xf]
  %v12722 = vld [vmem:[%s10 + $0x158] sm:$0xf]
  %v12723 = vld [vmem:[%s10 + $0x15c] sm:$0xf]
  %v12724 = vld [vmem:[%s10 + $0x160] sm:$0xf]
  %v12725 = vld [vmem:[%s10 + $0x164] sm:$0xf]
  %v12726 = vld [vmem:[%s10 + $0x168] sm:$0xf]
  %v12727 = vld [vmem:[%s10 + $0x16c] sm:$0xf]
  %v12728 = vld [vmem:[%s10 + $0x170] sm:$0xf]
  %v12729 = vld [vmem:[%s10 + $0x174] sm:$0xf]
  %v12730 = vld [vmem:[%s10 + $0x178] sm:$0xf]
  %v12731 = vld [vmem:[%s10 + $0x17c] sm:$0xf]
  %v12732 = vld [vmem:[%s10 + $0x180] sm:$0xf]
  %v12733 = vld [vmem:[%s10 + $0x184] sm:$0xf]
  %v12734 = vld [vmem:[%s10 + $0x188] sm:$0xf]
  %v12735 = vld [vmem:[%s10 + $0x18c] sm:$0xf]
  %v12736 = vld [vmem:[%s10 + $0x190] sm:$0xf]
  %v12737 = vld [vmem:[%s10 + $0x194] sm:$0xf]
  %v12738 = vld [vmem:[%s10 + $0x198] sm:$0xf]
  %v12739 = vld [vmem:[%s10 + $0x19c] sm:$0xf]
  %v12740 = vld [vmem:[%s10 + $0x1a0] sm:$0xf]
  %v12741 = vld [vmem:[%s10 + $0x1a4] sm:$0xf]
  %v12742 = vld [vmem:[%s10 + $0x1a8] sm:$0xf]
  %v12743 = vld [vmem:[%s10 + $0x1ac] sm:$0xf]
  %v12744 = vld [vmem:[%s10 + $0x1b0] sm:$0xf]
  %v12745 = vld [vmem:[%s10 + $0x1b4] sm:$0xf]
  %v12746 = vld [vmem:[%s10 + $0x1b8] sm:$0xf]
  %v12747 = vld [vmem:[%s10 + $0x1bc] sm:$0xf]
  %v12748 = vld [vmem:[%s10 + $0x1c0] sm:$0xf]
  %v12749 = vld [vmem:[%s10 + $0x1c4] sm:$0xf]
  %v12750 = vld [vmem:[%s10 + $0x1c8] sm:$0xf]
  %v12751 = vld [vmem:[%s10 + $0x1cc] sm:$0xf]
  %v12752 = vld [vmem:[%s10 + $0x1d0] sm:$0xf]
  %v12753 = vld [vmem:[%s10 + $0x1d4] sm:$0xf]
  %v12754 = vld [vmem:[%s10 + $0x1d8] sm:$0xf]
  %v12755 = vld [vmem:[%s10 + $0x1dc] sm:$0xf]
  %v12756 = vld [vmem:[%s10 + $0x1e0] sm:$0xf]
  %v12757 = vld [vmem:[%s10 + $0x1e4] sm:$0xf]
  %v12758 = vld [vmem:[%s10 + $0x1e8] sm:$0xf]
  %v12759 = vld [vmem:[%s10 + $0x1ec] sm:$0xf]
  %v12760 = vld [vmem:[%s10 + $0x1f0] sm:$0xf]
  %v12761 = vld [vmem:[%s10 + $0x1f4] sm:$0xf]
  %v12762 = vld [vmem:[%s10 + $0x1f8] sm:$0xf]
  %v12763 = vld [vmem:[%s10 + $0x1fc] sm:$0xf]
  %v12764 = vld [vmem:[%s10 + $0x200] sm:$0xf]
  %v12765 = vld [vmem:[%s10 + $0x204] sm:$0x1]
  %v12766 = vld [vmem:[%s11] sm:$0x1]
  %v12768 = vlaneseq
  %v12769 = vshrl.u32 %v12768, 7
  %v12770 = vsub.s32 0, %v12769
  %v12771 = vrot.slane %v12766, %v12770
  %v12903 = vunpack.c.l.b16 %v12636
  %v12904 = vunpack.c.l.b16 %v12637
  %v12905 = vunpack.c.l.b16 %v12638
  %v12906 = vunpack.c.l.b16 %v12639
  %v12907 = vunpack.c.l.b16 %v12640
  %v12908 = vunpack.c.l.b16 %v12641
  %v12909 = vunpack.c.l.b16 %v12642
  %v12910 = vunpack.c.l.b16 %v12643
  %v12911 = vunpack.c.l.b16 %v12644
  %v12912 = vunpack.c.l.b16 %v12645
  %v12913 = vunpack.c.l.b16 %v12646
  %v12914 = vunpack.c.l.b16 %v12647
  %v12915 = vunpack.c.l.b16 %v12648
  %v12916 = vunpack.c.l.b16 %v12649
  %v12917 = vunpack.c.l.b16 %v12650
  %v12918 = vunpack.c.l.b16 %v12651
  %v12919 = vunpack.c.l.b16 %v12652
  %v12920 = vunpack.c.l.b16 %v12653
  %v12921 = vunpack.c.l.b16 %v12654
  %v12922 = vunpack.c.l.b16 %v12655
  %v12923 = vunpack.c.l.b16 %v12656
  %v12924 = vunpack.c.l.b16 %v12657
  %v12925 = vunpack.c.l.b16 %v12658
  %v12926 = vunpack.c.l.b16 %v12659
  %v12927 = vunpack.c.l.b16 %v12660
  %v12928 = vunpack.c.l.b16 %v12661
  %v12929 = vunpack.c.l.b16 %v12662
  %v12930 = vunpack.c.l.b16 %v12663
  %v12931 = vunpack.c.l.b16 %v12664
  %v12932 = vunpack.c.l.b16 %v12665
  %v12933 = vunpack.c.l.b16 %v12666
  %v12934 = vunpack.c.l.b16 %v12667
  %v12935 = vunpack.c.l.b16 %v12668
  %v12936 = vunpack.c.l.b16 %v12669
  %v12937 = vunpack.c.l.b16 %v12670
  %v12938 = vunpack.c.l.b16 %v12671
  %v12939 = vunpack.c.l.b16 %v12672
  %v12940 = vunpack.c.l.b16 %v12673
  %v12941 = vunpack.c.l.b16 %v12674
  %v12942 = vunpack.c.l.b16 %v12675
  %v12943 = vunpack.c.l.b16 %v12676
  %v12944 = vunpack.c.l.b16 %v12677
  %v12945 = vunpack.c.l.b16 %v12678
  %v12946 = vunpack.c.l.b16 %v12679
  %v12947 = vunpack.c.l.b16 %v12680
  %v12948 = vunpack.c.l.b16 %v12681
  %v12949 = vunpack.c.l.b16 %v12682
  %v12950 = vunpack.c.l.b16 %v12683
  %v12951 = vunpack.c.l.b16 %v12684
  %v12952 = vunpack.c.l.b16 %v12685
  %v12953 = vunpack.c.l.b16 %v12686
  %v12954 = vunpack.c.l.b16 %v12687
  %v12955 = vunpack.c.l.b16 %v12688
  %v12956 = vunpack.c.l.b16 %v12689
  %v12957 = vunpack.c.l.b16 %v12690
  %v12958 = vunpack.c.l.b16 %v12691
  %v12959 = vunpack.c.l.b16 %v12692
  %v12960 = vunpack.c.l.b16 %v12693
  %v12961 = vunpack.c.l.b16 %v12694
  %v12962 = vunpack.c.l.b16 %v12695
  %v12963 = vunpack.c.l.b16 %v12696
  %v12964 = vunpack.c.l.b16 %v12697
  %v12965 = vunpack.c.l.b16 %v12698
  %v12966 = vunpack.c.l.b16 %v12699
  %v12967 = vunpack.c.l.b16 %v12700
  %v12968 = vunpack.c.l.b16 %v12701
  %v12969 = vunpack.c.l.b16 %v12702
  %v12970 = vunpack.c.l.b16 %v12703
  %v12971 = vunpack.c.l.b16 %v12704
  %v12972 = vunpack.c.l.b16 %v12705
  %v12973 = vunpack.c.l.b16 %v12706
  %v12974 = vunpack.c.l.b16 %v12707
  %v12975 = vunpack.c.l.b16 %v12708
  %v12976 = vunpack.c.l.b16 %v12709
  %v12977 = vunpack.c.l.b16 %v12710
  %v12978 = vunpack.c.l.b16 %v12711
  %v12979 = vunpack.c.l.b16 %v12712
  %v12980 = vunpack.c.l.b16 %v12713
  %v12981 = vunpack.c.l.b16 %v12714
  %v12982 = vunpack.c.l.b16 %v12715
  %v12983 = vunpack.c.l.b16 %v12716
  %v12984 = vunpack.c.l.b16 %v12717
  %v12985 = vunpack.c.l.b16 %v12718
  %v12986 = vunpack.c.l.b16 %v12719
  %v12987 = vunpack.c.l.b16 %v12720
  %v12988 = vunpack.c.l.b16 %v12721
  %v12989 = vunpack.c.l.b16 %v12722
  %v12990 = vunpack.c.l.b16 %v12723
  %v12991 = vunpack.c.l.b16 %v12724
  %v12992 = vunpack.c.l.b16 %v12725
  %v12993 = vunpack.c.l.b16 %v12726
  %v12994 = vunpack.c.l.b16 %v12727
  %v12995 = vunpack.c.l.b16 %v12728
  %v12996 = vunpack.c.l.b16 %v12729
  %v12997 = vunpack.c.l.b16 %v12730
  %v12998 = vunpack.c.l.b16 %v12731
  %v12999 = vunpack.c.l.b16 %v12732
  %v13000 = vunpack.c.l.b16 %v12733
  %v13001 = vunpack.c.l.b16 %v12734
  %v13002 = vunpack.c.l.b16 %v12735
  %v13003 = vunpack.c.l.b16 %v12736
  %v13004 = vunpack.c.l.b16 %v12737
  %v13005 = vunpack.c.l.b16 %v12738
  %v13006 = vunpack.c.l.b16 %v12739
  %v13007 = vunpack.c.l.b16 %v12740
  %v13008 = vunpack.c.l.b16 %v12741
  %v13009 = vunpack.c.l.b16 %v12742
  %v13010 = vunpack.c.l.b16 %v12743
  %v13011 = vunpack.c.l.b16 %v12744
  %v13012 = vunpack.c.l.b16 %v12745
  %v13013 = vunpack.c.l.b16 %v12746
  %v13014 = vunpack.c.l.b16 %v12747
  %v13015 = vunpack.c.l.b16 %v12748
  %v13016 = vunpack.c.l.b16 %v12749
  %v13017 = vunpack.c.l.b16 %v12750
  %v13018 = vunpack.c.l.b16 %v12751
  %v13019 = vunpack.c.l.b16 %v12752
  %v13020 = vunpack.c.l.b16 %v12753
  %v13021 = vunpack.c.l.b16 %v12754
  %v13022 = vunpack.c.l.b16 %v12755
  %v13023 = vunpack.c.l.b16 %v12756
  %v13024 = vunpack.c.l.b16 %v12757
  %v13025 = vunpack.c.l.b16 %v12758
  %v13026 = vunpack.c.l.b16 %v12759
  %v13027 = vunpack.c.l.b16 %v12760
  %v13028 = vunpack.c.l.b16 %v12761
  %v13029 = vunpack.c.l.b16 %v12762
  %v13030 = vunpack.c.l.b16 %v12763
  %v13031 = vunpack.c.l.b16 %v12764
  %v13032 = vunpack.c.l.b16 %v12765
  %v13033 = vpack.c.b16 %v12904, %v12903
  %v13034 = vpack.c.b16 %v12906, %v12905
  %v13035 = vpack.c.b16 %v12908, %v12907
  %v13036 = vpack.c.b16 %v12910, %v12909
  %v13037 = vpack.c.b16 %v12912, %v12911
  %v13038 = vpack.c.b16 %v12914, %v12913
  %v13039 = vpack.c.b16 %v12916, %v12915
  %v13040 = vpack.c.b16 %v12918, %v12917
  %v13041 = vpack.c.b16 %v12920, %v12919
  %v13042 = vpack.c.b16 %v12922, %v12921
  %v13043 = vpack.c.b16 %v12924, %v12923
  %v13044 = vpack.c.b16 %v12926, %v12925
  %v13045 = vpack.c.b16 %v12928, %v12927
  %v13046 = vpack.c.b16 %v12930, %v12929
  %v13047 = vpack.c.b16 %v12932, %v12931
  %v13048 = vpack.c.b16 %v12934, %v12933
  %v13049 = vpack.c.b16 %v12936, %v12935
  %v13050 = vpack.c.b16 %v12938, %v12937
  %v13051 = vpack.c.b16 %v12940, %v12939
  %v13052 = vpack.c.b16 %v12942, %v12941
  %v13053 = vpack.c.b16 %v12944, %v12943
  %v13054 = vpack.c.b16 %v12946, %v12945
  %v13055 = vpack.c.b16 %v12948, %v12947
  %v13056 = vpack.c.b16 %v12950, %v12949
  %v13057 = vpack.c.b16 %v12952, %v12951
  %v13058 = vpack.c.b16 %v12954, %v12953
  %v13059 = vpack.c.b16 %v12956, %v12955
  %v13060 = vpack.c.b16 %v12958, %v12957
  %v13061 = vpack.c.b16 %v12960, %v12959
  %v13062 = vpack.c.b16 %v12962, %v12961
  %v13063 = vpack.c.b16 %v12964, %v12963
  %v13064 = vpack.c.b16 %v12966, %v12965
  %v13065 = vpack.c.b16 %v12968, %v12967
  %v13066 = vpack.c.b16 %v12970, %v12969
  %v13067 = vpack.c.b16 %v12972, %v12971
  %v13068 = vpack.c.b16 %v12974, %v12973
  %v13069 = vpack.c.b16 %v12976, %v12975
  %v13070 = vpack.c.b16 %v12978, %v12977
  %v13071 = vpack.c.b16 %v12980, %v12979
  %v13072 = vpack.c.b16 %v12982, %v12981
  %v13073 = vpack.c.b16 %v12984, %v12983
  %v13074 = vpack.c.b16 %v12986, %v12985
  %v13075 = vpack.c.b16 %v12988, %v12987
  %v13076 = vpack.c.b16 %v12990, %v12989
  %v13077 = vpack.c.b16 %v12992, %v12991
  %v13078 = vpack.c.b16 %v12994, %v12993
  %v13079 = vpack.c.b16 %v12996, %v12995
  %v13080 = vpack.c.b16 %v12998, %v12997
  %v13081 = vpack.c.b16 %v13000, %v12999
  %v13082 = vpack.c.b16 %v13002, %v13001
  %v13083 = vpack.c.b16 %v13004, %v13003
  %v13084 = vpack.c.b16 %v13006, %v13005
  %v13085 = vpack.c.b16 %v13008, %v13007
  %v13086 = vpack.c.b16 %v13010, %v13009
  %v13087 = vpack.c.b16 %v13012, %v13011
  %v13088 = vpack.c.b16 %v13014, %v13013
  %v13089 = vpack.c.b16 %v13016, %v13015
  %v13090 = vpack.c.b16 %v13018, %v13017
  %v13091 = vpack.c.b16 %v13020, %v13019
  %v13092 = vpack.c.b16 %v13022, %v13021
  %v13093 = vpack.c.b16 %v13024, %v13023
  %v13094 = vpack.c.b16 %v13026, %v13025
  %v13095 = vpack.c.b16 %v13028, %v13027
  %v13096 = vpack.c.b16 %v13030, %v13029
  %v13097 = vpack.c.b16 %v13032, %v13031
  %vm13162 = vcmask 80896
  %v13164 = vsel %vm13162, %v12635, 0
  %vm13166 = vcmask 1044480
  %v13168 = vsel %vm13166, %v13097, 0
  %13170 = vmatprep.subr.bf16.mxu0 0
  %13171 = vmatpush1.bf16.msra.mxu0 %v13040
  %13172 = vmatprep.subr.bf16.mxu0 0
  %13173 = vmatpush1.bf16.msra.mxu0 %v13039
  %13174 = vmatprep.subr.bf16.mxu0 0
  %13175 = vmatpush1.bf16.msra.mxu0 %v13038
  %13176 = vmatprep.subr.bf16.mxu0 0
  %13177 = vmatpush1.bf16.msra.mxu0 %v13037
  %13178 = vmatprep.subr.bf16.mxu0 0
  %13179 = vmatpush1.bf16.msra.mxu0 %v13036
  %13180 = vmatprep.subr.bf16.mxu0 0
  %13181 = vmatpush1.bf16.msra.mxu0 %v13035
  %13182 = vmatprep.subr.bf16.mxu0 0
  %13183 = vmatpush1.bf16.msra.mxu0 %v13034
  %13184 = vmatprep.subr.bf16.mxu0 0
  %13185 = vmatpush1.bf16.msra.mxu0 %v13033
  %13186 = vmatprep.subr.bf16.mxu0 0
  %13187 = vmatpush2.bf16.msra.mxu0 %v13048
  %13188 = vmatprep.subr.bf16.mxu0 0
  %13189 = vmatpush2.bf16.msra.mxu0 %v13047
  %13190 = vmatprep.subr.bf16.mxu0 0
  %13191 = vmatpush2.bf16.msra.mxu0 %v13046
  %13192 = vmatprep.subr.bf16.mxu0 0
  %13193 = vmatpush2.bf16.msra.mxu0 %v13045
  %13194 = vmatprep.subr.bf16.mxu0 0
  %13195 = vmatpush2.bf16.msra.mxu0 %v13044
  %13196 = vmatprep.subr.bf16.mxu0 0
  %13197 = vmatpush2.bf16.msra.mxu0 %v13043
  %13198 = vmatprep.subr.bf16.mxu0 0
  %13199 = vmatpush2.bf16.msra.mxu0 %v13042
  %13200 = vmatprep.subr.bf16.mxu0 0
  %13201 = vmatpush2.bf16.msra.mxu0 %v13041
  %13202 = vmatprep.mubr.bf16.mxu0 %v12591
  %13203 = vmatmul.mubr.bf16.gmra.mxu0 %v12590
  %v13204 = vpop.f32.mrf.mxu0
  %v13205 = vadd.f32 %v12771, %v13204
  %v13206 = vpop.f32.mrf.mxu0
  %v13207 = vpop.f32.mrf.mxu0
  %v13208 = vpop.f32.mrf.mxu0
  %13209 = vdwg.mxu0
  %13210 = vmatprep.subr.bf16.mxu0 0
  %13211 = vmatpush1.bf16.msra.mxu0 %v13056
  %13212 = vmatprep.subr.bf16.mxu0 0
  %13213 = vmatpush1.bf16.msra.mxu0 %v13055
  %13214 = vmatprep.subr.bf16.mxu0 0
  %13215 = vmatpush1.bf16.msra.mxu0 %v13054
  %13216 = vmatprep.subr.bf16.mxu0 0
  %13217 = vmatpush1.bf16.msra.mxu0 %v13053
  %13218 = vmatprep.subr.bf16.mxu0 0
  %13219 = vmatpush1.bf16.msra.mxu0 %v13052
  %13220 = vmatprep.subr.bf16.mxu0 0
  %13221 = vmatpush1.bf16.msra.mxu0 %v13051
  %13222 = vmatprep.subr.bf16.mxu0 0
  %13223 = vmatpush1.bf16.msra.mxu0 %v13050
  %13224 = vmatprep.subr.bf16.mxu0 0
  %13225 = vmatpush1.bf16.msra.mxu0 %v13049
  %13226 = vmatprep.subr.bf16.mxu0 0
  %13227 = vmatpush2.bf16.msra.mxu0 %v13064
  %13228 = vmatprep.subr.bf16.mxu0 0
  %13229 = vmatpush2.bf16.msra.mxu0 %v13063
  %13230 = vmatprep.subr.bf16.mxu0 0
  %13231 = vmatpush2.bf16.msra.mxu0 %v13062
  %13232 = vmatprep.subr.bf16.mxu0 0
  %13233 = vmatpush2.bf16.msra.mxu0 %v13061
  %13234 = vmatprep.subr.bf16.mxu0 0
  %13235 = vmatpush2.bf16.msra.mxu0 %v13060
  %13236 = vmatprep.subr.bf16.mxu0 0
  %13237 = vmatpush2.bf16.msra.mxu0 %v13059
  %13238 = vmatprep.subr.bf16.mxu0 0
  %13239 = vmatpush2.bf16.msra.mxu0 %v13058
  %13240 = vmatprep.subr.bf16.mxu0 0
  %13241 = vmatpush2.bf16.msra.mxu0 %v13057
  %13242 = vmatprep.mubr.bf16.mxu0 %v12605
  %13243 = vmatmul.mubr.bf16.gmra.mxu0 %v12604
  %v13244 = vpop.f32.mrf.mxu0
  %v13245 = vadd.f32 %v13205, %v13244
  %v13246 = vpop.f32.mrf.mxu0
  %v13247 = vpop.f32.mrf.mxu0
  %v13248 = vpop.f32.mrf.mxu0
  %13249 = vdwg.mxu0
  %13250 = vmatprep.subr.bf16.mxu0 0
  %13251 = vmatpush1.bf16.msra.mxu0 %v13072
  %13252 = vmatprep.subr.bf16.mxu0 0
  %13253 = vmatpush1.bf16.msra.mxu0 %v13071
  %13254 = vmatprep.subr.bf16.mxu0 0
  %13255 = vmatpush1.bf16.msra.mxu0 %v13070
  %13256 = vmatprep.subr.bf16.mxu0 0
  %13257 = vmatpush1.bf16.msra.mxu0 %v13069
  %13258 = vmatprep.subr.bf16.mxu0 0
  %13259 = vmatpush1.bf16.msra.mxu0 %v13068
  %13260 = vmatprep.subr.bf16.mxu0 0
  %13261 = vmatpush1.bf16.msra.mxu0 %v13067
  %13262 = vmatprep.subr.bf16.mxu0 0
  %13263 = vmatpush1.bf16.msra.mxu0 %v13066
  %13264 = vmatprep.subr.bf16.mxu0 0
  %13265 = vmatpush1.bf16.msra.mxu0 %v13065
  %13266 = vmatprep.subr.bf16.mxu0 0
  %13267 = vmatpush2.bf16.msra.mxu0 %v13080
  %13268 = vmatprep.subr.bf16.mxu0 0
  %13269 = vmatpush2.bf16.msra.mxu0 %v13079
  %13270 = vmatprep.subr.bf16.mxu0 0
  %13271 = vmatpush2.bf16.msra.mxu0 %v13078
  %13272 = vmatprep.subr.bf16.mxu0 0
  %13273 = vmatpush2.bf16.msra.mxu0 %v13077
  %13274 = vmatprep.subr.bf16.mxu0 0
  %13275 = vmatpush2.bf16.msra.mxu0 %v13076
  %13276 = vmatprep.subr.bf16.mxu0 0
  %13277 = vmatpush2.bf16.msra.mxu0 %v13075
  %13278 = vmatprep.subr.bf16.mxu0 0
  %13279 = vmatpush2.bf16.msra.mxu0 %v13074
  %13280 = vmatprep.subr.bf16.mxu0 0
  %13281 = vmatpush2.bf16.msra.mxu0 %v13073
  %13282 = vmatprep.mubr.bf16.mxu0 %v12619
  %13283 = vmatmul.mubr.bf16.gmra.mxu0 %v12618
  %v13284 = vpop.f32.mrf.mxu0
  %v13285 = vadd.f32 %v13245, %v13284
  %v13286 = vpop.f32.mrf.mxu0
  %v13287 = vpop.f32.mrf.mxu0
  %v13288 = vpop.f32.mrf.mxu0
  %13289 = vdwg.mxu0
  %13290 = vmatprep.subr.bf16.mxu0 0
  %13291 = vmatpush1.bf16.msra.mxu0 %v13088
  %13292 = vmatprep.subr.bf16.mxu0 0
  %13293 = vmatpush1.bf16.msra.mxu0 %v13087
  %13294 = vmatprep.subr.bf16.mxu0 0
  %13295 = vmatpush1.bf16.msra.mxu0 %v13086
  %13296 = vmatprep.subr.bf16.mxu0 0
  %13297 = vmatpush1.bf16.msra.mxu0 %v13085
  %13298 = vmatprep.subr.bf16.mxu0 0
  %13299 = vmatpush1.bf16.msra.mxu0 %v13084
  %13300 = vmatprep.subr.bf16.mxu0 0
  %13301 = vmatpush1.bf16.msra.mxu0 %v13083
  %13302 = vmatprep.subr.bf16.mxu0 0
  %13303 = vmatpush1.bf16.msra.mxu0 %v13082
  %13304 = vmatprep.subr.bf16.mxu0 0
  %13305 = vmatpush1.bf16.msra.mxu0 %v13081
  %13306 = vmatprep.subr.bf16.mxu0 0
  %13307 = vmatpush2.bf16.msra.mxu0 %v13096
  %13308 = vmatprep.subr.bf16.mxu0 0
  %13309 = vmatpush2.bf16.msra.mxu0 %v13095
  %13310 = vmatprep.subr.bf16.mxu0 0
  %13311 = vmatpush2.bf16.msra.mxu0 %v13094
  %13312 = vmatprep.subr.bf16.mxu0 0
  %13313 = vmatpush2.bf16.msra.mxu0 %v13093
  %13314 = vmatprep.subr.bf16.mxu0 0
  %13315 = vmatpush2.bf16.msra.mxu0 %v13092
  %13316 = vmatprep.subr.bf16.mxu0 0
  %13317 = vmatpush2.bf16.msra.mxu0 %v13091
  %13318 = vmatprep.subr.bf16.mxu0 0
  %13319 = vmatpush2.bf16.msra.mxu0 %v13090
  %13320 = vmatprep.subr.bf16.mxu0 0
  %13321 = vmatpush2.bf16.msra.mxu0 %v13089
  %13322 = vmatprep.mubr.bf16.mxu0 %v12633
  %13323 = vmatmul.mubr.bf16.gmra.mxu0 %v12632
  %v13324 = vpop.f32.mrf.mxu0
  %v13325 = vadd.f32 %v13285, %v13324
  %v13326 = vpop.f32.mrf.mxu0
  %v13327 = vpop.f32.mrf.mxu0
  %v13328 = vpop.f32.mrf.mxu0
  %13329 = vdwg.mxu0
  %13330 = vmatprep.subr.bf16.mxu0 0
  %13331 = vmatpush1.bf16.msra.mxu0 0
  %13332 = vmatprep.subr.bf16.mxu0 0
  %13333 = vmatpush1.bf16.msra.mxu0 0
  %13334 = vmatprep.subr.bf16.mxu0 0
  %13335 = vmatpush1.bf16.msra.mxu0 0
  %13336 = vmatprep.subr.bf16.mxu0 0
  %13337 = vmatpush1.bf16.msra.mxu0 0
  %13338 = vmatprep.subr.bf16.mxu0 0
  %13339 = vmatpush1.bf16.msra.mxu0 0
  %13340 = vmatprep.subr.bf16.mxu0 0
  %13341 = vmatpush1.bf16.msra.mxu0 0
  %13342 = vmatprep.subr.bf16.mxu0 0
  %13343 = vmatpush1.bf16.msra.mxu0 0
  %13344 = vmatprep.subr.bf16.mxu0 0
  %13345 = vmatpush1.bf16.msra.mxu0 %v13168
  %13346 = vmatprep.subr.bf16.mxu0 0
  %13347 = vmatpush2.bf16.msra.mxu0 0
  %13348 = vmatprep.subr.bf16.mxu0 0
  %13349 = vmatpush2.bf16.msra.mxu0 0
  %13350 = vmatprep.subr.bf16.mxu0 0
  %13351 = vmatpush2.bf16.msra.mxu0 0
  %13352 = vmatprep.subr.bf16.mxu0 0
  %13353 = vmatpush2.bf16.msra.mxu0 0
  %13354 = vmatprep.subr.bf16.mxu0 0
  %13355 = vmatpush2.bf16.msra.mxu0 0
  %13356 = vmatprep.subr.bf16.mxu0 0
  %13357 = vmatpush2.bf16.msra.mxu0 0
  %13358 = vmatprep.subr.bf16.mxu0 0
  %13359 = vmatpush2.bf16.msra.mxu0 0
  %13360 = vmatprep.subr.bf16.mxu0 0
  %13361 = vmatpush2.bf16.msra.mxu0 0
  %13362 = vmatprep.mubr.bf16.mxu0 0
  %13363 = vmatmul.mubr.bf16.gmra.mxu0 %v13164
  %v13364 = vpop.f32.mrf.mxu0
  %v13365 = vadd.f32 %v13325, %v13364
  %v13366 = vpop.f32.mrf.mxu0
  %v13367 = vpop.f32.mrf.mxu0
  %v13368 = vpop.f32.mrf.mxu0
  %13369 = vdwg.mxu0
  %vm13370 = vcmask 254976
  %13371 = vst.msk [vmem:[%s12] sm:$0x3] %vm13370, %v13365
  // Predicated region
  $region50: #{conv_encoder_forward.1} parent=0 // pred_check
    _
  $region51: #{conv_encoder_forward.1} parent=0 // pred_check_branch
    %13373 = sbr.rel (0) target = $region53
  $region52: #{conv_encoder_forward.1} parent=0 // pred_region
    _
  $region53: #{conv_encoder_forward.1} parent=0 // pred_fallthru
    _
  // Predicated region
  $region54: #{conv_encoder_forward.1} parent=0 // pred_check
    _
  $region55: #{conv_encoder_forward.1} parent=0 // pred_check_branch
    %13375 = sbr.rel (0) target = $region57
  $region56: #{conv_encoder_forward.1} parent=0 // pred_region
    _
  $region57: #{conv_encoder_forward.1} parent=0 // pred_fallthru
    _

</llo_original>
